<compile_context>
chip_gen: v7x
topology: tpu7x:2x2x1
jax: 0.10.0
libtpu: 0.0.40
codegen_flags: <defaults>
</compile_context>

<pallas_src>
import jax
import jax.numpy as jnp
from jax.experimental import pallas as pl
from jax.experimental.pallas import tpu as pltpu

NEG_SLOPE = 0.01  # nn.LeakyReLU default negative_slope

CONV_DIMS = [(1, 2), (2, 4), (4, 8)]                       # (Cin, Cout)
MLP_DIMS = [(1352, 1024), (1024, 256), (256, 64),
            (64, 16), (16, 4), (4, 3)]                     # (fan_in, fan_out)
VMEM_LIMIT = 32 * 1024 * 1024                              # safe on v5e/v6e/v7x


def _round_up(n, m):
    return (n + m - 1) // m * m


MLP_K1_PAD = _round_up(MLP_DIMS[0][0], 128)                # 1352 -> 1408


def _out_size(n):  # conv k=3, s=2, p=1
    return (n + 2 - 3) // 2 + 1


# ------------------------------ Pallas kernels ------------------------------ #
def _conv_kernel(p_ref, w_ref, b_ref, o_ref):
    """Lane-dense conv-as-matmul: bf16 (8, Kp) @ (Kp, Npix_pad), f32 accumulate,
    f32 bias + LeakyReLU.  Output last dim is 2560/640/256 lanes (unmasked stores)."""
    y = jnp.dot(w_ref[...], p_ref[...], preferred_element_type=jnp.float32)
    y = y + b_ref[...]                       # (8, 1) f32 broadcasts over lanes
    o_ref[...] = jnp.where(y >= 0, y, NEG_SLOPE * y)


def _mlp_kernel(x_ref, w1, w2, w3, w4, w5, w6,
                b1, b2, b3, b4, b5, b6, o_ref):
    """All six Linear(+LeakyReLU) layers fused in one kernel; weights are bf16,
    accumulation and all elementwise math stay f32 (v5e-friendly)."""
    def layer(h, w_ref, b_ref, act):
        y = jnp.dot(h.astype(jnp.bfloat16), w_ref[...],
                    preferred_element_type=jnp.float32)
        y = y + b_ref[...]
        if act:
            y = jnp.where(y >= 0, y, NEG_SLOPE * y)
        return y

    h = x_ref[...]                           # (1, 1408) f32
    h = layer(h, w1, b1, True)
    h = layer(h, w2, b2, True)
    h = layer(h, w3, b3, True)
    h = layer(h, w4, b4, True)
    h = layer(h, w5, b5, True)               # tiny tail layers ride inside the fused kernel
    o_ref[...] = layer(h, w6, b6, False)     # fcn6: no activation


# ------------------------------ conv wrapper -------------------------------- #
def conv_lrelu(x_chw, w_pad, b_pad, c_out):
    """Conv2d(k=3,s=2,p=1)+LeakyReLU.  im2col via one conv_general_dilated_patches
    call (XLA glue, KB-scale), matmul in Pallas.  Output layout (Cout, Ho, Wo) so the
    final Flatten(0,2) is a free row-major reshape."""
    C, H, W = x_chw.shape
    Ho, Wo = _out_size(H), _out_size(W)
    n_pix = Ho * Wo
    n_pad = _round_up(n_pix, 128)
    k = C * 9
    k_pad = _round_up(k, 16)                 # bf16 sublane tile; was 128 before

    # Patch rows ordered (ci, kh, kw): channel slowest, then row-major filter taps —
    # identical to flattening the torch (Cout, Cin, 3, 3) weight to (Cout, Cin*9).
    patches = jax.lax.conv_general_dilated_patches(
        x_chw.astype(jnp.bfloat16)[None],                    # (1, C, H, W)
        filter_shape=(3, 3),
        window_strides=(2, 2),
        padding=((1, 1), (1, 1)),
    )                                                        # (1, C*9, Ho, Wo) bf16
    patches = patches.reshape(k, n_pix)
    patches = jnp.pad(patches, ((0, k_pad - k), (0, n_pad - n_pix)))

    y = pl.pallas_call(
        _conv_kernel,
        out_shape=jax.ShapeDtypeStruct((8, n_pad), jnp.float32),
        in_specs=[pl.BlockSpec(memory_space=pltpu.MemorySpace.VMEM)] * 3,
        out_specs=pl.BlockSpec(memory_space=pltpu.MemorySpace.VMEM),
        compiler_params=pltpu.CompilerParams(vmem_limit_bytes=VMEM_LIMIT),
    )(patches, w_pad, b_pad)
    # NOTE: padded pixel columns hold LeakyReLU(bias), padded channel rows hold 0;
    # both are sliced off here and never consumed.
    return y[:c_out, :n_pix].reshape(c_out, Ho, Wo)


# -------------------------------- forward ----------------------------------- #
def simple_net_forward(x_chw, p):
    x = conv_lrelu(x_chw, p["c1_w"], p["c1_b"], 2)          # (2, 50, 50)
    x = conv_lrelu(x, p["c2_w"], p["c2_b"], 4)              # (4, 25, 25)
    x = conv_lrelu(x, p["c3_w"], p["c3_b"], 8)              # (8, 13, 13)

    # nn.Flatten(0, 2) on (C, H, W) == row-major ravel of the lane-dense layout.
    feat = x.reshape(1, 8 * 13 * 13)                        # (1, 1352)
    feat = jnp.pad(feat, ((0, 0), (0, MLP_K1_PAD - 8 * 13 * 13)))  # (1, 1408)

    out = pl.pallas_call(
        _mlp_kernel,
        out_shape=jax.ShapeDtypeStruct((1, 128), jnp.float32),
        in_specs=[pl.BlockSpec(memory_space=pltpu.MemorySpace.VMEM)] * 13,
        out_specs=pl.BlockSpec(memory_space=pltpu.MemorySpace.VMEM),
        compiler_params=pltpu.CompilerParams(vmem_limit_bytes=VMEM_LIMIT),
    )(feat,
      p["f1_w"], p["f2_w"], p["f3_w"], p["f4_w"], p["f5_w"], p["f6_w"],
      p["f1_b"], p["f2_b"], p["f3_b"], p["f4_b"], p["f5_b"], p["f6_b"])
    return out[0, :3]


# ------------------------ deterministic parameters -------------------------- #
def init_params(key):
    """torch-default uniform(-1/sqrt(fan_in), 1/sqrt(fan_in)) init, torch layouts."""
    def uniform(k, shape, fan_in):
        bound = 1.0 / (fan_in ** 0.5)
        return jax.random.uniform(k, shape, jnp.float32, -bound, bound)

    keys = jax.random.split(key, 18)
    raw = {}
    i = 0
    for idx, (cin, cout) in enumerate(CONV_DIMS, start=1):
        fan = cin * 9
        raw[f"c{idx}_w"] = uniform(keys[i], (cout, cin, 3, 3), fan); i += 1
        raw[f"c{idx}_b"] = uniform(keys[i], (cout,), fan); i += 1
    for idx, (fin, fout) in enumerate(MLP_DIMS, start=1):
        raw[f"f{idx}_w"] = uniform(keys[i], (fout, fin), fin); i += 1
        raw[f"f{idx}_b"] = uniform(keys[i], (fout,), fin); i += 1
    return raw


def prepare_params(raw):
    """One-time layout prep (outside the jitted forward):
    convs  -> bf16 (8, Kp) lane-dense matmul operands (Kp = 16/32/48) + (8, 1) f32 bias;
    linears-> transposed (K, N), zero-padded to 128-multiples, cast to bf16;
    biases stay f32 as (1, N_pad)."""
    p = {}
    for idx, (cin, cout) in enumerate(CONV_DIMS, start=1):
        k = cin * 9
        kp = _round_up(k, 16)
        w = raw[f"c{idx}_w"].reshape(cout, k)               # torch (Cout,Cin,kh,kw) flatten
        p[f"c{idx}_w"] = jnp.pad(w, ((0, 8 - cout), (0, kp - k))).astype(jnp.bfloat16)
        p[f"c{idx}_b"] = jnp.pad(raw[f"c{idx}_b"], (0, 8 - cout)).reshape(8, 1)
    for idx, (fin, fout) in enumerate(MLP_DIMS, start=1):
        kp = _round_up(fin, 128)
        npad = _round_up(fout, 128)
        w = raw[f"f{idx}_w"].T                              # (K, N)
        w = jnp.pad(w, ((0, kp - fin), (0, npad - fout)))
        p[f"f{idx}_w"] = w.astype(jnp.bfloat16)
        p[f"f{idx}_b"] = jnp.pad(raw[f"f{idx}_b"], (0, npad - fout)).reshape(1, npad)
    return p


if __name__ == "__main__":
    root = jax.random.PRNGKey(0)
    k_in, k_params = jax.random.split(root)
    # Input shape implied by the module: (C=1, H=100, W=100) -> 8*13*13 = 1352 features.
    x = jax.random.normal(k_in, (1, 100, 100), dtype=jnp.float32)
    params = prepare_params(init_params(k_params))          # done once, eagerly

    fwd = jax.jit(simple_net_forward)
    out = jax.block_until_ready(fwd(x, params))
    assert out.shape == (3,) and out.dtype == jnp.float32
    print("KERNEL_OK")
</pallas_src>

<mosaic_0001>
module attributes {stable_mosaic.version = 11 : i64} {
  func.func @_conv_kernel(%arg0: memref<16x2560xbf16, #tpu.memory_space<vmem>>, %arg1: memref<8x16xbf16, #tpu.memory_space<vmem>>, %arg2: memref<8x1xf32, #tpu.memory_space<vmem>>, %arg3: memref<8x2560xf32, #tpu.memory_space<vmem>>) attributes {dimension_semantics = [], scalar_prefetch = 0 : i64, scratch_operands = 0 : i64, tpu.core_type = #tpu.core_type<tc>} {
    %c0 = arith.constant 0 : index
    %c0_0 = arith.constant 0 : index
    %0 = vector.load %arg1[%c0, %c0_0] : memref<8x16xbf16, #tpu.memory_space<vmem>>, vector<8x16xbf16>
    %c0_1 = arith.constant 0 : index
    %c0_2 = arith.constant 0 : index
    %1 = vector.load %arg0[%c0_1, %c0_2] : memref<16x2560xbf16, #tpu.memory_space<vmem>>, vector<16x2560xbf16>
    %cst = arith.constant dense<0.000000e+00> : vector<8x2560xf32>
    %2 = tpu.matmul %0, %1, %cst {dimension_numbers = #tpu.dot_dimension_numbers<[1], [0], [0], [1], [0, 0, 1, 1], [], []>} : vector<8x16xbf16>, vector<16x2560xbf16>, vector<8x2560xf32> -> vector<8x2560xf32>
    %c0_3 = arith.constant 0 : index
    %c0_4 = arith.constant 0 : index
    %3 = vector.load %arg2[%c0_3, %c0_4] : memref<8x1xf32, #tpu.memory_space<vmem>>, vector<8x1xf32>
    %4 = vector.broadcast %3 : vector<8x1xf32> to vector<8x2560xf32>
    %5 = arith.addf %2, %4 : vector<8x2560xf32>
    %cst_5 = arith.constant 0.000000e+00 : f32
    %6 = vector.broadcast %cst_5 : f32 to vector<8x2560xf32>
    %7 = arith.cmpf oge, %5, %6 : vector<8x2560xf32>
    %cst_6 = arith.constant 0.00999999977 : f32
    %8 = vector.broadcast %cst_6 : f32 to vector<8x2560xf32>
    %9 = arith.mulf %8, %5 : vector<8x2560xf32>
    %10 = arith.select %7, %5, %9 : vector<8x2560xi1>, vector<8x2560xf32>
    %c0_7 = arith.constant 0 : index
    %c0_8 = arith.constant 0 : index
    %11 = vector.load %arg3[%c0_7, %c0_8] : memref<8x2560xf32, #tpu.memory_space<vmem>>, vector<8x2560xf32>
    tpu.vector_store %arg3[%c0_7, %c0_8], %10 {strides = array<i32>} : memref<8x2560xf32, #tpu.memory_space<vmem>>, vector<8x2560xf32>,
    return
  }
}

module attributes {stable_mosaic.version = 11 : i64} {
  func.func @_conv_kernel(%arg0: memref<32x640xbf16, #tpu.memory_space<vmem>>, %arg1: memref<8x32xbf16, #tpu.memory_space<vmem>>, %arg2: memref<8x1xf32, #tpu.memory_space<vmem>>, %arg3: memref<8x640xf32, #tpu.memory_space<vmem>>) attributes {dimension_semantics = [], scalar_prefetch = 0 : i64, scratch_operands = 0 : i64, tpu.core_type = #tpu.core_type<tc>} {
    %c0 = arith.constant 0 : index
    %c0_0 = arith.constant 0 : index
    %0 = vector.load %arg1[%c0, %c0_0] : memref<8x32xbf16, #tpu.memory_space<vmem>>, vector<8x32xbf16>
    %c0_1 = arith.constant 0 : index
    %c0_2 = arith.constant 0 : index
    %1 = vector.load %arg0[%c0_1, %c0_2] : memref<32x640xbf16, #tpu.memory_space<vmem>>, vector<32x640xbf16>
    %cst = arith.constant dense<0.000000e+00> : vector<8x640xf32>
    %2 = tpu.matmul %0, %1, %cst {dimension_numbers = #tpu.dot_dimension_numbers<[1], [0], [0], [1], [0, 0, 1, 1], [], []>} : vector<8x32xbf16>, vector<32x640xbf16>, vector<8x640xf32> -> vector<8x640xf32>
    %c0_3 = arith.constant 0 : index
    %c0_4 = arith.constant 0 : index
    %3 = vector.load %arg2[%c0_3, %c0_4] : memref<8x1xf32, #tpu.memory_space<vmem>>, vector<8x1xf32>
    %4 = vector.broadcast %3 : vector<8x1xf32> to vector<8x640xf32>
    %5 = arith.addf %2, %4 : vector<8x640xf32>
    %cst_5 = arith.constant 0.000000e+00 : f32
    %6 = vector.broadcast %cst_5 : f32 to vector<8x640xf32>
    %7 = arith.cmpf oge, %5, %6 : vector<8x640xf32>
    %cst_6 = arith.constant 0.00999999977 : f32
    %8 = vector.broadcast %cst_6 : f32 to vector<8x640xf32>
    %9 = arith.mulf %8, %5 : vector<8x640xf32>
    %10 = arith.select %7, %5, %9 : vector<8x640xi1>, vector<8x640xf32>
    %c0_7 = arith.constant 0 : index
    %c0_8 = arith.constant 0 : index
    %11 = vector.load %arg3[%c0_7, %c0_8] : memref<8x640xf32, #tpu.memory_space<vmem>>, vector<8x640xf32>
    tpu.vector_store %arg3[%c0_7, %c0_8], %10 {strides = array<i32>} : memref<8x640xf32, #tpu.memory_space<vmem>>, vector<8x640xf32>,
    return
  }
}

module attributes {stable_mosaic.version = 11 : i64} {
  func.func @_conv_kernel(%arg0: memref<48x256xbf16, #tpu.memory_space<vmem>>, %arg1: memref<8x48xbf16, #tpu.memory_space<vmem>>, %arg2: memref<8x1xf32, #tpu.memory_space<vmem>>, %arg3: memref<8x256xf32, #tpu.memory_space<vmem>>) attributes {dimension_semantics = [], scalar_prefetch = 0 : i64, scratch_operands = 0 : i64, tpu.core_type = #tpu.core_type<tc>} {
    %c0 = arith.constant 0 : index
    %c0_0 = arith.constant 0 : index
    %0 = vector.load %arg1[%c0, %c0_0] : memref<8x48xbf16, #tpu.memory_space<vmem>>, vector<8x48xbf16>
    %c0_1 = arith.constant 0 : index
    %c0_2 = arith.constant 0 : index
    %1 = vector.load %arg0[%c0_1, %c0_2] : memref<48x256xbf16, #tpu.memory_space<vmem>>, vector<48x256xbf16>
    %cst = arith.constant dense<0.000000e+00> : vector<8x256xf32>
    %2 = tpu.matmul %0, %1, %cst {dimension_numbers = #tpu.dot_dimension_numbers<[1], [0], [0], [1], [0, 0, 1, 1], [], []>} : vector<8x48xbf16>, vector<48x256xbf16>, vector<8x256xf32> -> vector<8x256xf32>
    %c0_3 = arith.constant 0 : index
    %c0_4 = arith.constant 0 : index
    %3 = vector.load %arg2[%c0_3, %c0_4] : memref<8x1xf32, #tpu.memory_space<vmem>>, vector<8x1xf32>
    %4 = vector.broadcast %3 : vector<8x1xf32> to vector<8x256xf32>
    %5 = arith.addf %2, %4 : vector<8x256xf32>
    %cst_5 = arith.constant 0.000000e+00 : f32
    %6 = vector.broadcast %cst_5 : f32 to vector<8x256xf32>
    %7 = arith.cmpf oge, %5, %6 : vector<8x256xf32>
    %cst_6 = arith.constant 0.00999999977 : f32
    %8 = vector.broadcast %cst_6 : f32 to vector<8x256xf32>
    %9 = arith.mulf %8, %5 : vector<8x256xf32>
    %10 = arith.select %7, %5, %9 : vector<8x256xi1>, vector<8x256xf32>
    %c0_7 = arith.constant 0 : index
    %c0_8 = arith.constant 0 : index
    %11 = vector.load %arg3[%c0_7, %c0_8] : memref<8x256xf32, #tpu.memory_space<vmem>>, vector<8x256xf32>
    tpu.vector_store %arg3[%c0_7, %c0_8], %10 {strides = array<i32>} : memref<8x256xf32, #tpu.memory_space<vmem>>, vector<8x256xf32>,
    return
  }
}

module attributes {stable_mosaic.version = 11 : i64} {
  func.func @_mlp_kernel(%arg0: memref<1x1408xf32, #tpu.memory_space<vmem>>, %arg1: memref<1408x1024xbf16, #tpu.memory_space<vmem>>, %arg2: memref<1024x256xbf16, #tpu.memory_space<vmem>>, %arg3: memref<256x128xbf16, #tpu.memory_space<vmem>>, %arg4: memref<128x128xbf16, #tpu.memory_space<vmem>>, %arg5: memref<128x128xbf16, #tpu.memory_space<vmem>>, %arg6: memref<128x128xbf16, #tpu.memory_space<vmem>>, %arg7: memref<1x1024xf32, #tpu.memory_space<vmem>>, %arg8: memref<1x256xf32, #tpu.memory_space<vmem>>, %arg9: memref<1x128xf32, #tpu.memory_space<vmem>>, %arg10: memref<1x128xf32, #tpu.memory_space<vmem>>, %arg11: memref<1x128xf32, #tpu.memory_space<vmem>>, %arg12: memref<1x128xf32, #tpu.memory_space<vmem>>, %arg13: memref<1x128xf32, #tpu.memory_space<vmem>>) attributes {dimension_semantics = [], scalar_prefetch = 0 : i64, scratch_operands = 0 : i64, tpu.core_type = #tpu.core_type<tc>} {
    %c0 = arith.constant 0 : index
    %c0_0 = arith.constant 0 : index
    %0 = vector.load %arg0[%c0, %c0_0] : memref<1x1408xf32, #tpu.memory_space<vmem>>, vector<1x1408xf32>
    %1 = arith.truncf %0 : vector<1x1408xf32> to vector<1x1408xbf16>
    %c0_1 = arith.constant 0 : index
    %c0_2 = arith.constant 0 : index
    %2 = vector.load %arg1[%c0_1, %c0_2] : memref<1408x1024xbf16, #tpu.memory_space<vmem>>, vector<1408x1024xbf16>
    %cst = arith.constant dense<0.000000e+00> : vector<1x1024xf32>
    %3 = tpu.matmul %1, %2, %cst {dimension_numbers = #tpu.dot_dimension_numbers<[1], [0], [0], [1], [0, 0, 1, 1], [], []>} : vector<1x1408xbf16>, vector<1408x1024xbf16>, vector<1x1024xf32> -> vector<1x1024xf32>
    %c0_3 = arith.constant 0 : index
    %c0_4 = arith.constant 0 : index
    %4 = vector.load %arg7[%c0_3, %c0_4] : memref<1x1024xf32, #tpu.memory_space<vmem>>, vector<1x1024xf32>
    %5 = arith.addf %3, %4 : vector<1x1024xf32>
    %cst_5 = arith.constant 0.000000e+00 : f32
    %6 = vector.broadcast %cst_5 : f32 to vector<1x1024xf32>
    %7 = arith.cmpf oge, %5, %6 : vector<1x1024xf32>
    %cst_6 = arith.constant 0.00999999977 : f32
    %8 = vector.broadcast %cst_6 : f32 to vector<1x1024xf32>
    %9 = arith.mulf %8, %5 : vector<1x1024xf32>
    %10 = arith.select %7, %5, %9 : vector<1x1024xi1>, vector<1x1024xf32>
    %11 = arith.truncf %10 : vector<1x1024xf32> to vector<1x1024xbf16>
    %c0_7 = arith.constant 0 : index
    %c0_8 = arith.constant 0 : index
    %12 = vector.load %arg2[%c0_7, %c0_8] : memref<1024x256xbf16, #tpu.memory_space<vmem>>, vector<1024x256xbf16>
    %cst_9 = arith.constant dense<0.000000e+00> : vector<1x256xf32>
    %13 = tpu.matmul %11, %12, %cst_9 {dimension_numbers = #tpu.dot_dimension_numbers<[1], [0], [0], [1], [0, 0, 1, 1], [], []>} : vector<1x1024xbf16>, vector<1024x256xbf16>, vector<1x256xf32> -> vector<1x256xf32>
    %c0_10 = arith.constant 0 : index
    %c0_11 = arith.constant 0 : index
    %14 = vector.load %arg8[%c0_10, %c0_11] : memref<1x256xf32, #tpu.memory_space<vmem>>, vector<1x256xf32>
    %15 = arith.addf %13, %14 : vector<1x256xf32>
    %cst_12 = arith.constant 0.000000e+00 : f32
    %16 = vector.broadcast %cst_12 : f32 to vector<1x256xf32>
    %17 = arith.cmpf oge, %15, %16 : vector<1x256xf32>
    %cst_13 = arith.constant 0.00999999977 : f32
    %18 = vector.broadcast %cst_13 : f32 to vector<1x256xf32>
    %19 = arith.mulf %18, %15 : vector<1x256xf32>
    %20 = arith.select %17, %15, %19 : vector<1x256xi1>, vector<1x256xf32>
    %21 = arith.truncf %20 : vector<1x256xf32> to vector<1x256xbf16>
    %c0_14 = arith.constant 0 : index
    %c0_15 = arith.constant 0 : index
    %22 = vector.load %arg3[%c0_14, %c0_15] : memref<256x128xbf16, #tpu.memory_space<vmem>>, vector<256x128xbf16>
    %cst_16 = arith.constant dense<0.000000e+00> : vector<1x128xf32>
    %23 = tpu.matmul %21, %22, %cst_16 {dimension_numbers = #tpu.dot_dimension_numbers<[1], [0], [0], [1], [0, 0, 1, 1], [], []>} : vector<1x256xbf16>, vector<256x128xbf16>, vector<1x128xf32> -> vector<1x128xf32>
    %c0_17 = arith.constant 0 : index
    %c0_18 = arith.constant 0 : index
    %24 = vector.load %arg9[%c0_17, %c0_18] : memref<1x128xf32, #tpu.memory_space<vmem>>, vector<1x128xf32>
    %25 = arith.addf %23, %24 : vector<1x128xf32>
    %cst_19 = arith.constant 0.000000e+00 : f32
    %26 = vector.broadcast %cst_19 : f32 to vector<1x128xf32>
    %27 = arith.cmpf oge, %25, %26 : vector<1x128xf32>
    %cst_20 = arith.constant 0.00999999977 : f32
    %28 = vector.broadcast %cst_20 : f32 to vector<1x128xf32>
    %29 = arith.mulf %28, %25 : vector<1x128xf32>
    %30 = arith.select %27, %25, %29 : vector<1x128xi1>, vector<1x128xf32>
    %31 = arith.truncf %30 : vector<1x128xf32> to vector<1x128xbf16>
    %c0_21 = arith.constant 0 : index
    %c0_22 = arith.constant 0 : index
    %32 = vector.load %arg4[%c0_21, %c0_22] : memref<128x128xbf16, #tpu.memory_space<vmem>>, vector<128x128xbf16>
    %cst_23 = arith.constant dense<0.000000e+00> : vector<1x128xf32>
    %33 = tpu.matmul %31, %32, %cst_23 {dimension_numbers = #tpu.dot_dimension_numbers<[1], [0], [0], [1], [0, 0, 1, 1], [], []>} : vector<1x128xbf16>, vector<128x128xbf16>, vector<1x128xf32> -> vector<1x128xf32>
    %c0_24 = arith.constant 0 : index
    %c0_25 = arith.constant 0 : index
    %34 = vector.load %arg10[%c0_24, %c0_25] : memref<1x128xf32, #tpu.memory_space<vmem>>, vector<1x128xf32>
    %35 = arith.addf %33, %34 : vector<1x128xf32>
    %cst_26 = arith.constant 0.000000e+00 : f32
    %36 = vector.broadcast %cst_26 : f32 to vector<1x128xf32>
    %37 = arith.cmpf oge, %35, %36 : vector<1x128xf32>
    %cst_27 = arith.constant 0.00999999977 : f32
    %38 = vector.broadcast %cst_27 : f32 to vector<1x128xf32>
    %39 = arith.mulf %38, %35 : vector<1x128xf32>
    %40 = arith.select %37, %35, %39 : vector<1x128xi1>, vector<1x128xf32>
    %41 = arith.truncf %40 : vector<1x128xf32> to vector<1x128xbf16>
    %c0_28 = arith.constant 0 : index
    %c0_29 = arith.constant 0 : index
    %42 = vector.load %arg5[%c0_28, %c0_29] : memref<128x128xbf16, #tpu.memory_space<vmem>>, vector<128x128xbf16>
    %cst_30 = arith.constant dense<0.000000e+00> : vector<1x128xf32>
    %43 = tpu.matmul %41, %42, %cst_30 {dimension_numbers = #tpu.dot_dimension_numbers<[1], [0], [0], [1], [0, 0, 1, 1], [], []>} : vector<1x128xbf16>, vector<128x128xbf16>, vector<1x128xf32> -> vector<1x128xf32>
    %c0_31 = arith.constant 0 : index
    %c0_32 = arith.constant 0 : index
    %44 = vector.load %arg11[%c0_31, %c0_32] : memref<1x128xf32, #tpu.memory_space<vmem>>, vector<1x128xf32>
    %45 = arith.addf %43, %44 : vector<1x128xf32>
    %cst_33 = arith.constant 0.000000e+00 : f32
    %46 = vector.broadcast %cst_33 : f32 to vector<1x128xf32>
    %47 = arith.cmpf oge, %45, %46 : vector<1x128xf32>
    %cst_34 = arith.constant 0.00999999977 : f32
    %48 = vector.broadcast %cst_34 : f32 to vector<1x128xf32>
    %49 = arith.mulf %48, %45 : vector<1x128xf32>
    %50 = arith.select %47, %45, %49 : vector<1x128xi1>, vector<1x128xf32>
    %51 = arith.truncf %50 : vector<1x128xf32> to vector<1x128xbf16>
    %c0_35 = arith.constant 0 : index
    %c0_36 = arith.constant 0 : index
    %52 = vector.load %arg6[%c0_35, %c0_36] : memref<128x128xbf16, #tpu.memory_space<vmem>>, vector<128x128xbf16>
    %cst_37 = arith.constant dense<0.000000e+00> : vector<1x128xf32>
    %53 = tpu.matmul %51, %52, %cst_37 {dimension_numbers = #tpu.dot_dimension_numbers<[1], [0], [0], [1], [0, 0, 1, 1], [], []>} : vector<1x128xbf16>, vector<128x128xbf16>, vector<1x128xf32> -> vector<1x128xf32>
    %c0_38 = arith.constant 0 : index
    %c0_39 = arith.constant 0 : index
    %54 = vector.load %arg12[%c0_38, %c0_39] : memref<1x128xf32, #tpu.memory_space<vmem>>, vector<1x128xf32>
    %55 = arith.addf %53, %54 : vector<1x128xf32>
    %c0_40 = arith.constant 0 : index
    %c0_41 = arith.constant 0 : index
    %56 = vector.load %arg13[%c0_40, %c0_41] : memref<1x128xf32, #tpu.memory_space<vmem>>, vector<1x128xf32>
    tpu.vector_store %arg13[%c0_40, %c0_41], %55 {strides = array<i32>} : memref<1x128xf32, #tpu.memory_space<vmem>>, vector<1x128xf32>,
    return
  }
}

</mosaic_0001>

<llo_original>
// kernel: simple_net_forward.4
$region0: #{simple_net_forward.4}
  #allocation0 [shape = 'u32[]', space=smem, size = 0x4, offset = 0x4, fixed_abs, tag = 'smem constant byte address 0x4 - core index']
  #allocation1 [shape = 'u32[144,128]{1,0:T(1,128)}', space=vmem, size = 0x12000, scoped, tag = 'internal scratch']
  %s0 = inlined_call_operand.vmem [shape: bf16[16,2560], index: 0, kind: input, shape index: {}]
  %s1 = inlined_call_operand.vmem [shape: bf16[8,16], index: 1, kind: input, shape index: {}]
  %s2 = inlined_call_operand.vmem [shape: f32[8,1], index: 2, kind: input, shape index: {}]
  %s3 = inlined_call_operand.vmem [shape: f32[8,2560], index: 3, kind: output, shape index: {}]
  %s4 = sld [smem:[#allocation0]]
  $region22: #{simple_net_forward.4} parent=0
    _
  %s6 = ssub.s32 1, %s4
  %s7 = scalar_select 0, %s6, %s4
  // Predicated region
  $region2: #{simple_net_forward.4} parent=0 // pred_check
    _
  $region3: #{simple_net_forward.4} parent=0 // pred_check_branch
    %9 = sbr.rel (0) target = $region5
  $region4: #{simple_net_forward.4} parent=0 // pred_region
    _
  $region5: #{simple_net_forward.4} parent=0 // pred_fallthru
    _
  // Predicated region
  $region6: #{simple_net_forward.4} parent=0 // pred_check
    _
  $region7: #{simple_net_forward.4} parent=0 // pred_check_branch
    %11 = sbr.rel (0) target = $region9
  $region8: #{simple_net_forward.4} parent=0 // pred_region
    _
  $region9: #{simple_net_forward.4} parent=0 // pred_fallthru
    _
  // Predicated region
  $region10: #{simple_net_forward.4} parent=0 // pred_check
    _
  $region11: #{simple_net_forward.4} parent=0 // pred_check_branch
    %13 = sbr.rel (0) target = $region13
  $region12: #{simple_net_forward.4} parent=0 // pred_region
    _
  $region13: #{simple_net_forward.4} parent=0 // pred_fallthru
    _
  %v15 = vld [vmem:[%s1] sm:$0xf]
  %v16 = vld [vmem:[%s0] sm:$0xff]
  %v17 = vld [vmem:[%s0 + $0x8] sm:$0xff]
  %v18 = vld [vmem:[%s0 + $0x10] sm:$0xff]
  %v19 = vld [vmem:[%s0 + $0x18] sm:$0xff]
  %v20 = vld [vmem:[%s0 + $0x20] sm:$0xff]
  %v21 = vld [vmem:[%s0 + $0x28] sm:$0xff]
  %v22 = vld [vmem:[%s0 + $0x30] sm:$0xff]
  %v23 = vld [vmem:[%s0 + $0x38] sm:$0xff]
  %v24 = vld [vmem:[%s0 + $0x40] sm:$0xff]
  %v25 = vld [vmem:[%s0 + $0x48] sm:$0xff]
  %v26 = vld [vmem:[%s0 + $0x50] sm:$0xff]
  %v27 = vld [vmem:[%s0 + $0x58] sm:$0xff]
  %v28 = vld [vmem:[%s0 + $0x60] sm:$0xff]
  %v29 = vld [vmem:[%s0 + $0x68] sm:$0xff]
  %v30 = vld [vmem:[%s0 + $0x70] sm:$0xff]
  %v31 = vld [vmem:[%s0 + $0x78] sm:$0xff]
  %v32 = vld [vmem:[%s0 + $0x80] sm:$0xff]
  %v33 = vld [vmem:[%s0 + $0x88] sm:$0xff]
  %v34 = vld [vmem:[%s0 + $0x90] sm:$0xff]
  %v35 = vld [vmem:[%s0 + $0x98] sm:$0xff]
  %v36 = vld [vmem:[%s2] sm:$0xff]
  %38 = vset.pattern.permute.xlu0 0
  %39 = vperm.xlu0 %38, %v36
  %v40 = vpop.permute.xlu0 %39
  %v62 = vunpack.c.l.b16 %v16
  %v63 = vunpack.c.h.b16 %v16
  %v64 = vunpack.c.l.b16 %v17
  %v65 = vunpack.c.h.b16 %v17
  %v66 = vunpack.c.l.b16 %v18
  %v67 = vunpack.c.h.b16 %v18
  %v68 = vunpack.c.l.b16 %v19
  %v69 = vunpack.c.h.b16 %v19
  %v70 = vunpack.c.l.b16 %v20
  %v71 = vunpack.c.h.b16 %v20
  %v72 = vunpack.c.l.b16 %v21
  %v73 = vunpack.c.h.b16 %v21
  %v74 = vunpack.c.l.b16 %v22
  %v75 = vunpack.c.h.b16 %v22
  %v76 = vunpack.c.l.b16 %v23
  %v77 = vunpack.c.h.b16 %v23
  %v78 = vunpack.c.l.b16 %v24
  %v79 = vunpack.c.h.b16 %v24
  %v80 = vunpack.c.l.b16 %v25
  %v81 = vunpack.c.h.b16 %v25
  %v82 = vunpack.c.l.b16 %v26
  %v83 = vunpack.c.h.b16 %v26
  %v84 = vunpack.c.l.b16 %v27
  %v85 = vunpack.c.h.b16 %v27
  %v86 = vunpack.c.l.b16 %v28
  %v87 = vunpack.c.h.b16 %v28
  %v88 = vunpack.c.l.b16 %v29
  %v89 = vunpack.c.h.b16 %v29
  %v90 = vunpack.c.l.b16 %v30
  %v91 = vunpack.c.h.b16 %v30
  %v92 = vunpack.c.l.b16 %v31
  %v93 = vunpack.c.h.b16 %v31
  %v94 = vunpack.c.l.b16 %v32
  %v95 = vunpack.c.h.b16 %v32
  %v96 = vunpack.c.l.b16 %v33
  %v97 = vunpack.c.h.b16 %v33
  %v98 = vunpack.c.l.b16 %v34
  %v99 = vunpack.c.h.b16 %v34
  %v100 = vunpack.c.l.b16 %v35
  %v101 = vunpack.c.h.b16 %v35
  %v102 = vpack.c.b16 %v82, %v62
  %v103 = vpack.c.b16 %v83, %v63
  %v104 = vpack.c.b16 %v84, %v64
  %v105 = vpack.c.b16 %v85, %v65
  %v106 = vpack.c.b16 %v86, %v66
  %v107 = vpack.c.b16 %v87, %v67
  %v108 = vpack.c.b16 %v88, %v68
  %v109 = vpack.c.b16 %v89, %v69
  %v110 = vpack.c.b16 %v90, %v70
  %v111 = vpack.c.b16 %v91, %v71
  %v112 = vpack.c.b16 %v92, %v72
  %v113 = vpack.c.b16 %v93, %v73
  %v114 = vpack.c.b16 %v94, %v74
  %v115 = vpack.c.b16 %v95, %v75
  %v116 = vpack.c.b16 %v96, %v76
  %v117 = vpack.c.b16 %v97, %v77
  %v118 = vpack.c.b16 %v98, %v78
  %v119 = vpack.c.b16 %v99, %v79
  %v120 = vpack.c.b16 %v100, %v80
  %v121 = vpack.c.b16 %v101, %v81
  %vm142 = vcmask 130048
  %v144 = vsel %vm142, %v15, 0
  %146 = vmatprep.subr.bf16.mxu0 %v103
  %147 = vmatpush1.bf16.msra.mxu0 %v102
  %148 = vmatprep.subr.bf16.mxu0 0
  %149 = vmatpush1.bf16.msra.mxu0 0
  %150 = vmatprep.subr.bf16.mxu0 0
  %151 = vmatpush1.bf16.msra.mxu0 0
  %152 = vmatprep.subr.bf16.mxu0 0
  %153 = vmatpush1.bf16.msra.mxu0 0
  %154 = vmatprep.subr.bf16.mxu0 0
  %155 = vmatpush1.bf16.msra.mxu0 0
  %156 = vmatprep.subr.bf16.mxu0 0
  %157 = vmatpush1.bf16.msra.mxu0 0
  %158 = vmatprep.subr.bf16.mxu0 0
  %159 = vmatpush1.bf16.msra.mxu0 0
  %160 = vmatprep.subr.bf16.mxu0 0
  %161 = vmatpush1.bf16.msra.mxu0 0
  %162 = vmatprep.subr.bf16.mxu0 0
  %163 = vmatpush1.bf16.msra.mxu0 0
  %164 = vmatprep.subr.bf16.mxu0 0
  %165 = vmatpush1.bf16.msra.mxu0 0
  %166 = vmatprep.subr.bf16.mxu0 0
  %167 = vmatpush1.bf16.msra.mxu0 0
  %168 = vmatprep.subr.bf16.mxu0 0
  %169 = vmatpush1.bf16.msra.mxu0 0
  %170 = vmatprep.subr.bf16.mxu0 0
  %171 = vmatpush1.bf16.msra.mxu0 0
  %172 = vmatprep.subr.bf16.mxu0 0
  %173 = vmatpush1.bf16.msra.mxu0 0
  %174 = vmatprep.subr.bf16.mxu0 0
  %175 = vmatpush1.bf16.msra.mxu0 0
  %176 = vmatprep.subr.bf16.mxu0 0
  %177 = vmatpush1.bf16.msra.mxu0 0
  %178 = vmatprep.mubr.bf16.mxu0 0
  %179 = vmatmul.mubr.bf16.gmra.mrb[0].mxu0 %v144
  %v180 = vpop.f32.mrb[0].mxu0
  %v181 = vadd.f32 %v40, %v180
  %v182 = vpop.f32.mrb[0].mxu0
  %v183 = vadd.f32 %v40, %v182
  %v184 = vpop.f32.mrb[0].mxu0
  %v185 = vpop.f32.mrb[0].mxu0
  %186 = vdwg.mxu0
  %187 = vmatprep.subr.bf16.mxu0 %v105
  %188 = vmatpush1.bf16.msra.mxu0 %v104
  %189 = vmatprep.subr.bf16.mxu0 0
  %190 = vmatpush1.bf16.msra.mxu0 0
  %191 = vmatprep.subr.bf16.mxu0 0
  %192 = vmatpush1.bf16.msra.mxu0 0
  %193 = vmatprep.subr.bf16.mxu0 0
  %194 = vmatpush1.bf16.msra.mxu0 0
  %195 = vmatprep.subr.bf16.mxu0 0
  %196 = vmatpush1.bf16.msra.mxu0 0
  %197 = vmatprep.subr.bf16.mxu0 0
  %198 = vmatpush1.bf16.msra.mxu0 0
  %199 = vmatprep.subr.bf16.mxu0 0
  %200 = vmatpush1.bf16.msra.mxu0 0
  %201 = vmatprep.subr.bf16.mxu0 0
  %202 = vmatpush1.bf16.msra.mxu0 0
  %203 = vmatprep.subr.bf16.mxu0 0
  %204 = vmatpush1.bf16.msra.mxu0 0
  %205 = vmatprep.subr.bf16.mxu0 0
  %206 = vmatpush1.bf16.msra.mxu0 0
  %207 = vmatprep.subr.bf16.mxu0 0
  %208 = vmatpush1.bf16.msra.mxu0 0
  %209 = vmatprep.subr.bf16.mxu0 0
  %210 = vmatpush1.bf16.msra.mxu0 0
  %211 = vmatprep.subr.bf16.mxu0 0
  %212 = vmatpush1.bf16.msra.mxu0 0
  %213 = vmatprep.subr.bf16.mxu0 0
  %214 = vmatpush1.bf16.msra.mxu0 0
  %215 = vmatprep.subr.bf16.mxu0 0
  %216 = vmatpush1.bf16.msra.mxu0 0
  %217 = vmatprep.subr.bf16.mxu0 0
  %218 = vmatpush1.bf16.msra.mxu0 0
  %219 = vmatprep.mubr.bf16.mxu0 0
  %220 = vmatmul.mubr.bf16.gmra.mrb[0].mxu0 %v144
  %v221 = vpop.f32.mrb[0].mxu0
  %v222 = vadd.f32 %v40, %v221
  %v223 = vpop.f32.mrb[0].mxu0
  %v224 = vadd.f32 %v40, %v223
  %v225 = vpop.f32.mrb[0].mxu0
  %v226 = vpop.f32.mrb[0].mxu0
  %227 = vdwg.mxu0
  %228 = vmatprep.subr.bf16.mxu0 %v107
  %229 = vmatpush1.bf16.msra.mxu0 %v106
  %230 = vmatprep.subr.bf16.mxu0 0
  %231 = vmatpush1.bf16.msra.mxu0 0
  %232 = vmatprep.subr.bf16.mxu0 0
  %233 = vmatpush1.bf16.msra.mxu0 0
  %234 = vmatprep.subr.bf16.mxu0 0
  %235 = vmatpush1.bf16.msra.mxu0 0
  %236 = vmatprep.subr.bf16.mxu0 0
  %237 = vmatpush1.bf16.msra.mxu0 0
  %238 = vmatprep.subr.bf16.mxu0 0
  %239 = vmatpush1.bf16.msra.mxu0 0
  %240 = vmatprep.subr.bf16.mxu0 0
  %241 = vmatpush1.bf16.msra.mxu0 0
  %242 = vmatprep.subr.bf16.mxu0 0
  %243 = vmatpush1.bf16.msra.mxu0 0
  %244 = vmatprep.subr.bf16.mxu0 0
  %245 = vmatpush1.bf16.msra.mxu0 0
  %246 = vmatprep.subr.bf16.mxu0 0
  %247 = vmatpush1.bf16.msra.mxu0 0
  %248 = vmatprep.subr.bf16.mxu0 0
  %249 = vmatpush1.bf16.msra.mxu0 0
  %250 = vmatprep.subr.bf16.mxu0 0
  %251 = vmatpush1.bf16.msra.mxu0 0
  %252 = vmatprep.subr.bf16.mxu0 0
  %253 = vmatpush1.bf16.msra.mxu0 0
  %254 = vmatprep.subr.bf16.mxu0 0
  %255 = vmatpush1.bf16.msra.mxu0 0
  %256 = vmatprep.subr.bf16.mxu0 0
  %257 = vmatpush1.bf16.msra.mxu0 0
  %258 = vmatprep.subr.bf16.mxu0 0
  %259 = vmatpush1.bf16.msra.mxu0 0
  %260 = vmatprep.mubr.bf16.mxu0 0
  %261 = vmatmul.mubr.bf16.gmra.mrb[0].mxu0 %v144
  %v262 = vpop.f32.mrb[0].mxu0
  %v263 = vadd.f32 %v40, %v262
  %v264 = vpop.f32.mrb[0].mxu0
  %v265 = vadd.f32 %v40, %v264
  %v266 = vpop.f32.mrb[0].mxu0
  %v267 = vpop.f32.mrb[0].mxu0
  %268 = vdwg.mxu0
  %269 = vmatprep.subr.bf16.mxu0 %v109
  %270 = vmatpush1.bf16.msra.mxu0 %v108
  %271 = vmatprep.subr.bf16.mxu0 0
  %272 = vmatpush1.bf16.msra.mxu0 0
  %273 = vmatprep.subr.bf16.mxu0 0
  %274 = vmatpush1.bf16.msra.mxu0 0
  %275 = vmatprep.subr.bf16.mxu0 0
  %276 = vmatpush1.bf16.msra.mxu0 0
  %277 = vmatprep.subr.bf16.mxu0 0
  %278 = vmatpush1.bf16.msra.mxu0 0
  %279 = vmatprep.subr.bf16.mxu0 0
  %280 = vmatpush1.bf16.msra.mxu0 0
  %281 = vmatprep.subr.bf16.mxu0 0
  %282 = vmatpush1.bf16.msra.mxu0 0
  %283 = vmatprep.subr.bf16.mxu0 0
  %284 = vmatpush1.bf16.msra.mxu0 0
  %285 = vmatprep.subr.bf16.mxu0 0
  %286 = vmatpush1.bf16.msra.mxu0 0
  %287 = vmatprep.subr.bf16.mxu0 0
  %288 = vmatpush1.bf16.msra.mxu0 0
  %289 = vmatprep.subr.bf16.mxu0 0
  %290 = vmatpush1.bf16.msra.mxu0 0
  %291 = vmatprep.subr.bf16.mxu0 0
  %292 = vmatpush1.bf16.msra.mxu0 0
  %293 = vmatprep.subr.bf16.mxu0 0
  %294 = vmatpush1.bf16.msra.mxu0 0
  %295 = vmatprep.subr.bf16.mxu0 0
  %296 = vmatpush1.bf16.msra.mxu0 0
  %297 = vmatprep.subr.bf16.mxu0 0
  %298 = vmatpush1.bf16.msra.mxu0 0
  %299 = vmatprep.subr.bf16.mxu0 0
  %300 = vmatpush1.bf16.msra.mxu0 0
  %301 = vmatprep.mubr.bf16.mxu0 0
  %302 = vmatmul.mubr.bf16.gmra.mrb[0].mxu0 %v144
  %v303 = vpop.f32.mrb[0].mxu0
  %v304 = vadd.f32 %v40, %v303
  %v305 = vpop.f32.mrb[0].mxu0
  %v306 = vadd.f32 %v40, %v305
  %v307 = vpop.f32.mrb[0].mxu0
  %v308 = vpop.f32.mrb[0].mxu0
  %309 = vdwg.mxu0
  %310 = vmatprep.subr.bf16.mxu0 %v111
  %311 = vmatpush1.bf16.msra.mxu0 %v110
  %312 = vmatprep.subr.bf16.mxu0 0
  %313 = vmatpush1.bf16.msra.mxu0 0
  %314 = vmatprep.subr.bf16.mxu0 0
  %315 = vmatpush1.bf16.msra.mxu0 0
  %316 = vmatprep.subr.bf16.mxu0 0
  %317 = vmatpush1.bf16.msra.mxu0 0
  %318 = vmatprep.subr.bf16.mxu0 0
  %319 = vmatpush1.bf16.msra.mxu0 0
  %320 = vmatprep.subr.bf16.mxu0 0
  %321 = vmatpush1.bf16.msra.mxu0 0
  %322 = vmatprep.subr.bf16.mxu0 0
  %323 = vmatpush1.bf16.msra.mxu0 0
  %324 = vmatprep.subr.bf16.mxu0 0
  %325 = vmatpush1.bf16.msra.mxu0 0
  %326 = vmatprep.subr.bf16.mxu0 0
  %327 = vmatpush1.bf16.msra.mxu0 0
  %328 = vmatprep.subr.bf16.mxu0 0
  %329 = vmatpush1.bf16.msra.mxu0 0
  %330 = vmatprep.subr.bf16.mxu0 0
  %331 = vmatpush1.bf16.msra.mxu0 0
  %332 = vmatprep.subr.bf16.mxu0 0
  %333 = vmatpush1.bf16.msra.mxu0 0
  %334 = vmatprep.subr.bf16.mxu0 0
  %335 = vmatpush1.bf16.msra.mxu0 0
  %336 = vmatprep.subr.bf16.mxu0 0
  %337 = vmatpush1.bf16.msra.mxu0 0
  %338 = vmatprep.subr.bf16.mxu0 0
  %339 = vmatpush1.bf16.msra.mxu0 0
  %340 = vmatprep.subr.bf16.mxu0 0
  %341 = vmatpush1.bf16.msra.mxu0 0
  %342 = vmatprep.mubr.bf16.mxu0 0
  %343 = vmatmul.mubr.bf16.gmra.mrb[0].mxu0 %v144
  %v344 = vpop.f32.mrb[0].mxu0
  %v345 = vadd.f32 %v40, %v344
  %v346 = vpop.f32.mrb[0].mxu0
  %v347 = vadd.f32 %v40, %v346
  %v348 = vpop.f32.mrb[0].mxu0
  %v349 = vpop.f32.mrb[0].mxu0
  %350 = vdwg.mxu0
  %351 = vmatprep.subr.bf16.mxu0 %v113
  %352 = vmatpush1.bf16.msra.mxu0 %v112
  %353 = vmatprep.subr.bf16.mxu0 0
  %354 = vmatpush1.bf16.msra.mxu0 0
  %355 = vmatprep.subr.bf16.mxu0 0
  %356 = vmatpush1.bf16.msra.mxu0 0
  %357 = vmatprep.subr.bf16.mxu0 0
  %358 = vmatpush1.bf16.msra.mxu0 0
  %359 = vmatprep.subr.bf16.mxu0 0
  %360 = vmatpush1.bf16.msra.mxu0 0
  %361 = vmatprep.subr.bf16.mxu0 0
  %362 = vmatpush1.bf16.msra.mxu0 0
  %363 = vmatprep.subr.bf16.mxu0 0
  %364 = vmatpush1.bf16.msra.mxu0 0
  %365 = vmatprep.subr.bf16.mxu0 0
  %366 = vmatpush1.bf16.msra.mxu0 0
  %367 = vmatprep.subr.bf16.mxu0 0
  %368 = vmatpush1.bf16.msra.mxu0 0
  %369 = vmatprep.subr.bf16.mxu0 0
  %370 = vmatpush1.bf16.msra.mxu0 0
  %371 = vmatprep.subr.bf16.mxu0 0
  %372 = vmatpush1.bf16.msra.mxu0 0
  %373 = vmatprep.subr.bf16.mxu0 0
  %374 = vmatpush1.bf16.msra.mxu0 0
  %375 = vmatprep.subr.bf16.mxu0 0
  %376 = vmatpush1.bf16.msra.mxu0 0
  %377 = vmatprep.subr.bf16.mxu0 0
  %378 = vmatpush1.bf16.msra.mxu0 0
  %379 = vmatprep.subr.bf16.mxu0 0
  %380 = vmatpush1.bf16.msra.mxu0 0
  %381 = vmatprep.subr.bf16.mxu0 0
  %382 = vmatpush1.bf16.msra.mxu0 0
  %383 = vmatprep.mubr.bf16.mxu0 0
  %384 = vmatmul.mubr.bf16.gmra.mrb[0].mxu0 %v144
  %v385 = vpop.f32.mrb[0].mxu0
  %v386 = vadd.f32 %v40, %v385
  %v387 = vpop.f32.mrb[0].mxu0
  %v388 = vadd.f32 %v40, %v387
  %v389 = vpop.f32.mrb[0].mxu0
  %v390 = vpop.f32.mrb[0].mxu0
  %391 = vdwg.mxu0
  %392 = vmatprep.subr.bf16.mxu0 %v115
  %393 = vmatpush1.bf16.msra.mxu0 %v114
  %394 = vmatprep.subr.bf16.mxu0 0
  %395 = vmatpush1.bf16.msra.mxu0 0
  %396 = vmatprep.subr.bf16.mxu0 0
  %397 = vmatpush1.bf16.msra.mxu0 0
  %398 = vmatprep.subr.bf16.mxu0 0
  %399 = vmatpush1.bf16.msra.mxu0 0
  %400 = vmatprep.subr.bf16.mxu0 0
  %401 = vmatpush1.bf16.msra.mxu0 0
  %402 = vmatprep.subr.bf16.mxu0 0
  %403 = vmatpush1.bf16.msra.mxu0 0
  %404 = vmatprep.subr.bf16.mxu0 0
  %405 = vmatpush1.bf16.msra.mxu0 0
  %406 = vmatprep.subr.bf16.mxu0 0
  %407 = vmatpush1.bf16.msra.mxu0 0
  %408 = vmatprep.subr.bf16.mxu0 0
  %409 = vmatpush1.bf16.msra.mxu0 0
  %410 = vmatprep.subr.bf16.mxu0 0
  %411 = vmatpush1.bf16.msra.mxu0 0
  %412 = vmatprep.subr.bf16.mxu0 0
  %413 = vmatpush1.bf16.msra.mxu0 0
  %414 = vmatprep.subr.bf16.mxu0 0
  %415 = vmatpush1.bf16.msra.mxu0 0
  %416 = vmatprep.subr.bf16.mxu0 0
  %417 = vmatpush1.bf16.msra.mxu0 0
  %418 = vmatprep.subr.bf16.mxu0 0
  %419 = vmatpush1.bf16.msra.mxu0 0
  %420 = vmatprep.subr.bf16.mxu0 0
  %421 = vmatpush1.bf16.msra.mxu0 0
  %422 = vmatprep.subr.bf16.mxu0 0
  %423 = vmatpush1.bf16.msra.mxu0 0
  %424 = vmatprep.mubr.bf16.mxu0 0
  %425 = vmatmul.mubr.bf16.gmra.mrb[0].mxu0 %v144
  %v426 = vpop.f32.mrb[0].mxu0
  %v427 = vadd.f32 %v40, %v426
  %v428 = vpop.f32.mrb[0].mxu0
  %v429 = vadd.f32 %v40, %v428
  %v430 = vpop.f32.mrb[0].mxu0
  %v431 = vpop.f32.mrb[0].mxu0
  %432 = vdwg.mxu0
  %433 = vmatprep.subr.bf16.mxu0 %v117
  %434 = vmatpush1.bf16.msra.mxu0 %v116
  %435 = vmatprep.subr.bf16.mxu0 0
  %436 = vmatpush1.bf16.msra.mxu0 0
  %437 = vmatprep.subr.bf16.mxu0 0
  %438 = vmatpush1.bf16.msra.mxu0 0
  %439 = vmatprep.subr.bf16.mxu0 0
  %440 = vmatpush1.bf16.msra.mxu0 0
  %441 = vmatprep.subr.bf16.mxu0 0
  %442 = vmatpush1.bf16.msra.mxu0 0
  %443 = vmatprep.subr.bf16.mxu0 0
  %444 = vmatpush1.bf16.msra.mxu0 0
  %445 = vmatprep.subr.bf16.mxu0 0
  %446 = vmatpush1.bf16.msra.mxu0 0
  %447 = vmatprep.subr.bf16.mxu0 0
  %448 = vmatpush1.bf16.msra.mxu0 0
  %449 = vmatprep.subr.bf16.mxu0 0
  %450 = vmatpush1.bf16.msra.mxu0 0
  %451 = vmatprep.subr.bf16.mxu0 0
  %452 = vmatpush1.bf16.msra.mxu0 0
  %453 = vmatprep.subr.bf16.mxu0 0
  %454 = vmatpush1.bf16.msra.mxu0 0
  %455 = vmatprep.subr.bf16.mxu0 0
  %456 = vmatpush1.bf16.msra.mxu0 0
  %457 = vmatprep.subr.bf16.mxu0 0
  %458 = vmatpush1.bf16.msra.mxu0 0
  %459 = vmatprep.subr.bf16.mxu0 0
  %460 = vmatpush1.bf16.msra.mxu0 0
  %461 = vmatprep.subr.bf16.mxu0 0
  %462 = vmatpush1.bf16.msra.mxu0 0
  %463 = vmatprep.subr.bf16.mxu0 0
  %464 = vmatpush1.bf16.msra.mxu0 0
  %465 = vmatprep.mubr.bf16.mxu0 0
  %466 = vmatmul.mubr.bf16.gmra.mrb[0].mxu0 %v144
  %v467 = vpop.f32.mrb[0].mxu0
  %v468 = vadd.f32 %v40, %v467
  %v469 = vpop.f32.mrb[0].mxu0
  %v470 = vadd.f32 %v40, %v469
  %v471 = vpop.f32.mrb[0].mxu0
  %v472 = vpop.f32.mrb[0].mxu0
  %473 = vdwg.mxu0
  %474 = vmatprep.subr.bf16.mxu0 %v119
  %475 = vmatpush1.bf16.msra.mxu0 %v118
  %476 = vmatprep.subr.bf16.mxu0 0
  %477 = vmatpush1.bf16.msra.mxu0 0
  %478 = vmatprep.subr.bf16.mxu0 0
  %479 = vmatpush1.bf16.msra.mxu0 0
  %480 = vmatprep.subr.bf16.mxu0 0
  %481 = vmatpush1.bf16.msra.mxu0 0
  %482 = vmatprep.subr.bf16.mxu0 0
  %483 = vmatpush1.bf16.msra.mxu0 0
  %484 = vmatprep.subr.bf16.mxu0 0
  %485 = vmatpush1.bf16.msra.mxu0 0
  %486 = vmatprep.subr.bf16.mxu0 0
  %487 = vmatpush1.bf16.msra.mxu0 0
  %488 = vmatprep.subr.bf16.mxu0 0
  %489 = vmatpush1.bf16.msra.mxu0 0
  %490 = vmatprep.subr.bf16.mxu0 0
  %491 = vmatpush1.bf16.msra.mxu0 0
  %492 = vmatprep.subr.bf16.mxu0 0
  %493 = vmatpush1.bf16.msra.mxu0 0
  %494 = vmatprep.subr.bf16.mxu0 0
  %495 = vmatpush1.bf16.msra.mxu0 0
  %496 = vmatprep.subr.bf16.mxu0 0
  %497 = vmatpush1.bf16.msra.mxu0 0
  %498 = vmatprep.subr.bf16.mxu0 0
  %499 = vmatpush1.bf16.msra.mxu0 0
  %500 = vmatprep.subr.bf16.mxu0 0
  %501 = vmatpush1.bf16.msra.mxu0 0
  %502 = vmatprep.subr.bf16.mxu0 0
  %503 = vmatpush1.bf16.msra.mxu0 0
  %504 = vmatprep.subr.bf16.mxu0 0
  %505 = vmatpush1.bf16.msra.mxu0 0
  %506 = vmatprep.mubr.bf16.mxu0 0
  %507 = vmatmul.mubr.bf16.gmra.mrb[0].mxu0 %v144
  %v508 = vpop.f32.mrb[0].mxu0
  %v509 = vadd.f32 %v40, %v508
  %v510 = vpop.f32.mrb[0].mxu0
  %v511 = vadd.f32 %v40, %v510
  %v512 = vpop.f32.mrb[0].mxu0
  %v513 = vpop.f32.mrb[0].mxu0
  %514 = vdwg.mxu0
  %515 = vmatprep.subr.bf16.mxu0 %v121
  %516 = vmatpush1.bf16.msra.mxu0 %v120
  %517 = vmatprep.subr.bf16.mxu0 0
  %518 = vmatpush1.bf16.msra.mxu0 0
  %519 = vmatprep.subr.bf16.mxu0 0
  %520 = vmatpush1.bf16.msra.mxu0 0
  %521 = vmatprep.subr.bf16.mxu0 0
  %522 = vmatpush1.bf16.msra.mxu0 0
  %523 = vmatprep.subr.bf16.mxu0 0
  %524 = vmatpush1.bf16.msra.mxu0 0
  %525 = vmatprep.subr.bf16.mxu0 0
  %526 = vmatpush1.bf16.msra.mxu0 0
  %527 = vmatprep.subr.bf16.mxu0 0
  %528 = vmatpush1.bf16.msra.mxu0 0
  %529 = vmatprep.subr.bf16.mxu0 0
  %530 = vmatpush1.bf16.msra.mxu0 0
  %531 = vmatprep.subr.bf16.mxu0 0
  %532 = vmatpush1.bf16.msra.mxu0 0
  %533 = vmatprep.subr.bf16.mxu0 0
  %534 = vmatpush1.bf16.msra.mxu0 0
  %535 = vmatprep.subr.bf16.mxu0 0
  %536 = vmatpush1.bf16.msra.mxu0 0
  %537 = vmatprep.subr.bf16.mxu0 0
  %538 = vmatpush1.bf16.msra.mxu0 0
  %539 = vmatprep.subr.bf16.mxu0 0
  %540 = vmatpush1.bf16.msra.mxu0 0
  %541 = vmatprep.subr.bf16.mxu0 0
  %542 = vmatpush1.bf16.msra.mxu0 0
  %543 = vmatprep.subr.bf16.mxu0 0
  %544 = vmatpush1.bf16.msra.mxu0 0
  %545 = vmatprep.subr.bf16.mxu0 0
  %546 = vmatpush1.bf16.msra.mxu0 0
  %547 = vmatprep.mubr.bf16.mxu0 0
  %548 = vmatmul.mubr.bf16.gmra.mrb[0].mxu0 %v144
  %v549 = vpop.f32.mrb[0].mxu0
  %v550 = vadd.f32 %v40, %v549
  %v551 = vpop.f32.mrb[0].mxu0
  %v552 = vadd.f32 %v40, %v551
  %v553 = vpop.f32.mrb[0].mxu0
  %v554 = vpop.f32.mrb[0].mxu0
  %555 = vdwg.mxu0
  %vm556 = vcmp.ge.f32.partialorder %v181, 0.0
  %vm557 = vcmp.ge.f32.partialorder %v183, 0.0
  %vm558 = vcmp.ge.f32.partialorder %v222, 0.0
  %vm559 = vcmp.ge.f32.partialorder %v224, 0.0
  %vm560 = vcmp.ge.f32.partialorder %v263, 0.0
  %vm561 = vcmp.ge.f32.partialorder %v265, 0.0
  %vm562 = vcmp.ge.f32.partialorder %v304, 0.0
  %vm563 = vcmp.ge.f32.partialorder %v306, 0.0
  %vm564 = vcmp.ge.f32.partialorder %v345, 0.0
  %vm565 = vcmp.ge.f32.partialorder %v347, 0.0
  %vm566 = vcmp.ge.f32.partialorder %v386, 0.0
  %vm567 = vcmp.ge.f32.partialorder %v388, 0.0
  %vm568 = vcmp.ge.f32.partialorder %v427, 0.0
  %vm569 = vcmp.ge.f32.partialorder %v429, 0.0
  %vm570 = vcmp.ge.f32.partialorder %v468, 0.0
  %vm571 = vcmp.ge.f32.partialorder %v470, 0.0
  %vm572 = vcmp.ge.f32.partialorder %v509, 0.0
  %vm573 = vcmp.ge.f32.partialorder %v511, 0.0
  %vm574 = vcmp.ge.f32.partialorder %v550, 0.0
  %vm575 = vcmp.ge.f32.partialorder %v552, 0.0
  %v576 = vmul.f32 %v181, 0.01
  %v577 = vmul.f32 %v183, 0.01
  %v578 = vmul.f32 %v222, 0.01
  %v579 = vmul.f32 %v224, 0.01
  %v580 = vmul.f32 %v263, 0.01
  %v581 = vmul.f32 %v265, 0.01
  %v582 = vmul.f32 %v304, 0.01
  %v583 = vmul.f32 %v306, 0.01
  %v584 = vmul.f32 %v345, 0.01
  %v585 = vmul.f32 %v347, 0.01
  %v586 = vmul.f32 %v386, 0.01
  %v587 = vmul.f32 %v388, 0.01
  %v588 = vmul.f32 %v427, 0.01
  %v589 = vmul.f32 %v429, 0.01
  %v590 = vmul.f32 %v468, 0.01
  %v591 = vmul.f32 %v470, 0.01
  %v592 = vmul.f32 %v509, 0.01
  %v593 = vmul.f32 %v511, 0.01
  %v594 = vmul.f32 %v550, 0.01
  %v595 = vmul.f32 %v552, 0.01
  %v596 = vsel %vm556, %v181, %v576
  %v597 = vsel %vm557, %v183, %v577
  %v598 = vsel %vm558, %v222, %v578
  %v599 = vsel %vm559, %v224, %v579
  %v600 = vsel %vm560, %v263, %v580
  %v601 = vsel %vm561, %v265, %v581
  %v602 = vsel %vm562, %v304, %v582
  %v603 = vsel %vm563, %v306, %v583
  %v604 = vsel %vm564, %v345, %v584
  %v605 = vsel %vm565, %v347, %v585
  %v606 = vsel %vm566, %v386, %v586
  %v607 = vsel %vm567, %v388, %v587
  %v608 = vsel %vm568, %v427, %v588
  %v609 = vsel %vm569, %v429, %v589
  %v610 = vsel %vm570, %v468, %v590
  %v611 = vsel %vm571, %v470, %v591
  %v612 = vsel %vm572, %v509, %v592
  %v613 = vsel %vm573, %v511, %v593
  %v614 = vsel %vm574, %v550, %v594
  %v615 = vsel %vm575, %v552, %v595
  %616 = vst [vmem:[%s3] sm:$0xff] %v596
  %617 = vst [vmem:[%s3 + $0x8] sm:$0xff] %v597
  %618 = vst [vmem:[%s3 + $0x10] sm:$0xff] %v598
  %619 = vst [vmem:[%s3 + $0x18] sm:$0xff] %v599
  %620 = vst [vmem:[%s3 + $0x20] sm:$0xff] %v600
  %621 = vst [vmem:[%s3 + $0x28] sm:$0xff] %v601
  %622 = vst [vmem:[%s3 + $0x30] sm:$0xff] %v602
  %623 = vst [vmem:[%s3 + $0x38] sm:$0xff] %v603
  %624 = vst [vmem:[%s3 + $0x40] sm:$0xff] %v604
  %625 = vst [vmem:[%s3 + $0x48] sm:$0xff] %v605
  %626 = vst [vmem:[%s3 + $0x50] sm:$0xff] %v606
  %627 = vst [vmem:[%s3 + $0x58] sm:$0xff] %v607
  %628 = vst [vmem:[%s3 + $0x60] sm:$0xff] %v608
  %629 = vst [vmem:[%s3 + $0x68] sm:$0xff] %v609
  %630 = vst [vmem:[%s3 + $0x70] sm:$0xff] %v610
  %631 = vst [vmem:[%s3 + $0x78] sm:$0xff] %v611
  %632 = vst [vmem:[%s3 + $0x80] sm:$0xff] %v612
  %633 = vst [vmem:[%s3 + $0x88] sm:$0xff] %v613
  %634 = vst [vmem:[%s3 + $0x90] sm:$0xff] %v614
  %635 = vst [vmem:[%s3 + $0x98] sm:$0xff] %v615
  // Predicated region
  $region14: #{simple_net_forward.4} parent=0 // pred_check
    _
  $region15: #{simple_net_forward.4} parent=0 // pred_check_branch
    %637 = sbr.rel (0) target = $region17
  $region16: #{simple_net_forward.4} parent=0 // pred_region
    _
  $region17: #{simple_net_forward.4} parent=0 // pred_fallthru
    _
  // Predicated region
  $region18: #{simple_net_forward.4} parent=0 // pred_check
    _
  $region19: #{simple_net_forward.4} parent=0 // pred_check_branch
    %639 = sbr.rel (0) target = $region21
  $region20: #{simple_net_forward.4} parent=0 // pred_region
    _
  $region21: #{simple_net_forward.4} parent=0 // pred_fallthru
    _

// kernel: simple_net_forward.5
$region0: #{simple_net_forward.5}
  #allocation0 [shape = 'u32[]', space=smem, size = 0x4, offset = 0x4, fixed_abs, tag = 'smem constant byte address 0x4 - core index']
  #allocation1 [shape = 'u32[144,128]{1,0:T(1,128)}', space=vmem, size = 0x12000, scoped, tag = 'internal scratch']
  %s0 = inlined_call_operand.vmem [shape: bf16[32,640], index: 0, kind: input, shape index: {}]
  %s1 = inlined_call_operand.vmem [shape: bf16[8,32], index: 1, kind: input, shape index: {}]
  %s2 = inlined_call_operand.vmem [shape: f32[8,1], index: 2, kind: input, shape index: {}]
  %s3 = inlined_call_operand.vmem [shape: f32[8,640], index: 3, kind: output, shape index: {}]
  %s4 = sld [smem:[#allocation0]]
  $region22: #{simple_net_forward.5} parent=0
    _
  %s6 = ssub.s32 1, %s4
  %s7 = scalar_select 0, %s6, %s4
  // Predicated region
  $region2: #{simple_net_forward.5} parent=0 // pred_check
    _
  $region3: #{simple_net_forward.5} parent=0 // pred_check_branch
    %9 = sbr.rel (0) target = $region5
  $region4: #{simple_net_forward.5} parent=0 // pred_region
    _
  $region5: #{simple_net_forward.5} parent=0 // pred_fallthru
    _
  // Predicated region
  $region6: #{simple_net_forward.5} parent=0 // pred_check
    _
  $region7: #{simple_net_forward.5} parent=0 // pred_check_branch
    %11 = sbr.rel (0) target = $region9
  $region8: #{simple_net_forward.5} parent=0 // pred_region
    _
  $region9: #{simple_net_forward.5} parent=0 // pred_fallthru
    _
  // Predicated region
  $region10: #{simple_net_forward.5} parent=0 // pred_check
    _
  $region11: #{simple_net_forward.5} parent=0 // pred_check_branch
    %13 = sbr.rel (0) target = $region13
  $region12: #{simple_net_forward.5} parent=0 // pred_region
    _
  $region13: #{simple_net_forward.5} parent=0 // pred_fallthru
    _
  %v15 = vld [vmem:[%s1] sm:$0xf]
  %v16 = vld [vmem:[%s0] sm:$0xff]
  %v17 = vld [vmem:[%s0 + $0x8] sm:$0xff]
  %v18 = vld [vmem:[%s0 + $0x10] sm:$0xf]
  %v19 = vld [vmem:[%s0 + $0x14] sm:$0xff]
  %v20 = vld [vmem:[%s0 + $0x1c] sm:$0xff]
  %v21 = vld [vmem:[%s0 + $0x24] sm:$0xf]
  %v22 = vld [vmem:[%s0 + $0x28] sm:$0xff]
  %v23 = vld [vmem:[%s0 + $0x30] sm:$0xff]
  %v24 = vld [vmem:[%s0 + $0x38] sm:$0xf]
  %v25 = vld [vmem:[%s0 + $0x3c] sm:$0xff]
  %v26 = vld [vmem:[%s0 + $0x44] sm:$0xff]
  %v27 = vld [vmem:[%s0 + $0x4c] sm:$0xf]
  %v28 = vld [vmem:[%s2] sm:$0xff]
  %30 = vset.pattern.permute.xlu0 0
  %31 = vperm.xlu0 %30, %v28
  %v32 = vpop.permute.xlu0 %31
  %v46 = vunpack.c.l.b16 %v16
  %v47 = vunpack.c.h.b16 %v16
  %v48 = vunpack.c.l.b16 %v17
  %v49 = vunpack.c.h.b16 %v17
  %v50 = vunpack.c.l.b16 %v18
  %v51 = vunpack.c.l.b16 %v19
  %v52 = vunpack.c.h.b16 %v19
  %v53 = vunpack.c.l.b16 %v20
  %v54 = vunpack.c.h.b16 %v20
  %v55 = vunpack.c.l.b16 %v21
  %v56 = vunpack.c.l.b16 %v22
  %v57 = vunpack.c.h.b16 %v22
  %v58 = vunpack.c.l.b16 %v23
  %v59 = vunpack.c.h.b16 %v23
  %v60 = vunpack.c.l.b16 %v24
  %v61 = vunpack.c.l.b16 %v25
  %v62 = vunpack.c.h.b16 %v25
  %v63 = vunpack.c.l.b16 %v26
  %v64 = vunpack.c.h.b16 %v26
  %v65 = vunpack.c.l.b16 %v27
  %v66 = vpack.c.b16 %v51, %v46
  %v67 = vpack.c.b16 %v52, %v47
  %v68 = vpack.c.b16 %v53, %v48
  %v69 = vpack.c.b16 %v54, %v49
  %v70 = vpack.c.b16 %v55, %v50
  %v71 = vpack.c.b16 %v61, %v56
  %v72 = vpack.c.b16 %v62, %v57
  %v73 = vpack.c.b16 %v63, %v58
  %v74 = vpack.c.b16 %v64, %v59
  %v75 = vpack.c.b16 %v65, %v60
  %vm86 = vcmask 261120
  %v88 = vsel %vm86, %v15, 0
  %90 = vmatprep.subr.bf16.mxu0 %v67
  %91 = vmatpush1.bf16.msra.mxu0 %v66
  %92 = vmatprep.subr.bf16.mxu0 %v72
  %93 = vmatpush1.bf16.msra.mxu0 %v71
  %94 = vmatprep.subr.bf16.mxu0 0
  %95 = vmatpush1.bf16.msra.mxu0 0
  %96 = vmatprep.subr.bf16.mxu0 0
  %97 = vmatpush1.bf16.msra.mxu0 0
  %98 = vmatprep.subr.bf16.mxu0 0
  %99 = vmatpush1.bf16.msra.mxu0 0
  %100 = vmatprep.subr.bf16.mxu0 0
  %101 = vmatpush1.bf16.msra.mxu0 0
  %102 = vmatprep.subr.bf16.mxu0 0
  %103 = vmatpush1.bf16.msra.mxu0 0
  %104 = vmatprep.subr.bf16.mxu0 0
  %105 = vmatpush1.bf16.msra.mxu0 0
  %106 = vmatprep.subr.bf16.mxu0 0
  %107 = vmatpush1.bf16.msra.mxu0 0
  %108 = vmatprep.subr.bf16.mxu0 0
  %109 = vmatpush1.bf16.msra.mxu0 0
  %110 = vmatprep.subr.bf16.mxu0 0
  %111 = vmatpush1.bf16.msra.mxu0 0
  %112 = vmatprep.subr.bf16.mxu0 0
  %113 = vmatpush1.bf16.msra.mxu0 0
  %114 = vmatprep.subr.bf16.mxu0 0
  %115 = vmatpush1.bf16.msra.mxu0 0
  %116 = vmatprep.subr.bf16.mxu0 0
  %117 = vmatpush1.bf16.msra.mxu0 0
  %118 = vmatprep.subr.bf16.mxu0 0
  %119 = vmatpush1.bf16.msra.mxu0 0
  %120 = vmatprep.subr.bf16.mxu0 0
  %121 = vmatpush1.bf16.msra.mxu0 0
  %122 = vmatprep.mubr.bf16.mxu0 0
  %123 = vmatmul.mubr.bf16.gmra.mrb[0].mxu0 %v88
  %v124 = vpop.f32.mrb[0].mxu0
  %v125 = vadd.f32 %v32, %v124
  %v126 = vpop.f32.mrb[0].mxu0
  %v127 = vadd.f32 %v32, %v126
  %v128 = vpop.f32.mrb[0].mxu0
  %v129 = vpop.f32.mrb[0].mxu0
  %130 = vdwg.mxu0
  %131 = vmatprep.subr.bf16.mxu0 %v69
  %132 = vmatpush1.bf16.msra.mxu0 %v68
  %133 = vmatprep.subr.bf16.mxu0 %v74
  %134 = vmatpush1.bf16.msra.mxu0 %v73
  %135 = vmatprep.subr.bf16.mxu0 0
  %136 = vmatpush1.bf16.msra.mxu0 0
  %137 = vmatprep.subr.bf16.mxu0 0
  %138 = vmatpush1.bf16.msra.mxu0 0
  %139 = vmatprep.subr.bf16.mxu0 0
  %140 = vmatpush1.bf16.msra.mxu0 0
  %141 = vmatprep.subr.bf16.mxu0 0
  %142 = vmatpush1.bf16.msra.mxu0 0
  %143 = vmatprep.subr.bf16.mxu0 0
  %144 = vmatpush1.bf16.msra.mxu0 0
  %145 = vmatprep.subr.bf16.mxu0 0
  %146 = vmatpush1.bf16.msra.mxu0 0
  %147 = vmatprep.subr.bf16.mxu0 0
  %148 = vmatpush1.bf16.msra.mxu0 0
  %149 = vmatprep.subr.bf16.mxu0 0
  %150 = vmatpush1.bf16.msra.mxu0 0
  %151 = vmatprep.subr.bf16.mxu0 0
  %152 = vmatpush1.bf16.msra.mxu0 0
  %153 = vmatprep.subr.bf16.mxu0 0
  %154 = vmatpush1.bf16.msra.mxu0 0
  %155 = vmatprep.subr.bf16.mxu0 0
  %156 = vmatpush1.bf16.msra.mxu0 0
  %157 = vmatprep.subr.bf16.mxu0 0
  %158 = vmatpush1.bf16.msra.mxu0 0
  %159 = vmatprep.subr.bf16.mxu0 0
  %160 = vmatpush1.bf16.msra.mxu0 0
  %161 = vmatprep.subr.bf16.mxu0 0
  %162 = vmatpush1.bf16.msra.mxu0 0
  %163 = vmatprep.mubr.bf16.mxu0 0
  %164 = vmatmul.mubr.bf16.gmra.mrb[0].mxu0 %v88
  %v165 = vpop.f32.mrb[0].mxu0
  %v166 = vadd.f32 %v32, %v165
  %v167 = vpop.f32.mrb[0].mxu0
  %v168 = vadd.f32 %v32, %v167
  %v169 = vpop.f32.mrb[0].mxu0
  %v170 = vpop.f32.mrb[0].mxu0
  %171 = vdwg.mxu0
  %172 = vmatprep.subr.bf16.mxu0 0
  %173 = vmatpush1.bf16.msra.mxu0 %v70
  %174 = vmatprep.subr.bf16.mxu0 0
  %175 = vmatpush1.bf16.msra.mxu0 %v75
  %176 = vmatprep.subr.bf16.mxu0 0
  %177 = vmatpush1.bf16.msra.mxu0 0
  %178 = vmatprep.subr.bf16.mxu0 0
  %179 = vmatpush1.bf16.msra.mxu0 0
  %180 = vmatprep.subr.bf16.mxu0 0
  %181 = vmatpush1.bf16.msra.mxu0 0
  %182 = vmatprep.subr.bf16.mxu0 0
  %183 = vmatpush1.bf16.msra.mxu0 0
  %184 = vmatprep.subr.bf16.mxu0 0
  %185 = vmatpush1.bf16.msra.mxu0 0
  %186 = vmatprep.subr.bf16.mxu0 0
  %187 = vmatpush1.bf16.msra.mxu0 0
  %188 = vmatprep.subr.bf16.mxu0 0
  %189 = vmatpush1.bf16.msra.mxu0 0
  %190 = vmatprep.subr.bf16.mxu0 0
  %191 = vmatpush1.bf16.msra.mxu0 0
  %192 = vmatprep.subr.bf16.mxu0 0
  %193 = vmatpush1.bf16.msra.mxu0 0
  %194 = vmatprep.subr.bf16.mxu0 0
  %195 = vmatpush1.bf16.msra.mxu0 0
  %196 = vmatprep.subr.bf16.mxu0 0
  %197 = vmatpush1.bf16.msra.mxu0 0
  %198 = vmatprep.subr.bf16.mxu0 0
  %199 = vmatpush1.bf16.msra.mxu0 0
  %200 = vmatprep.subr.bf16.mxu0 0
  %201 = vmatpush1.bf16.msra.mxu0 0
  %202 = vmatprep.subr.bf16.mxu0 0
  %203 = vmatpush1.bf16.msra.mxu0 0
  %204 = vmatprep.mubr.bf16.mxu0 0
  %205 = vmatmul.mubr.bf16.gmra.mrb[0].mxu0 %v88
  %v206 = vpop.f32.mrb[0].mxu0
  %v207 = vadd.f32 %v32, %v206
  %v208 = vpop.f32.mrb[0].mxu0
  %v209 = vpop.f32.mrb[0].mxu0
  %v210 = vpop.f32.mrb[0].mxu0
  %211 = vdwg.mxu0
  %vm212 = vcmp.ge.f32.partialorder %v125, 0.0
  %vm213 = vcmp.ge.f32.partialorder %v127, 0.0
  %vm214 = vcmp.ge.f32.partialorder %v166, 0.0
  %vm215 = vcmp.ge.f32.partialorder %v168, 0.0
  %vm216 = vcmp.ge.f32.partialorder %v207, 0.0
  %v217 = vmul.f32 %v125, 0.01
  %v218 = vmul.f32 %v127, 0.01
  %v219 = vmul.f32 %v166, 0.01
  %v220 = vmul.f32 %v168, 0.01
  %v221 = vmul.f32 %v207, 0.01
  %v222 = vsel %vm212, %v125, %v217
  %v223 = vsel %vm213, %v127, %v218
  %v224 = vsel %vm214, %v166, %v219
  %v225 = vsel %vm215, %v168, %v220
  %v226 = vsel %vm216, %v207, %v221
  %227 = vst [vmem:[%s3] sm:$0xff] %v222
  %228 = vst [vmem:[%s3 + $0x8] sm:$0xff] %v223
  %229 = vst [vmem:[%s3 + $0x10] sm:$0xff] %v224
  %230 = vst [vmem:[%s3 + $0x18] sm:$0xff] %v225
  %231 = vst [vmem:[%s3 + $0x20] sm:$0xff] %v226
  // Predicated region
  $region14: #{simple_net_forward.5} parent=0 // pred_check
    _
  $region15: #{simple_net_forward.5} parent=0 // pred_check_branch
    %233 = sbr.rel (0) target = $region17
  $region16: #{simple_net_forward.5} parent=0 // pred_region
    _
  $region17: #{simple_net_forward.5} parent=0 // pred_fallthru
    _
  // Predicated region
  $region18: #{simple_net_forward.5} parent=0 // pred_check
    _
  $region19: #{simple_net_forward.5} parent=0 // pred_check_branch
    %235 = sbr.rel (0) target = $region21
  $region20: #{simple_net_forward.5} parent=0 // pred_region
    _
  $region21: #{simple_net_forward.5} parent=0 // pred_fallthru
    _

// kernel: simple_net_forward.6
$region0: #{simple_net_forward.6}
  #allocation0 [shape = 'u32[]', space=smem, size = 0x4, offset = 0x4, fixed_abs, tag = 'smem constant byte address 0x4 - core index']
  #allocation1 [shape = 'u32[144,128]{1,0:T(1,128)}', space=vmem, size = 0x12000, scoped, tag = 'internal scratch']
  %s0 = inlined_call_operand.vmem [shape: bf16[48,256], index: 0, kind: input, shape index: {}]
  %s1 = inlined_call_operand.vmem [shape: bf16[8,48], index: 1, kind: input, shape index: {}]
  %s2 = inlined_call_operand.vmem [shape: f32[8,1], index: 2, kind: input, shape index: {}]
  %s3 = inlined_call_operand.vmem [shape: f32[8,256], index: 3, kind: output, shape index: {}]
  %s4 = sld [smem:[#allocation0]]
  $region22: #{simple_net_forward.6} parent=0
    _
  %s6 = ssub.s32 1, %s4
  %s7 = scalar_select 0, %s6, %s4
  // Predicated region
  $region2: #{simple_net_forward.6} parent=0 // pred_check
    _
  $region3: #{simple_net_forward.6} parent=0 // pred_check_branch
    %9 = sbr.rel (0) target = $region5
  $region4: #{simple_net_forward.6} parent=0 // pred_region
    _
  $region5: #{simple_net_forward.6} parent=0 // pred_fallthru
    _
  // Predicated region
  $region6: #{simple_net_forward.6} parent=0 // pred_check
    _
  $region7: #{simple_net_forward.6} parent=0 // pred_check_branch
    %11 = sbr.rel (0) target = $region9
  $region8: #{simple_net_forward.6} parent=0 // pred_region
    _
  $region9: #{simple_net_forward.6} parent=0 // pred_fallthru
    _
  // Predicated region
  $region10: #{simple_net_forward.6} parent=0 // pred_check
    _
  $region11: #{simple_net_forward.6} parent=0 // pred_check_branch
    %13 = sbr.rel (0) target = $region13
  $region12: #{simple_net_forward.6} parent=0 // pred_region
    _
  $region13: #{simple_net_forward.6} parent=0 // pred_fallthru
    _
  %v15 = vld [vmem:[%s1] sm:$0xf]
  %v16 = vld [vmem:[%s0] sm:$0xff]
  %v17 = vld [vmem:[%s0 + $0x8] sm:$0xff]
  %v18 = vld [vmem:[%s0 + $0x10] sm:$0xff]
  %v19 = vld [vmem:[%s0 + $0x18] sm:$0xff]
  %v20 = vld [vmem:[%s0 + $0x20] sm:$0xff]
  %v21 = vld [vmem:[%s0 + $0x28] sm:$0xff]
  %v22 = vld [vmem:[%s2] sm:$0xff]
  %24 = vset.pattern.permute.xlu0 0
  %25 = vperm.xlu0 %24, %v22
  %v26 = vpop.permute.xlu0 %25
  %v34 = vunpack.c.l.b16 %v16
  %v35 = vunpack.c.h.b16 %v16
  %v36 = vunpack.c.l.b16 %v17
  %v37 = vunpack.c.h.b16 %v17
  %v38 = vunpack.c.l.b16 %v18
  %v39 = vunpack.c.h.b16 %v18
  %v40 = vunpack.c.l.b16 %v19
  %v41 = vunpack.c.h.b16 %v19
  %v42 = vunpack.c.l.b16 %v20
  %v43 = vunpack.c.h.b16 %v20
  %v44 = vunpack.c.l.b16 %v21
  %v45 = vunpack.c.h.b16 %v21
  %v46 = vpack.c.b16 %v36, %v34
  %v47 = vpack.c.b16 %v37, %v35
  %v48 = vpack.c.b16 %v40, %v38
  %v49 = vpack.c.b16 %v41, %v39
  %v50 = vpack.c.b16 %v44, %v42
  %v51 = vpack.c.b16 %v45, %v43
  %vm58 = vcmask 392192
  %v60 = vsel %vm58, %v15, 0
  %62 = vmatprep.subr.bf16.mxu0 %v47
  %63 = vmatpush1.bf16.msra.mxu0 %v46
  %64 = vmatprep.subr.bf16.mxu0 %v49
  %65 = vmatpush1.bf16.msra.mxu0 %v48
  %66 = vmatprep.subr.bf16.mxu0 %v51
  %67 = vmatpush1.bf16.msra.mxu0 %v50
  %68 = vmatprep.subr.bf16.mxu0 0
  %69 = vmatpush1.bf16.msra.mxu0 0
  %70 = vmatprep.subr.bf16.mxu0 0
  %71 = vmatpush1.bf16.msra.mxu0 0
  %72 = vmatprep.subr.bf16.mxu0 0
  %73 = vmatpush1.bf16.msra.mxu0 0
  %74 = vmatprep.subr.bf16.mxu0 0
  %75 = vmatpush1.bf16.msra.mxu0 0
  %76 = vmatprep.subr.bf16.mxu0 0
  %77 = vmatpush1.bf16.msra.mxu0 0
  %78 = vmatprep.subr.bf16.mxu0 0
  %79 = vmatpush1.bf16.msra.mxu0 0
  %80 = vmatprep.subr.bf16.mxu0 0
  %81 = vmatpush1.bf16.msra.mxu0 0
  %82 = vmatprep.subr.bf16.mxu0 0
  %83 = vmatpush1.bf16.msra.mxu0 0
  %84 = vmatprep.subr.bf16.mxu0 0
  %85 = vmatpush1.bf16.msra.mxu0 0
  %86 = vmatprep.subr.bf16.mxu0 0
  %87 = vmatpush1.bf16.msra.mxu0 0
  %88 = vmatprep.subr.bf16.mxu0 0
  %89 = vmatpush1.bf16.msra.mxu0 0
  %90 = vmatprep.subr.bf16.mxu0 0
  %91 = vmatpush1.bf16.msra.mxu0 0
  %92 = vmatprep.subr.bf16.mxu0 0
  %93 = vmatpush1.bf16.msra.mxu0 0
  %94 = vmatprep.mubr.bf16.mxu0 0
  %95 = vmatmul.mubr.bf16.gmra.mrb[0].mxu0 %v60
  %v96 = vpop.f32.mrb[0].mxu0
  %v97 = vadd.f32 %v26, %v96
  %v98 = vpop.f32.mrb[0].mxu0
  %v99 = vadd.f32 %v26, %v98
  %v100 = vpop.f32.mrb[0].mxu0
  %v101 = vpop.f32.mrb[0].mxu0
  %102 = vdwg.mxu0
  %vm103 = vcmp.ge.f32.partialorder %v97, 0.0
  %vm104 = vcmp.ge.f32.partialorder %v99, 0.0
  %v105 = vmul.f32 %v97, 0.01
  %v106 = vmul.f32 %v99, 0.01
  %v107 = vsel %vm103, %v97, %v105
  %v108 = vsel %vm104, %v99, %v106
  %109 = vst [vmem:[%s3] sm:$0xff] %v107
  %110 = vst [vmem:[%s3 + $0x8] sm:$0xff] %v108
  // Predicated region
  $region14: #{simple_net_forward.6} parent=0 // pred_check
    _
  $region15: #{simple_net_forward.6} parent=0 // pred_check_branch
    %112 = sbr.rel (0) target = $region17
  $region16: #{simple_net_forward.6} parent=0 // pred_region
    _
  $region17: #{simple_net_forward.6} parent=0 // pred_fallthru
    _
  // Predicated region
  $region18: #{simple_net_forward.6} parent=0 // pred_check
    _
  $region19: #{simple_net_forward.6} parent=0 // pred_check_branch
    %114 = sbr.rel (0) target = $region21
  $region20: #{simple_net_forward.6} parent=0 // pred_region
    _
  $region21: #{simple_net_forward.6} parent=0 // pred_fallthru
    _

// kernel: simple_net_forward.7
$region0: #{simple_net_forward.7}
  #allocation0 [shape = 'u32[]', space=smem, size = 0x4, offset = 0x4, fixed_abs, tag = 'smem constant byte address 0x4 - core index']
  #allocation1 [shape = 'u32[144,128]{1,0:T(1,128)}', space=vmem, size = 0x12000, scoped, tag = 'internal scratch']
  %s0 = inlined_call_operand.vmem [shape: f32[1,1408], index: 0, kind: input, shape index: {}]
  %s1 = inlined_call_operand.vmem [shape: bf16[1408,1024], index: 1, kind: input, shape index: {}]
  %s2 = inlined_call_operand.vmem [shape: bf16[1024,256], index: 2, kind: input, shape index: {}]
  %s3 = inlined_call_operand.vmem [shape: bf16[256,128], index: 3, kind: input, shape index: {}]
  %s4 = inlined_call_operand.vmem [shape: bf16[128,128], index: 4, kind: input, shape index: {}]
  %s5 = inlined_call_operand.vmem [shape: bf16[128,128], index: 5, kind: input, shape index: {}]
  %s6 = inlined_call_operand.vmem [shape: bf16[128,128], index: 6, kind: input, shape index: {}]
  %s7 = inlined_call_operand.vmem [shape: f32[1,1024], index: 7, kind: input, shape index: {}]
  %s8 = inlined_call_operand.vmem [shape: f32[1,256], index: 8, kind: input, shape index: {}]
  %s9 = inlined_call_operand.vmem [shape: f32[1,128], index: 9, kind: input, shape index: {}]
  %s10 = inlined_call_operand.vmem [shape: f32[1,128], index: 10, kind: input, shape index: {}]
  %s11 = inlined_call_operand.vmem [shape: f32[1,128], index: 11, kind: input, shape index: {}]
  %s12 = inlined_call_operand.vmem [shape: f32[1,128], index: 12, kind: input, shape index: {}]
  %s13 = inlined_call_operand.vmem [shape: f32[1,128], index: 13, kind: output, shape index: {}]
  %s14 = sld [smem:[#allocation0]]
  $region62: #{simple_net_forward.7} parent=0
    _
  %s16 = ssub.s32 1, %s14
  %s17 = scalar_select 0, %s16, %s14
  // Predicated region
  $region2: #{simple_net_forward.7} parent=0 // pred_check
    _
  $region3: #{simple_net_forward.7} parent=0 // pred_check_branch
    %19 = sbr.rel (0) target = $region5
  $region4: #{simple_net_forward.7} parent=0 // pred_region
    _
  $region5: #{simple_net_forward.7} parent=0 // pred_fallthru
    _
  // Predicated region
  $region6: #{simple_net_forward.7} parent=0 // pred_check
    _
  $region7: #{simple_net_forward.7} parent=0 // pred_check_branch
    %21 = sbr.rel (0) target = $region9
  $region8: #{simple_net_forward.7} parent=0 // pred_region
    _
  $region9: #{simple_net_forward.7} parent=0 // pred_fallthru
    _
  // Predicated region
  $region10: #{simple_net_forward.7} parent=0 // pred_check
    _
  $region11: #{simple_net_forward.7} parent=0 // pred_check_branch
    %23 = sbr.rel (0) target = $region13
  $region12: #{simple_net_forward.7} parent=0 // pred_region
    _
  $region13: #{simple_net_forward.7} parent=0 // pred_fallthru
    _
  // Predicated region
  $region14: #{simple_net_forward.7} parent=0 // pred_check
    _
  $region15: #{simple_net_forward.7} parent=0 // pred_check_branch
    %25 = sbr.rel (0) target = $region17
  $region16: #{simple_net_forward.7} parent=0 // pred_region
    _
  $region17: #{simple_net_forward.7} parent=0 // pred_fallthru
    _
  // Predicated region
  $region18: #{simple_net_forward.7} parent=0 // pred_check
    _
  $region19: #{simple_net_forward.7} parent=0 // pred_check_branch
    %27 = sbr.rel (0) target = $region21
  $region20: #{simple_net_forward.7} parent=0 // pred_region
    _
  $region21: #{simple_net_forward.7} parent=0 // pred_fallthru
    _
  // Predicated region
  $region22: #{simple_net_forward.7} parent=0 // pred_check
    _
  $region23: #{simple_net_forward.7} parent=0 // pred_check_branch
    %29 = sbr.rel (0) target = $region25
  $region24: #{simple_net_forward.7} parent=0 // pred_region
    _
  $region25: #{simple_net_forward.7} parent=0 // pred_fallthru
    _
  // Predicated region
  $region26: #{simple_net_forward.7} parent=0 // pred_check
    _
  $region27: #{simple_net_forward.7} parent=0 // pred_check_branch
    %31 = sbr.rel (0) target = $region29
  $region28: #{simple_net_forward.7} parent=0 // pred_region
    _
  $region29: #{simple_net_forward.7} parent=0 // pred_fallthru
    _
  // Predicated region
  $region30: #{simple_net_forward.7} parent=0 // pred_check
    _
  $region31: #{simple_net_forward.7} parent=0 // pred_check_branch
    %33 = sbr.rel (0) target = $region33
  $region32: #{simple_net_forward.7} parent=0 // pred_region
    _
  $region33: #{simple_net_forward.7} parent=0 // pred_fallthru
    _
  // Predicated region
  $region34: #{simple_net_forward.7} parent=0 // pred_check
    _
  $region35: #{simple_net_forward.7} parent=0 // pred_check_branch
    %35 = sbr.rel (0) target = $region37
  $region36: #{simple_net_forward.7} parent=0 // pred_region
    _
  $region37: #{simple_net_forward.7} parent=0 // pred_fallthru
    _
  // Predicated region
  $region38: #{simple_net_forward.7} parent=0 // pred_check
    _
  $region39: #{simple_net_forward.7} parent=0 // pred_check_branch
    %37 = sbr.rel (0) target = $region41
  $region40: #{simple_net_forward.7} parent=0 // pred_region
    _
  $region41: #{simple_net_forward.7} parent=0 // pred_fallthru
    _
  // Predicated region
  $region42: #{simple_net_forward.7} parent=0 // pred_check
    _
  $region43: #{simple_net_forward.7} parent=0 // pred_check_branch
    %39 = sbr.rel (0) target = $region45
  $region44: #{simple_net_forward.7} parent=0 // pred_region
    _
  $region45: #{simple_net_forward.7} parent=0 // pred_fallthru
    _
  // Predicated region
  $region46: #{simple_net_forward.7} parent=0 // pred_check
    _
  $region47: #{simple_net_forward.7} parent=0 // pred_check_branch
    %41 = sbr.rel (0) target = $region49
  $region48: #{simple_net_forward.7} parent=0 // pred_region
    _
  $region49: #{simple_net_forward.7} parent=0 // pred_fallthru
    _
  // Predicated region
  $region50: #{simple_net_forward.7} parent=0 // pred_check
    _
  $region51: #{simple_net_forward.7} parent=0 // pred_check_branch
    %43 = sbr.rel (0) target = $region53
  $region52: #{simple_net_forward.7} parent=0 // pred_region
    _
  $region53: #{simple_net_forward.7} parent=0 // pred_fallthru
    _
  %v45 = vld [vmem:[%s0] sm:$0xff]
  %v46 = vld [vmem:[%s0 + $0x8] sm:$0x7]
  %v49 = vlaneseq
  %v50 = vshrl.u32 %v49, 7
  %v51 = vsub.s32 0, %v50
  %v52 = vrot.slane %v45, %v51
  %v53 = vlaneseq
  %v54 = vshrl.u32 %v53, 7
  %v55 = vsub.s32 1, %v54
  %v56 = vrot.slane %v45, %v55
  %v57 = vlaneseq
  %v58 = vshrl.u32 %v57, 7
  %v59 = vsub.s32 2, %v58
  %v60 = vrot.slane %v45, %v59
  %v61 = vlaneseq
  %v62 = vshrl.u32 %v61, 7
  %v63 = vsub.s32 3, %v62
  %v64 = vrot.slane %v45, %v63
  %v65 = vlaneseq
  %v66 = vshrl.u32 %v65, 7
  %v67 = vsub.s32 4, %v66
  %v68 = vrot.slane %v45, %v67
  %v69 = vlaneseq
  %v70 = vshrl.u32 %v69, 7
  %v71 = vsub.s32 5, %v70
  %v72 = vrot.slane %v45, %v71
  %v73 = vlaneseq
  %v74 = vshrl.u32 %v73, 7
  %v75 = vsub.s32 6, %v74
  %v76 = vrot.slane %v45, %v75
  %v77 = vlaneseq
  %v78 = vshrl.u32 %v77, 7
  %v79 = vsub.s32 7, %v78
  %v80 = vrot.slane %v45, %v79
  %v81 = vlaneseq
  %v82 = vshrl.u32 %v81, 7
  %v83 = vsub.s32 0, %v82
  %v84 = vrot.slane %v46, %v83
  %v85 = vlaneseq
  %v86 = vshrl.u32 %v85, 7
  %v87 = vsub.s32 1, %v86
  %v88 = vrot.slane %v46, %v87
  %v89 = vlaneseq
  %v90 = vshrl.u32 %v89, 7
  %v91 = vsub.s32 2, %v90
  %v92 = vrot.slane %v46, %v91
  %v104 = vpack.c.bf16 %v52, %v52
  %v105 = vpack.c.bf16 %v56, %v56
  %v106 = vpack.c.bf16 %v60, %v60
  %v107 = vpack.c.bf16 %v64, %v64
  %v108 = vpack.c.bf16 %v68, %v68
  %v109 = vpack.c.bf16 %v72, %v72
  %v110 = vpack.c.bf16 %v76, %v76
  %v111 = vpack.c.bf16 %v80, %v80
  %v112 = vpack.c.bf16 %v84, %v84
  %v113 = vpack.c.bf16 %v88, %v88
  %v114 = vpack.c.bf16 %v92, %v92
  %v115 = vld [vmem:[%s1] sm:$0xff]
  %v116 = vld [vmem:[%s1 + $0x8] sm:$0xff]
  %v117 = vld [vmem:[%s1 + $0x10] sm:$0xff]
  %v118 = vld [vmem:[%s1 + $0x18] sm:$0xff]
  %v119 = vld [vmem:[%s1 + $0x20] sm:$0xff]
  %v120 = vld [vmem:[%s1 + $0x28] sm:$0xff]
  %v121 = vld [vmem:[%s1 + $0x30] sm:$0xff]
  %v122 = vld [vmem:[%s1 + $0x38] sm:$0xff]
  %v123 = vld [vmem:[%s1 + $0x40] sm:$0xff]
  %v124 = vld [vmem:[%s1 + $0x48] sm:$0xff]
  %v125 = vld [vmem:[%s1 + $0x50] sm:$0xff]
  %v126 = vld [vmem:[%s1 + $0x58] sm:$0xff]
  %v127 = vld [vmem:[%s1 + $0x60] sm:$0xff]
  %v128 = vld [vmem:[%s1 + $0x68] sm:$0xff]
  %v129 = vld [vmem:[%s1 + $0x70] sm:$0xff]
  %v130 = vld [vmem:[%s1 + $0x78] sm:$0xff]
  %v131 = vld [vmem:[%s1 + $0x80] sm:$0xff]
  %v132 = vld [vmem:[%s1 + $0x88] sm:$0xff]
  %v133 = vld [vmem:[%s1 + $0x90] sm:$0xff]
  %v134 = vld [vmem:[%s1 + $0x98] sm:$0xff]
  %v135 = vld [vmem:[%s1 + $0xa0] sm:$0xff]
  %v136 = vld [vmem:[%s1 + $0xa8] sm:$0xff]
  %v137 = vld [vmem:[%s1 + $0xb0] sm:$0xff]
  %v138 = vld [vmem:[%s1 + $0xb8] sm:$0xff]
  %v139 = vld [vmem:[%s1 + $0xc0] sm:$0xff]
  %v140 = vld [vmem:[%s1 + $0xc8] sm:$0xff]
  %v141 = vld [vmem:[%s1 + $0xd0] sm:$0xff]
  %v142 = vld [vmem:[%s1 + $0xd8] sm:$0xff]
  %v143 = vld [vmem:[%s1 + $0xe0] sm:$0xff]
  %v144 = vld [vmem:[%s1 + $0xe8] sm:$0xff]
  %v145 = vld [vmem:[%s1 + $0xf0] sm:$0xff]
  %v146 = vld [vmem:[%s1 + $0xf8] sm:$0xff]
  %v147 = vld [vmem:[%s1 + $0x100] sm:$0xff]
  %v148 = vld [vmem:[%s1 + $0x108] sm:$0xff]
  %v149 = vld [vmem:[%s1 + $0x110] sm:$0xff]
  %v150 = vld [vmem:[%s1 + $0x118] sm:$0xff]
  %v151 = vld [vmem:[%s1 + $0x120] sm:$0xff]
  %v152 = vld [vmem:[%s1 + $0x128] sm:$0xff]
  %v153 = vld [vmem:[%s1 + $0x130] sm:$0xff]
  %v154 = vld [vmem:[%s1 + $0x138] sm:$0xff]
  %v155 = vld [vmem:[%s1 + $0x140] sm:$0xff]
  %v156 = vld [vmem:[%s1 + $0x148] sm:$0xff]
  %v157 = vld [vmem:[%s1 + $0x150] sm:$0xff]
  %v158 = vld [vmem:[%s1 + $0x158] sm:$0xff]
  %v159 = vld [vmem:[%s1 + $0x160] sm:$0xff]
  %v160 = vld [vmem:[%s1 + $0x168] sm:$0xff]
  %v161 = vld [vmem:[%s1 + $0x170] sm:$0xff]
  %v162 = vld [vmem:[%s1 + $0x178] sm:$0xff]
  %v163 = vld [vmem:[%s1 + $0x180] sm:$0xff]
  %v164 = vld [vmem:[%s1 + $0x188] sm:$0xff]
  %v165 = vld [vmem:[%s1 + $0x190] sm:$0xff]
  %v166 = vld [vmem:[%s1 + $0x198] sm:$0xff]
  %v167 = vld [vmem:[%s1 + $0x1a0] sm:$0xff]
  %v168 = vld [vmem:[%s1 + $0x1a8] sm:$0xff]
  %v169 = vld [vmem:[%s1 + $0x1b0] sm:$0xff]
  %v170 = vld [vmem:[%s1 + $0x1b8] sm:$0xff]
  %v171 = vld [vmem:[%s1 + $0x1c0] sm:$0xff]
  %v172 = vld [vmem:[%s1 + $0x1c8] sm:$0xff]
  %v173 = vld [vmem:[%s1 + $0x1d0] sm:$0xff]
  %v174 = vld [vmem:[%s1 + $0x1d8] sm:$0xff]
  %v175 = vld [vmem:[%s1 + $0x1e0] sm:$0xff]
  %v176 = vld [vmem:[%s1 + $0x1e8] sm:$0xff]
  %v177 = vld [vmem:[%s1 + $0x1f0] sm:$0xff]
  %v178 = vld [vmem:[%s1 + $0x1f8] sm:$0xff]
  %v179 = vld [vmem:[%s1 + $0x200] sm:$0xff]
  %v180 = vld [vmem:[%s1 + $0x208] sm:$0xff]
  %v181 = vld [vmem:[%s1 + $0x210] sm:$0xff]
  %v182 = vld [vmem:[%s1 + $0x218] sm:$0xff]
  %v183 = vld [vmem:[%s1 + $0x220] sm:$0xff]
  %v184 = vld [vmem:[%s1 + $0x228] sm:$0xff]
  %v185 = vld [vmem:[%s1 + $0x230] sm:$0xff]
  %v186 = vld [vmem:[%s1 + $0x238] sm:$0xff]
  %v187 = vld [vmem:[%s1 + $0x240] sm:$0xff]
  %v188 = vld [vmem:[%s1 + $0x248] sm:$0xff]
  %v189 = vld [vmem:[%s1 + $0x250] sm:$0xff]
  %v190 = vld [vmem:[%s1 + $0x258] sm:$0xff]
  %v191 = vld [vmem:[%s1 + $0x260] sm:$0xff]
  %v192 = vld [vmem:[%s1 + $0x268] sm:$0xff]
  %v193 = vld [vmem:[%s1 + $0x270] sm:$0xff]
  %v194 = vld [vmem:[%s1 + $0x278] sm:$0xff]
  %v195 = vld [vmem:[%s1 + $0x280] sm:$0xff]
  %v196 = vld [vmem:[%s1 + $0x288] sm:$0xff]
  %v197 = vld [vmem:[%s1 + $0x290] sm:$0xff]
  %v198 = vld [vmem:[%s1 + $0x298] sm:$0xff]
  %v199 = vld [vmem:[%s1 + $0x2a0] sm:$0xff]
  %v200 = vld [vmem:[%s1 + $0x2a8] sm:$0xff]
  %v201 = vld [vmem:[%s1 + $0x2b0] sm:$0xff]
  %v202 = vld [vmem:[%s1 + $0x2b8] sm:$0xff]
  %v203 = vld [vmem:[%s1 + $0x2c0] sm:$0xff]
  %v204 = vld [vmem:[%s1 + $0x2c8] sm:$0xff]
  %v205 = vld [vmem:[%s1 + $0x2d0] sm:$0xff]
  %v206 = vld [vmem:[%s1 + $0x2d8] sm:$0xff]
  %v207 = vld [vmem:[%s1 + $0x2e0] sm:$0xff]
  %v208 = vld [vmem:[%s1 + $0x2e8] sm:$0xff]
  %v209 = vld [vmem:[%s1 + $0x2f0] sm:$0xff]
  %v210 = vld [vmem:[%s1 + $0x2f8] sm:$0xff]
  %v211 = vld [vmem:[%s1 + $0x300] sm:$0xff]
  %v212 = vld [vmem:[%s1 + $0x308] sm:$0xff]
  %v213 = vld [vmem:[%s1 + $0x310] sm:$0xff]
  %v214 = vld [vmem:[%s1 + $0x318] sm:$0xff]
  %v215 = vld [vmem:[%s1 + $0x320] sm:$0xff]
  %v216 = vld [vmem:[%s1 + $0x328] sm:$0xff]
  %v217 = vld [vmem:[%s1 + $0x330] sm:$0xff]
  %v218 = vld [vmem:[%s1 + $0x338] sm:$0xff]
  %v219 = vld [vmem:[%s1 + $0x340] sm:$0xff]
  %v220 = vld [vmem:[%s1 + $0x348] sm:$0xff]
  %v221 = vld [vmem:[%s1 + $0x350] sm:$0xff]
  %v222 = vld [vmem:[%s1 + $0x358] sm:$0xff]
  %v223 = vld [vmem:[%s1 + $0x360] sm:$0xff]
  %v224 = vld [vmem:[%s1 + $0x368] sm:$0xff]
  %v225 = vld [vmem:[%s1 + $0x370] sm:$0xff]
  %v226 = vld [vmem:[%s1 + $0x378] sm:$0xff]
  %v227 = vld [vmem:[%s1 + $0x380] sm:$0xff]
  %v228 = vld [vmem:[%s1 + $0x388] sm:$0xff]
  %v229 = vld [vmem:[%s1 + $0x390] sm:$0xff]
  %v230 = vld [vmem:[%s1 + $0x398] sm:$0xff]
  %v231 = vld [vmem:[%s1 + $0x3a0] sm:$0xff]
  %v232 = vld [vmem:[%s1 + $0x3a8] sm:$0xff]
  %v233 = vld [vmem:[%s1 + $0x3b0] sm:$0xff]
  %v234 = vld [vmem:[%s1 + $0x3b8] sm:$0xff]
  %v235 = vld [vmem:[%s1 + $0x3c0] sm:$0xff]
  %v236 = vld [vmem:[%s1 + $0x3c8] sm:$0xff]
  %v237 = vld [vmem:[%s1 + $0x3d0] sm:$0xff]
  %v238 = vld [vmem:[%s1 + $0x3d8] sm:$0xff]
  %v239 = vld [vmem:[%s1 + $0x3e0] sm:$0xff]
  %v240 = vld [vmem:[%s1 + $0x3e8] sm:$0xff]
  %v241 = vld [vmem:[%s1 + $0x3f0] sm:$0xff]
  %v242 = vld [vmem:[%s1 + $0x3f8] sm:$0xff]
  %v243 = vld [vmem:[%s1 + $0x400] sm:$0xff]
  %v244 = vld [vmem:[%s1 + $0x408] sm:$0xff]
  %v245 = vld [vmem:[%s1 + $0x410] sm:$0xff]
  %v246 = vld [vmem:[%s1 + $0x418] sm:$0xff]
  %v247 = vld [vmem:[%s1 + $0x420] sm:$0xff]
  %v248 = vld [vmem:[%s1 + $0x428] sm:$0xff]
  %v249 = vld [vmem:[%s1 + $0x430] sm:$0xff]
  %v250 = vld [vmem:[%s1 + $0x438] sm:$0xff]
  %v251 = vld [vmem:[%s1 + $0x440] sm:$0xff]
  %v252 = vld [vmem:[%s1 + $0x448] sm:$0xff]
  %v253 = vld [vmem:[%s1 + $0x450] sm:$0xff]
  %v254 = vld [vmem:[%s1 + $0x458] sm:$0xff]
  %v255 = vld [vmem:[%s1 + $0x460] sm:$0xff]
  %v256 = vld [vmem:[%s1 + $0x468] sm:$0xff]
  %v257 = vld [vmem:[%s1 + $0x470] sm:$0xff]
  %v258 = vld [vmem:[%s1 + $0x478] sm:$0xff]
  %v259 = vld [vmem:[%s1 + $0x480] sm:$0xff]
  %v260 = vld [vmem:[%s1 + $0x488] sm:$0xff]
  %v261 = vld [vmem:[%s1 + $0x490] sm:$0xff]
  %v262 = vld [vmem:[%s1 + $0x498] sm:$0xff]
  %v263 = vld [vmem:[%s1 + $0x4a0] sm:$0xff]
  %v264 = vld [vmem:[%s1 + $0x4a8] sm:$0xff]
  %v265 = vld [vmem:[%s1 + $0x4b0] sm:$0xff]
  %v266 = vld [vmem:[%s1 + $0x4b8] sm:$0xff]
  %v267 = vld [vmem:[%s1 + $0x4c0] sm:$0xff]
  %v268 = vld [vmem:[%s1 + $0x4c8] sm:$0xff]
  %v269 = vld [vmem:[%s1 + $0x4d0] sm:$0xff]
  %v270 = vld [vmem:[%s1 + $0x4d8] sm:$0xff]
  %v271 = vld [vmem:[%s1 + $0x4e0] sm:$0xff]
  %v272 = vld [vmem:[%s1 + $0x4e8] sm:$0xff]
  %v273 = vld [vmem:[%s1 + $0x4f0] sm:$0xff]
  %v274 = vld [vmem:[%s1 + $0x4f8] sm:$0xff]
  %v275 = vld [vmem:[%s1 + $0x500] sm:$0xff]
  %v276 = vld [vmem:[%s1 + $0x508] sm:$0xff]
  %v277 = vld [vmem:[%s1 + $0x510] sm:$0xff]
  %v278 = vld [vmem:[%s1 + $0x518] sm:$0xff]
  %v279 = vld [vmem:[%s1 + $0x520] sm:$0xff]
  %v280 = vld [vmem:[%s1 + $0x528] sm:$0xff]
  %v281 = vld [vmem:[%s1 + $0x530] sm:$0xff]
  %v282 = vld [vmem:[%s1 + $0x538] sm:$0xff]
  %v283 = vld [vmem:[%s1 + $0x540] sm:$0xff]
  %v284 = vld [vmem:[%s1 + $0x548] sm:$0xff]
  %v285 = vld [vmem:[%s1 + $0x550] sm:$0xff]
  %v286 = vld [vmem:[%s1 + $0x558] sm:$0xff]
  %v287 = vld [vmem:[%s1 + $0x560] sm:$0xff]
  %v288 = vld [vmem:[%s1 + $0x568] sm:$0xff]
  %v289 = vld [vmem:[%s1 + $0x570] sm:$0xff]
  %v290 = vld [vmem:[%s1 + $0x578] sm:$0xff]
  %v291 = vld [vmem:[%s1 + $0x580] sm:$0xff]
  %v292 = vld [vmem:[%s1 + $0x588] sm:$0xff]
  %v293 = vld [vmem:[%s1 + $0x590] sm:$0xff]
  %v294 = vld [vmem:[%s1 + $0x598] sm:$0xff]
  %v295 = vld [vmem:[%s1 + $0x5a0] sm:$0xff]
  %v296 = vld [vmem:[%s1 + $0x5a8] sm:$0xff]
  %v297 = vld [vmem:[%s1 + $0x5b0] sm:$0xff]
  %v298 = vld [vmem:[%s1 + $0x5b8] sm:$0xff]
  %v299 = vld [vmem:[%s1 + $0x5c0] sm:$0xff]
  %v300 = vld [vmem:[%s1 + $0x5c8] sm:$0xff]
  %v301 = vld [vmem:[%s1 + $0x5d0] sm:$0xff]
  %v302 = vld [vmem:[%s1 + $0x5d8] sm:$0xff]
  %v303 = vld [vmem:[%s1 + $0x5e0] sm:$0xff]
  %v304 = vld [vmem:[%s1 + $0x5e8] sm:$0xff]
  %v305 = vld [vmem:[%s1 + $0x5f0] sm:$0xff]
  %v306 = vld [vmem:[%s1 + $0x5f8] sm:$0xff]
  %v307 = vld [vmem:[%s1 + $0x600] sm:$0xff]
  %v308 = vld [vmem:[%s1 + $0x608] sm:$0xff]
  %v309 = vld [vmem:[%s1 + $0x610] sm:$0xff]
  %v310 = vld [vmem:[%s1 + $0x618] sm:$0xff]
  %v311 = vld [vmem:[%s1 + $0x620] sm:$0xff]
  %v312 = vld [vmem:[%s1 + $0x628] sm:$0xff]
  %v313 = vld [vmem:[%s1 + $0x630] sm:$0xff]
  %v314 = vld [vmem:[%s1 + $0x638] sm:$0xff]
  %v315 = vld [vmem:[%s1 + $0x640] sm:$0xff]
  %v316 = vld [vmem:[%s1 + $0x648] sm:$0xff]
  %v317 = vld [vmem:[%s1 + $0x650] sm:$0xff]
  %v318 = vld [vmem:[%s1 + $0x658] sm:$0xff]
  %v319 = vld [vmem:[%s1 + $0x660] sm:$0xff]
  %v320 = vld [vmem:[%s1 + $0x668] sm:$0xff]
  %v321 = vld [vmem:[%s1 + $0x670] sm:$0xff]
  %v322 = vld [vmem:[%s1 + $0x678] sm:$0xff]
  %v323 = vld [vmem:[%s1 + $0x680] sm:$0xff]
  %v324 = vld [vmem:[%s1 + $0x688] sm:$0xff]
  %v325 = vld [vmem:[%s1 + $0x690] sm:$0xff]
  %v326 = vld [vmem:[%s1 + $0x698] sm:$0xff]
  %v327 = vld [vmem:[%s1 + $0x6a0] sm:$0xff]
  %v328 = vld [vmem:[%s1 + $0x6a8] sm:$0xff]
  %v329 = vld [vmem:[%s1 + $0x6b0] sm:$0xff]
  %v330 = vld [vmem:[%s1 + $0x6b8] sm:$0xff]
  %v331 = vld [vmem:[%s1 + $0x6c0] sm:$0xff]
  %v332 = vld [vmem:[%s1 + $0x6c8] sm:$0xff]
  %v333 = vld [vmem:[%s1 + $0x6d0] sm:$0xff]
  %v334 = vld [vmem:[%s1 + $0x6d8] sm:$0xff]
  %v335 = vld [vmem:[%s1 + $0x6e0] sm:$0xff]
  %v336 = vld [vmem:[%s1 + $0x6e8] sm:$0xff]
  %v337 = vld [vmem:[%s1 + $0x6f0] sm:$0xff]
  %v338 = vld [vmem:[%s1 + $0x6f8] sm:$0xff]
  %v339 = vld [vmem:[%s1 + $0x700] sm:$0xff]
  %v340 = vld [vmem:[%s1 + $0x708] sm:$0xff]
  %v341 = vld [vmem:[%s1 + $0x710] sm:$0xff]
  %v342 = vld [vmem:[%s1 + $0x718] sm:$0xff]
  %v343 = vld [vmem:[%s1 + $0x720] sm:$0xff]
  %v344 = vld [vmem:[%s1 + $0x728] sm:$0xff]
  %v345 = vld [vmem:[%s1 + $0x730] sm:$0xff]
  %v346 = vld [vmem:[%s1 + $0x738] sm:$0xff]
  %v347 = vld [vmem:[%s1 + $0x740] sm:$0xff]
  %v348 = vld [vmem:[%s1 + $0x748] sm:$0xff]
  %v349 = vld [vmem:[%s1 + $0x750] sm:$0xff]
  %v350 = vld [vmem:[%s1 + $0x758] sm:$0xff]
  %v351 = vld [vmem:[%s1 + $0x760] sm:$0xff]
  %v352 = vld [vmem:[%s1 + $0x768] sm:$0xff]
  %v353 = vld [vmem:[%s1 + $0x770] sm:$0xff]
  %v354 = vld [vmem:[%s1 + $0x778] sm:$0xff]
  %v355 = vld [vmem:[%s1 + $0x780] sm:$0xff]
  %v356 = vld [vmem:[%s1 + $0x788] sm:$0xff]
  %v357 = vld [vmem:[%s1 + $0x790] sm:$0xff]
  %v358 = vld [vmem:[%s1 + $0x798] sm:$0xff]
  %v359 = vld [vmem:[%s1 + $0x7a0] sm:$0xff]
  %v360 = vld [vmem:[%s1 + $0x7a8] sm:$0xff]
  %v361 = vld [vmem:[%s1 + $0x7b0] sm:$0xff]
  %v362 = vld [vmem:[%s1 + $0x7b8] sm:$0xff]
  %v363 = vld [vmem:[%s1 + $0x7c0] sm:$0xff]
  %v364 = vld [vmem:[%s1 + $0x7c8] sm:$0xff]
  %v365 = vld [vmem:[%s1 + $0x7d0] sm:$0xff]
  %v366 = vld [vmem:[%s1 + $0x7d8] sm:$0xff]
  %v367 = vld [vmem:[%s1 + $0x7e0] sm:$0xff]
  %v368 = vld [vmem:[%s1 + $0x7e8] sm:$0xff]
  %v369 = vld [vmem:[%s1 + $0x7f0] sm:$0xff]
  %v370 = vld [vmem:[%s1 + $0x7f8] sm:$0xff]
  %v371 = vld [vmem:[%s1 + $0x800] sm:$0xff]
  %v372 = vld [vmem:[%s1 + $0x808] sm:$0xff]
  %v373 = vld [vmem:[%s1 + $0x810] sm:$0xff]
  %v374 = vld [vmem:[%s1 + $0x818] sm:$0xff]
  %v375 = vld [vmem:[%s1 + $0x820] sm:$0xff]
  %v376 = vld [vmem:[%s1 + $0x828] sm:$0xff]
  %v377 = vld [vmem:[%s1 + $0x830] sm:$0xff]
  %v378 = vld [vmem:[%s1 + $0x838] sm:$0xff]
  %v379 = vld [vmem:[%s1 + $0x840] sm:$0xff]
  %v380 = vld [vmem:[%s1 + $0x848] sm:$0xff]
  %v381 = vld [vmem:[%s1 + $0x850] sm:$0xff]
  %v382 = vld [vmem:[%s1 + $0x858] sm:$0xff]
  %v383 = vld [vmem:[%s1 + $0x860] sm:$0xff]
  %v384 = vld [vmem:[%s1 + $0x868] sm:$0xff]
  %v385 = vld [vmem:[%s1 + $0x870] sm:$0xff]
  %v386 = vld [vmem:[%s1 + $0x878] sm:$0xff]
  %v387 = vld [vmem:[%s1 + $0x880] sm:$0xff]
  %v388 = vld [vmem:[%s1 + $0x888] sm:$0xff]
  %v389 = vld [vmem:[%s1 + $0x890] sm:$0xff]
  %v390 = vld [vmem:[%s1 + $0x898] sm:$0xff]
  %v391 = vld [vmem:[%s1 + $0x8a0] sm:$0xff]
  %v392 = vld [vmem:[%s1 + $0x8a8] sm:$0xff]
  %v393 = vld [vmem:[%s1 + $0x8b0] sm:$0xff]
  %v394 = vld [vmem:[%s1 + $0x8b8] sm:$0xff]
  %v395 = vld [vmem:[%s1 + $0x8c0] sm:$0xff]
  %v396 = vld [vmem:[%s1 + $0x8c8] sm:$0xff]
  %v397 = vld [vmem:[%s1 + $0x8d0] sm:$0xff]
  %v398 = vld [vmem:[%s1 + $0x8d8] sm:$0xff]
  %v399 = vld [vmem:[%s1 + $0x8e0] sm:$0xff]
  %v400 = vld [vmem:[%s1 + $0x8e8] sm:$0xff]
  %v401 = vld [vmem:[%s1 + $0x8f0] sm:$0xff]
  %v402 = vld [vmem:[%s1 + $0x8f8] sm:$0xff]
  %v403 = vld [vmem:[%s1 + $0x900] sm:$0xff]
  %v404 = vld [vmem:[%s1 + $0x908] sm:$0xff]
  %v405 = vld [vmem:[%s1 + $0x910] sm:$0xff]
  %v406 = vld [vmem:[%s1 + $0x918] sm:$0xff]
  %v407 = vld [vmem:[%s1 + $0x920] sm:$0xff]
  %v408 = vld [vmem:[%s1 + $0x928] sm:$0xff]
  %v409 = vld [vmem:[%s1 + $0x930] sm:$0xff]
  %v410 = vld [vmem:[%s1 + $0x938] sm:$0xff]
  %v411 = vld [vmem:[%s1 + $0x940] sm:$0xff]
  %v412 = vld [vmem:[%s1 + $0x948] sm:$0xff]
  %v413 = vld [vmem:[%s1 + $0x950] sm:$0xff]
  %v414 = vld [vmem:[%s1 + $0x958] sm:$0xff]
  %v415 = vld [vmem:[%s1 + $0x960] sm:$0xff]
  %v416 = vld [vmem:[%s1 + $0x968] sm:$0xff]
  %v417 = vld [vmem:[%s1 + $0x970] sm:$0xff]
  %v418 = vld [vmem:[%s1 + $0x978] sm:$0xff]
  %v419 = vld [vmem:[%s1 + $0x980] sm:$0xff]
  %v420 = vld [vmem:[%s1 + $0x988] sm:$0xff]
  %v421 = vld [vmem:[%s1 + $0x990] sm:$0xff]
  %v422 = vld [vmem:[%s1 + $0x998] sm:$0xff]
  %v423 = vld [vmem:[%s1 + $0x9a0] sm:$0xff]
  %v424 = vld [vmem:[%s1 + $0x9a8] sm:$0xff]
  %v425 = vld [vmem:[%s1 + $0x9b0] sm:$0xff]
  %v426 = vld [vmem:[%s1 + $0x9b8] sm:$0xff]
  %v427 = vld [vmem:[%s1 + $0x9c0] sm:$0xff]
  %v428 = vld [vmem:[%s1 + $0x9c8] sm:$0xff]
  %v429 = vld [vmem:[%s1 + $0x9d0] sm:$0xff]
  %v430 = vld [vmem:[%s1 + $0x9d8] sm:$0xff]
  %v431 = vld [vmem:[%s1 + $0x9e0] sm:$0xff]
  %v432 = vld [vmem:[%s1 + $0x9e8] sm:$0xff]
  %v433 = vld [vmem:[%s1 + $0x9f0] sm:$0xff]
  %v434 = vld [vmem:[%s1 + $0x9f8] sm:$0xff]
  %v435 = vld [vmem:[%s1 + $0xa00] sm:$0xff]
  %v436 = vld [vmem:[%s1 + $0xa08] sm:$0xff]
  %v437 = vld [vmem:[%s1 + $0xa10] sm:$0xff]
  %v438 = vld [vmem:[%s1 + $0xa18] sm:$0xff]
  %v439 = vld [vmem:[%s1 + $0xa20] sm:$0xff]
  %v440 = vld [vmem:[%s1 + $0xa28] sm:$0xff]
  %v441 = vld [vmem:[%s1 + $0xa30] sm:$0xff]
  %v442 = vld [vmem:[%s1 + $0xa38] sm:$0xff]
  %v443 = vld [vmem:[%s1 + $0xa40] sm:$0xff]
  %v444 = vld [vmem:[%s1 + $0xa48] sm:$0xff]
  %v445 = vld [vmem:[%s1 + $0xa50] sm:$0xff]
  %v446 = vld [vmem:[%s1 + $0xa58] sm:$0xff]
  %v447 = vld [vmem:[%s1 + $0xa60] sm:$0xff]
  %v448 = vld [vmem:[%s1 + $0xa68] sm:$0xff]
  %v449 = vld [vmem:[%s1 + $0xa70] sm:$0xff]
  %v450 = vld [vmem:[%s1 + $0xa78] sm:$0xff]
  %v451 = vld [vmem:[%s1 + $0xa80] sm:$0xff]
  %v452 = vld [vmem:[%s1 + $0xa88] sm:$0xff]
  %v453 = vld [vmem:[%s1 + $0xa90] sm:$0xff]
  %v454 = vld [vmem:[%s1 + $0xa98] sm:$0xff]
  %v455 = vld [vmem:[%s1 + $0xaa0] sm:$0xff]
  %v456 = vld [vmem:[%s1 + $0xaa8] sm:$0xff]
  %v457 = vld [vmem:[%s1 + $0xab0] sm:$0xff]
  %v458 = vld [vmem:[%s1 + $0xab8] sm:$0xff]
  %v459 = vld [vmem:[%s1 + $0xac0] sm:$0xff]
  %v460 = vld [vmem:[%s1 + $0xac8] sm:$0xff]
  %v461 = vld [vmem:[%s1 + $0xad0] sm:$0xff]
  %v462 = vld [vmem:[%s1 + $0xad8] sm:$0xff]
  %v463 = vld [vmem:[%s1 + $0xae0] sm:$0xff]
  %v464 = vld [vmem:[%s1 + $0xae8] sm:$0xff]
  %v465 = vld [vmem:[%s1 + $0xaf0] sm:$0xff]
  %v466 = vld [vmem:[%s1 + $0xaf8] sm:$0xff]
  %v467 = vld [vmem:[%s1 + $0xb00] sm:$0xff]
  %v468 = vld [vmem:[%s1 + $0xb08] sm:$0xff]
  %v469 = vld [vmem:[%s1 + $0xb10] sm:$0xff]
  %v470 = vld [vmem:[%s1 + $0xb18] sm:$0xff]
  %v471 = vld [vmem:[%s1 + $0xb20] sm:$0xff]
  %v472 = vld [vmem:[%s1 + $0xb28] sm:$0xff]
  %v473 = vld [vmem:[%s1 + $0xb30] sm:$0xff]
  %v474 = vld [vmem:[%s1 + $0xb38] sm:$0xff]
  %v475 = vld [vmem:[%s1 + $0xb40] sm:$0xff]
  %v476 = vld [vmem:[%s1 + $0xb48] sm:$0xff]
  %v477 = vld [vmem:[%s1 + $0xb50] sm:$0xff]
  %v478 = vld [vmem:[%s1 + $0xb58] sm:$0xff]
  %v479 = vld [vmem:[%s1 + $0xb60] sm:$0xff]
  %v480 = vld [vmem:[%s1 + $0xb68] sm:$0xff]
  %v481 = vld [vmem:[%s1 + $0xb70] sm:$0xff]
  %v482 = vld [vmem:[%s1 + $0xb78] sm:$0xff]
  %v483 = vld [vmem:[%s1 + $0xb80] sm:$0xff]
  %v484 = vld [vmem:[%s1 + $0xb88] sm:$0xff]
  %v485 = vld [vmem:[%s1 + $0xb90] sm:$0xff]
  %v486 = vld [vmem:[%s1 + $0xb98] sm:$0xff]
  %v487 = vld [vmem:[%s1 + $0xba0] sm:$0xff]
  %v488 = vld [vmem:[%s1 + $0xba8] sm:$0xff]
  %v489 = vld [vmem:[%s1 + $0xbb0] sm:$0xff]
  %v490 = vld [vmem:[%s1 + $0xbb8] sm:$0xff]
  %v491 = vld [vmem:[%s1 + $0xbc0] sm:$0xff]
  %v492 = vld [vmem:[%s1 + $0xbc8] sm:$0xff]
  %v493 = vld [vmem:[%s1 + $0xbd0] sm:$0xff]
  %v494 = vld [vmem:[%s1 + $0xbd8] sm:$0xff]
  %v495 = vld [vmem:[%s1 + $0xbe0] sm:$0xff]
  %v496 = vld [vmem:[%s1 + $0xbe8] sm:$0xff]
  %v497 = vld [vmem:[%s1 + $0xbf0] sm:$0xff]
  %v498 = vld [vmem:[%s1 + $0xbf8] sm:$0xff]
  %v499 = vld [vmem:[%s1 + $0xc00] sm:$0xff]
  %v500 = vld [vmem:[%s1 + $0xc08] sm:$0xff]
  %v501 = vld [vmem:[%s1 + $0xc10] sm:$0xff]
  %v502 = vld [vmem:[%s1 + $0xc18] sm:$0xff]
  %v503 = vld [vmem:[%s1 + $0xc20] sm:$0xff]
  %v504 = vld [vmem:[%s1 + $0xc28] sm:$0xff]
  %v505 = vld [vmem:[%s1 + $0xc30] sm:$0xff]
  %v506 = vld [vmem:[%s1 + $0xc38] sm:$0xff]
  %v507 = vld [vmem:[%s1 + $0xc40] sm:$0xff]
  %v508 = vld [vmem:[%s1 + $0xc48] sm:$0xff]
  %v509 = vld [vmem:[%s1 + $0xc50] sm:$0xff]
  %v510 = vld [vmem:[%s1 + $0xc58] sm:$0xff]
  %v511 = vld [vmem:[%s1 + $0xc60] sm:$0xff]
  %v512 = vld [vmem:[%s1 + $0xc68] sm:$0xff]
  %v513 = vld [vmem:[%s1 + $0xc70] sm:$0xff]
  %v514 = vld [vmem:[%s1 + $0xc78] sm:$0xff]
  %v515 = vld [vmem:[%s1 + $0xc80] sm:$0xff]
  %v516 = vld [vmem:[%s1 + $0xc88] sm:$0xff]
  %v517 = vld [vmem:[%s1 + $0xc90] sm:$0xff]
  %v518 = vld [vmem:[%s1 + $0xc98] sm:$0xff]
  %v519 = vld [vmem:[%s1 + $0xca0] sm:$0xff]
  %v520 = vld [vmem:[%s1 + $0xca8] sm:$0xff]
  %v521 = vld [vmem:[%s1 + $0xcb0] sm:$0xff]
  %v522 = vld [vmem:[%s1 + $0xcb8] sm:$0xff]
  %v523 = vld [vmem:[%s1 + $0xcc0] sm:$0xff]
  %v524 = vld [vmem:[%s1 + $0xcc8] sm:$0xff]
  %v525 = vld [vmem:[%s1 + $0xcd0] sm:$0xff]
  %v526 = vld [vmem:[%s1 + $0xcd8] sm:$0xff]
  %v527 = vld [vmem:[%s1 + $0xce0] sm:$0xff]
  %v528 = vld [vmem:[%s1 + $0xce8] sm:$0xff]
  %v529 = vld [vmem:[%s1 + $0xcf0] sm:$0xff]
  %v530 = vld [vmem:[%s1 + $0xcf8] sm:$0xff]
  %v531 = vld [vmem:[%s1 + $0xd00] sm:$0xff]
  %v532 = vld [vmem:[%s1 + $0xd08] sm:$0xff]
  %v533 = vld [vmem:[%s1 + $0xd10] sm:$0xff]
  %v534 = vld [vmem:[%s1 + $0xd18] sm:$0xff]
  %v535 = vld [vmem:[%s1 + $0xd20] sm:$0xff]
  %v536 = vld [vmem:[%s1 + $0xd28] sm:$0xff]
  %v537 = vld [vmem:[%s1 + $0xd30] sm:$0xff]
  %v538 = vld [vmem:[%s1 + $0xd38] sm:$0xff]
  %v539 = vld [vmem:[%s1 + $0xd40] sm:$0xff]
  %v540 = vld [vmem:[%s1 + $0xd48] sm:$0xff]
  %v541 = vld [vmem:[%s1 + $0xd50] sm:$0xff]
  %v542 = vld [vmem:[%s1 + $0xd58] sm:$0xff]
  %v543 = vld [vmem:[%s1 + $0xd60] sm:$0xff]
  %v544 = vld [vmem:[%s1 + $0xd68] sm:$0xff]
  %v545 = vld [vmem:[%s1 + $0xd70] sm:$0xff]
  %v546 = vld [vmem:[%s1 + $0xd78] sm:$0xff]
  %v547 = vld [vmem:[%s1 + $0xd80] sm:$0xff]
  %v548 = vld [vmem:[%s1 + $0xd88] sm:$0xff]
  %v549 = vld [vmem:[%s1 + $0xd90] sm:$0xff]
  %v550 = vld [vmem:[%s1 + $0xd98] sm:$0xff]
  %v551 = vld [vmem:[%s1 + $0xda0] sm:$0xff]
  %v552 = vld [vmem:[%s1 + $0xda8] sm:$0xff]
  %v553 = vld [vmem:[%s1 + $0xdb0] sm:$0xff]
  %v554 = vld [vmem:[%s1 + $0xdb8] sm:$0xff]
  %v555 = vld [vmem:[%s1 + $0xdc0] sm:$0xff]
  %v556 = vld [vmem:[%s1 + $0xdc8] sm:$0xff]
  %v557 = vld [vmem:[%s1 + $0xdd0] sm:$0xff]
  %v558 = vld [vmem:[%s1 + $0xdd8] sm:$0xff]
  %v559 = vld [vmem:[%s1 + $0xde0] sm:$0xff]
  %v560 = vld [vmem:[%s1 + $0xde8] sm:$0xff]
  %v561 = vld [vmem:[%s1 + $0xdf0] sm:$0xff]
  %v562 = vld [vmem:[%s1 + $0xdf8] sm:$0xff]
  %v563 = vld [vmem:[%s1 + $0xe00] sm:$0xff]
  %v564 = vld [vmem:[%s1 + $0xe08] sm:$0xff]
  %v565 = vld [vmem:[%s1 + $0xe10] sm:$0xff]
  %v566 = vld [vmem:[%s1 + $0xe18] sm:$0xff]
  %v567 = vld [vmem:[%s1 + $0xe20] sm:$0xff]
  %v568 = vld [vmem:[%s1 + $0xe28] sm:$0xff]
  %v569 = vld [vmem:[%s1 + $0xe30] sm:$0xff]
  %v570 = vld [vmem:[%s1 + $0xe38] sm:$0xff]
  %v571 = vld [vmem:[%s1 + $0xe40] sm:$0xff]
  %v572 = vld [vmem:[%s1 + $0xe48] sm:$0xff]
  %v573 = vld [vmem:[%s1 + $0xe50] sm:$0xff]
  %v574 = vld [vmem:[%s1 + $0xe58] sm:$0xff]
  %v575 = vld [vmem:[%s1 + $0xe60] sm:$0xff]
  %v576 = vld [vmem:[%s1 + $0xe68] sm:$0xff]
  %v577 = vld [vmem:[%s1 + $0xe70] sm:$0xff]
  %v578 = vld [vmem:[%s1 + $0xe78] sm:$0xff]
  %v579 = vld [vmem:[%s1 + $0xe80] sm:$0xff]
  %v580 = vld [vmem:[%s1 + $0xe88] sm:$0xff]
  %v581 = vld [vmem:[%s1 + $0xe90] sm:$0xff]
  %v582 = vld [vmem:[%s1 + $0xe98] sm:$0xff]
  %v583 = vld [vmem:[%s1 + $0xea0] sm:$0xff]
  %v584 = vld [vmem:[%s1 + $0xea8] sm:$0xff]
  %v585 = vld [vmem:[%s1 + $0xeb0] sm:$0xff]
  %v586 = vld [vmem:[%s1 + $0xeb8] sm:$0xff]
  %v587 = vld [vmem:[%s1 + $0xec0] sm:$0xff]
  %v588 = vld [vmem:[%s1 + $0xec8] sm:$0xff]
  %v589 = vld [vmem:[%s1 + $0xed0] sm:$0xff]
  %v590 = vld [vmem:[%s1 + $0xed8] sm:$0xff]
  %v591 = vld [vmem:[%s1 + $0xee0] sm:$0xff]
  %v592 = vld [vmem:[%s1 + $0xee8] sm:$0xff]
  %v593 = vld [vmem:[%s1 + $0xef0] sm:$0xff]
  %v594 = vld [vmem:[%s1 + $0xef8] sm:$0xff]
  %v595 = vld [vmem:[%s1 + $0xf00] sm:$0xff]
  %v596 = vld [vmem:[%s1 + $0xf08] sm:$0xff]
  %v597 = vld [vmem:[%s1 + $0xf10] sm:$0xff]
  %v598 = vld [vmem:[%s1 + $0xf18] sm:$0xff]
  %v599 = vld [vmem:[%s1 + $0xf20] sm:$0xff]
  %v600 = vld [vmem:[%s1 + $0xf28] sm:$0xff]
  %v601 = vld [vmem:[%s1 + $0xf30] sm:$0xff]
  %v602 = vld [vmem:[%s1 + $0xf38] sm:$0xff]
  %v603 = vld [vmem:[%s1 + $0xf40] sm:$0xff]
  %v604 = vld [vmem:[%s1 + $0xf48] sm:$0xff]
  %v605 = vld [vmem:[%s1 + $0xf50] sm:$0xff]
  %v606 = vld [vmem:[%s1 + $0xf58] sm:$0xff]
  %v607 = vld [vmem:[%s1 + $0xf60] sm:$0xff]
  %v608 = vld [vmem:[%s1 + $0xf68] sm:$0xff]
  %v609 = vld [vmem:[%s1 + $0xf70] sm:$0xff]
  %v610 = vld [vmem:[%s1 + $0xf78] sm:$0xff]
  %v611 = vld [vmem:[%s1 + $0xf80] sm:$0xff]
  %v612 = vld [vmem:[%s1 + $0xf88] sm:$0xff]
  %v613 = vld [vmem:[%s1 + $0xf90] sm:$0xff]
  %v614 = vld [vmem:[%s1 + $0xf98] sm:$0xff]
  %v615 = vld [vmem:[%s1 + $0xfa0] sm:$0xff]
  %v616 = vld [vmem:[%s1 + $0xfa8] sm:$0xff]
  %v617 = vld [vmem:[%s1 + $0xfb0] sm:$0xff]
  %v618 = vld [vmem:[%s1 + $0xfb8] sm:$0xff]
  %v619 = vld [vmem:[%s1 + $0xfc0] sm:$0xff]
  %v620 = vld [vmem:[%s1 + $0xfc8] sm:$0xff]
  %v621 = vld [vmem:[%s1 + $0xfd0] sm:$0xff]
  %v622 = vld [vmem:[%s1 + $0xfd8] sm:$0xff]
  %v623 = vld [vmem:[%s1 + $0xfe0] sm:$0xff]
  %v624 = vld [vmem:[%s1 + $0xfe8] sm:$0xff]
  %v625 = vld [vmem:[%s1 + $0xff0] sm:$0xff]
  %v626 = vld [vmem:[%s1 + $0xff8] sm:$0xff]
  %v627 = vld [vmem:[%s1 + $0x1000] sm:$0xff]
  %v628 = vld [vmem:[%s1 + $0x1008] sm:$0xff]
  %v629 = vld [vmem:[%s1 + $0x1010] sm:$0xff]
  %v630 = vld [vmem:[%s1 + $0x1018] sm:$0xff]
  %v631 = vld [vmem:[%s1 + $0x1020] sm:$0xff]
  %v632 = vld [vmem:[%s1 + $0x1028] sm:$0xff]
  %v633 = vld [vmem:[%s1 + $0x1030] sm:$0xff]
  %v634 = vld [vmem:[%s1 + $0x1038] sm:$0xff]
  %v635 = vld [vmem:[%s1 + $0x1040] sm:$0xff]
  %v636 = vld [vmem:[%s1 + $0x1048] sm:$0xff]
  %v637 = vld [vmem:[%s1 + $0x1050] sm:$0xff]
  %v638 = vld [vmem:[%s1 + $0x1058] sm:$0xff]
  %v639 = vld [vmem:[%s1 + $0x1060] sm:$0xff]
  %v640 = vld [vmem:[%s1 + $0x1068] sm:$0xff]
  %v641 = vld [vmem:[%s1 + $0x1070] sm:$0xff]
  %v642 = vld [vmem:[%s1 + $0x1078] sm:$0xff]
  %v643 = vld [vmem:[%s1 + $0x1080] sm:$0xff]
  %v644 = vld [vmem:[%s1 + $0x1088] sm:$0xff]
  %v645 = vld [vmem:[%s1 + $0x1090] sm:$0xff]
  %v646 = vld [vmem:[%s1 + $0x1098] sm:$0xff]
  %v647 = vld [vmem:[%s1 + $0x10a0] sm:$0xff]
  %v648 = vld [vmem:[%s1 + $0x10a8] sm:$0xff]
  %v649 = vld [vmem:[%s1 + $0x10b0] sm:$0xff]
  %v650 = vld [vmem:[%s1 + $0x10b8] sm:$0xff]
  %v651 = vld [vmem:[%s1 + $0x10c0] sm:$0xff]
  %v652 = vld [vmem:[%s1 + $0x10c8] sm:$0xff]
  %v653 = vld [vmem:[%s1 + $0x10d0] sm:$0xff]
  %v654 = vld [vmem:[%s1 + $0x10d8] sm:$0xff]
  %v655 = vld [vmem:[%s1 + $0x10e0] sm:$0xff]
  %v656 = vld [vmem:[%s1 + $0x10e8] sm:$0xff]
  %v657 = vld [vmem:[%s1 + $0x10f0] sm:$0xff]
  %v658 = vld [vmem:[%s1 + $0x10f8] sm:$0xff]
  %v659 = vld [vmem:[%s1 + $0x1100] sm:$0xff]
  %v660 = vld [vmem:[%s1 + $0x1108] sm:$0xff]
  %v661 = vld [vmem:[%s1 + $0x1110] sm:$0xff]
  %v662 = vld [vmem:[%s1 + $0x1118] sm:$0xff]
  %v663 = vld [vmem:[%s1 + $0x1120] sm:$0xff]
  %v664 = vld [vmem:[%s1 + $0x1128] sm:$0xff]
  %v665 = vld [vmem:[%s1 + $0x1130] sm:$0xff]
  %v666 = vld [vmem:[%s1 + $0x1138] sm:$0xff]
  %v667 = vld [vmem:[%s1 + $0x1140] sm:$0xff]
  %v668 = vld [vmem:[%s1 + $0x1148] sm:$0xff]
  %v669 = vld [vmem:[%s1 + $0x1150] sm:$0xff]
  %v670 = vld [vmem:[%s1 + $0x1158] sm:$0xff]
  %v671 = vld [vmem:[%s1 + $0x1160] sm:$0xff]
  %v672 = vld [vmem:[%s1 + $0x1168] sm:$0xff]
  %v673 = vld [vmem:[%s1 + $0x1170] sm:$0xff]
  %v674 = vld [vmem:[%s1 + $0x1178] sm:$0xff]
  %v675 = vld [vmem:[%s1 + $0x1180] sm:$0xff]
  %v676 = vld [vmem:[%s1 + $0x1188] sm:$0xff]
  %v677 = vld [vmem:[%s1 + $0x1190] sm:$0xff]
  %v678 = vld [vmem:[%s1 + $0x1198] sm:$0xff]
  %v679 = vld [vmem:[%s1 + $0x11a0] sm:$0xff]
  %v680 = vld [vmem:[%s1 + $0x11a8] sm:$0xff]
  %v681 = vld [vmem:[%s1 + $0x11b0] sm:$0xff]
  %v682 = vld [vmem:[%s1 + $0x11b8] sm:$0xff]
  %v683 = vld [vmem:[%s1 + $0x11c0] sm:$0xff]
  %v684 = vld [vmem:[%s1 + $0x11c8] sm:$0xff]
  %v685 = vld [vmem:[%s1 + $0x11d0] sm:$0xff]
  %v686 = vld [vmem:[%s1 + $0x11d8] sm:$0xff]
  %v687 = vld [vmem:[%s1 + $0x11e0] sm:$0xff]
  %v688 = vld [vmem:[%s1 + $0x11e8] sm:$0xff]
  %v689 = vld [vmem:[%s1 + $0x11f0] sm:$0xff]
  %v690 = vld [vmem:[%s1 + $0x11f8] sm:$0xff]
  %v691 = vld [vmem:[%s1 + $0x1200] sm:$0xff]
  %v692 = vld [vmem:[%s1 + $0x1208] sm:$0xff]
  %v693 = vld [vmem:[%s1 + $0x1210] sm:$0xff]
  %v694 = vld [vmem:[%s1 + $0x1218] sm:$0xff]
  %v695 = vld [vmem:[%s1 + $0x1220] sm:$0xff]
  %v696 = vld [vmem:[%s1 + $0x1228] sm:$0xff]
  %v697 = vld [vmem:[%s1 + $0x1230] sm:$0xff]
  %v698 = vld [vmem:[%s1 + $0x1238] sm:$0xff]
  %v699 = vld [vmem:[%s1 + $0x1240] sm:$0xff]
  %v700 = vld [vmem:[%s1 + $0x1248] sm:$0xff]
  %v701 = vld [vmem:[%s1 + $0x1250] sm:$0xff]
  %v702 = vld [vmem:[%s1 + $0x1258] sm:$0xff]
  %v703 = vld [vmem:[%s1 + $0x1260] sm:$0xff]
  %v704 = vld [vmem:[%s1 + $0x1268] sm:$0xff]
  %v705 = vld [vmem:[%s1 + $0x1270] sm:$0xff]
  %v706 = vld [vmem:[%s1 + $0x1278] sm:$0xff]
  %v707 = vld [vmem:[%s1 + $0x1280] sm:$0xff]
  %v708 = vld [vmem:[%s1 + $0x1288] sm:$0xff]
  %v709 = vld [vmem:[%s1 + $0x1290] sm:$0xff]
  %v710 = vld [vmem:[%s1 + $0x1298] sm:$0xff]
  %v711 = vld [vmem:[%s1 + $0x12a0] sm:$0xff]
  %v712 = vld [vmem:[%s1 + $0x12a8] sm:$0xff]
  %v713 = vld [vmem:[%s1 + $0x12b0] sm:$0xff]
  %v714 = vld [vmem:[%s1 + $0x12b8] sm:$0xff]
  %v715 = vld [vmem:[%s1 + $0x12c0] sm:$0xff]
  %v716 = vld [vmem:[%s1 + $0x12c8] sm:$0xff]
  %v717 = vld [vmem:[%s1 + $0x12d0] sm:$0xff]
  %v718 = vld [vmem:[%s1 + $0x12d8] sm:$0xff]
  %v719 = vld [vmem:[%s1 + $0x12e0] sm:$0xff]
  %v720 = vld [vmem:[%s1 + $0x12e8] sm:$0xff]
  %v721 = vld [vmem:[%s1 + $0x12f0] sm:$0xff]
  %v722 = vld [vmem:[%s1 + $0x12f8] sm:$0xff]
  %v723 = vld [vmem:[%s1 + $0x1300] sm:$0xff]
  %v724 = vld [vmem:[%s1 + $0x1308] sm:$0xff]
  %v725 = vld [vmem:[%s1 + $0x1310] sm:$0xff]
  %v726 = vld [vmem:[%s1 + $0x1318] sm:$0xff]
  %v727 = vld [vmem:[%s1 + $0x1320] sm:$0xff]
  %v728 = vld [vmem:[%s1 + $0x1328] sm:$0xff]
  %v729 = vld [vmem:[%s1 + $0x1330] sm:$0xff]
  %v730 = vld [vmem:[%s1 + $0x1338] sm:$0xff]
  %v731 = vld [vmem:[%s1 + $0x1340] sm:$0xff]
  %v732 = vld [vmem:[%s1 + $0x1348] sm:$0xff]
  %v733 = vld [vmem:[%s1 + $0x1350] sm:$0xff]
  %v734 = vld [vmem:[%s1 + $0x1358] sm:$0xff]
  %v735 = vld [vmem:[%s1 + $0x1360] sm:$0xff]
  %v736 = vld [vmem:[%s1 + $0x1368] sm:$0xff]
  %v737 = vld [vmem:[%s1 + $0x1370] sm:$0xff]
  %v738 = vld [vmem:[%s1 + $0x1378] sm:$0xff]
  %v739 = vld [vmem:[%s1 + $0x1380] sm:$0xff]
  %v740 = vld [vmem:[%s1 + $0x1388] sm:$0xff]
  %v741 = vld [vmem:[%s1 + $0x1390] sm:$0xff]
  %v742 = vld [vmem:[%s1 + $0x1398] sm:$0xff]
  %v743 = vld [vmem:[%s1 + $0x13a0] sm:$0xff]
  %v744 = vld [vmem:[%s1 + $0x13a8] sm:$0xff]
  %v745 = vld [vmem:[%s1 + $0x13b0] sm:$0xff]
  %v746 = vld [vmem:[%s1 + $0x13b8] sm:$0xff]
  %v747 = vld [vmem:[%s1 + $0x13c0] sm:$0xff]
  %v748 = vld [vmem:[%s1 + $0x13c8] sm:$0xff]
  %v749 = vld [vmem:[%s1 + $0x13d0] sm:$0xff]
  %v750 = vld [vmem:[%s1 + $0x13d8] sm:$0xff]
  %v751 = vld [vmem:[%s1 + $0x13e0] sm:$0xff]
  %v752 = vld [vmem:[%s1 + $0x13e8] sm:$0xff]
  %v753 = vld [vmem:[%s1 + $0x13f0] sm:$0xff]
  %v754 = vld [vmem:[%s1 + $0x13f8] sm:$0xff]
  %v755 = vld [vmem:[%s1 + $0x1400] sm:$0xff]
  %v756 = vld [vmem:[%s1 + $0x1408] sm:$0xff]
  %v757 = vld [vmem:[%s1 + $0x1410] sm:$0xff]
  %v758 = vld [vmem:[%s1 + $0x1418] sm:$0xff]
  %v759 = vld [vmem:[%s1 + $0x1420] sm:$0xff]
  %v760 = vld [vmem:[%s1 + $0x1428] sm:$0xff]
  %v761 = vld [vmem:[%s1 + $0x1430] sm:$0xff]
  %v762 = vld [vmem:[%s1 + $0x1438] sm:$0xff]
  %v763 = vld [vmem:[%s1 + $0x1440] sm:$0xff]
  %v764 = vld [vmem:[%s1 + $0x1448] sm:$0xff]
  %v765 = vld [vmem:[%s1 + $0x1450] sm:$0xff]
  %v766 = vld [vmem:[%s1 + $0x1458] sm:$0xff]
  %v767 = vld [vmem:[%s1 + $0x1460] sm:$0xff]
  %v768 = vld [vmem:[%s1 + $0x1468] sm:$0xff]
  %v769 = vld [vmem:[%s1 + $0x1470] sm:$0xff]
  %v770 = vld [vmem:[%s1 + $0x1478] sm:$0xff]
  %v771 = vld [vmem:[%s1 + $0x1480] sm:$0xff]
  %v772 = vld [vmem:[%s1 + $0x1488] sm:$0xff]
  %v773 = vld [vmem:[%s1 + $0x1490] sm:$0xff]
  %v774 = vld [vmem:[%s1 + $0x1498] sm:$0xff]
  %v775 = vld [vmem:[%s1 + $0x14a0] sm:$0xff]
  %v776 = vld [vmem:[%s1 + $0x14a8] sm:$0xff]
  %v777 = vld [vmem:[%s1 + $0x14b0] sm:$0xff]
  %v778 = vld [vmem:[%s1 + $0x14b8] sm:$0xff]
  %v779 = vld [vmem:[%s1 + $0x14c0] sm:$0xff]
  %v780 = vld [vmem:[%s1 + $0x14c8] sm:$0xff]
  %v781 = vld [vmem:[%s1 + $0x14d0] sm:$0xff]
  %v782 = vld [vmem:[%s1 + $0x14d8] sm:$0xff]
  %v783 = vld [vmem:[%s1 + $0x14e0] sm:$0xff]
  %v784 = vld [vmem:[%s1 + $0x14e8] sm:$0xff]
  %v785 = vld [vmem:[%s1 + $0x14f0] sm:$0xff]
  %v786 = vld [vmem:[%s1 + $0x14f8] sm:$0xff]
  %v787 = vld [vmem:[%s1 + $0x1500] sm:$0xff]
  %v788 = vld [vmem:[%s1 + $0x1508] sm:$0xff]
  %v789 = vld [vmem:[%s1 + $0x1510] sm:$0xff]
  %v790 = vld [vmem:[%s1 + $0x1518] sm:$0xff]
  %v791 = vld [vmem:[%s1 + $0x1520] sm:$0xff]
  %v792 = vld [vmem:[%s1 + $0x1528] sm:$0xff]
  %v793 = vld [vmem:[%s1 + $0x1530] sm:$0xff]
  %v794 = vld [vmem:[%s1 + $0x1538] sm:$0xff]
  %v795 = vld [vmem:[%s1 + $0x1540] sm:$0xff]
  %v796 = vld [vmem:[%s1 + $0x1548] sm:$0xff]
  %v797 = vld [vmem:[%s1 + $0x1550] sm:$0xff]
  %v798 = vld [vmem:[%s1 + $0x1558] sm:$0xff]
  %v799 = vld [vmem:[%s1 + $0x1560] sm:$0xff]
  %v800 = vld [vmem:[%s1 + $0x1568] sm:$0xff]
  %v801 = vld [vmem:[%s1 + $0x1570] sm:$0xff]
  %v802 = vld [vmem:[%s1 + $0x1578] sm:$0xff]
  %v803 = vld [vmem:[%s1 + $0x1580] sm:$0xff]
  %v804 = vld [vmem:[%s1 + $0x1588] sm:$0xff]
  %v805 = vld [vmem:[%s1 + $0x1590] sm:$0xff]
  %v806 = vld [vmem:[%s1 + $0x1598] sm:$0xff]
  %v807 = vld [vmem:[%s1 + $0x15a0] sm:$0xff]
  %v808 = vld [vmem:[%s1 + $0x15a8] sm:$0xff]
  %v809 = vld [vmem:[%s1 + $0x15b0] sm:$0xff]
  %v810 = vld [vmem:[%s1 + $0x15b8] sm:$0xff]
  %v811 = vld [vmem:[%s1 + $0x15c0] sm:$0xff]
  %v812 = vld [vmem:[%s1 + $0x15c8] sm:$0xff]
  %v813 = vld [vmem:[%s1 + $0x15d0] sm:$0xff]
  %v814 = vld [vmem:[%s1 + $0x15d8] sm:$0xff]
  %v815 = vld [vmem:[%s1 + $0x15e0] sm:$0xff]
  %v816 = vld [vmem:[%s1 + $0x15e8] sm:$0xff]
  %v817 = vld [vmem:[%s1 + $0x15f0] sm:$0xff]
  %v818 = vld [vmem:[%s1 + $0x15f8] sm:$0xff]
  %v819 = vld [vmem:[%s7] sm:$0xff]
  %v1524 = vunpack.c.l.b16 %v115
  %v1525 = vunpack.c.h.b16 %v115
  %v1526 = vunpack.c.l.b16 %v116
  %v1527 = vunpack.c.h.b16 %v116
  %v1528 = vunpack.c.l.b16 %v117
  %v1529 = vunpack.c.h.b16 %v117
  %v1530 = vunpack.c.l.b16 %v118
  %v1531 = vunpack.c.h.b16 %v118
  %v1532 = vunpack.c.l.b16 %v119
  %v1533 = vunpack.c.h.b16 %v119
  %v1534 = vunpack.c.l.b16 %v120
  %v1535 = vunpack.c.h.b16 %v120
  %v1536 = vunpack.c.l.b16 %v121
  %v1537 = vunpack.c.h.b16 %v121
  %v1538 = vunpack.c.l.b16 %v122
  %v1539 = vunpack.c.h.b16 %v122
  %v1540 = vunpack.c.l.b16 %v123
  %v1541 = vunpack.c.h.b16 %v123
  %v1542 = vunpack.c.l.b16 %v124
  %v1543 = vunpack.c.h.b16 %v124
  %v1544 = vunpack.c.l.b16 %v125
  %v1545 = vunpack.c.h.b16 %v125
  %v1546 = vunpack.c.l.b16 %v126
  %v1547 = vunpack.c.h.b16 %v126
  %v1548 = vunpack.c.l.b16 %v127
  %v1549 = vunpack.c.h.b16 %v127
  %v1550 = vunpack.c.l.b16 %v128
  %v1551 = vunpack.c.h.b16 %v128
  %v1552 = vunpack.c.l.b16 %v129
  %v1553 = vunpack.c.h.b16 %v129
  %v1554 = vunpack.c.l.b16 %v130
  %v1555 = vunpack.c.h.b16 %v130
  %v1556 = vunpack.c.l.b16 %v131
  %v1557 = vunpack.c.h.b16 %v131
  %v1558 = vunpack.c.l.b16 %v132
  %v1559 = vunpack.c.h.b16 %v132
  %v1560 = vunpack.c.l.b16 %v133
  %v1561 = vunpack.c.h.b16 %v133
  %v1562 = vunpack.c.l.b16 %v134
  %v1563 = vunpack.c.h.b16 %v134
  %v1564 = vunpack.c.l.b16 %v135
  %v1565 = vunpack.c.h.b16 %v135
  %v1566 = vunpack.c.l.b16 %v136
  %v1567 = vunpack.c.h.b16 %v136
  %v1568 = vunpack.c.l.b16 %v137
  %v1569 = vunpack.c.h.b16 %v137
  %v1570 = vunpack.c.l.b16 %v138
  %v1571 = vunpack.c.h.b16 %v138
  %v1572 = vunpack.c.l.b16 %v139
  %v1573 = vunpack.c.h.b16 %v139
  %v1574 = vunpack.c.l.b16 %v140
  %v1575 = vunpack.c.h.b16 %v140
  %v1576 = vunpack.c.l.b16 %v141
  %v1577 = vunpack.c.h.b16 %v141
  %v1578 = vunpack.c.l.b16 %v142
  %v1579 = vunpack.c.h.b16 %v142
  %v1580 = vunpack.c.l.b16 %v143
  %v1581 = vunpack.c.h.b16 %v143
  %v1582 = vunpack.c.l.b16 %v144
  %v1583 = vunpack.c.h.b16 %v144
  %v1584 = vunpack.c.l.b16 %v145
  %v1585 = vunpack.c.h.b16 %v145
  %v1586 = vunpack.c.l.b16 %v146
  %v1587 = vunpack.c.h.b16 %v146
  %v1588 = vunpack.c.l.b16 %v147
  %v1589 = vunpack.c.h.b16 %v147
  %v1590 = vunpack.c.l.b16 %v148
  %v1591 = vunpack.c.h.b16 %v148
  %v1592 = vunpack.c.l.b16 %v149
  %v1593 = vunpack.c.h.b16 %v149
  %v1594 = vunpack.c.l.b16 %v150
  %v1595 = vunpack.c.h.b16 %v150
  %v1596 = vunpack.c.l.b16 %v151
  %v1597 = vunpack.c.h.b16 %v151
  %v1598 = vunpack.c.l.b16 %v152
  %v1599 = vunpack.c.h.b16 %v152
  %v1600 = vunpack.c.l.b16 %v153
  %v1601 = vunpack.c.h.b16 %v153
  %v1602 = vunpack.c.l.b16 %v154
  %v1603 = vunpack.c.h.b16 %v154
  %v1604 = vunpack.c.l.b16 %v155
  %v1605 = vunpack.c.h.b16 %v155
  %v1606 = vunpack.c.l.b16 %v156
  %v1607 = vunpack.c.h.b16 %v156
  %v1608 = vunpack.c.l.b16 %v157
  %v1609 = vunpack.c.h.b16 %v157
  %v1610 = vunpack.c.l.b16 %v158
  %v1611 = vunpack.c.h.b16 %v158
  %v1612 = vunpack.c.l.b16 %v159
  %v1613 = vunpack.c.h.b16 %v159
  %v1614 = vunpack.c.l.b16 %v160
  %v1615 = vunpack.c.h.b16 %v160
  %v1616 = vunpack.c.l.b16 %v161
  %v1617 = vunpack.c.h.b16 %v161
  %v1618 = vunpack.c.l.b16 %v162
  %v1619 = vunpack.c.h.b16 %v162
  %v1620 = vunpack.c.l.b16 %v163
  %v1621 = vunpack.c.h.b16 %v163
  %v1622 = vunpack.c.l.b16 %v164
  %v1623 = vunpack.c.h.b16 %v164
  %v1624 = vunpack.c.l.b16 %v165
  %v1625 = vunpack.c.h.b16 %v165
  %v1626 = vunpack.c.l.b16 %v166
  %v1627 = vunpack.c.h.b16 %v166
  %v1628 = vunpack.c.l.b16 %v167
  %v1629 = vunpack.c.h.b16 %v167
  %v1630 = vunpack.c.l.b16 %v168
  %v1631 = vunpack.c.h.b16 %v168
  %v1632 = vunpack.c.l.b16 %v169
  %v1633 = vunpack.c.h.b16 %v169
  %v1634 = vunpack.c.l.b16 %v170
  %v1635 = vunpack.c.h.b16 %v170
  %v1636 = vunpack.c.l.b16 %v171
  %v1637 = vunpack.c.h.b16 %v171
  %v1638 = vunpack.c.l.b16 %v172
  %v1639 = vunpack.c.h.b16 %v172
  %v1640 = vunpack.c.l.b16 %v173
  %v1641 = vunpack.c.h.b16 %v173
  %v1642 = vunpack.c.l.b16 %v174
  %v1643 = vunpack.c.h.b16 %v174
  %v1644 = vunpack.c.l.b16 %v175
  %v1645 = vunpack.c.h.b16 %v175
  %v1646 = vunpack.c.l.b16 %v176
  %v1647 = vunpack.c.h.b16 %v176
  %v1648 = vunpack.c.l.b16 %v177
  %v1649 = vunpack.c.h.b16 %v177
  %v1650 = vunpack.c.l.b16 %v178
  %v1651 = vunpack.c.h.b16 %v178
  %v1652 = vunpack.c.l.b16 %v179
  %v1653 = vunpack.c.h.b16 %v179
  %v1654 = vunpack.c.l.b16 %v180
  %v1655 = vunpack.c.h.b16 %v180
  %v1656 = vunpack.c.l.b16 %v181
  %v1657 = vunpack.c.h.b16 %v181
  %v1658 = vunpack.c.l.b16 %v182
  %v1659 = vunpack.c.h.b16 %v182
  %v1660 = vunpack.c.l.b16 %v183
  %v1661 = vunpack.c.h.b16 %v183
  %v1662 = vunpack.c.l.b16 %v184
  %v1663 = vunpack.c.h.b16 %v184
  %v1664 = vunpack.c.l.b16 %v185
  %v1665 = vunpack.c.h.b16 %v185
  %v1666 = vunpack.c.l.b16 %v186
  %v1667 = vunpack.c.h.b16 %v186
  %v1668 = vunpack.c.l.b16 %v187
  %v1669 = vunpack.c.h.b16 %v187
  %v1670 = vunpack.c.l.b16 %v188
  %v1671 = vunpack.c.h.b16 %v188
  %v1672 = vunpack.c.l.b16 %v189
  %v1673 = vunpack.c.h.b16 %v189
  %v1674 = vunpack.c.l.b16 %v190
  %v1675 = vunpack.c.h.b16 %v190
  %v1676 = vunpack.c.l.b16 %v191
  %v1677 = vunpack.c.h.b16 %v191
  %v1678 = vunpack.c.l.b16 %v192
  %v1679 = vunpack.c.h.b16 %v192
  %v1680 = vunpack.c.l.b16 %v193
  %v1681 = vunpack.c.h.b16 %v193
  %v1682 = vunpack.c.l.b16 %v194
  %v1683 = vunpack.c.h.b16 %v194
  %v1684 = vunpack.c.l.b16 %v195
  %v1685 = vunpack.c.h.b16 %v195
  %v1686 = vunpack.c.l.b16 %v196
  %v1687 = vunpack.c.h.b16 %v196
  %v1688 = vunpack.c.l.b16 %v197
  %v1689 = vunpack.c.h.b16 %v197
  %v1690 = vunpack.c.l.b16 %v198
  %v1691 = vunpack.c.h.b16 %v198
  %v1692 = vunpack.c.l.b16 %v199
  %v1693 = vunpack.c.h.b16 %v199
  %v1694 = vunpack.c.l.b16 %v200
  %v1695 = vunpack.c.h.b16 %v200
  %v1696 = vunpack.c.l.b16 %v201
  %v1697 = vunpack.c.h.b16 %v201
  %v1698 = vunpack.c.l.b16 %v202
  %v1699 = vunpack.c.h.b16 %v202
  %v1700 = vunpack.c.l.b16 %v203
  %v1701 = vunpack.c.h.b16 %v203
  %v1702 = vunpack.c.l.b16 %v204
  %v1703 = vunpack.c.h.b16 %v204
  %v1704 = vunpack.c.l.b16 %v205
  %v1705 = vunpack.c.h.b16 %v205
  %v1706 = vunpack.c.l.b16 %v206
  %v1707 = vunpack.c.h.b16 %v206
  %v1708 = vunpack.c.l.b16 %v207
  %v1709 = vunpack.c.h.b16 %v207
  %v1710 = vunpack.c.l.b16 %v208
  %v1711 = vunpack.c.h.b16 %v208
  %v1712 = vunpack.c.l.b16 %v209
  %v1713 = vunpack.c.h.b16 %v209
  %v1714 = vunpack.c.l.b16 %v210
  %v1715 = vunpack.c.h.b16 %v210
  %v1716 = vunpack.c.l.b16 %v211
  %v1717 = vunpack.c.h.b16 %v211
  %v1718 = vunpack.c.l.b16 %v212
  %v1719 = vunpack.c.h.b16 %v212
  %v1720 = vunpack.c.l.b16 %v213
  %v1721 = vunpack.c.h.b16 %v213
  %v1722 = vunpack.c.l.b16 %v214
  %v1723 = vunpack.c.h.b16 %v214
  %v1724 = vunpack.c.l.b16 %v215
  %v1725 = vunpack.c.h.b16 %v215
  %v1726 = vunpack.c.l.b16 %v216
  %v1727 = vunpack.c.h.b16 %v216
  %v1728 = vunpack.c.l.b16 %v217
  %v1729 = vunpack.c.h.b16 %v217
  %v1730 = vunpack.c.l.b16 %v218
  %v1731 = vunpack.c.h.b16 %v218
  %v1732 = vunpack.c.l.b16 %v219
  %v1733 = vunpack.c.h.b16 %v219
  %v1734 = vunpack.c.l.b16 %v220
  %v1735 = vunpack.c.h.b16 %v220
  %v1736 = vunpack.c.l.b16 %v221
  %v1737 = vunpack.c.h.b16 %v221
  %v1738 = vunpack.c.l.b16 %v222
  %v1739 = vunpack.c.h.b16 %v222
  %v1740 = vunpack.c.l.b16 %v223
  %v1741 = vunpack.c.h.b16 %v223
  %v1742 = vunpack.c.l.b16 %v224
  %v1743 = vunpack.c.h.b16 %v224
  %v1744 = vunpack.c.l.b16 %v225
  %v1745 = vunpack.c.h.b16 %v225
  %v1746 = vunpack.c.l.b16 %v226
  %v1747 = vunpack.c.h.b16 %v226
  %v1748 = vunpack.c.l.b16 %v227
  %v1749 = vunpack.c.h.b16 %v227
  %v1750 = vunpack.c.l.b16 %v228
  %v1751 = vunpack.c.h.b16 %v228
  %v1752 = vunpack.c.l.b16 %v229
  %v1753 = vunpack.c.h.b16 %v229
  %v1754 = vunpack.c.l.b16 %v230
  %v1755 = vunpack.c.h.b16 %v230
  %v1756 = vunpack.c.l.b16 %v231
  %v1757 = vunpack.c.h.b16 %v231
  %v1758 = vunpack.c.l.b16 %v232
  %v1759 = vunpack.c.h.b16 %v232
  %v1760 = vunpack.c.l.b16 %v233
  %v1761 = vunpack.c.h.b16 %v233
  %v1762 = vunpack.c.l.b16 %v234
  %v1763 = vunpack.c.h.b16 %v234
  %v1764 = vunpack.c.l.b16 %v235
  %v1765 = vunpack.c.h.b16 %v235
  %v1766 = vunpack.c.l.b16 %v236
  %v1767 = vunpack.c.h.b16 %v236
  %v1768 = vunpack.c.l.b16 %v237
  %v1769 = vunpack.c.h.b16 %v237
  %v1770 = vunpack.c.l.b16 %v238
  %v1771 = vunpack.c.h.b16 %v238
  %v1772 = vunpack.c.l.b16 %v239
  %v1773 = vunpack.c.h.b16 %v239
  %v1774 = vunpack.c.l.b16 %v240
  %v1775 = vunpack.c.h.b16 %v240
  %v1776 = vunpack.c.l.b16 %v241
  %v1777 = vunpack.c.h.b16 %v241
  %v1778 = vunpack.c.l.b16 %v242
  %v1779 = vunpack.c.h.b16 %v242
  %v1780 = vunpack.c.l.b16 %v243
  %v1781 = vunpack.c.h.b16 %v243
  %v1782 = vunpack.c.l.b16 %v244
  %v1783 = vunpack.c.h.b16 %v244
  %v1784 = vunpack.c.l.b16 %v245
  %v1785 = vunpack.c.h.b16 %v245
  %v1786 = vunpack.c.l.b16 %v246
  %v1787 = vunpack.c.h.b16 %v246
  %v1788 = vunpack.c.l.b16 %v247
  %v1789 = vunpack.c.h.b16 %v247
  %v1790 = vunpack.c.l.b16 %v248
  %v1791 = vunpack.c.h.b16 %v248
  %v1792 = vunpack.c.l.b16 %v249
  %v1793 = vunpack.c.h.b16 %v249
  %v1794 = vunpack.c.l.b16 %v250
  %v1795 = vunpack.c.h.b16 %v250
  %v1796 = vunpack.c.l.b16 %v251
  %v1797 = vunpack.c.h.b16 %v251
  %v1798 = vunpack.c.l.b16 %v252
  %v1799 = vunpack.c.h.b16 %v252
  %v1800 = vunpack.c.l.b16 %v253
  %v1801 = vunpack.c.h.b16 %v253
  %v1802 = vunpack.c.l.b16 %v254
  %v1803 = vunpack.c.h.b16 %v254
  %v1804 = vunpack.c.l.b16 %v255
  %v1805 = vunpack.c.h.b16 %v255
  %v1806 = vunpack.c.l.b16 %v256
  %v1807 = vunpack.c.h.b16 %v256
  %v1808 = vunpack.c.l.b16 %v257
  %v1809 = vunpack.c.h.b16 %v257
  %v1810 = vunpack.c.l.b16 %v258
  %v1811 = vunpack.c.h.b16 %v258
  %v1812 = vunpack.c.l.b16 %v259
  %v1813 = vunpack.c.h.b16 %v259
  %v1814 = vunpack.c.l.b16 %v260
  %v1815 = vunpack.c.h.b16 %v260
  %v1816 = vunpack.c.l.b16 %v261
  %v1817 = vunpack.c.h.b16 %v261
  %v1818 = vunpack.c.l.b16 %v262
  %v1819 = vunpack.c.h.b16 %v262
  %v1820 = vunpack.c.l.b16 %v263
  %v1821 = vunpack.c.h.b16 %v263
  %v1822 = vunpack.c.l.b16 %v264
  %v1823 = vunpack.c.h.b16 %v264
  %v1824 = vunpack.c.l.b16 %v265
  %v1825 = vunpack.c.h.b16 %v265
  %v1826 = vunpack.c.l.b16 %v266
  %v1827 = vunpack.c.h.b16 %v266
  %v1828 = vunpack.c.l.b16 %v267
  %v1829 = vunpack.c.h.b16 %v267
  %v1830 = vunpack.c.l.b16 %v268
  %v1831 = vunpack.c.h.b16 %v268
  %v1832 = vunpack.c.l.b16 %v269
  %v1833 = vunpack.c.h.b16 %v269
  %v1834 = vunpack.c.l.b16 %v270
  %v1835 = vunpack.c.h.b16 %v270
  %v1836 = vunpack.c.l.b16 %v271
  %v1837 = vunpack.c.h.b16 %v271
  %v1838 = vunpack.c.l.b16 %v272
  %v1839 = vunpack.c.h.b16 %v272
  %v1840 = vunpack.c.l.b16 %v273
  %v1841 = vunpack.c.h.b16 %v273
  %v1842 = vunpack.c.l.b16 %v274
  %v1843 = vunpack.c.h.b16 %v274
  %v1844 = vunpack.c.l.b16 %v275
  %v1845 = vunpack.c.h.b16 %v275
  %v1846 = vunpack.c.l.b16 %v276
  %v1847 = vunpack.c.h.b16 %v276
  %v1848 = vunpack.c.l.b16 %v277
  %v1849 = vunpack.c.h.b16 %v277
  %v1850 = vunpack.c.l.b16 %v278
  %v1851 = vunpack.c.h.b16 %v278
  %v1852 = vunpack.c.l.b16 %v279
  %v1853 = vunpack.c.h.b16 %v279
  %v1854 = vunpack.c.l.b16 %v280
  %v1855 = vunpack.c.h.b16 %v280
  %v1856 = vunpack.c.l.b16 %v281
  %v1857 = vunpack.c.h.b16 %v281
  %v1858 = vunpack.c.l.b16 %v282
  %v1859 = vunpack.c.h.b16 %v282
  %v1860 = vunpack.c.l.b16 %v283
  %v1861 = vunpack.c.h.b16 %v283
  %v1862 = vunpack.c.l.b16 %v284
  %v1863 = vunpack.c.h.b16 %v284
  %v1864 = vunpack.c.l.b16 %v285
  %v1865 = vunpack.c.h.b16 %v285
  %v1866 = vunpack.c.l.b16 %v286
  %v1867 = vunpack.c.h.b16 %v286
  %v1868 = vunpack.c.l.b16 %v287
  %v1869 = vunpack.c.h.b16 %v287
  %v1870 = vunpack.c.l.b16 %v288
  %v1871 = vunpack.c.h.b16 %v288
  %v1872 = vunpack.c.l.b16 %v289
  %v1873 = vunpack.c.h.b16 %v289
  %v1874 = vunpack.c.l.b16 %v290
  %v1875 = vunpack.c.h.b16 %v290
  %v1876 = vunpack.c.l.b16 %v291
  %v1877 = vunpack.c.h.b16 %v291
  %v1878 = vunpack.c.l.b16 %v292
  %v1879 = vunpack.c.h.b16 %v292
  %v1880 = vunpack.c.l.b16 %v293
  %v1881 = vunpack.c.h.b16 %v293
  %v1882 = vunpack.c.l.b16 %v294
  %v1883 = vunpack.c.h.b16 %v294
  %v1884 = vunpack.c.l.b16 %v295
  %v1885 = vunpack.c.h.b16 %v295
  %v1886 = vunpack.c.l.b16 %v296
  %v1887 = vunpack.c.h.b16 %v296
  %v1888 = vunpack.c.l.b16 %v297
  %v1889 = vunpack.c.h.b16 %v297
  %v1890 = vunpack.c.l.b16 %v298
  %v1891 = vunpack.c.h.b16 %v298
  %v1892 = vunpack.c.l.b16 %v299
  %v1893 = vunpack.c.h.b16 %v299
  %v1894 = vunpack.c.l.b16 %v300
  %v1895 = vunpack.c.h.b16 %v300
  %v1896 = vunpack.c.l.b16 %v301
  %v1897 = vunpack.c.h.b16 %v301
  %v1898 = vunpack.c.l.b16 %v302
  %v1899 = vunpack.c.h.b16 %v302
  %v1900 = vunpack.c.l.b16 %v303
  %v1901 = vunpack.c.h.b16 %v303
  %v1902 = vunpack.c.l.b16 %v304
  %v1903 = vunpack.c.h.b16 %v304
  %v1904 = vunpack.c.l.b16 %v305
  %v1905 = vunpack.c.h.b16 %v305
  %v1906 = vunpack.c.l.b16 %v306
  %v1907 = vunpack.c.h.b16 %v306
  %v1908 = vunpack.c.l.b16 %v307
  %v1909 = vunpack.c.h.b16 %v307
  %v1910 = vunpack.c.l.b16 %v308
  %v1911 = vunpack.c.h.b16 %v308
  %v1912 = vunpack.c.l.b16 %v309
  %v1913 = vunpack.c.h.b16 %v309
  %v1914 = vunpack.c.l.b16 %v310
  %v1915 = vunpack.c.h.b16 %v310
  %v1916 = vunpack.c.l.b16 %v311
  %v1917 = vunpack.c.h.b16 %v311
  %v1918 = vunpack.c.l.b16 %v312
  %v1919 = vunpack.c.h.b16 %v312
  %v1920 = vunpack.c.l.b16 %v313
  %v1921 = vunpack.c.h.b16 %v313
  %v1922 = vunpack.c.l.b16 %v314
  %v1923 = vunpack.c.h.b16 %v314
  %v1924 = vunpack.c.l.b16 %v315
  %v1925 = vunpack.c.h.b16 %v315
  %v1926 = vunpack.c.l.b16 %v316
  %v1927 = vunpack.c.h.b16 %v316
  %v1928 = vunpack.c.l.b16 %v317
  %v1929 = vunpack.c.h.b16 %v317
  %v1930 = vunpack.c.l.b16 %v318
  %v1931 = vunpack.c.h.b16 %v318
  %v1932 = vunpack.c.l.b16 %v319
  %v1933 = vunpack.c.h.b16 %v319
  %v1934 = vunpack.c.l.b16 %v320
  %v1935 = vunpack.c.h.b16 %v320
  %v1936 = vunpack.c.l.b16 %v321
  %v1937 = vunpack.c.h.b16 %v321
  %v1938 = vunpack.c.l.b16 %v322
  %v1939 = vunpack.c.h.b16 %v322
  %v1940 = vunpack.c.l.b16 %v323
  %v1941 = vunpack.c.h.b16 %v323
  %v1942 = vunpack.c.l.b16 %v324
  %v1943 = vunpack.c.h.b16 %v324
  %v1944 = vunpack.c.l.b16 %v325
  %v1945 = vunpack.c.h.b16 %v325
  %v1946 = vunpack.c.l.b16 %v326
  %v1947 = vunpack.c.h.b16 %v326
  %v1948 = vunpack.c.l.b16 %v327
  %v1949 = vunpack.c.h.b16 %v327
  %v1950 = vunpack.c.l.b16 %v328
  %v1951 = vunpack.c.h.b16 %v328
  %v1952 = vunpack.c.l.b16 %v329
  %v1953 = vunpack.c.h.b16 %v329
  %v1954 = vunpack.c.l.b16 %v330
  %v1955 = vunpack.c.h.b16 %v330
  %v1956 = vunpack.c.l.b16 %v331
  %v1957 = vunpack.c.h.b16 %v331
  %v1958 = vunpack.c.l.b16 %v332
  %v1959 = vunpack.c.h.b16 %v332
  %v1960 = vunpack.c.l.b16 %v333
  %v1961 = vunpack.c.h.b16 %v333
  %v1962 = vunpack.c.l.b16 %v334
  %v1963 = vunpack.c.h.b16 %v334
  %v1964 = vunpack.c.l.b16 %v335
  %v1965 = vunpack.c.h.b16 %v335
  %v1966 = vunpack.c.l.b16 %v336
  %v1967 = vunpack.c.h.b16 %v336
  %v1968 = vunpack.c.l.b16 %v337
  %v1969 = vunpack.c.h.b16 %v337
  %v1970 = vunpack.c.l.b16 %v338
  %v1971 = vunpack.c.h.b16 %v338
  %v1972 = vunpack.c.l.b16 %v339
  %v1973 = vunpack.c.h.b16 %v339
  %v1974 = vunpack.c.l.b16 %v340
  %v1975 = vunpack.c.h.b16 %v340
  %v1976 = vunpack.c.l.b16 %v341
  %v1977 = vunpack.c.h.b16 %v341
  %v1978 = vunpack.c.l.b16 %v342
  %v1979 = vunpack.c.h.b16 %v342
  %v1980 = vunpack.c.l.b16 %v343
  %v1981 = vunpack.c.h.b16 %v343
  %v1982 = vunpack.c.l.b16 %v344
  %v1983 = vunpack.c.h.b16 %v344
  %v1984 = vunpack.c.l.b16 %v345
  %v1985 = vunpack.c.h.b16 %v345
  %v1986 = vunpack.c.l.b16 %v346
  %v1987 = vunpack.c.h.b16 %v346
  %v1988 = vunpack.c.l.b16 %v347
  %v1989 = vunpack.c.h.b16 %v347
  %v1990 = vunpack.c.l.b16 %v348
  %v1991 = vunpack.c.h.b16 %v348
  %v1992 = vunpack.c.l.b16 %v349
  %v1993 = vunpack.c.h.b16 %v349
  %v1994 = vunpack.c.l.b16 %v350
  %v1995 = vunpack.c.h.b16 %v350
  %v1996 = vunpack.c.l.b16 %v351
  %v1997 = vunpack.c.h.b16 %v351
  %v1998 = vunpack.c.l.b16 %v352
  %v1999 = vunpack.c.h.b16 %v352
  %v2000 = vunpack.c.l.b16 %v353
  %v2001 = vunpack.c.h.b16 %v353
  %v2002 = vunpack.c.l.b16 %v354
  %v2003 = vunpack.c.h.b16 %v354
  %v2004 = vunpack.c.l.b16 %v355
  %v2005 = vunpack.c.h.b16 %v355
  %v2006 = vunpack.c.l.b16 %v356
  %v2007 = vunpack.c.h.b16 %v356
  %v2008 = vunpack.c.l.b16 %v357
  %v2009 = vunpack.c.h.b16 %v357
  %v2010 = vunpack.c.l.b16 %v358
  %v2011 = vunpack.c.h.b16 %v358
  %v2012 = vunpack.c.l.b16 %v359
  %v2013 = vunpack.c.h.b16 %v359
  %v2014 = vunpack.c.l.b16 %v360
  %v2015 = vunpack.c.h.b16 %v360
  %v2016 = vunpack.c.l.b16 %v361
  %v2017 = vunpack.c.h.b16 %v361
  %v2018 = vunpack.c.l.b16 %v362
  %v2019 = vunpack.c.h.b16 %v362
  %v2020 = vunpack.c.l.b16 %v363
  %v2021 = vunpack.c.h.b16 %v363
  %v2022 = vunpack.c.l.b16 %v364
  %v2023 = vunpack.c.h.b16 %v364
  %v2024 = vunpack.c.l.b16 %v365
  %v2025 = vunpack.c.h.b16 %v365
  %v2026 = vunpack.c.l.b16 %v366
  %v2027 = vunpack.c.h.b16 %v366
  %v2028 = vunpack.c.l.b16 %v367
  %v2029 = vunpack.c.h.b16 %v367
  %v2030 = vunpack.c.l.b16 %v368
  %v2031 = vunpack.c.h.b16 %v368
  %v2032 = vunpack.c.l.b16 %v369
  %v2033 = vunpack.c.h.b16 %v369
  %v2034 = vunpack.c.l.b16 %v370
  %v2035 = vunpack.c.h.b16 %v370
  %v2036 = vunpack.c.l.b16 %v371
  %v2037 = vunpack.c.h.b16 %v371
  %v2038 = vunpack.c.l.b16 %v372
  %v2039 = vunpack.c.h.b16 %v372
  %v2040 = vunpack.c.l.b16 %v373
  %v2041 = vunpack.c.h.b16 %v373
  %v2042 = vunpack.c.l.b16 %v374
  %v2043 = vunpack.c.h.b16 %v374
  %v2044 = vunpack.c.l.b16 %v375
  %v2045 = vunpack.c.h.b16 %v375
  %v2046 = vunpack.c.l.b16 %v376
  %v2047 = vunpack.c.h.b16 %v376
  %v2048 = vunpack.c.l.b16 %v377
  %v2049 = vunpack.c.h.b16 %v377
  %v2050 = vunpack.c.l.b16 %v378
  %v2051 = vunpack.c.h.b16 %v378
  %v2052 = vunpack.c.l.b16 %v379
  %v2053 = vunpack.c.h.b16 %v379
  %v2054 = vunpack.c.l.b16 %v380
  %v2055 = vunpack.c.h.b16 %v380
  %v2056 = vunpack.c.l.b16 %v381
  %v2057 = vunpack.c.h.b16 %v381
  %v2058 = vunpack.c.l.b16 %v382
  %v2059 = vunpack.c.h.b16 %v382
  %v2060 = vunpack.c.l.b16 %v383
  %v2061 = vunpack.c.h.b16 %v383
  %v2062 = vunpack.c.l.b16 %v384
  %v2063 = vunpack.c.h.b16 %v384
  %v2064 = vunpack.c.l.b16 %v385
  %v2065 = vunpack.c.h.b16 %v385
  %v2066 = vunpack.c.l.b16 %v386
  %v2067 = vunpack.c.h.b16 %v386
  %v2068 = vunpack.c.l.b16 %v387
  %v2069 = vunpack.c.h.b16 %v387
  %v2070 = vunpack.c.l.b16 %v388
  %v2071 = vunpack.c.h.b16 %v388
  %v2072 = vunpack.c.l.b16 %v389
  %v2073 = vunpack.c.h.b16 %v389
  %v2074 = vunpack.c.l.b16 %v390
  %v2075 = vunpack.c.h.b16 %v390
  %v2076 = vunpack.c.l.b16 %v391
  %v2077 = vunpack.c.h.b16 %v391
  %v2078 = vunpack.c.l.b16 %v392
  %v2079 = vunpack.c.h.b16 %v392
  %v2080 = vunpack.c.l.b16 %v393
  %v2081 = vunpack.c.h.b16 %v393
  %v2082 = vunpack.c.l.b16 %v394
  %v2083 = vunpack.c.h.b16 %v394
  %v2084 = vunpack.c.l.b16 %v395
  %v2085 = vunpack.c.h.b16 %v395
  %v2086 = vunpack.c.l.b16 %v396
  %v2087 = vunpack.c.h.b16 %v396
  %v2088 = vunpack.c.l.b16 %v397
  %v2089 = vunpack.c.h.b16 %v397
  %v2090 = vunpack.c.l.b16 %v398
  %v2091 = vunpack.c.h.b16 %v398
  %v2092 = vunpack.c.l.b16 %v399
  %v2093 = vunpack.c.h.b16 %v399
  %v2094 = vunpack.c.l.b16 %v400
  %v2095 = vunpack.c.h.b16 %v400
  %v2096 = vunpack.c.l.b16 %v401
  %v2097 = vunpack.c.h.b16 %v401
  %v2098 = vunpack.c.l.b16 %v402
  %v2099 = vunpack.c.h.b16 %v402
  %v2100 = vunpack.c.l.b16 %v403
  %v2101 = vunpack.c.h.b16 %v403
  %v2102 = vunpack.c.l.b16 %v404
  %v2103 = vunpack.c.h.b16 %v404
  %v2104 = vunpack.c.l.b16 %v405
  %v2105 = vunpack.c.h.b16 %v405
  %v2106 = vunpack.c.l.b16 %v406
  %v2107 = vunpack.c.h.b16 %v406
  %v2108 = vunpack.c.l.b16 %v407
  %v2109 = vunpack.c.h.b16 %v407
  %v2110 = vunpack.c.l.b16 %v408
  %v2111 = vunpack.c.h.b16 %v408
  %v2112 = vunpack.c.l.b16 %v409
  %v2113 = vunpack.c.h.b16 %v409
  %v2114 = vunpack.c.l.b16 %v410
  %v2115 = vunpack.c.h.b16 %v410
  %v2116 = vunpack.c.l.b16 %v411
  %v2117 = vunpack.c.h.b16 %v411
  %v2118 = vunpack.c.l.b16 %v412
  %v2119 = vunpack.c.h.b16 %v412
  %v2120 = vunpack.c.l.b16 %v413
  %v2121 = vunpack.c.h.b16 %v413
  %v2122 = vunpack.c.l.b16 %v414
  %v2123 = vunpack.c.h.b16 %v414
  %v2124 = vunpack.c.l.b16 %v415
  %v2125 = vunpack.c.h.b16 %v415
  %v2126 = vunpack.c.l.b16 %v416
  %v2127 = vunpack.c.h.b16 %v416
  %v2128 = vunpack.c.l.b16 %v417
  %v2129 = vunpack.c.h.b16 %v417
  %v2130 = vunpack.c.l.b16 %v418
  %v2131 = vunpack.c.h.b16 %v418
  %v2132 = vunpack.c.l.b16 %v419
  %v2133 = vunpack.c.h.b16 %v419
  %v2134 = vunpack.c.l.b16 %v420
  %v2135 = vunpack.c.h.b16 %v420
  %v2136 = vunpack.c.l.b16 %v421
  %v2137 = vunpack.c.h.b16 %v421
  %v2138 = vunpack.c.l.b16 %v422
  %v2139 = vunpack.c.h.b16 %v422
  %v2140 = vunpack.c.l.b16 %v423
  %v2141 = vunpack.c.h.b16 %v423
  %v2142 = vunpack.c.l.b16 %v424
  %v2143 = vunpack.c.h.b16 %v424
  %v2144 = vunpack.c.l.b16 %v425
  %v2145 = vunpack.c.h.b16 %v425
  %v2146 = vunpack.c.l.b16 %v426
  %v2147 = vunpack.c.h.b16 %v426
  %v2148 = vunpack.c.l.b16 %v427
  %v2149 = vunpack.c.h.b16 %v427
  %v2150 = vunpack.c.l.b16 %v428
  %v2151 = vunpack.c.h.b16 %v428
  %v2152 = vunpack.c.l.b16 %v429
  %v2153 = vunpack.c.h.b16 %v429
  %v2154 = vunpack.c.l.b16 %v430
  %v2155 = vunpack.c.h.b16 %v430
  %v2156 = vunpack.c.l.b16 %v431
  %v2157 = vunpack.c.h.b16 %v431
  %v2158 = vunpack.c.l.b16 %v432
  %v2159 = vunpack.c.h.b16 %v432
  %v2160 = vunpack.c.l.b16 %v433
  %v2161 = vunpack.c.h.b16 %v433
  %v2162 = vunpack.c.l.b16 %v434
  %v2163 = vunpack.c.h.b16 %v434
  %v2164 = vunpack.c.l.b16 %v435
  %v2165 = vunpack.c.h.b16 %v435
  %v2166 = vunpack.c.l.b16 %v436
  %v2167 = vunpack.c.h.b16 %v436
  %v2168 = vunpack.c.l.b16 %v437
  %v2169 = vunpack.c.h.b16 %v437
  %v2170 = vunpack.c.l.b16 %v438
  %v2171 = vunpack.c.h.b16 %v438
  %v2172 = vunpack.c.l.b16 %v439
  %v2173 = vunpack.c.h.b16 %v439
  %v2174 = vunpack.c.l.b16 %v440
  %v2175 = vunpack.c.h.b16 %v440
  %v2176 = vunpack.c.l.b16 %v441
  %v2177 = vunpack.c.h.b16 %v441
  %v2178 = vunpack.c.l.b16 %v442
  %v2179 = vunpack.c.h.b16 %v442
  %v2180 = vunpack.c.l.b16 %v443
  %v2181 = vunpack.c.h.b16 %v443
  %v2182 = vunpack.c.l.b16 %v444
  %v2183 = vunpack.c.h.b16 %v444
  %v2184 = vunpack.c.l.b16 %v445
  %v2185 = vunpack.c.h.b16 %v445
  %v2186 = vunpack.c.l.b16 %v446
  %v2187 = vunpack.c.h.b16 %v446
  %v2188 = vunpack.c.l.b16 %v447
  %v2189 = vunpack.c.h.b16 %v447
  %v2190 = vunpack.c.l.b16 %v448
  %v2191 = vunpack.c.h.b16 %v448
  %v2192 = vunpack.c.l.b16 %v449
  %v2193 = vunpack.c.h.b16 %v449
  %v2194 = vunpack.c.l.b16 %v450
  %v2195 = vunpack.c.h.b16 %v450
  %v2196 = vunpack.c.l.b16 %v451
  %v2197 = vunpack.c.h.b16 %v451
  %v2198 = vunpack.c.l.b16 %v452
  %v2199 = vunpack.c.h.b16 %v452
  %v2200 = vunpack.c.l.b16 %v453
  %v2201 = vunpack.c.h.b16 %v453
  %v2202 = vunpack.c.l.b16 %v454
  %v2203 = vunpack.c.h.b16 %v454
  %v2204 = vunpack.c.l.b16 %v455
  %v2205 = vunpack.c.h.b16 %v455
  %v2206 = vunpack.c.l.b16 %v456
  %v2207 = vunpack.c.h.b16 %v456
  %v2208 = vunpack.c.l.b16 %v457
  %v2209 = vunpack.c.h.b16 %v457
  %v2210 = vunpack.c.l.b16 %v458
  %v2211 = vunpack.c.h.b16 %v458
  %v2212 = vunpack.c.l.b16 %v459
  %v2213 = vunpack.c.h.b16 %v459
  %v2214 = vunpack.c.l.b16 %v460
  %v2215 = vunpack.c.h.b16 %v460
  %v2216 = vunpack.c.l.b16 %v461
  %v2217 = vunpack.c.h.b16 %v461
  %v2218 = vunpack.c.l.b16 %v462
  %v2219 = vunpack.c.h.b16 %v462
  %v2220 = vunpack.c.l.b16 %v463
  %v2221 = vunpack.c.h.b16 %v463
  %v2222 = vunpack.c.l.b16 %v464
  %v2223 = vunpack.c.h.b16 %v464
  %v2224 = vunpack.c.l.b16 %v465
  %v2225 = vunpack.c.h.b16 %v465
  %v2226 = vunpack.c.l.b16 %v466
  %v2227 = vunpack.c.h.b16 %v466
  %v2228 = vunpack.c.l.b16 %v467
  %v2229 = vunpack.c.h.b16 %v467
  %v2230 = vunpack.c.l.b16 %v468
  %v2231 = vunpack.c.h.b16 %v468
  %v2232 = vunpack.c.l.b16 %v469
  %v2233 = vunpack.c.h.b16 %v469
  %v2234 = vunpack.c.l.b16 %v470
  %v2235 = vunpack.c.h.b16 %v470
  %v2236 = vunpack.c.l.b16 %v471
  %v2237 = vunpack.c.h.b16 %v471
  %v2238 = vunpack.c.l.b16 %v472
  %v2239 = vunpack.c.h.b16 %v472
  %v2240 = vunpack.c.l.b16 %v473
  %v2241 = vunpack.c.h.b16 %v473
  %v2242 = vunpack.c.l.b16 %v474
  %v2243 = vunpack.c.h.b16 %v474
  %v2244 = vunpack.c.l.b16 %v475
  %v2245 = vunpack.c.h.b16 %v475
  %v2246 = vunpack.c.l.b16 %v476
  %v2247 = vunpack.c.h.b16 %v476
  %v2248 = vunpack.c.l.b16 %v477
  %v2249 = vunpack.c.h.b16 %v477
  %v2250 = vunpack.c.l.b16 %v478
  %v2251 = vunpack.c.h.b16 %v478
  %v2252 = vunpack.c.l.b16 %v479
  %v2253 = vunpack.c.h.b16 %v479
  %v2254 = vunpack.c.l.b16 %v480
  %v2255 = vunpack.c.h.b16 %v480
  %v2256 = vunpack.c.l.b16 %v481
  %v2257 = vunpack.c.h.b16 %v481
  %v2258 = vunpack.c.l.b16 %v482
  %v2259 = vunpack.c.h.b16 %v482
  %v2260 = vunpack.c.l.b16 %v483
  %v2261 = vunpack.c.h.b16 %v483
  %v2262 = vunpack.c.l.b16 %v484
  %v2263 = vunpack.c.h.b16 %v484
  %v2264 = vunpack.c.l.b16 %v485
  %v2265 = vunpack.c.h.b16 %v485
  %v2266 = vunpack.c.l.b16 %v486
  %v2267 = vunpack.c.h.b16 %v486
  %v2268 = vunpack.c.l.b16 %v487
  %v2269 = vunpack.c.h.b16 %v487
  %v2270 = vunpack.c.l.b16 %v488
  %v2271 = vunpack.c.h.b16 %v488
  %v2272 = vunpack.c.l.b16 %v489
  %v2273 = vunpack.c.h.b16 %v489
  %v2274 = vunpack.c.l.b16 %v490
  %v2275 = vunpack.c.h.b16 %v490
  %v2276 = vunpack.c.l.b16 %v491
  %v2277 = vunpack.c.h.b16 %v491
  %v2278 = vunpack.c.l.b16 %v492
  %v2279 = vunpack.c.h.b16 %v492
  %v2280 = vunpack.c.l.b16 %v493
  %v2281 = vunpack.c.h.b16 %v493
  %v2282 = vunpack.c.l.b16 %v494
  %v2283 = vunpack.c.h.b16 %v494
  %v2284 = vunpack.c.l.b16 %v495
  %v2285 = vunpack.c.h.b16 %v495
  %v2286 = vunpack.c.l.b16 %v496
  %v2287 = vunpack.c.h.b16 %v496
  %v2288 = vunpack.c.l.b16 %v497
  %v2289 = vunpack.c.h.b16 %v497
  %v2290 = vunpack.c.l.b16 %v498
  %v2291 = vunpack.c.h.b16 %v498
  %v2292 = vunpack.c.l.b16 %v499
  %v2293 = vunpack.c.h.b16 %v499
  %v2294 = vunpack.c.l.b16 %v500
  %v2295 = vunpack.c.h.b16 %v500
  %v2296 = vunpack.c.l.b16 %v501
  %v2297 = vunpack.c.h.b16 %v501
  %v2298 = vunpack.c.l.b16 %v502
  %v2299 = vunpack.c.h.b16 %v502
  %v2300 = vunpack.c.l.b16 %v503
  %v2301 = vunpack.c.h.b16 %v503
  %v2302 = vunpack.c.l.b16 %v504
  %v2303 = vunpack.c.h.b16 %v504
  %v2304 = vunpack.c.l.b16 %v505
  %v2305 = vunpack.c.h.b16 %v505
  %v2306 = vunpack.c.l.b16 %v506
  %v2307 = vunpack.c.h.b16 %v506
  %v2308 = vunpack.c.l.b16 %v507
  %v2309 = vunpack.c.h.b16 %v507
  %v2310 = vunpack.c.l.b16 %v508
  %v2311 = vunpack.c.h.b16 %v508
  %v2312 = vunpack.c.l.b16 %v509
  %v2313 = vunpack.c.h.b16 %v509
  %v2314 = vunpack.c.l.b16 %v510
  %v2315 = vunpack.c.h.b16 %v510
  %v2316 = vunpack.c.l.b16 %v511
  %v2317 = vunpack.c.h.b16 %v511
  %v2318 = vunpack.c.l.b16 %v512
  %v2319 = vunpack.c.h.b16 %v512
  %v2320 = vunpack.c.l.b16 %v513
  %v2321 = vunpack.c.h.b16 %v513
  %v2322 = vunpack.c.l.b16 %v514
  %v2323 = vunpack.c.h.b16 %v514
  %v2324 = vunpack.c.l.b16 %v515
  %v2325 = vunpack.c.h.b16 %v515
  %v2326 = vunpack.c.l.b16 %v516
  %v2327 = vunpack.c.h.b16 %v516
  %v2328 = vunpack.c.l.b16 %v517
  %v2329 = vunpack.c.h.b16 %v517
  %v2330 = vunpack.c.l.b16 %v518
  %v2331 = vunpack.c.h.b16 %v518
  %v2332 = vunpack.c.l.b16 %v519
  %v2333 = vunpack.c.h.b16 %v519
  %v2334 = vunpack.c.l.b16 %v520
  %v2335 = vunpack.c.h.b16 %v520
  %v2336 = vunpack.c.l.b16 %v521
  %v2337 = vunpack.c.h.b16 %v521
  %v2338 = vunpack.c.l.b16 %v522
  %v2339 = vunpack.c.h.b16 %v522
  %v2340 = vunpack.c.l.b16 %v523
  %v2341 = vunpack.c.h.b16 %v523
  %v2342 = vunpack.c.l.b16 %v524
  %v2343 = vunpack.c.h.b16 %v524
  %v2344 = vunpack.c.l.b16 %v525
  %v2345 = vunpack.c.h.b16 %v525
  %v2346 = vunpack.c.l.b16 %v526
  %v2347 = vunpack.c.h.b16 %v526
  %v2348 = vunpack.c.l.b16 %v527
  %v2349 = vunpack.c.h.b16 %v527
  %v2350 = vunpack.c.l.b16 %v528
  %v2351 = vunpack.c.h.b16 %v528
  %v2352 = vunpack.c.l.b16 %v529
  %v2353 = vunpack.c.h.b16 %v529
  %v2354 = vunpack.c.l.b16 %v530
  %v2355 = vunpack.c.h.b16 %v530
  %v2356 = vunpack.c.l.b16 %v531
  %v2357 = vunpack.c.h.b16 %v531
  %v2358 = vunpack.c.l.b16 %v532
  %v2359 = vunpack.c.h.b16 %v532
  %v2360 = vunpack.c.l.b16 %v533
  %v2361 = vunpack.c.h.b16 %v533
  %v2362 = vunpack.c.l.b16 %v534
  %v2363 = vunpack.c.h.b16 %v534
  %v2364 = vunpack.c.l.b16 %v535
  %v2365 = vunpack.c.h.b16 %v535
  %v2366 = vunpack.c.l.b16 %v536
  %v2367 = vunpack.c.h.b16 %v536
  %v2368 = vunpack.c.l.b16 %v537
  %v2369 = vunpack.c.h.b16 %v537
  %v2370 = vunpack.c.l.b16 %v538
  %v2371 = vunpack.c.h.b16 %v538
  %v2372 = vunpack.c.l.b16 %v539
  %v2373 = vunpack.c.h.b16 %v539
  %v2374 = vunpack.c.l.b16 %v540
  %v2375 = vunpack.c.h.b16 %v540
  %v2376 = vunpack.c.l.b16 %v541
  %v2377 = vunpack.c.h.b16 %v541
  %v2378 = vunpack.c.l.b16 %v542
  %v2379 = vunpack.c.h.b16 %v542
  %v2380 = vunpack.c.l.b16 %v543
  %v2381 = vunpack.c.h.b16 %v543
  %v2382 = vunpack.c.l.b16 %v544
  %v2383 = vunpack.c.h.b16 %v544
  %v2384 = vunpack.c.l.b16 %v545
  %v2385 = vunpack.c.h.b16 %v545
  %v2386 = vunpack.c.l.b16 %v546
  %v2387 = vunpack.c.h.b16 %v546
  %v2388 = vunpack.c.l.b16 %v547
  %v2389 = vunpack.c.h.b16 %v547
  %v2390 = vunpack.c.l.b16 %v548
  %v2391 = vunpack.c.h.b16 %v548
  %v2392 = vunpack.c.l.b16 %v549
  %v2393 = vunpack.c.h.b16 %v549
  %v2394 = vunpack.c.l.b16 %v550
  %v2395 = vunpack.c.h.b16 %v550
  %v2396 = vunpack.c.l.b16 %v551
  %v2397 = vunpack.c.h.b16 %v551
  %v2398 = vunpack.c.l.b16 %v552
  %v2399 = vunpack.c.h.b16 %v552
  %v2400 = vunpack.c.l.b16 %v553
  %v2401 = vunpack.c.h.b16 %v553
  %v2402 = vunpack.c.l.b16 %v554
  %v2403 = vunpack.c.h.b16 %v554
  %v2404 = vunpack.c.l.b16 %v555
  %v2405 = vunpack.c.h.b16 %v555
  %v2406 = vunpack.c.l.b16 %v556
  %v2407 = vunpack.c.h.b16 %v556
  %v2408 = vunpack.c.l.b16 %v557
  %v2409 = vunpack.c.h.b16 %v557
  %v2410 = vunpack.c.l.b16 %v558
  %v2411 = vunpack.c.h.b16 %v558
  %v2412 = vunpack.c.l.b16 %v559
  %v2413 = vunpack.c.h.b16 %v559
  %v2414 = vunpack.c.l.b16 %v560
  %v2415 = vunpack.c.h.b16 %v560
  %v2416 = vunpack.c.l.b16 %v561
  %v2417 = vunpack.c.h.b16 %v561
  %v2418 = vunpack.c.l.b16 %v562
  %v2419 = vunpack.c.h.b16 %v562
  %v2420 = vunpack.c.l.b16 %v563
  %v2421 = vunpack.c.h.b16 %v563
  %v2422 = vunpack.c.l.b16 %v564
  %v2423 = vunpack.c.h.b16 %v564
  %v2424 = vunpack.c.l.b16 %v565
  %v2425 = vunpack.c.h.b16 %v565
  %v2426 = vunpack.c.l.b16 %v566
  %v2427 = vunpack.c.h.b16 %v566
  %v2428 = vunpack.c.l.b16 %v567
  %v2429 = vunpack.c.h.b16 %v567
  %v2430 = vunpack.c.l.b16 %v568
  %v2431 = vunpack.c.h.b16 %v568
  %v2432 = vunpack.c.l.b16 %v569
  %v2433 = vunpack.c.h.b16 %v569
  %v2434 = vunpack.c.l.b16 %v570
  %v2435 = vunpack.c.h.b16 %v570
  %v2436 = vunpack.c.l.b16 %v571
  %v2437 = vunpack.c.h.b16 %v571
  %v2438 = vunpack.c.l.b16 %v572
  %v2439 = vunpack.c.h.b16 %v572
  %v2440 = vunpack.c.l.b16 %v573
  %v2441 = vunpack.c.h.b16 %v573
  %v2442 = vunpack.c.l.b16 %v574
  %v2443 = vunpack.c.h.b16 %v574
  %v2444 = vunpack.c.l.b16 %v575
  %v2445 = vunpack.c.h.b16 %v575
  %v2446 = vunpack.c.l.b16 %v576
  %v2447 = vunpack.c.h.b16 %v576
  %v2448 = vunpack.c.l.b16 %v577
  %v2449 = vunpack.c.h.b16 %v577
  %v2450 = vunpack.c.l.b16 %v578
  %v2451 = vunpack.c.h.b16 %v578
  %v2452 = vunpack.c.l.b16 %v579
  %v2453 = vunpack.c.h.b16 %v579
  %v2454 = vunpack.c.l.b16 %v580
  %v2455 = vunpack.c.h.b16 %v580
  %v2456 = vunpack.c.l.b16 %v581
  %v2457 = vunpack.c.h.b16 %v581
  %v2458 = vunpack.c.l.b16 %v582
  %v2459 = vunpack.c.h.b16 %v582
  %v2460 = vunpack.c.l.b16 %v583
  %v2461 = vunpack.c.h.b16 %v583
  %v2462 = vunpack.c.l.b16 %v584
  %v2463 = vunpack.c.h.b16 %v584
  %v2464 = vunpack.c.l.b16 %v585
  %v2465 = vunpack.c.h.b16 %v585
  %v2466 = vunpack.c.l.b16 %v586
  %v2467 = vunpack.c.h.b16 %v586
  %v2468 = vunpack.c.l.b16 %v587
  %v2469 = vunpack.c.h.b16 %v587
  %v2470 = vunpack.c.l.b16 %v588
  %v2471 = vunpack.c.h.b16 %v588
  %v2472 = vunpack.c.l.b16 %v589
  %v2473 = vunpack.c.h.b16 %v589
  %v2474 = vunpack.c.l.b16 %v590
  %v2475 = vunpack.c.h.b16 %v590
  %v2476 = vunpack.c.l.b16 %v591
  %v2477 = vunpack.c.h.b16 %v591
  %v2478 = vunpack.c.l.b16 %v592
  %v2479 = vunpack.c.h.b16 %v592
  %v2480 = vunpack.c.l.b16 %v593
  %v2481 = vunpack.c.h.b16 %v593
  %v2482 = vunpack.c.l.b16 %v594
  %v2483 = vunpack.c.h.b16 %v594
  %v2484 = vunpack.c.l.b16 %v595
  %v2485 = vunpack.c.h.b16 %v595
  %v2486 = vunpack.c.l.b16 %v596
  %v2487 = vunpack.c.h.b16 %v596
  %v2488 = vunpack.c.l.b16 %v597
  %v2489 = vunpack.c.h.b16 %v597
  %v2490 = vunpack.c.l.b16 %v598
  %v2491 = vunpack.c.h.b16 %v598
  %v2492 = vunpack.c.l.b16 %v599
  %v2493 = vunpack.c.h.b16 %v599
  %v2494 = vunpack.c.l.b16 %v600
  %v2495 = vunpack.c.h.b16 %v600
  %v2496 = vunpack.c.l.b16 %v601
  %v2497 = vunpack.c.h.b16 %v601
  %v2498 = vunpack.c.l.b16 %v602
  %v2499 = vunpack.c.h.b16 %v602
  %v2500 = vunpack.c.l.b16 %v603
  %v2501 = vunpack.c.h.b16 %v603
  %v2502 = vunpack.c.l.b16 %v604
  %v2503 = vunpack.c.h.b16 %v604
  %v2504 = vunpack.c.l.b16 %v605
  %v2505 = vunpack.c.h.b16 %v605
  %v2506 = vunpack.c.l.b16 %v606
  %v2507 = vunpack.c.h.b16 %v606
  %v2508 = vunpack.c.l.b16 %v607
  %v2509 = vunpack.c.h.b16 %v607
  %v2510 = vunpack.c.l.b16 %v608
  %v2511 = vunpack.c.h.b16 %v608
  %v2512 = vunpack.c.l.b16 %v609
  %v2513 = vunpack.c.h.b16 %v609
  %v2514 = vunpack.c.l.b16 %v610
  %v2515 = vunpack.c.h.b16 %v610
  %v2516 = vunpack.c.l.b16 %v611
  %v2517 = vunpack.c.h.b16 %v611
  %v2518 = vunpack.c.l.b16 %v612
  %v2519 = vunpack.c.h.b16 %v612
  %v2520 = vunpack.c.l.b16 %v613
  %v2521 = vunpack.c.h.b16 %v613
  %v2522 = vunpack.c.l.b16 %v614
  %v2523 = vunpack.c.h.b16 %v614
  %v2524 = vunpack.c.l.b16 %v615
  %v2525 = vunpack.c.h.b16 %v615
  %v2526 = vunpack.c.l.b16 %v616
  %v2527 = vunpack.c.h.b16 %v616
  %v2528 = vunpack.c.l.b16 %v617
  %v2529 = vunpack.c.h.b16 %v617
  %v2530 = vunpack.c.l.b16 %v618
  %v2531 = vunpack.c.h.b16 %v618
  %v2532 = vunpack.c.l.b16 %v619
  %v2533 = vunpack.c.h.b16 %v619
  %v2534 = vunpack.c.l.b16 %v620
  %v2535 = vunpack.c.h.b16 %v620
  %v2536 = vunpack.c.l.b16 %v621
  %v2537 = vunpack.c.h.b16 %v621
  %v2538 = vunpack.c.l.b16 %v622
  %v2539 = vunpack.c.h.b16 %v622
  %v2540 = vunpack.c.l.b16 %v623
  %v2541 = vunpack.c.h.b16 %v623
  %v2542 = vunpack.c.l.b16 %v624
  %v2543 = vunpack.c.h.b16 %v624
  %v2544 = vunpack.c.l.b16 %v625
  %v2545 = vunpack.c.h.b16 %v625
  %v2546 = vunpack.c.l.b16 %v626
  %v2547 = vunpack.c.h.b16 %v626
  %v2548 = vunpack.c.l.b16 %v627
  %v2549 = vunpack.c.h.b16 %v627
  %v2550 = vunpack.c.l.b16 %v628
  %v2551 = vunpack.c.h.b16 %v628
  %v2552 = vunpack.c.l.b16 %v629
  %v2553 = vunpack.c.h.b16 %v629
  %v2554 = vunpack.c.l.b16 %v630
  %v2555 = vunpack.c.h.b16 %v630
  %v2556 = vunpack.c.l.b16 %v631
  %v2557 = vunpack.c.h.b16 %v631
  %v2558 = vunpack.c.l.b16 %v632
  %v2559 = vunpack.c.h.b16 %v632
  %v2560 = vunpack.c.l.b16 %v633
  %v2561 = vunpack.c.h.b16 %v633
  %v2562 = vunpack.c.l.b16 %v634
  %v2563 = vunpack.c.h.b16 %v634
  %v2564 = vunpack.c.l.b16 %v635
  %v2565 = vunpack.c.h.b16 %v635
  %v2566 = vunpack.c.l.b16 %v636
  %v2567 = vunpack.c.h.b16 %v636
  %v2568 = vunpack.c.l.b16 %v637
  %v2569 = vunpack.c.h.b16 %v637
  %v2570 = vunpack.c.l.b16 %v638
  %v2571 = vunpack.c.h.b16 %v638
  %v2572 = vunpack.c.l.b16 %v639
  %v2573 = vunpack.c.h.b16 %v639
  %v2574 = vunpack.c.l.b16 %v640
  %v2575 = vunpack.c.h.b16 %v640
  %v2576 = vunpack.c.l.b16 %v641
  %v2577 = vunpack.c.h.b16 %v641
  %v2578 = vunpack.c.l.b16 %v642
  %v2579 = vunpack.c.h.b16 %v642
  %v2580 = vunpack.c.l.b16 %v643
  %v2581 = vunpack.c.h.b16 %v643
  %v2582 = vunpack.c.l.b16 %v644
  %v2583 = vunpack.c.h.b16 %v644
  %v2584 = vunpack.c.l.b16 %v645
  %v2585 = vunpack.c.h.b16 %v645
  %v2586 = vunpack.c.l.b16 %v646
  %v2587 = vunpack.c.h.b16 %v646
  %v2588 = vunpack.c.l.b16 %v647
  %v2589 = vunpack.c.h.b16 %v647
  %v2590 = vunpack.c.l.b16 %v648
  %v2591 = vunpack.c.h.b16 %v648
  %v2592 = vunpack.c.l.b16 %v649
  %v2593 = vunpack.c.h.b16 %v649
  %v2594 = vunpack.c.l.b16 %v650
  %v2595 = vunpack.c.h.b16 %v650
  %v2596 = vunpack.c.l.b16 %v651
  %v2597 = vunpack.c.h.b16 %v651
  %v2598 = vunpack.c.l.b16 %v652
  %v2599 = vunpack.c.h.b16 %v652
  %v2600 = vunpack.c.l.b16 %v653
  %v2601 = vunpack.c.h.b16 %v653
  %v2602 = vunpack.c.l.b16 %v654
  %v2603 = vunpack.c.h.b16 %v654
  %v2604 = vunpack.c.l.b16 %v655
  %v2605 = vunpack.c.h.b16 %v655
  %v2606 = vunpack.c.l.b16 %v656
  %v2607 = vunpack.c.h.b16 %v656
  %v2608 = vunpack.c.l.b16 %v657
  %v2609 = vunpack.c.h.b16 %v657
  %v2610 = vunpack.c.l.b16 %v658
  %v2611 = vunpack.c.h.b16 %v658
  %v2612 = vunpack.c.l.b16 %v659
  %v2613 = vunpack.c.h.b16 %v659
  %v2614 = vunpack.c.l.b16 %v660
  %v2615 = vunpack.c.h.b16 %v660
  %v2616 = vunpack.c.l.b16 %v661
  %v2617 = vunpack.c.h.b16 %v661
  %v2618 = vunpack.c.l.b16 %v662
  %v2619 = vunpack.c.h.b16 %v662
  %v2620 = vunpack.c.l.b16 %v663
  %v2621 = vunpack.c.h.b16 %v663
  %v2622 = vunpack.c.l.b16 %v664
  %v2623 = vunpack.c.h.b16 %v664
  %v2624 = vunpack.c.l.b16 %v665
  %v2625 = vunpack.c.h.b16 %v665
  %v2626 = vunpack.c.l.b16 %v666
  %v2627 = vunpack.c.h.b16 %v666
  %v2628 = vunpack.c.l.b16 %v667
  %v2629 = vunpack.c.h.b16 %v667
  %v2630 = vunpack.c.l.b16 %v668
  %v2631 = vunpack.c.h.b16 %v668
  %v2632 = vunpack.c.l.b16 %v669
  %v2633 = vunpack.c.h.b16 %v669
  %v2634 = vunpack.c.l.b16 %v670
  %v2635 = vunpack.c.h.b16 %v670
  %v2636 = vunpack.c.l.b16 %v671
  %v2637 = vunpack.c.h.b16 %v671
  %v2638 = vunpack.c.l.b16 %v672
  %v2639 = vunpack.c.h.b16 %v672
  %v2640 = vunpack.c.l.b16 %v673
  %v2641 = vunpack.c.h.b16 %v673
  %v2642 = vunpack.c.l.b16 %v674
  %v2643 = vunpack.c.h.b16 %v674
  %v2644 = vunpack.c.l.b16 %v675
  %v2645 = vunpack.c.h.b16 %v675
  %v2646 = vunpack.c.l.b16 %v676
  %v2647 = vunpack.c.h.b16 %v676
  %v2648 = vunpack.c.l.b16 %v677
  %v2649 = vunpack.c.h.b16 %v677
  %v2650 = vunpack.c.l.b16 %v678
  %v2651 = vunpack.c.h.b16 %v678
  %v2652 = vunpack.c.l.b16 %v679
  %v2653 = vunpack.c.h.b16 %v679
  %v2654 = vunpack.c.l.b16 %v680
  %v2655 = vunpack.c.h.b16 %v680
  %v2656 = vunpack.c.l.b16 %v681
  %v2657 = vunpack.c.h.b16 %v681
  %v2658 = vunpack.c.l.b16 %v682
  %v2659 = vunpack.c.h.b16 %v682
  %v2660 = vunpack.c.l.b16 %v683
  %v2661 = vunpack.c.h.b16 %v683
  %v2662 = vunpack.c.l.b16 %v684
  %v2663 = vunpack.c.h.b16 %v684
  %v2664 = vunpack.c.l.b16 %v685
  %v2665 = vunpack.c.h.b16 %v685
  %v2666 = vunpack.c.l.b16 %v686
  %v2667 = vunpack.c.h.b16 %v686
  %v2668 = vunpack.c.l.b16 %v687
  %v2669 = vunpack.c.h.b16 %v687
  %v2670 = vunpack.c.l.b16 %v688
  %v2671 = vunpack.c.h.b16 %v688
  %v2672 = vunpack.c.l.b16 %v689
  %v2673 = vunpack.c.h.b16 %v689
  %v2674 = vunpack.c.l.b16 %v690
  %v2675 = vunpack.c.h.b16 %v690
  %v2676 = vunpack.c.l.b16 %v691
  %v2677 = vunpack.c.h.b16 %v691
  %v2678 = vunpack.c.l.b16 %v692
  %v2679 = vunpack.c.h.b16 %v692
  %v2680 = vunpack.c.l.b16 %v693
  %v2681 = vunpack.c.h.b16 %v693
  %v2682 = vunpack.c.l.b16 %v694
  %v2683 = vunpack.c.h.b16 %v694
  %v2684 = vunpack.c.l.b16 %v695
  %v2685 = vunpack.c.h.b16 %v695
  %v2686 = vunpack.c.l.b16 %v696
  %v2687 = vunpack.c.h.b16 %v696
  %v2688 = vunpack.c.l.b16 %v697
  %v2689 = vunpack.c.h.b16 %v697
  %v2690 = vunpack.c.l.b16 %v698
  %v2691 = vunpack.c.h.b16 %v698
  %v2692 = vunpack.c.l.b16 %v699
  %v2693 = vunpack.c.h.b16 %v699
  %v2694 = vunpack.c.l.b16 %v700
  %v2695 = vunpack.c.h.b16 %v700
  %v2696 = vunpack.c.l.b16 %v701
  %v2697 = vunpack.c.h.b16 %v701
  %v2698 = vunpack.c.l.b16 %v702
  %v2699 = vunpack.c.h.b16 %v702
  %v2700 = vunpack.c.l.b16 %v703
  %v2701 = vunpack.c.h.b16 %v703
  %v2702 = vunpack.c.l.b16 %v704
  %v2703 = vunpack.c.h.b16 %v704
  %v2704 = vunpack.c.l.b16 %v705
  %v2705 = vunpack.c.h.b16 %v705
  %v2706 = vunpack.c.l.b16 %v706
  %v2707 = vunpack.c.h.b16 %v706
  %v2708 = vunpack.c.l.b16 %v707
  %v2709 = vunpack.c.h.b16 %v707
  %v2710 = vunpack.c.l.b16 %v708
  %v2711 = vunpack.c.h.b16 %v708
  %v2712 = vunpack.c.l.b16 %v709
  %v2713 = vunpack.c.h.b16 %v709
  %v2714 = vunpack.c.l.b16 %v710
  %v2715 = vunpack.c.h.b16 %v710
  %v2716 = vunpack.c.l.b16 %v711
  %v2717 = vunpack.c.h.b16 %v711
  %v2718 = vunpack.c.l.b16 %v712
  %v2719 = vunpack.c.h.b16 %v712
  %v2720 = vunpack.c.l.b16 %v713
  %v2721 = vunpack.c.h.b16 %v713
  %v2722 = vunpack.c.l.b16 %v714
  %v2723 = vunpack.c.h.b16 %v714
  %v2724 = vunpack.c.l.b16 %v715
  %v2725 = vunpack.c.h.b16 %v715
  %v2726 = vunpack.c.l.b16 %v716
  %v2727 = vunpack.c.h.b16 %v716
  %v2728 = vunpack.c.l.b16 %v717
  %v2729 = vunpack.c.h.b16 %v717
  %v2730 = vunpack.c.l.b16 %v718
  %v2731 = vunpack.c.h.b16 %v718
  %v2732 = vunpack.c.l.b16 %v719
  %v2733 = vunpack.c.h.b16 %v719
  %v2734 = vunpack.c.l.b16 %v720
  %v2735 = vunpack.c.h.b16 %v720
  %v2736 = vunpack.c.l.b16 %v721
  %v2737 = vunpack.c.h.b16 %v721
  %v2738 = vunpack.c.l.b16 %v722
  %v2739 = vunpack.c.h.b16 %v722
  %v2740 = vunpack.c.l.b16 %v723
  %v2741 = vunpack.c.h.b16 %v723
  %v2742 = vunpack.c.l.b16 %v724
  %v2743 = vunpack.c.h.b16 %v724
  %v2744 = vunpack.c.l.b16 %v725
  %v2745 = vunpack.c.h.b16 %v725
  %v2746 = vunpack.c.l.b16 %v726
  %v2747 = vunpack.c.h.b16 %v726
  %v2748 = vunpack.c.l.b16 %v727
  %v2749 = vunpack.c.h.b16 %v727
  %v2750 = vunpack.c.l.b16 %v728
  %v2751 = vunpack.c.h.b16 %v728
  %v2752 = vunpack.c.l.b16 %v729
  %v2753 = vunpack.c.h.b16 %v729
  %v2754 = vunpack.c.l.b16 %v730
  %v2755 = vunpack.c.h.b16 %v730
  %v2756 = vunpack.c.l.b16 %v731
  %v2757 = vunpack.c.h.b16 %v731
  %v2758 = vunpack.c.l.b16 %v732
  %v2759 = vunpack.c.h.b16 %v732
  %v2760 = vunpack.c.l.b16 %v733
  %v2761 = vunpack.c.h.b16 %v733
  %v2762 = vunpack.c.l.b16 %v734
  %v2763 = vunpack.c.h.b16 %v734
  %v2764 = vunpack.c.l.b16 %v735
  %v2765 = vunpack.c.h.b16 %v735
  %v2766 = vunpack.c.l.b16 %v736
  %v2767 = vunpack.c.h.b16 %v736
  %v2768 = vunpack.c.l.b16 %v737
  %v2769 = vunpack.c.h.b16 %v737
  %v2770 = vunpack.c.l.b16 %v738
  %v2771 = vunpack.c.h.b16 %v738
  %v2772 = vunpack.c.l.b16 %v739
  %v2773 = vunpack.c.h.b16 %v739
  %v2774 = vunpack.c.l.b16 %v740
  %v2775 = vunpack.c.h.b16 %v740
  %v2776 = vunpack.c.l.b16 %v741
  %v2777 = vunpack.c.h.b16 %v741
  %v2778 = vunpack.c.l.b16 %v742
  %v2779 = vunpack.c.h.b16 %v742
  %v2780 = vunpack.c.l.b16 %v743
  %v2781 = vunpack.c.h.b16 %v743
  %v2782 = vunpack.c.l.b16 %v744
  %v2783 = vunpack.c.h.b16 %v744
  %v2784 = vunpack.c.l.b16 %v745
  %v2785 = vunpack.c.h.b16 %v745
  %v2786 = vunpack.c.l.b16 %v746
  %v2787 = vunpack.c.h.b16 %v746
  %v2788 = vunpack.c.l.b16 %v747
  %v2789 = vunpack.c.h.b16 %v747
  %v2790 = vunpack.c.l.b16 %v748
  %v2791 = vunpack.c.h.b16 %v748
  %v2792 = vunpack.c.l.b16 %v749
  %v2793 = vunpack.c.h.b16 %v749
  %v2794 = vunpack.c.l.b16 %v750
  %v2795 = vunpack.c.h.b16 %v750
  %v2796 = vunpack.c.l.b16 %v751
  %v2797 = vunpack.c.h.b16 %v751
  %v2798 = vunpack.c.l.b16 %v752
  %v2799 = vunpack.c.h.b16 %v752
  %v2800 = vunpack.c.l.b16 %v753
  %v2801 = vunpack.c.h.b16 %v753
  %v2802 = vunpack.c.l.b16 %v754
  %v2803 = vunpack.c.h.b16 %v754
  %v2804 = vunpack.c.l.b16 %v755
  %v2805 = vunpack.c.h.b16 %v755
  %v2806 = vunpack.c.l.b16 %v756
  %v2807 = vunpack.c.h.b16 %v756
  %v2808 = vunpack.c.l.b16 %v757
  %v2809 = vunpack.c.h.b16 %v757
  %v2810 = vunpack.c.l.b16 %v758
  %v2811 = vunpack.c.h.b16 %v758
  %v2812 = vunpack.c.l.b16 %v759
  %v2813 = vunpack.c.h.b16 %v759
  %v2814 = vunpack.c.l.b16 %v760
  %v2815 = vunpack.c.h.b16 %v760
  %v2816 = vunpack.c.l.b16 %v761
  %v2817 = vunpack.c.h.b16 %v761
  %v2818 = vunpack.c.l.b16 %v762
  %v2819 = vunpack.c.h.b16 %v762
  %v2820 = vunpack.c.l.b16 %v763
  %v2821 = vunpack.c.h.b16 %v763
  %v2822 = vunpack.c.l.b16 %v764
  %v2823 = vunpack.c.h.b16 %v764
  %v2824 = vunpack.c.l.b16 %v765
  %v2825 = vunpack.c.h.b16 %v765
  %v2826 = vunpack.c.l.b16 %v766
  %v2827 = vunpack.c.h.b16 %v766
  %v2828 = vunpack.c.l.b16 %v767
  %v2829 = vunpack.c.h.b16 %v767
  %v2830 = vunpack.c.l.b16 %v768
  %v2831 = vunpack.c.h.b16 %v768
  %v2832 = vunpack.c.l.b16 %v769
  %v2833 = vunpack.c.h.b16 %v769
  %v2834 = vunpack.c.l.b16 %v770
  %v2835 = vunpack.c.h.b16 %v770
  %v2836 = vunpack.c.l.b16 %v771
  %v2837 = vunpack.c.h.b16 %v771
  %v2838 = vunpack.c.l.b16 %v772
  %v2839 = vunpack.c.h.b16 %v772
  %v2840 = vunpack.c.l.b16 %v773
  %v2841 = vunpack.c.h.b16 %v773
  %v2842 = vunpack.c.l.b16 %v774
  %v2843 = vunpack.c.h.b16 %v774
  %v2844 = vunpack.c.l.b16 %v775
  %v2845 = vunpack.c.h.b16 %v775
  %v2846 = vunpack.c.l.b16 %v776
  %v2847 = vunpack.c.h.b16 %v776
  %v2848 = vunpack.c.l.b16 %v777
  %v2849 = vunpack.c.h.b16 %v777
  %v2850 = vunpack.c.l.b16 %v778
  %v2851 = vunpack.c.h.b16 %v778
  %v2852 = vunpack.c.l.b16 %v779
  %v2853 = vunpack.c.h.b16 %v779
  %v2854 = vunpack.c.l.b16 %v780
  %v2855 = vunpack.c.h.b16 %v780
  %v2856 = vunpack.c.l.b16 %v781
  %v2857 = vunpack.c.h.b16 %v781
  %v2858 = vunpack.c.l.b16 %v782
  %v2859 = vunpack.c.h.b16 %v782
  %v2860 = vunpack.c.l.b16 %v783
  %v2861 = vunpack.c.h.b16 %v783
  %v2862 = vunpack.c.l.b16 %v784
  %v2863 = vunpack.c.h.b16 %v784
  %v2864 = vunpack.c.l.b16 %v785
  %v2865 = vunpack.c.h.b16 %v785
  %v2866 = vunpack.c.l.b16 %v786
  %v2867 = vunpack.c.h.b16 %v786
  %v2868 = vunpack.c.l.b16 %v787
  %v2869 = vunpack.c.h.b16 %v787
  %v2870 = vunpack.c.l.b16 %v788
  %v2871 = vunpack.c.h.b16 %v788
  %v2872 = vunpack.c.l.b16 %v789
  %v2873 = vunpack.c.h.b16 %v789
  %v2874 = vunpack.c.l.b16 %v790
  %v2875 = vunpack.c.h.b16 %v790
  %v2876 = vunpack.c.l.b16 %v791
  %v2877 = vunpack.c.h.b16 %v791
  %v2878 = vunpack.c.l.b16 %v792
  %v2879 = vunpack.c.h.b16 %v792
  %v2880 = vunpack.c.l.b16 %v793
  %v2881 = vunpack.c.h.b16 %v793
  %v2882 = vunpack.c.l.b16 %v794
  %v2883 = vunpack.c.h.b16 %v794
  %v2884 = vunpack.c.l.b16 %v795
  %v2885 = vunpack.c.h.b16 %v795
  %v2886 = vunpack.c.l.b16 %v796
  %v2887 = vunpack.c.h.b16 %v796
  %v2888 = vunpack.c.l.b16 %v797
  %v2889 = vunpack.c.h.b16 %v797
  %v2890 = vunpack.c.l.b16 %v798
  %v2891 = vunpack.c.h.b16 %v798
  %v2892 = vunpack.c.l.b16 %v799
  %v2893 = vunpack.c.h.b16 %v799
  %v2894 = vunpack.c.l.b16 %v800
  %v2895 = vunpack.c.h.b16 %v800
  %v2896 = vunpack.c.l.b16 %v801
  %v2897 = vunpack.c.h.b16 %v801
  %v2898 = vunpack.c.l.b16 %v802
  %v2899 = vunpack.c.h.b16 %v802
  %v2900 = vunpack.c.l.b16 %v803
  %v2901 = vunpack.c.h.b16 %v803
  %v2902 = vunpack.c.l.b16 %v804
  %v2903 = vunpack.c.h.b16 %v804
  %v2904 = vunpack.c.l.b16 %v805
  %v2905 = vunpack.c.h.b16 %v805
  %v2906 = vunpack.c.l.b16 %v806
  %v2907 = vunpack.c.h.b16 %v806
  %v2908 = vunpack.c.l.b16 %v807
  %v2909 = vunpack.c.h.b16 %v807
  %v2910 = vunpack.c.l.b16 %v808
  %v2911 = vunpack.c.h.b16 %v808
  %v2912 = vunpack.c.l.b16 %v809
  %v2913 = vunpack.c.h.b16 %v809
  %v2914 = vunpack.c.l.b16 %v810
  %v2915 = vunpack.c.h.b16 %v810
  %v2916 = vunpack.c.l.b16 %v811
  %v2917 = vunpack.c.h.b16 %v811
  %v2918 = vunpack.c.l.b16 %v812
  %v2919 = vunpack.c.h.b16 %v812
  %v2920 = vunpack.c.l.b16 %v813
  %v2921 = vunpack.c.h.b16 %v813
  %v2922 = vunpack.c.l.b16 %v814
  %v2923 = vunpack.c.h.b16 %v814
  %v2924 = vunpack.c.l.b16 %v815
  %v2925 = vunpack.c.h.b16 %v815
  %v2926 = vunpack.c.l.b16 %v816
  %v2927 = vunpack.c.h.b16 %v816
  %v2928 = vunpack.c.l.b16 %v817
  %v2929 = vunpack.c.h.b16 %v817
  %v2930 = vunpack.c.l.b16 %v818
  %v2931 = vunpack.c.h.b16 %v818
  %v2932 = vpack.c.b16 %v1532, %v1524
  %v2933 = vpack.c.b16 %v1533, %v1525
  %v2934 = vpack.c.b16 %v1534, %v1526
  %v2935 = vpack.c.b16 %v1535, %v1527
  %v2936 = vpack.c.b16 %v1536, %v1528
  %v2937 = vpack.c.b16 %v1537, %v1529
  %v2938 = vpack.c.b16 %v1538, %v1530
  %v2939 = vpack.c.b16 %v1539, %v1531
  %v2940 = vpack.c.b16 %v1548, %v1540
  %v2941 = vpack.c.b16 %v1549, %v1541
  %v2942 = vpack.c.b16 %v1550, %v1542
  %v2943 = vpack.c.b16 %v1551, %v1543
  %v2944 = vpack.c.b16 %v1552, %v1544
  %v2945 = vpack.c.b16 %v1553, %v1545
  %v2946 = vpack.c.b16 %v1554, %v1546
  %v2947 = vpack.c.b16 %v1555, %v1547
  %v2948 = vpack.c.b16 %v1564, %v1556
  %v2949 = vpack.c.b16 %v1565, %v1557
  %v2950 = vpack.c.b16 %v1566, %v1558
  %v2951 = vpack.c.b16 %v1567, %v1559
  %v2952 = vpack.c.b16 %v1568, %v1560
  %v2953 = vpack.c.b16 %v1569, %v1561
  %v2954 = vpack.c.b16 %v1570, %v1562
  %v2955 = vpack.c.b16 %v1571, %v1563
  %v2956 = vpack.c.b16 %v1580, %v1572
  %v2957 = vpack.c.b16 %v1581, %v1573
  %v2958 = vpack.c.b16 %v1582, %v1574
  %v2959 = vpack.c.b16 %v1583, %v1575
  %v2960 = vpack.c.b16 %v1584, %v1576
  %v2961 = vpack.c.b16 %v1585, %v1577
  %v2962 = vpack.c.b16 %v1586, %v1578
  %v2963 = vpack.c.b16 %v1587, %v1579
  %v2964 = vpack.c.b16 %v1596, %v1588
  %v2965 = vpack.c.b16 %v1597, %v1589
  %v2966 = vpack.c.b16 %v1598, %v1590
  %v2967 = vpack.c.b16 %v1599, %v1591
  %v2968 = vpack.c.b16 %v1600, %v1592
  %v2969 = vpack.c.b16 %v1601, %v1593
  %v2970 = vpack.c.b16 %v1602, %v1594
  %v2971 = vpack.c.b16 %v1603, %v1595
  %v2972 = vpack.c.b16 %v1612, %v1604
  %v2973 = vpack.c.b16 %v1613, %v1605
  %v2974 = vpack.c.b16 %v1614, %v1606
  %v2975 = vpack.c.b16 %v1615, %v1607
  %v2976 = vpack.c.b16 %v1616, %v1608
  %v2977 = vpack.c.b16 %v1617, %v1609
  %v2978 = vpack.c.b16 %v1618, %v1610
  %v2979 = vpack.c.b16 %v1619, %v1611
  %v2980 = vpack.c.b16 %v1628, %v1620
  %v2981 = vpack.c.b16 %v1629, %v1621
  %v2982 = vpack.c.b16 %v1630, %v1622
  %v2983 = vpack.c.b16 %v1631, %v1623
  %v2984 = vpack.c.b16 %v1632, %v1624
  %v2985 = vpack.c.b16 %v1633, %v1625
  %v2986 = vpack.c.b16 %v1634, %v1626
  %v2987 = vpack.c.b16 %v1635, %v1627
  %v2988 = vpack.c.b16 %v1644, %v1636
  %v2989 = vpack.c.b16 %v1645, %v1637
  %v2990 = vpack.c.b16 %v1646, %v1638
  %v2991 = vpack.c.b16 %v1647, %v1639
  %v2992 = vpack.c.b16 %v1648, %v1640
  %v2993 = vpack.c.b16 %v1649, %v1641
  %v2994 = vpack.c.b16 %v1650, %v1642
  %v2995 = vpack.c.b16 %v1651, %v1643
  %v2996 = vpack.c.b16 %v1660, %v1652
  %v2997 = vpack.c.b16 %v1661, %v1653
  %v2998 = vpack.c.b16 %v1662, %v1654
  %v2999 = vpack.c.b16 %v1663, %v1655
  %v3000 = vpack.c.b16 %v1664, %v1656
  %v3001 = vpack.c.b16 %v1665, %v1657
  %v3002 = vpack.c.b16 %v1666, %v1658
  %v3003 = vpack.c.b16 %v1667, %v1659
  %v3004 = vpack.c.b16 %v1676, %v1668
  %v3005 = vpack.c.b16 %v1677, %v1669
  %v3006 = vpack.c.b16 %v1678, %v1670
  %v3007 = vpack.c.b16 %v1679, %v1671
  %v3008 = vpack.c.b16 %v1680, %v1672
  %v3009 = vpack.c.b16 %v1681, %v1673
  %v3010 = vpack.c.b16 %v1682, %v1674
  %v3011 = vpack.c.b16 %v1683, %v1675
  %v3012 = vpack.c.b16 %v1692, %v1684
  %v3013 = vpack.c.b16 %v1693, %v1685
  %v3014 = vpack.c.b16 %v1694, %v1686
  %v3015 = vpack.c.b16 %v1695, %v1687
  %v3016 = vpack.c.b16 %v1696, %v1688
  %v3017 = vpack.c.b16 %v1697, %v1689
  %v3018 = vpack.c.b16 %v1698, %v1690
  %v3019 = vpack.c.b16 %v1699, %v1691
  %v3020 = vpack.c.b16 %v1708, %v1700
  %v3021 = vpack.c.b16 %v1709, %v1701
  %v3022 = vpack.c.b16 %v1710, %v1702
  %v3023 = vpack.c.b16 %v1711, %v1703
  %v3024 = vpack.c.b16 %v1712, %v1704
  %v3025 = vpack.c.b16 %v1713, %v1705
  %v3026 = vpack.c.b16 %v1714, %v1706
  %v3027 = vpack.c.b16 %v1715, %v1707
  %v3028 = vpack.c.b16 %v1724, %v1716
  %v3029 = vpack.c.b16 %v1725, %v1717
  %v3030 = vpack.c.b16 %v1726, %v1718
  %v3031 = vpack.c.b16 %v1727, %v1719
  %v3032 = vpack.c.b16 %v1728, %v1720
  %v3033 = vpack.c.b16 %v1729, %v1721
  %v3034 = vpack.c.b16 %v1730, %v1722
  %v3035 = vpack.c.b16 %v1731, %v1723
  %v3036 = vpack.c.b16 %v1740, %v1732
  %v3037 = vpack.c.b16 %v1741, %v1733
  %v3038 = vpack.c.b16 %v1742, %v1734
  %v3039 = vpack.c.b16 %v1743, %v1735
  %v3040 = vpack.c.b16 %v1744, %v1736
  %v3041 = vpack.c.b16 %v1745, %v1737
  %v3042 = vpack.c.b16 %v1746, %v1738
  %v3043 = vpack.c.b16 %v1747, %v1739
  %v3044 = vpack.c.b16 %v1756, %v1748
  %v3045 = vpack.c.b16 %v1757, %v1749
  %v3046 = vpack.c.b16 %v1758, %v1750
  %v3047 = vpack.c.b16 %v1759, %v1751
  %v3048 = vpack.c.b16 %v1760, %v1752
  %v3049 = vpack.c.b16 %v1761, %v1753
  %v3050 = vpack.c.b16 %v1762, %v1754
  %v3051 = vpack.c.b16 %v1763, %v1755
  %v3052 = vpack.c.b16 %v1772, %v1764
  %v3053 = vpack.c.b16 %v1773, %v1765
  %v3054 = vpack.c.b16 %v1774, %v1766
  %v3055 = vpack.c.b16 %v1775, %v1767
  %v3056 = vpack.c.b16 %v1776, %v1768
  %v3057 = vpack.c.b16 %v1777, %v1769
  %v3058 = vpack.c.b16 %v1778, %v1770
  %v3059 = vpack.c.b16 %v1779, %v1771
  %v3060 = vpack.c.b16 %v1788, %v1780
  %v3061 = vpack.c.b16 %v1789, %v1781
  %v3062 = vpack.c.b16 %v1790, %v1782
  %v3063 = vpack.c.b16 %v1791, %v1783
  %v3064 = vpack.c.b16 %v1792, %v1784
  %v3065 = vpack.c.b16 %v1793, %v1785
  %v3066 = vpack.c.b16 %v1794, %v1786
  %v3067 = vpack.c.b16 %v1795, %v1787
  %v3068 = vpack.c.b16 %v1804, %v1796
  %v3069 = vpack.c.b16 %v1805, %v1797
  %v3070 = vpack.c.b16 %v1806, %v1798
  %v3071 = vpack.c.b16 %v1807, %v1799
  %v3072 = vpack.c.b16 %v1808, %v1800
  %v3073 = vpack.c.b16 %v1809, %v1801
  %v3074 = vpack.c.b16 %v1810, %v1802
  %v3075 = vpack.c.b16 %v1811, %v1803
  %v3076 = vpack.c.b16 %v1820, %v1812
  %v3077 = vpack.c.b16 %v1821, %v1813
  %v3078 = vpack.c.b16 %v1822, %v1814
  %v3079 = vpack.c.b16 %v1823, %v1815
  %v3080 = vpack.c.b16 %v1824, %v1816
  %v3081 = vpack.c.b16 %v1825, %v1817
  %v3082 = vpack.c.b16 %v1826, %v1818
  %v3083 = vpack.c.b16 %v1827, %v1819
  %v3084 = vpack.c.b16 %v1836, %v1828
  %v3085 = vpack.c.b16 %v1837, %v1829
  %v3086 = vpack.c.b16 %v1838, %v1830
  %v3087 = vpack.c.b16 %v1839, %v1831
  %v3088 = vpack.c.b16 %v1840, %v1832
  %v3089 = vpack.c.b16 %v1841, %v1833
  %v3090 = vpack.c.b16 %v1842, %v1834
  %v3091 = vpack.c.b16 %v1843, %v1835
  %v3092 = vpack.c.b16 %v1852, %v1844
  %v3093 = vpack.c.b16 %v1853, %v1845
  %v3094 = vpack.c.b16 %v1854, %v1846
  %v3095 = vpack.c.b16 %v1855, %v1847
  %v3096 = vpack.c.b16 %v1856, %v1848
  %v3097 = vpack.c.b16 %v1857, %v1849
  %v3098 = vpack.c.b16 %v1858, %v1850
  %v3099 = vpack.c.b16 %v1859, %v1851
  %v3100 = vpack.c.b16 %v1868, %v1860
  %v3101 = vpack.c.b16 %v1869, %v1861
  %v3102 = vpack.c.b16 %v1870, %v1862
  %v3103 = vpack.c.b16 %v1871, %v1863
  %v3104 = vpack.c.b16 %v1872, %v1864
  %v3105 = vpack.c.b16 %v1873, %v1865
  %v3106 = vpack.c.b16 %v1874, %v1866
  %v3107 = vpack.c.b16 %v1875, %v1867
  %v3108 = vpack.c.b16 %v1884, %v1876
  %v3109 = vpack.c.b16 %v1885, %v1877
  %v3110 = vpack.c.b16 %v1886, %v1878
  %v3111 = vpack.c.b16 %v1887, %v1879
  %v3112 = vpack.c.b16 %v1888, %v1880
  %v3113 = vpack.c.b16 %v1889, %v1881
  %v3114 = vpack.c.b16 %v1890, %v1882
  %v3115 = vpack.c.b16 %v1891, %v1883
  %v3116 = vpack.c.b16 %v1900, %v1892
  %v3117 = vpack.c.b16 %v1901, %v1893
  %v3118 = vpack.c.b16 %v1902, %v1894
  %v3119 = vpack.c.b16 %v1903, %v1895
  %v3120 = vpack.c.b16 %v1904, %v1896
  %v3121 = vpack.c.b16 %v1905, %v1897
  %v3122 = vpack.c.b16 %v1906, %v1898
  %v3123 = vpack.c.b16 %v1907, %v1899
  %v3124 = vpack.c.b16 %v1916, %v1908
  %v3125 = vpack.c.b16 %v1917, %v1909
  %v3126 = vpack.c.b16 %v1918, %v1910
  %v3127 = vpack.c.b16 %v1919, %v1911
  %v3128 = vpack.c.b16 %v1920, %v1912
  %v3129 = vpack.c.b16 %v1921, %v1913
  %v3130 = vpack.c.b16 %v1922, %v1914
  %v3131 = vpack.c.b16 %v1923, %v1915
  %v3132 = vpack.c.b16 %v1932, %v1924
  %v3133 = vpack.c.b16 %v1933, %v1925
  %v3134 = vpack.c.b16 %v1934, %v1926
  %v3135 = vpack.c.b16 %v1935, %v1927
  %v3136 = vpack.c.b16 %v1936, %v1928
  %v3137 = vpack.c.b16 %v1937, %v1929
  %v3138 = vpack.c.b16 %v1938, %v1930
  %v3139 = vpack.c.b16 %v1939, %v1931
  %v3140 = vpack.c.b16 %v1948, %v1940
  %v3141 = vpack.c.b16 %v1949, %v1941
  %v3142 = vpack.c.b16 %v1950, %v1942
  %v3143 = vpack.c.b16 %v1951, %v1943
  %v3144 = vpack.c.b16 %v1952, %v1944
  %v3145 = vpack.c.b16 %v1953, %v1945
  %v3146 = vpack.c.b16 %v1954, %v1946
  %v3147 = vpack.c.b16 %v1955, %v1947
  %v3148 = vpack.c.b16 %v1964, %v1956
  %v3149 = vpack.c.b16 %v1965, %v1957
  %v3150 = vpack.c.b16 %v1966, %v1958
  %v3151 = vpack.c.b16 %v1967, %v1959
  %v3152 = vpack.c.b16 %v1968, %v1960
  %v3153 = vpack.c.b16 %v1969, %v1961
  %v3154 = vpack.c.b16 %v1970, %v1962
  %v3155 = vpack.c.b16 %v1971, %v1963
  %v3156 = vpack.c.b16 %v1980, %v1972
  %v3157 = vpack.c.b16 %v1981, %v1973
  %v3158 = vpack.c.b16 %v1982, %v1974
  %v3159 = vpack.c.b16 %v1983, %v1975
  %v3160 = vpack.c.b16 %v1984, %v1976
  %v3161 = vpack.c.b16 %v1985, %v1977
  %v3162 = vpack.c.b16 %v1986, %v1978
  %v3163 = vpack.c.b16 %v1987, %v1979
  %v3164 = vpack.c.b16 %v1996, %v1988
  %v3165 = vpack.c.b16 %v1997, %v1989
  %v3166 = vpack.c.b16 %v1998, %v1990
  %v3167 = vpack.c.b16 %v1999, %v1991
  %v3168 = vpack.c.b16 %v2000, %v1992
  %v3169 = vpack.c.b16 %v2001, %v1993
  %v3170 = vpack.c.b16 %v2002, %v1994
  %v3171 = vpack.c.b16 %v2003, %v1995
  %v3172 = vpack.c.b16 %v2012, %v2004
  %v3173 = vpack.c.b16 %v2013, %v2005
  %v3174 = vpack.c.b16 %v2014, %v2006
  %v3175 = vpack.c.b16 %v2015, %v2007
  %v3176 = vpack.c.b16 %v2016, %v2008
  %v3177 = vpack.c.b16 %v2017, %v2009
  %v3178 = vpack.c.b16 %v2018, %v2010
  %v3179 = vpack.c.b16 %v2019, %v2011
  %v3180 = vpack.c.b16 %v2028, %v2020
  %v3181 = vpack.c.b16 %v2029, %v2021
  %v3182 = vpack.c.b16 %v2030, %v2022
  %v3183 = vpack.c.b16 %v2031, %v2023
  %v3184 = vpack.c.b16 %v2032, %v2024
  %v3185 = vpack.c.b16 %v2033, %v2025
  %v3186 = vpack.c.b16 %v2034, %v2026
  %v3187 = vpack.c.b16 %v2035, %v2027
  %v3188 = vpack.c.b16 %v2044, %v2036
  %v3189 = vpack.c.b16 %v2045, %v2037
  %v3190 = vpack.c.b16 %v2046, %v2038
  %v3191 = vpack.c.b16 %v2047, %v2039
  %v3192 = vpack.c.b16 %v2048, %v2040
  %v3193 = vpack.c.b16 %v2049, %v2041
  %v3194 = vpack.c.b16 %v2050, %v2042
  %v3195 = vpack.c.b16 %v2051, %v2043
  %v3196 = vpack.c.b16 %v2060, %v2052
  %v3197 = vpack.c.b16 %v2061, %v2053
  %v3198 = vpack.c.b16 %v2062, %v2054
  %v3199 = vpack.c.b16 %v2063, %v2055
  %v3200 = vpack.c.b16 %v2064, %v2056
  %v3201 = vpack.c.b16 %v2065, %v2057
  %v3202 = vpack.c.b16 %v2066, %v2058
  %v3203 = vpack.c.b16 %v2067, %v2059
  %v3204 = vpack.c.b16 %v2076, %v2068
  %v3205 = vpack.c.b16 %v2077, %v2069
  %v3206 = vpack.c.b16 %v2078, %v2070
  %v3207 = vpack.c.b16 %v2079, %v2071
  %v3208 = vpack.c.b16 %v2080, %v2072
  %v3209 = vpack.c.b16 %v2081, %v2073
  %v3210 = vpack.c.b16 %v2082, %v2074
  %v3211 = vpack.c.b16 %v2083, %v2075
  %v3212 = vpack.c.b16 %v2092, %v2084
  %v3213 = vpack.c.b16 %v2093, %v2085
  %v3214 = vpack.c.b16 %v2094, %v2086
  %v3215 = vpack.c.b16 %v2095, %v2087
  %v3216 = vpack.c.b16 %v2096, %v2088
  %v3217 = vpack.c.b16 %v2097, %v2089
  %v3218 = vpack.c.b16 %v2098, %v2090
  %v3219 = vpack.c.b16 %v2099, %v2091
  %v3220 = vpack.c.b16 %v2108, %v2100
  %v3221 = vpack.c.b16 %v2109, %v2101
  %v3222 = vpack.c.b16 %v2110, %v2102
  %v3223 = vpack.c.b16 %v2111, %v2103
  %v3224 = vpack.c.b16 %v2112, %v2104
  %v3225 = vpack.c.b16 %v2113, %v2105
  %v3226 = vpack.c.b16 %v2114, %v2106
  %v3227 = vpack.c.b16 %v2115, %v2107
  %v3228 = vpack.c.b16 %v2124, %v2116
  %v3229 = vpack.c.b16 %v2125, %v2117
  %v3230 = vpack.c.b16 %v2126, %v2118
  %v3231 = vpack.c.b16 %v2127, %v2119
  %v3232 = vpack.c.b16 %v2128, %v2120
  %v3233 = vpack.c.b16 %v2129, %v2121
  %v3234 = vpack.c.b16 %v2130, %v2122
  %v3235 = vpack.c.b16 %v2131, %v2123
  %v3236 = vpack.c.b16 %v2140, %v2132
  %v3237 = vpack.c.b16 %v2141, %v2133
  %v3238 = vpack.c.b16 %v2142, %v2134
  %v3239 = vpack.c.b16 %v2143, %v2135
  %v3240 = vpack.c.b16 %v2144, %v2136
  %v3241 = vpack.c.b16 %v2145, %v2137
  %v3242 = vpack.c.b16 %v2146, %v2138
  %v3243 = vpack.c.b16 %v2147, %v2139
  %v3244 = vpack.c.b16 %v2156, %v2148
  %v3245 = vpack.c.b16 %v2157, %v2149
  %v3246 = vpack.c.b16 %v2158, %v2150
  %v3247 = vpack.c.b16 %v2159, %v2151
  %v3248 = vpack.c.b16 %v2160, %v2152
  %v3249 = vpack.c.b16 %v2161, %v2153
  %v3250 = vpack.c.b16 %v2162, %v2154
  %v3251 = vpack.c.b16 %v2163, %v2155
  %v3252 = vpack.c.b16 %v2172, %v2164
  %v3253 = vpack.c.b16 %v2173, %v2165
  %v3254 = vpack.c.b16 %v2174, %v2166
  %v3255 = vpack.c.b16 %v2175, %v2167
  %v3256 = vpack.c.b16 %v2176, %v2168
  %v3257 = vpack.c.b16 %v2177, %v2169
  %v3258 = vpack.c.b16 %v2178, %v2170
  %v3259 = vpack.c.b16 %v2179, %v2171
  %v3260 = vpack.c.b16 %v2188, %v2180
  %v3261 = vpack.c.b16 %v2189, %v2181
  %v3262 = vpack.c.b16 %v2190, %v2182
  %v3263 = vpack.c.b16 %v2191, %v2183
  %v3264 = vpack.c.b16 %v2192, %v2184
  %v3265 = vpack.c.b16 %v2193, %v2185
  %v3266 = vpack.c.b16 %v2194, %v2186
  %v3267 = vpack.c.b16 %v2195, %v2187
  %v3268 = vpack.c.b16 %v2204, %v2196
  %v3269 = vpack.c.b16 %v2205, %v2197
  %v3270 = vpack.c.b16 %v2206, %v2198
  %v3271 = vpack.c.b16 %v2207, %v2199
  %v3272 = vpack.c.b16 %v2208, %v2200
  %v3273 = vpack.c.b16 %v2209, %v2201
  %v3274 = vpack.c.b16 %v2210, %v2202
  %v3275 = vpack.c.b16 %v2211, %v2203
  %v3276 = vpack.c.b16 %v2220, %v2212
  %v3277 = vpack.c.b16 %v2221, %v2213
  %v3278 = vpack.c.b16 %v2222, %v2214
  %v3279 = vpack.c.b16 %v2223, %v2215
  %v3280 = vpack.c.b16 %v2224, %v2216
  %v3281 = vpack.c.b16 %v2225, %v2217
  %v3282 = vpack.c.b16 %v2226, %v2218
  %v3283 = vpack.c.b16 %v2227, %v2219
  %v3284 = vpack.c.b16 %v2236, %v2228
  %v3285 = vpack.c.b16 %v2237, %v2229
  %v3286 = vpack.c.b16 %v2238, %v2230
  %v3287 = vpack.c.b16 %v2239, %v2231
  %v3288 = vpack.c.b16 %v2240, %v2232
  %v3289 = vpack.c.b16 %v2241, %v2233
  %v3290 = vpack.c.b16 %v2242, %v2234
  %v3291 = vpack.c.b16 %v2243, %v2235
  %v3292 = vpack.c.b16 %v2252, %v2244
  %v3293 = vpack.c.b16 %v2253, %v2245
  %v3294 = vpack.c.b16 %v2254, %v2246
  %v3295 = vpack.c.b16 %v2255, %v2247
  %v3296 = vpack.c.b16 %v2256, %v2248
  %v3297 = vpack.c.b16 %v2257, %v2249
  %v3298 = vpack.c.b16 %v2258, %v2250
  %v3299 = vpack.c.b16 %v2259, %v2251
  %v3300 = vpack.c.b16 %v2268, %v2260
  %v3301 = vpack.c.b16 %v2269, %v2261
  %v3302 = vpack.c.b16 %v2270, %v2262
  %v3303 = vpack.c.b16 %v2271, %v2263
  %v3304 = vpack.c.b16 %v2272, %v2264
  %v3305 = vpack.c.b16 %v2273, %v2265
  %v3306 = vpack.c.b16 %v2274, %v2266
  %v3307 = vpack.c.b16 %v2275, %v2267
  %v3308 = vpack.c.b16 %v2284, %v2276
  %v3309 = vpack.c.b16 %v2285, %v2277
  %v3310 = vpack.c.b16 %v2286, %v2278
  %v3311 = vpack.c.b16 %v2287, %v2279
  %v3312 = vpack.c.b16 %v2288, %v2280
  %v3313 = vpack.c.b16 %v2289, %v2281
  %v3314 = vpack.c.b16 %v2290, %v2282
  %v3315 = vpack.c.b16 %v2291, %v2283
  %v3316 = vpack.c.b16 %v2300, %v2292
  %v3317 = vpack.c.b16 %v2301, %v2293
  %v3318 = vpack.c.b16 %v2302, %v2294
  %v3319 = vpack.c.b16 %v2303, %v2295
  %v3320 = vpack.c.b16 %v2304, %v2296
  %v3321 = vpack.c.b16 %v2305, %v2297
  %v3322 = vpack.c.b16 %v2306, %v2298
  %v3323 = vpack.c.b16 %v2307, %v2299
  %v3324 = vpack.c.b16 %v2316, %v2308
  %v3325 = vpack.c.b16 %v2317, %v2309
  %v3326 = vpack.c.b16 %v2318, %v2310
  %v3327 = vpack.c.b16 %v2319, %v2311
  %v3328 = vpack.c.b16 %v2320, %v2312
  %v3329 = vpack.c.b16 %v2321, %v2313
  %v3330 = vpack.c.b16 %v2322, %v2314
  %v3331 = vpack.c.b16 %v2323, %v2315
  %v3332 = vpack.c.b16 %v2332, %v2324
  %v3333 = vpack.c.b16 %v2333, %v2325
  %v3334 = vpack.c.b16 %v2334, %v2326
  %v3335 = vpack.c.b16 %v2335, %v2327
  %v3336 = vpack.c.b16 %v2336, %v2328
  %v3337 = vpack.c.b16 %v2337, %v2329
  %v3338 = vpack.c.b16 %v2338, %v2330
  %v3339 = vpack.c.b16 %v2339, %v2331
  %v3340 = vpack.c.b16 %v2348, %v2340
  %v3341 = vpack.c.b16 %v2349, %v2341
  %v3342 = vpack.c.b16 %v2350, %v2342
  %v3343 = vpack.c.b16 %v2351, %v2343
  %v3344 = vpack.c.b16 %v2352, %v2344
  %v3345 = vpack.c.b16 %v2353, %v2345
  %v3346 = vpack.c.b16 %v2354, %v2346
  %v3347 = vpack.c.b16 %v2355, %v2347
  %v3348 = vpack.c.b16 %v2364, %v2356
  %v3349 = vpack.c.b16 %v2365, %v2357
  %v3350 = vpack.c.b16 %v2366, %v2358
  %v3351 = vpack.c.b16 %v2367, %v2359
  %v3352 = vpack.c.b16 %v2368, %v2360
  %v3353 = vpack.c.b16 %v2369, %v2361
  %v3354 = vpack.c.b16 %v2370, %v2362
  %v3355 = vpack.c.b16 %v2371, %v2363
  %v3356 = vpack.c.b16 %v2380, %v2372
  %v3357 = vpack.c.b16 %v2381, %v2373
  %v3358 = vpack.c.b16 %v2382, %v2374
  %v3359 = vpack.c.b16 %v2383, %v2375
  %v3360 = vpack.c.b16 %v2384, %v2376
  %v3361 = vpack.c.b16 %v2385, %v2377
  %v3362 = vpack.c.b16 %v2386, %v2378
  %v3363 = vpack.c.b16 %v2387, %v2379
  %v3364 = vpack.c.b16 %v2396, %v2388
  %v3365 = vpack.c.b16 %v2397, %v2389
  %v3366 = vpack.c.b16 %v2398, %v2390
  %v3367 = vpack.c.b16 %v2399, %v2391
  %v3368 = vpack.c.b16 %v2400, %v2392
  %v3369 = vpack.c.b16 %v2401, %v2393
  %v3370 = vpack.c.b16 %v2402, %v2394
  %v3371 = vpack.c.b16 %v2403, %v2395
  %v3372 = vpack.c.b16 %v2412, %v2404
  %v3373 = vpack.c.b16 %v2413, %v2405
  %v3374 = vpack.c.b16 %v2414, %v2406
  %v3375 = vpack.c.b16 %v2415, %v2407
  %v3376 = vpack.c.b16 %v2416, %v2408
  %v3377 = vpack.c.b16 %v2417, %v2409
  %v3378 = vpack.c.b16 %v2418, %v2410
  %v3379 = vpack.c.b16 %v2419, %v2411
  %v3380 = vpack.c.b16 %v2428, %v2420
  %v3381 = vpack.c.b16 %v2429, %v2421
  %v3382 = vpack.c.b16 %v2430, %v2422
  %v3383 = vpack.c.b16 %v2431, %v2423
  %v3384 = vpack.c.b16 %v2432, %v2424
  %v3385 = vpack.c.b16 %v2433, %v2425
  %v3386 = vpack.c.b16 %v2434, %v2426
  %v3387 = vpack.c.b16 %v2435, %v2427
  %v3388 = vpack.c.b16 %v2444, %v2436
  %v3389 = vpack.c.b16 %v2445, %v2437
  %v3390 = vpack.c.b16 %v2446, %v2438
  %v3391 = vpack.c.b16 %v2447, %v2439
  %v3392 = vpack.c.b16 %v2448, %v2440
  %v3393 = vpack.c.b16 %v2449, %v2441
  %v3394 = vpack.c.b16 %v2450, %v2442
  %v3395 = vpack.c.b16 %v2451, %v2443
  %v3396 = vpack.c.b16 %v2460, %v2452
  %v3397 = vpack.c.b16 %v2461, %v2453
  %v3398 = vpack.c.b16 %v2462, %v2454
  %v3399 = vpack.c.b16 %v2463, %v2455
  %v3400 = vpack.c.b16 %v2464, %v2456
  %v3401 = vpack.c.b16 %v2465, %v2457
  %v3402 = vpack.c.b16 %v2466, %v2458
  %v3403 = vpack.c.b16 %v2467, %v2459
  %v3404 = vpack.c.b16 %v2476, %v2468
  %v3405 = vpack.c.b16 %v2477, %v2469
  %v3406 = vpack.c.b16 %v2478, %v2470
  %v3407 = vpack.c.b16 %v2479, %v2471
  %v3408 = vpack.c.b16 %v2480, %v2472
  %v3409 = vpack.c.b16 %v2481, %v2473
  %v3410 = vpack.c.b16 %v2482, %v2474
  %v3411 = vpack.c.b16 %v2483, %v2475
  %v3412 = vpack.c.b16 %v2492, %v2484
  %v3413 = vpack.c.b16 %v2493, %v2485
  %v3414 = vpack.c.b16 %v2494, %v2486
  %v3415 = vpack.c.b16 %v2495, %v2487
  %v3416 = vpack.c.b16 %v2496, %v2488
  %v3417 = vpack.c.b16 %v2497, %v2489
  %v3418 = vpack.c.b16 %v2498, %v2490
  %v3419 = vpack.c.b16 %v2499, %v2491
  %v3420 = vpack.c.b16 %v2508, %v2500
  %v3421 = vpack.c.b16 %v2509, %v2501
  %v3422 = vpack.c.b16 %v2510, %v2502
  %v3423 = vpack.c.b16 %v2511, %v2503
  %v3424 = vpack.c.b16 %v2512, %v2504
  %v3425 = vpack.c.b16 %v2513, %v2505
  %v3426 = vpack.c.b16 %v2514, %v2506
  %v3427 = vpack.c.b16 %v2515, %v2507
  %v3428 = vpack.c.b16 %v2524, %v2516
  %v3429 = vpack.c.b16 %v2525, %v2517
  %v3430 = vpack.c.b16 %v2526, %v2518
  %v3431 = vpack.c.b16 %v2527, %v2519
  %v3432 = vpack.c.b16 %v2528, %v2520
  %v3433 = vpack.c.b16 %v2529, %v2521
  %v3434 = vpack.c.b16 %v2530, %v2522
  %v3435 = vpack.c.b16 %v2531, %v2523
  %v3436 = vpack.c.b16 %v2540, %v2532
  %v3437 = vpack.c.b16 %v2541, %v2533
  %v3438 = vpack.c.b16 %v2542, %v2534
  %v3439 = vpack.c.b16 %v2543, %v2535
  %v3440 = vpack.c.b16 %v2544, %v2536
  %v3441 = vpack.c.b16 %v2545, %v2537
  %v3442 = vpack.c.b16 %v2546, %v2538
  %v3443 = vpack.c.b16 %v2547, %v2539
  %v3444 = vpack.c.b16 %v2556, %v2548
  %v3445 = vpack.c.b16 %v2557, %v2549
  %v3446 = vpack.c.b16 %v2558, %v2550
  %v3447 = vpack.c.b16 %v2559, %v2551
  %v3448 = vpack.c.b16 %v2560, %v2552
  %v3449 = vpack.c.b16 %v2561, %v2553
  %v3450 = vpack.c.b16 %v2562, %v2554
  %v3451 = vpack.c.b16 %v2563, %v2555
  %v3452 = vpack.c.b16 %v2572, %v2564
  %v3453 = vpack.c.b16 %v2573, %v2565
  %v3454 = vpack.c.b16 %v2574, %v2566
  %v3455 = vpack.c.b16 %v2575, %v2567
  %v3456 = vpack.c.b16 %v2576, %v2568
  %v3457 = vpack.c.b16 %v2577, %v2569
  %v3458 = vpack.c.b16 %v2578, %v2570
  %v3459 = vpack.c.b16 %v2579, %v2571
  %v3460 = vpack.c.b16 %v2588, %v2580
  %v3461 = vpack.c.b16 %v2589, %v2581
  %v3462 = vpack.c.b16 %v2590, %v2582
  %v3463 = vpack.c.b16 %v2591, %v2583
  %v3464 = vpack.c.b16 %v2592, %v2584
  %v3465 = vpack.c.b16 %v2593, %v2585
  %v3466 = vpack.c.b16 %v2594, %v2586
  %v3467 = vpack.c.b16 %v2595, %v2587
  %v3468 = vpack.c.b16 %v2604, %v2596
  %v3469 = vpack.c.b16 %v2605, %v2597
  %v3470 = vpack.c.b16 %v2606, %v2598
  %v3471 = vpack.c.b16 %v2607, %v2599
  %v3472 = vpack.c.b16 %v2608, %v2600
  %v3473 = vpack.c.b16 %v2609, %v2601
  %v3474 = vpack.c.b16 %v2610, %v2602
  %v3475 = vpack.c.b16 %v2611, %v2603
  %v3476 = vpack.c.b16 %v2620, %v2612
  %v3477 = vpack.c.b16 %v2621, %v2613
  %v3478 = vpack.c.b16 %v2622, %v2614
  %v3479 = vpack.c.b16 %v2623, %v2615
  %v3480 = vpack.c.b16 %v2624, %v2616
  %v3481 = vpack.c.b16 %v2625, %v2617
  %v3482 = vpack.c.b16 %v2626, %v2618
  %v3483 = vpack.c.b16 %v2627, %v2619
  %v3484 = vpack.c.b16 %v2636, %v2628
  %v3485 = vpack.c.b16 %v2637, %v2629
  %v3486 = vpack.c.b16 %v2638, %v2630
  %v3487 = vpack.c.b16 %v2639, %v2631
  %v3488 = vpack.c.b16 %v2640, %v2632
  %v3489 = vpack.c.b16 %v2641, %v2633
  %v3490 = vpack.c.b16 %v2642, %v2634
  %v3491 = vpack.c.b16 %v2643, %v2635
  %v3492 = vpack.c.b16 %v2652, %v2644
  %v3493 = vpack.c.b16 %v2653, %v2645
  %v3494 = vpack.c.b16 %v2654, %v2646
  %v3495 = vpack.c.b16 %v2655, %v2647
  %v3496 = vpack.c.b16 %v2656, %v2648
  %v3497 = vpack.c.b16 %v2657, %v2649
  %v3498 = vpack.c.b16 %v2658, %v2650
  %v3499 = vpack.c.b16 %v2659, %v2651
  %v3500 = vpack.c.b16 %v2668, %v2660
  %v3501 = vpack.c.b16 %v2669, %v2661
  %v3502 = vpack.c.b16 %v2670, %v2662
  %v3503 = vpack.c.b16 %v2671, %v2663
  %v3504 = vpack.c.b16 %v2672, %v2664
  %v3505 = vpack.c.b16 %v2673, %v2665
  %v3506 = vpack.c.b16 %v2674, %v2666
  %v3507 = vpack.c.b16 %v2675, %v2667
  %v3508 = vpack.c.b16 %v2684, %v2676
  %v3509 = vpack.c.b16 %v2685, %v2677
  %v3510 = vpack.c.b16 %v2686, %v2678
  %v3511 = vpack.c.b16 %v2687, %v2679
  %v3512 = vpack.c.b16 %v2688, %v2680
  %v3513 = vpack.c.b16 %v2689, %v2681
  %v3514 = vpack.c.b16 %v2690, %v2682
  %v3515 = vpack.c.b16 %v2691, %v2683
  %v3516 = vpack.c.b16 %v2700, %v2692
  %v3517 = vpack.c.b16 %v2701, %v2693
  %v3518 = vpack.c.b16 %v2702, %v2694
  %v3519 = vpack.c.b16 %v2703, %v2695
  %v3520 = vpack.c.b16 %v2704, %v2696
  %v3521 = vpack.c.b16 %v2705, %v2697
  %v3522 = vpack.c.b16 %v2706, %v2698
  %v3523 = vpack.c.b16 %v2707, %v2699
  %v3524 = vpack.c.b16 %v2716, %v2708
  %v3525 = vpack.c.b16 %v2717, %v2709
  %v3526 = vpack.c.b16 %v2718, %v2710
  %v3527 = vpack.c.b16 %v2719, %v2711
  %v3528 = vpack.c.b16 %v2720, %v2712
  %v3529 = vpack.c.b16 %v2721, %v2713
  %v3530 = vpack.c.b16 %v2722, %v2714
  %v3531 = vpack.c.b16 %v2723, %v2715
  %v3532 = vpack.c.b16 %v2732, %v2724
  %v3533 = vpack.c.b16 %v2733, %v2725
  %v3534 = vpack.c.b16 %v2734, %v2726
  %v3535 = vpack.c.b16 %v2735, %v2727
  %v3536 = vpack.c.b16 %v2736, %v2728
  %v3537 = vpack.c.b16 %v2737, %v2729
  %v3538 = vpack.c.b16 %v2738, %v2730
  %v3539 = vpack.c.b16 %v2739, %v2731
  %v3540 = vpack.c.b16 %v2748, %v2740
  %v3541 = vpack.c.b16 %v2749, %v2741
  %v3542 = vpack.c.b16 %v2750, %v2742
  %v3543 = vpack.c.b16 %v2751, %v2743
  %v3544 = vpack.c.b16 %v2752, %v2744
  %v3545 = vpack.c.b16 %v2753, %v2745
  %v3546 = vpack.c.b16 %v2754, %v2746
  %v3547 = vpack.c.b16 %v2755, %v2747
  %v3548 = vpack.c.b16 %v2764, %v2756
  %v3549 = vpack.c.b16 %v2765, %v2757
  %v3550 = vpack.c.b16 %v2766, %v2758
  %v3551 = vpack.c.b16 %v2767, %v2759
  %v3552 = vpack.c.b16 %v2768, %v2760
  %v3553 = vpack.c.b16 %v2769, %v2761
  %v3554 = vpack.c.b16 %v2770, %v2762
  %v3555 = vpack.c.b16 %v2771, %v2763
  %v3556 = vpack.c.b16 %v2780, %v2772
  %v3557 = vpack.c.b16 %v2781, %v2773
  %v3558 = vpack.c.b16 %v2782, %v2774
  %v3559 = vpack.c.b16 %v2783, %v2775
  %v3560 = vpack.c.b16 %v2784, %v2776
  %v3561 = vpack.c.b16 %v2785, %v2777
  %v3562 = vpack.c.b16 %v2786, %v2778
  %v3563 = vpack.c.b16 %v2787, %v2779
  %v3564 = vpack.c.b16 %v2796, %v2788
  %v3565 = vpack.c.b16 %v2797, %v2789
  %v3566 = vpack.c.b16 %v2798, %v2790
  %v3567 = vpack.c.b16 %v2799, %v2791
  %v3568 = vpack.c.b16 %v2800, %v2792
  %v3569 = vpack.c.b16 %v2801, %v2793
  %v3570 = vpack.c.b16 %v2802, %v2794
  %v3571 = vpack.c.b16 %v2803, %v2795
  %v3572 = vpack.c.b16 %v2812, %v2804
  %v3573 = vpack.c.b16 %v2813, %v2805
  %v3574 = vpack.c.b16 %v2814, %v2806
  %v3575 = vpack.c.b16 %v2815, %v2807
  %v3576 = vpack.c.b16 %v2816, %v2808
  %v3577 = vpack.c.b16 %v2817, %v2809
  %v3578 = vpack.c.b16 %v2818, %v2810
  %v3579 = vpack.c.b16 %v2819, %v2811
  %v3580 = vpack.c.b16 %v2828, %v2820
  %v3581 = vpack.c.b16 %v2829, %v2821
  %v3582 = vpack.c.b16 %v2830, %v2822
  %v3583 = vpack.c.b16 %v2831, %v2823
  %v3584 = vpack.c.b16 %v2832, %v2824
  %v3585 = vpack.c.b16 %v2833, %v2825
  %v3586 = vpack.c.b16 %v2834, %v2826
  %v3587 = vpack.c.b16 %v2835, %v2827
  %v3588 = vpack.c.b16 %v2844, %v2836
  %v3589 = vpack.c.b16 %v2845, %v2837
  %v3590 = vpack.c.b16 %v2846, %v2838
  %v3591 = vpack.c.b16 %v2847, %v2839
  %v3592 = vpack.c.b16 %v2848, %v2840
  %v3593 = vpack.c.b16 %v2849, %v2841
  %v3594 = vpack.c.b16 %v2850, %v2842
  %v3595 = vpack.c.b16 %v2851, %v2843
  %v3596 = vpack.c.b16 %v2860, %v2852
  %v3597 = vpack.c.b16 %v2861, %v2853
  %v3598 = vpack.c.b16 %v2862, %v2854
  %v3599 = vpack.c.b16 %v2863, %v2855
  %v3600 = vpack.c.b16 %v2864, %v2856
  %v3601 = vpack.c.b16 %v2865, %v2857
  %v3602 = vpack.c.b16 %v2866, %v2858
  %v3603 = vpack.c.b16 %v2867, %v2859
  %v3604 = vpack.c.b16 %v2876, %v2868
  %v3605 = vpack.c.b16 %v2877, %v2869
  %v3606 = vpack.c.b16 %v2878, %v2870
  %v3607 = vpack.c.b16 %v2879, %v2871
  %v3608 = vpack.c.b16 %v2880, %v2872
  %v3609 = vpack.c.b16 %v2881, %v2873
  %v3610 = vpack.c.b16 %v2882, %v2874
  %v3611 = vpack.c.b16 %v2883, %v2875
  %v3612 = vpack.c.b16 %v2892, %v2884
  %v3613 = vpack.c.b16 %v2893, %v2885
  %v3614 = vpack.c.b16 %v2894, %v2886
  %v3615 = vpack.c.b16 %v2895, %v2887
  %v3616 = vpack.c.b16 %v2896, %v2888
  %v3617 = vpack.c.b16 %v2897, %v2889
  %v3618 = vpack.c.b16 %v2898, %v2890
  %v3619 = vpack.c.b16 %v2899, %v2891
  %v3620 = vpack.c.b16 %v2908, %v2900
  %v3621 = vpack.c.b16 %v2909, %v2901
  %v3622 = vpack.c.b16 %v2910, %v2902
  %v3623 = vpack.c.b16 %v2911, %v2903
  %v3624 = vpack.c.b16 %v2912, %v2904
  %v3625 = vpack.c.b16 %v2913, %v2905
  %v3626 = vpack.c.b16 %v2914, %v2906
  %v3627 = vpack.c.b16 %v2915, %v2907
  %v3628 = vpack.c.b16 %v2924, %v2916
  %v3629 = vpack.c.b16 %v2925, %v2917
  %v3630 = vpack.c.b16 %v2926, %v2918
  %v3631 = vpack.c.b16 %v2927, %v2919
  %v3632 = vpack.c.b16 %v2928, %v2920
  %v3633 = vpack.c.b16 %v2929, %v2921
  %v3634 = vpack.c.b16 %v2930, %v2922
  %v3635 = vpack.c.b16 %v2931, %v2923
  %v4341 = vlaneseq
  %v4342 = vshrl.u32 %v4341, 7
  %v4343 = vsub.s32 0, %v4342
  %v4344 = vrot.slane %v819, %v4343
  %v4345 = vlaneseq
  %v4346 = vshrl.u32 %v4345, 7
  %v4347 = vsub.s32 1, %v4346
  %v4348 = vrot.slane %v819, %v4347
  %v4349 = vlaneseq
  %v4350 = vshrl.u32 %v4349, 7
  %v4351 = vsub.s32 2, %v4350
  %v4352 = vrot.slane %v819, %v4351
  %v4353 = vlaneseq
  %v4354 = vshrl.u32 %v4353, 7
  %v4355 = vsub.s32 3, %v4354
  %v4356 = vrot.slane %v819, %v4355
  %v4357 = vlaneseq
  %v4358 = vshrl.u32 %v4357, 7
  %v4359 = vsub.s32 4, %v4358
  %v4360 = vrot.slane %v819, %v4359
  %v4361 = vlaneseq
  %v4362 = vshrl.u32 %v4361, 7
  %v4363 = vsub.s32 5, %v4362
  %v4364 = vrot.slane %v819, %v4363
  %v4365 = vlaneseq
  %v4366 = vshrl.u32 %v4365, 7
  %v4367 = vsub.s32 6, %v4366
  %v4368 = vrot.slane %v819, %v4367
  %v4369 = vlaneseq
  %v4370 = vshrl.u32 %v4369, 7
  %v4371 = vsub.s32 7, %v4370
  %v4372 = vrot.slane %v819, %v4371
  %4381 = vmatprep.subr.bf16.mxu0 %v2933
  %4382 = vmatpush1.bf16.msra.mxu0 %v2932
  %4383 = vmatprep.subr.bf16.mxu0 %v2941
  %4384 = vmatpush1.bf16.msra.mxu0 %v2940
  %4385 = vmatprep.subr.bf16.mxu0 %v2949
  %4386 = vmatpush1.bf16.msra.mxu0 %v2948
  %4387 = vmatprep.subr.bf16.mxu0 %v2957
  %4388 = vmatpush1.bf16.msra.mxu0 %v2956
  %4389 = vmatprep.subr.bf16.mxu0 %v2965
  %4390 = vmatpush1.bf16.msra.mxu0 %v2964
  %4391 = vmatprep.subr.bf16.mxu0 %v2973
  %4392 = vmatpush1.bf16.msra.mxu0 %v2972
  %4393 = vmatprep.subr.bf16.mxu0 %v2981
  %4394 = vmatpush1.bf16.msra.mxu0 %v2980
  %4395 = vmatprep.subr.bf16.mxu0 %v2989
  %4396 = vmatpush1.bf16.msra.mxu0 %v2988
  %4397 = vmatprep.subr.bf16.mxu0 %v2997
  %4398 = vmatpush1.bf16.msra.mxu0 %v2996
  %4399 = vmatprep.subr.bf16.mxu0 %v3005
  %4400 = vmatpush1.bf16.msra.mxu0 %v3004
  %4401 = vmatprep.subr.bf16.mxu0 %v3013
  %4402 = vmatpush1.bf16.msra.mxu0 %v3012
  %4403 = vmatprep.subr.bf16.mxu0 %v3021
  %4404 = vmatpush1.bf16.msra.mxu0 %v3020
  %4405 = vmatprep.subr.bf16.mxu0 %v3029
  %4406 = vmatpush1.bf16.msra.mxu0 %v3028
  %4407 = vmatprep.subr.bf16.mxu0 %v3037
  %4408 = vmatpush1.bf16.msra.mxu0 %v3036
  %4409 = vmatprep.subr.bf16.mxu0 %v3045
  %4410 = vmatpush1.bf16.msra.mxu0 %v3044
  %4411 = vmatprep.subr.bf16.mxu0 %v3053
  %4412 = vmatpush1.bf16.msra.mxu0 %v3052
  %4413 = vmatprep.mubr.bf16.mxu0 %v105
  %4414 = vmatmul.mubr.bf16.gmra.mrb[0].mxu0 %v104
  %v4415 = vpop.f32.mrb[0].mxu0
  %v4416 = vadd.f32 %v4344, %v4415
  %v4417 = vpop.f32.mrb[0].mxu0
  %v4418 = vadd.f32 %v4348, %v4417
  %v4419 = vpop.f32.mrb[0].mxu0
  %v4420 = vpop.f32.mrb[0].mxu0
  %4421 = vdwg.mxu0
  %4422 = vmatprep.subr.bf16.mxu0 %v3061
  %4423 = vmatpush1.bf16.msra.mxu0 %v3060
  %4424 = vmatprep.subr.bf16.mxu0 %v3069
  %4425 = vmatpush1.bf16.msra.mxu0 %v3068
  %4426 = vmatprep.subr.bf16.mxu0 %v3077
  %4427 = vmatpush1.bf16.msra.mxu0 %v3076
  %4428 = vmatprep.subr.bf16.mxu0 %v3085
  %4429 = vmatpush1.bf16.msra.mxu0 %v3084
  %4430 = vmatprep.subr.bf16.mxu0 %v3093
  %4431 = vmatpush1.bf16.msra.mxu0 %v3092
  %4432 = vmatprep.subr.bf16.mxu0 %v3101
  %4433 = vmatpush1.bf16.msra.mxu0 %v3100
  %4434 = vmatprep.subr.bf16.mxu0 %v3109
  %4435 = vmatpush1.bf16.msra.mxu0 %v3108
  %4436 = vmatprep.subr.bf16.mxu0 %v3117
  %4437 = vmatpush1.bf16.msra.mxu0 %v3116
  %4438 = vmatprep.subr.bf16.mxu0 %v3125
  %4439 = vmatpush1.bf16.msra.mxu0 %v3124
  %4440 = vmatprep.subr.bf16.mxu0 %v3133
  %4441 = vmatpush1.bf16.msra.mxu0 %v3132
  %4442 = vmatprep.subr.bf16.mxu0 %v3141
  %4443 = vmatpush1.bf16.msra.mxu0 %v3140
  %4444 = vmatprep.subr.bf16.mxu0 %v3149
  %4445 = vmatpush1.bf16.msra.mxu0 %v3148
  %4446 = vmatprep.subr.bf16.mxu0 %v3157
  %4447 = vmatpush1.bf16.msra.mxu0 %v3156
  %4448 = vmatprep.subr.bf16.mxu0 %v3165
  %4449 = vmatpush1.bf16.msra.mxu0 %v3164
  %4450 = vmatprep.subr.bf16.mxu0 %v3173
  %4451 = vmatpush1.bf16.msra.mxu0 %v3172
  %4452 = vmatprep.subr.bf16.mxu0 %v3181
  %4453 = vmatpush1.bf16.msra.mxu0 %v3180
  %4454 = vmatprep.mubr.bf16.mxu0 %v107
  %4455 = vmatmul.mubr.bf16.gmra.mrb[0].mxu0 %v106
  %v4456 = vpop.f32.mrb[0].mxu0
  %v4457 = vadd.f32 %v4416, %v4456
  %v4458 = vpop.f32.mrb[0].mxu0
  %v4459 = vadd.f32 %v4418, %v4458
  %v4460 = vpop.f32.mrb[0].mxu0
  %v4461 = vpop.f32.mrb[0].mxu0
  %4462 = vdwg.mxu0
  %4463 = vmatprep.subr.bf16.mxu0 %v3189
  %4464 = vmatpush1.bf16.msra.mxu0 %v3188
  %4465 = vmatprep.subr.bf16.mxu0 %v3197
  %4466 = vmatpush1.bf16.msra.mxu0 %v3196
  %4467 = vmatprep.subr.bf16.mxu0 %v3205
  %4468 = vmatpush1.bf16.msra.mxu0 %v3204
  %4469 = vmatprep.subr.bf16.mxu0 %v3213
  %4470 = vmatpush1.bf16.msra.mxu0 %v3212
  %4471 = vmatprep.subr.bf16.mxu0 %v3221
  %4472 = vmatpush1.bf16.msra.mxu0 %v3220
  %4473 = vmatprep.subr.bf16.mxu0 %v3229
  %4474 = vmatpush1.bf16.msra.mxu0 %v3228
  %4475 = vmatprep.subr.bf16.mxu0 %v3237
  %4476 = vmatpush1.bf16.msra.mxu0 %v3236
  %4477 = vmatprep.subr.bf16.mxu0 %v3245
  %4478 = vmatpush1.bf16.msra.mxu0 %v3244
  %4479 = vmatprep.subr.bf16.mxu0 %v3253
  %4480 = vmatpush1.bf16.msra.mxu0 %v3252
  %4481 = vmatprep.subr.bf16.mxu0 %v3261
  %4482 = vmatpush1.bf16.msra.mxu0 %v3260
  %4483 = vmatprep.subr.bf16.mxu0 %v3269
  %4484 = vmatpush1.bf16.msra.mxu0 %v3268
  %4485 = vmatprep.subr.bf16.mxu0 %v3277
  %4486 = vmatpush1.bf16.msra.mxu0 %v3276
  %4487 = vmatprep.subr.bf16.mxu0 %v3285
  %4488 = vmatpush1.bf16.msra.mxu0 %v3284
  %4489 = vmatprep.subr.bf16.mxu0 %v3293
  %4490 = vmatpush1.bf16.msra.mxu0 %v3292
  %4491 = vmatprep.subr.bf16.mxu0 %v3301
  %4492 = vmatpush1.bf16.msra.mxu0 %v3300
  %4493 = vmatprep.subr.bf16.mxu0 %v3309
  %4494 = vmatpush1.bf16.msra.mxu0 %v3308
  %4495 = vmatprep.mubr.bf16.mxu0 %v109
  %4496 = vmatmul.mubr.bf16.gmra.mrb[0].mxu0 %v108
  %v4497 = vpop.f32.mrb[0].mxu0
  %v4498 = vadd.f32 %v4457, %v4497
  %v4499 = vpop.f32.mrb[0].mxu0
  %v4500 = vadd.f32 %v4459, %v4499
  %v4501 = vpop.f32.mrb[0].mxu0
  %v4502 = vpop.f32.mrb[0].mxu0
  %4503 = vdwg.mxu0
  %4504 = vmatprep.subr.bf16.mxu0 %v3317
  %4505 = vmatpush1.bf16.msra.mxu0 %v3316
  %4506 = vmatprep.subr.bf16.mxu0 %v3325
  %4507 = vmatpush1.bf16.msra.mxu0 %v3324
  %4508 = vmatprep.subr.bf16.mxu0 %v3333
  %4509 = vmatpush1.bf16.msra.mxu0 %v3332
  %4510 = vmatprep.subr.bf16.mxu0 %v3341
  %4511 = vmatpush1.bf16.msra.mxu0 %v3340
  %4512 = vmatprep.subr.bf16.mxu0 %v3349
  %4513 = vmatpush1.bf16.msra.mxu0 %v3348
  %4514 = vmatprep.subr.bf16.mxu0 %v3357
  %4515 = vmatpush1.bf16.msra.mxu0 %v3356
  %4516 = vmatprep.subr.bf16.mxu0 %v3365
  %4517 = vmatpush1.bf16.msra.mxu0 %v3364
  %4518 = vmatprep.subr.bf16.mxu0 %v3373
  %4519 = vmatpush1.bf16.msra.mxu0 %v3372
  %4520 = vmatprep.subr.bf16.mxu0 %v3381
  %4521 = vmatpush1.bf16.msra.mxu0 %v3380
  %4522 = vmatprep.subr.bf16.mxu0 %v3389
  %4523 = vmatpush1.bf16.msra.mxu0 %v3388
  %4524 = vmatprep.subr.bf16.mxu0 %v3397
  %4525 = vmatpush1.bf16.msra.mxu0 %v3396
  %4526 = vmatprep.subr.bf16.mxu0 %v3405
  %4527 = vmatpush1.bf16.msra.mxu0 %v3404
  %4528 = vmatprep.subr.bf16.mxu0 %v3413
  %4529 = vmatpush1.bf16.msra.mxu0 %v3412
  %4530 = vmatprep.subr.bf16.mxu0 %v3421
  %4531 = vmatpush1.bf16.msra.mxu0 %v3420
  %4532 = vmatprep.subr.bf16.mxu0 %v3429
  %4533 = vmatpush1.bf16.msra.mxu0 %v3428
  %4534 = vmatprep.subr.bf16.mxu0 %v3437
  %4535 = vmatpush1.bf16.msra.mxu0 %v3436
  %4536 = vmatprep.mubr.bf16.mxu0 %v111
  %4537 = vmatmul.mubr.bf16.gmra.mrb[0].mxu0 %v110
  %v4538 = vpop.f32.mrb[0].mxu0
  %v4539 = vadd.f32 %v4498, %v4538
  %v4540 = vpop.f32.mrb[0].mxu0
  %v4541 = vadd.f32 %v4500, %v4540
  %v4542 = vpop.f32.mrb[0].mxu0
  %v4543 = vpop.f32.mrb[0].mxu0
  %4544 = vdwg.mxu0
  %4545 = vmatprep.subr.bf16.mxu0 %v3445
  %4546 = vmatpush1.bf16.msra.mxu0 %v3444
  %4547 = vmatprep.subr.bf16.mxu0 %v3453
  %4548 = vmatpush1.bf16.msra.mxu0 %v3452
  %4549 = vmatprep.subr.bf16.mxu0 %v3461
  %4550 = vmatpush1.bf16.msra.mxu0 %v3460
  %4551 = vmatprep.subr.bf16.mxu0 %v3469
  %4552 = vmatpush1.bf16.msra.mxu0 %v3468
  %4553 = vmatprep.subr.bf16.mxu0 %v3477
  %4554 = vmatpush1.bf16.msra.mxu0 %v3476
  %4555 = vmatprep.subr.bf16.mxu0 %v3485
  %4556 = vmatpush1.bf16.msra.mxu0 %v3484
  %4557 = vmatprep.subr.bf16.mxu0 %v3493
  %4558 = vmatpush1.bf16.msra.mxu0 %v3492
  %4559 = vmatprep.subr.bf16.mxu0 %v3501
  %4560 = vmatpush1.bf16.msra.mxu0 %v3500
  %4561 = vmatprep.subr.bf16.mxu0 %v3509
  %4562 = vmatpush1.bf16.msra.mxu0 %v3508
  %4563 = vmatprep.subr.bf16.mxu0 %v3517
  %4564 = vmatpush1.bf16.msra.mxu0 %v3516
  %4565 = vmatprep.subr.bf16.mxu0 %v3525
  %4566 = vmatpush1.bf16.msra.mxu0 %v3524
  %4567 = vmatprep.subr.bf16.mxu0 %v3533
  %4568 = vmatpush1.bf16.msra.mxu0 %v3532
  %4569 = vmatprep.subr.bf16.mxu0 %v3541
  %4570 = vmatpush1.bf16.msra.mxu0 %v3540
  %4571 = vmatprep.subr.bf16.mxu0 %v3549
  %4572 = vmatpush1.bf16.msra.mxu0 %v3548
  %4573 = vmatprep.subr.bf16.mxu0 %v3557
  %4574 = vmatpush1.bf16.msra.mxu0 %v3556
  %4575 = vmatprep.subr.bf16.mxu0 %v3565
  %4576 = vmatpush1.bf16.msra.mxu0 %v3564
  %4577 = vmatprep.mubr.bf16.mxu0 %v113
  %4578 = vmatmul.mubr.bf16.gmra.mrb[0].mxu0 %v112
  %v4579 = vpop.f32.mrb[0].mxu0
  %v4580 = vadd.f32 %v4539, %v4579
  %v4581 = vpop.f32.mrb[0].mxu0
  %v4582 = vadd.f32 %v4541, %v4581
  %v4583 = vpop.f32.mrb[0].mxu0
  %v4584 = vpop.f32.mrb[0].mxu0
  %4585 = vdwg.mxu0
  %4586 = vmatprep.subr.bf16.mxu0 %v3573
  %4587 = vmatpush1.bf16.msra.mxu0 %v3572
  %4588 = vmatprep.subr.bf16.mxu0 %v3581
  %4589 = vmatpush1.bf16.msra.mxu0 %v3580
  %4590 = vmatprep.subr.bf16.mxu0 %v3589
  %4591 = vmatpush1.bf16.msra.mxu0 %v3588
  %4592 = vmatprep.subr.bf16.mxu0 %v3597
  %4593 = vmatpush1.bf16.msra.mxu0 %v3596
  %4594 = vmatprep.subr.bf16.mxu0 %v3605
  %4595 = vmatpush1.bf16.msra.mxu0 %v3604
  %4596 = vmatprep.subr.bf16.mxu0 %v3613
  %4597 = vmatpush1.bf16.msra.mxu0 %v3612
  %4598 = vmatprep.subr.bf16.mxu0 %v3621
  %4599 = vmatpush1.bf16.msra.mxu0 %v3620
  %4600 = vmatprep.subr.bf16.mxu0 %v3629
  %4601 = vmatpush1.bf16.msra.mxu0 %v3628
  %4602 = vmatprep.subr.bf16.mxu0 0
  %4603 = vmatpush1.bf16.msra.mxu0 0
  %4604 = vmatprep.subr.bf16.mxu0 0
  %4605 = vmatpush1.bf16.msra.mxu0 0
  %4606 = vmatprep.subr.bf16.mxu0 0
  %4607 = vmatpush1.bf16.msra.mxu0 0
  %4608 = vmatprep.subr.bf16.mxu0 0
  %4609 = vmatpush1.bf16.msra.mxu0 0
  %4610 = vmatprep.subr.bf16.mxu0 0
  %4611 = vmatpush1.bf16.msra.mxu0 0
  %4612 = vmatprep.subr.bf16.mxu0 0
  %4613 = vmatpush1.bf16.msra.mxu0 0
  %4614 = vmatprep.subr.bf16.mxu0 0
  %4615 = vmatpush1.bf16.msra.mxu0 0
  %4616 = vmatprep.subr.bf16.mxu0 0
  %4617 = vmatpush1.bf16.msra.mxu0 0
  %4618 = vmatprep.mubr.bf16.mxu0 0
  %4619 = vmatmul.mubr.bf16.gmra.mrb[0].mxu0 %v114
  %v4620 = vpop.f32.mrb[0].mxu0
  %v4621 = vadd.f32 %v4580, %v4620
  %v4622 = vpop.f32.mrb[0].mxu0
  %v4623 = vadd.f32 %v4582, %v4622
  %v4624 = vpop.f32.mrb[0].mxu0
  %v4625 = vpop.f32.mrb[0].mxu0
  %4626 = vdwg.mxu0
  %4627 = vmatprep.subr.bf16.mxu0 %v2935
  %4628 = vmatpush1.bf16.msra.mxu0 %v2934
  %4629 = vmatprep.subr.bf16.mxu0 %v2943
  %4630 = vmatpush1.bf16.msra.mxu0 %v2942
  %4631 = vmatprep.subr.bf16.mxu0 %v2951
  %4632 = vmatpush1.bf16.msra.mxu0 %v2950
  %4633 = vmatprep.subr.bf16.mxu0 %v2959
  %4634 = vmatpush1.bf16.msra.mxu0 %v2958
  %4635 = vmatprep.subr.bf16.mxu0 %v2967
  %4636 = vmatpush1.bf16.msra.mxu0 %v2966
  %4637 = vmatprep.subr.bf16.mxu0 %v2975
  %4638 = vmatpush1.bf16.msra.mxu0 %v2974
  %4639 = vmatprep.subr.bf16.mxu0 %v2983
  %4640 = vmatpush1.bf16.msra.mxu0 %v2982
  %4641 = vmatprep.subr.bf16.mxu0 %v2991
  %4642 = vmatpush1.bf16.msra.mxu0 %v2990
  %4643 = vmatprep.subr.bf16.mxu0 %v2999
  %4644 = vmatpush1.bf16.msra.mxu0 %v2998
  %4645 = vmatprep.subr.bf16.mxu0 %v3007
  %4646 = vmatpush1.bf16.msra.mxu0 %v3006
  %4647 = vmatprep.subr.bf16.mxu0 %v3015
  %4648 = vmatpush1.bf16.msra.mxu0 %v3014
  %4649 = vmatprep.subr.bf16.mxu0 %v3023
  %4650 = vmatpush1.bf16.msra.mxu0 %v3022
  %4651 = vmatprep.subr.bf16.mxu0 %v3031
  %4652 = vmatpush1.bf16.msra.mxu0 %v3030
  %4653 = vmatprep.subr.bf16.mxu0 %v3039
  %4654 = vmatpush1.bf16.msra.mxu0 %v3038
  %4655 = vmatprep.subr.bf16.mxu0 %v3047
  %4656 = vmatpush1.bf16.msra.mxu0 %v3046
  %4657 = vmatprep.subr.bf16.mxu0 %v3055
  %4658 = vmatpush1.bf16.msra.mxu0 %v3054
  %4659 = vmatprep.mubr.bf16.mxu0 %v105
  %4660 = vmatmul.mubr.bf16.gmra.mrb[0].mxu0 %v104
  %v4661 = vpop.f32.mrb[0].mxu0
  %v4662 = vadd.f32 %v4352, %v4661
  %v4663 = vpop.f32.mrb[0].mxu0
  %v4664 = vadd.f32 %v4356, %v4663
  %v4665 = vpop.f32.mrb[0].mxu0
  %v4666 = vpop.f32.mrb[0].mxu0
  %4667 = vdwg.mxu0
  %4668 = vmatprep.subr.bf16.mxu0 %v3063
  %4669 = vmatpush1.bf16.msra.mxu0 %v3062
  %4670 = vmatprep.subr.bf16.mxu0 %v3071
  %4671 = vmatpush1.bf16.msra.mxu0 %v3070
  %4672 = vmatprep.subr.bf16.mxu0 %v3079
  %4673 = vmatpush1.bf16.msra.mxu0 %v3078
  %4674 = vmatprep.subr.bf16.mxu0 %v3087
  %4675 = vmatpush1.bf16.msra.mxu0 %v3086
  %4676 = vmatprep.subr.bf16.mxu0 %v3095
  %4677 = vmatpush1.bf16.msra.mxu0 %v3094
  %4678 = vmatprep.subr.bf16.mxu0 %v3103
  %4679 = vmatpush1.bf16.msra.mxu0 %v3102
  %4680 = vmatprep.subr.bf16.mxu0 %v3111
  %4681 = vmatpush1.bf16.msra.mxu0 %v3110
  %4682 = vmatprep.subr.bf16.mxu0 %v3119
  %4683 = vmatpush1.bf16.msra.mxu0 %v3118
  %4684 = vmatprep.subr.bf16.mxu0 %v3127
  %4685 = vmatpush1.bf16.msra.mxu0 %v3126
  %4686 = vmatprep.subr.bf16.mxu0 %v3135
  %4687 = vmatpush1.bf16.msra.mxu0 %v3134
  %4688 = vmatprep.subr.bf16.mxu0 %v3143
  %4689 = vmatpush1.bf16.msra.mxu0 %v3142
  %4690 = vmatprep.subr.bf16.mxu0 %v3151
  %4691 = vmatpush1.bf16.msra.mxu0 %v3150
  %4692 = vmatprep.subr.bf16.mxu0 %v3159
  %4693 = vmatpush1.bf16.msra.mxu0 %v3158
  %4694 = vmatprep.subr.bf16.mxu0 %v3167
  %4695 = vmatpush1.bf16.msra.mxu0 %v3166
  %4696 = vmatprep.subr.bf16.mxu0 %v3175
  %4697 = vmatpush1.bf16.msra.mxu0 %v3174
  %4698 = vmatprep.subr.bf16.mxu0 %v3183
  %4699 = vmatpush1.bf16.msra.mxu0 %v3182
  %4700 = vmatprep.mubr.bf16.mxu0 %v107
  %4701 = vmatmul.mubr.bf16.gmra.mrb[0].mxu0 %v106
  %v4702 = vpop.f32.mrb[0].mxu0
  %v4703 = vadd.f32 %v4662, %v4702
  %v4704 = vpop.f32.mrb[0].mxu0
  %v4705 = vadd.f32 %v4664, %v4704
  %v4706 = vpop.f32.mrb[0].mxu0
  %v4707 = vpop.f32.mrb[0].mxu0
  %4708 = vdwg.mxu0
  %4709 = vmatprep.subr.bf16.mxu0 %v3191
  %4710 = vmatpush1.bf16.msra.mxu0 %v3190
  %4711 = vmatprep.subr.bf16.mxu0 %v3199
  %4712 = vmatpush1.bf16.msra.mxu0 %v3198
  %4713 = vmatprep.subr.bf16.mxu0 %v3207
  %4714 = vmatpush1.bf16.msra.mxu0 %v3206
  %4715 = vmatprep.subr.bf16.mxu0 %v3215
  %4716 = vmatpush1.bf16.msra.mxu0 %v3214
  %4717 = vmatprep.subr.bf16.mxu0 %v3223
  %4718 = vmatpush1.bf16.msra.mxu0 %v3222
  %4719 = vmatprep.subr.bf16.mxu0 %v3231
  %4720 = vmatpush1.bf16.msra.mxu0 %v3230
  %4721 = vmatprep.subr.bf16.mxu0 %v3239
  %4722 = vmatpush1.bf16.msra.mxu0 %v3238
  %4723 = vmatprep.subr.bf16.mxu0 %v3247
  %4724 = vmatpush1.bf16.msra.mxu0 %v3246
  %4725 = vmatprep.subr.bf16.mxu0 %v3255
  %4726 = vmatpush1.bf16.msra.mxu0 %v3254
  %4727 = vmatprep.subr.bf16.mxu0 %v3263
  %4728 = vmatpush1.bf16.msra.mxu0 %v3262
  %4729 = vmatprep.subr.bf16.mxu0 %v3271
  %4730 = vmatpush1.bf16.msra.mxu0 %v3270
  %4731 = vmatprep.subr.bf16.mxu0 %v3279
  %4732 = vmatpush1.bf16.msra.mxu0 %v3278
  %4733 = vmatprep.subr.bf16.mxu0 %v3287
  %4734 = vmatpush1.bf16.msra.mxu0 %v3286
  %4735 = vmatprep.subr.bf16.mxu0 %v3295
  %4736 = vmatpush1.bf16.msra.mxu0 %v3294
  %4737 = vmatprep.subr.bf16.mxu0 %v3303
  %4738 = vmatpush1.bf16.msra.mxu0 %v3302
  %4739 = vmatprep.subr.bf16.mxu0 %v3311
  %4740 = vmatpush1.bf16.msra.mxu0 %v3310
  %4741 = vmatprep.mubr.bf16.mxu0 %v109
  %4742 = vmatmul.mubr.bf16.gmra.mrb[0].mxu0 %v108
  %v4743 = vpop.f32.mrb[0].mxu0
  %v4744 = vadd.f32 %v4703, %v4743
  %v4745 = vpop.f32.mrb[0].mxu0
  %v4746 = vadd.f32 %v4705, %v4745
  %v4747 = vpop.f32.mrb[0].mxu0
  %v4748 = vpop.f32.mrb[0].mxu0
  %4749 = vdwg.mxu0
  %4750 = vmatprep.subr.bf16.mxu0 %v3319
  %4751 = vmatpush1.bf16.msra.mxu0 %v3318
  %4752 = vmatprep.subr.bf16.mxu0 %v3327
  %4753 = vmatpush1.bf16.msra.mxu0 %v3326
  %4754 = vmatprep.subr.bf16.mxu0 %v3335
  %4755 = vmatpush1.bf16.msra.mxu0 %v3334
  %4756 = vmatprep.subr.bf16.mxu0 %v3343
  %4757 = vmatpush1.bf16.msra.mxu0 %v3342
  %4758 = vmatprep.subr.bf16.mxu0 %v3351
  %4759 = vmatpush1.bf16.msra.mxu0 %v3350
  %4760 = vmatprep.subr.bf16.mxu0 %v3359
  %4761 = vmatpush1.bf16.msra.mxu0 %v3358
  %4762 = vmatprep.subr.bf16.mxu0 %v3367
  %4763 = vmatpush1.bf16.msra.mxu0 %v3366
  %4764 = vmatprep.subr.bf16.mxu0 %v3375
  %4765 = vmatpush1.bf16.msra.mxu0 %v3374
  %4766 = vmatprep.subr.bf16.mxu0 %v3383
  %4767 = vmatpush1.bf16.msra.mxu0 %v3382
  %4768 = vmatprep.subr.bf16.mxu0 %v3391
  %4769 = vmatpush1.bf16.msra.mxu0 %v3390
  %4770 = vmatprep.subr.bf16.mxu0 %v3399
  %4771 = vmatpush1.bf16.msra.mxu0 %v3398
  %4772 = vmatprep.subr.bf16.mxu0 %v3407
  %4773 = vmatpush1.bf16.msra.mxu0 %v3406
  %4774 = vmatprep.subr.bf16.mxu0 %v3415
  %4775 = vmatpush1.bf16.msra.mxu0 %v3414
  %4776 = vmatprep.subr.bf16.mxu0 %v3423
  %4777 = vmatpush1.bf16.msra.mxu0 %v3422
  %4778 = vmatprep.subr.bf16.mxu0 %v3431
  %4779 = vmatpush1.bf16.msra.mxu0 %v3430
  %4780 = vmatprep.subr.bf16.mxu0 %v3439
  %4781 = vmatpush1.bf16.msra.mxu0 %v3438
  %4782 = vmatprep.mubr.bf16.mxu0 %v111
  %4783 = vmatmul.mubr.bf16.gmra.mrb[0].mxu0 %v110
  %v4784 = vpop.f32.mrb[0].mxu0
  %v4785 = vadd.f32 %v4744, %v4784
  %v4786 = vpop.f32.mrb[0].mxu0
  %v4787 = vadd.f32 %v4746, %v4786
  %v4788 = vpop.f32.mrb[0].mxu0
  %v4789 = vpop.f32.mrb[0].mxu0
  %4790 = vdwg.mxu0
  %4791 = vmatprep.subr.bf16.mxu0 %v3447
  %4792 = vmatpush1.bf16.msra.mxu0 %v3446
  %4793 = vmatprep.subr.bf16.mxu0 %v3455
  %4794 = vmatpush1.bf16.msra.mxu0 %v3454
  %4795 = vmatprep.subr.bf16.mxu0 %v3463
  %4796 = vmatpush1.bf16.msra.mxu0 %v3462
  %4797 = vmatprep.subr.bf16.mxu0 %v3471
  %4798 = vmatpush1.bf16.msra.mxu0 %v3470
  %4799 = vmatprep.subr.bf16.mxu0 %v3479
  %4800 = vmatpush1.bf16.msra.mxu0 %v3478
  %4801 = vmatprep.subr.bf16.mxu0 %v3487
  %4802 = vmatpush1.bf16.msra.mxu0 %v3486
  %4803 = vmatprep.subr.bf16.mxu0 %v3495
  %4804 = vmatpush1.bf16.msra.mxu0 %v3494
  %4805 = vmatprep.subr.bf16.mxu0 %v3503
  %4806 = vmatpush1.bf16.msra.mxu0 %v3502
  %4807 = vmatprep.subr.bf16.mxu0 %v3511
  %4808 = vmatpush1.bf16.msra.mxu0 %v3510
  %4809 = vmatprep.subr.bf16.mxu0 %v3519
  %4810 = vmatpush1.bf16.msra.mxu0 %v3518
  %4811 = vmatprep.subr.bf16.mxu0 %v3527
  %4812 = vmatpush1.bf16.msra.mxu0 %v3526
  %4813 = vmatprep.subr.bf16.mxu0 %v3535
  %4814 = vmatpush1.bf16.msra.mxu0 %v3534
  %4815 = vmatprep.subr.bf16.mxu0 %v3543
  %4816 = vmatpush1.bf16.msra.mxu0 %v3542
  %4817 = vmatprep.subr.bf16.mxu0 %v3551
  %4818 = vmatpush1.bf16.msra.mxu0 %v3550
  %4819 = vmatprep.subr.bf16.mxu0 %v3559
  %4820 = vmatpush1.bf16.msra.mxu0 %v3558
  %4821 = vmatprep.subr.bf16.mxu0 %v3567
  %4822 = vmatpush1.bf16.msra.mxu0 %v3566
  %4823 = vmatprep.mubr.bf16.mxu0 %v113
  %4824 = vmatmul.mubr.bf16.gmra.mrb[0].mxu0 %v112
  %v4825 = vpop.f32.mrb[0].mxu0
  %v4826 = vadd.f32 %v4785, %v4825
  %v4827 = vpop.f32.mrb[0].mxu0
  %v4828 = vadd.f32 %v4787, %v4827
  %v4829 = vpop.f32.mrb[0].mxu0
  %v4830 = vpop.f32.mrb[0].mxu0
  %4831 = vdwg.mxu0
  %4832 = vmatprep.subr.bf16.mxu0 %v3575
  %4833 = vmatpush1.bf16.msra.mxu0 %v3574
  %4834 = vmatprep.subr.bf16.mxu0 %v3583
  %4835 = vmatpush1.bf16.msra.mxu0 %v3582
  %4836 = vmatprep.subr.bf16.mxu0 %v3591
  %4837 = vmatpush1.bf16.msra.mxu0 %v3590
  %4838 = vmatprep.subr.bf16.mxu0 %v3599
  %4839 = vmatpush1.bf16.msra.mxu0 %v3598
  %4840 = vmatprep.subr.bf16.mxu0 %v3607
  %4841 = vmatpush1.bf16.msra.mxu0 %v3606
  %4842 = vmatprep.subr.bf16.mxu0 %v3615
  %4843 = vmatpush1.bf16.msra.mxu0 %v3614
  %4844 = vmatprep.subr.bf16.mxu0 %v3623
  %4845 = vmatpush1.bf16.msra.mxu0 %v3622
  %4846 = vmatprep.subr.bf16.mxu0 %v3631
  %4847 = vmatpush1.bf16.msra.mxu0 %v3630
  %4848 = vmatprep.subr.bf16.mxu0 0
  %4849 = vmatpush1.bf16.msra.mxu0 0
  %4850 = vmatprep.subr.bf16.mxu0 0
  %4851 = vmatpush1.bf16.msra.mxu0 0
  %4852 = vmatprep.subr.bf16.mxu0 0
  %4853 = vmatpush1.bf16.msra.mxu0 0
  %4854 = vmatprep.subr.bf16.mxu0 0
  %4855 = vmatpush1.bf16.msra.mxu0 0
  %4856 = vmatprep.subr.bf16.mxu0 0
  %4857 = vmatpush1.bf16.msra.mxu0 0
  %4858 = vmatprep.subr.bf16.mxu0 0
  %4859 = vmatpush1.bf16.msra.mxu0 0
  %4860 = vmatprep.subr.bf16.mxu0 0
  %4861 = vmatpush1.bf16.msra.mxu0 0
  %4862 = vmatprep.subr.bf16.mxu0 0
  %4863 = vmatpush1.bf16.msra.mxu0 0
  %4864 = vmatprep.mubr.bf16.mxu0 0
  %4865 = vmatmul.mubr.bf16.gmra.mrb[0].mxu0 %v114
  %v4866 = vpop.f32.mrb[0].mxu0
  %v4867 = vadd.f32 %v4826, %v4866
  %v4868 = vpop.f32.mrb[0].mxu0
  %v4869 = vadd.f32 %v4828, %v4868
  %v4870 = vpop.f32.mrb[0].mxu0
  %v4871 = vpop.f32.mrb[0].mxu0
  %4872 = vdwg.mxu0
  %4873 = vmatprep.subr.bf16.mxu0 %v2937
  %4874 = vmatpush1.bf16.msra.mxu0 %v2936
  %4875 = vmatprep.subr.bf16.mxu0 %v2945
  %4876 = vmatpush1.bf16.msra.mxu0 %v2944
  %4877 = vmatprep.subr.bf16.mxu0 %v2953
  %4878 = vmatpush1.bf16.msra.mxu0 %v2952
  %4879 = vmatprep.subr.bf16.mxu0 %v2961
  %4880 = vmatpush1.bf16.msra.mxu0 %v2960
  %4881 = vmatprep.subr.bf16.mxu0 %v2969
  %4882 = vmatpush1.bf16.msra.mxu0 %v2968
  %4883 = vmatprep.subr.bf16.mxu0 %v2977
  %4884 = vmatpush1.bf16.msra.mxu0 %v2976
  %4885 = vmatprep.subr.bf16.mxu0 %v2985
  %4886 = vmatpush1.bf16.msra.mxu0 %v2984
  %4887 = vmatprep.subr.bf16.mxu0 %v2993
  %4888 = vmatpush1.bf16.msra.mxu0 %v2992
  %4889 = vmatprep.subr.bf16.mxu0 %v3001
  %4890 = vmatpush1.bf16.msra.mxu0 %v3000
  %4891 = vmatprep.subr.bf16.mxu0 %v3009
  %4892 = vmatpush1.bf16.msra.mxu0 %v3008
  %4893 = vmatprep.subr.bf16.mxu0 %v3017
  %4894 = vmatpush1.bf16.msra.mxu0 %v3016
  %4895 = vmatprep.subr.bf16.mxu0 %v3025
  %4896 = vmatpush1.bf16.msra.mxu0 %v3024
  %4897 = vmatprep.subr.bf16.mxu0 %v3033
  %4898 = vmatpush1.bf16.msra.mxu0 %v3032
  %4899 = vmatprep.subr.bf16.mxu0 %v3041
  %4900 = vmatpush1.bf16.msra.mxu0 %v3040
  %4901 = vmatprep.subr.bf16.mxu0 %v3049
  %4902 = vmatpush1.bf16.msra.mxu0 %v3048
  %4903 = vmatprep.subr.bf16.mxu0 %v3057
  %4904 = vmatpush1.bf16.msra.mxu0 %v3056
  %4905 = vmatprep.mubr.bf16.mxu0 %v105
  %4906 = vmatmul.mubr.bf16.gmra.mrb[0].mxu0 %v104
  %v4907 = vpop.f32.mrb[0].mxu0
  %v4908 = vadd.f32 %v4360, %v4907
  %v4909 = vpop.f32.mrb[0].mxu0
  %v4910 = vadd.f32 %v4364, %v4909
  %v4911 = vpop.f32.mrb[0].mxu0
  %v4912 = vpop.f32.mrb[0].mxu0
  %4913 = vdwg.mxu0
  %4914 = vmatprep.subr.bf16.mxu0 %v3065
  %4915 = vmatpush1.bf16.msra.mxu0 %v3064
  %4916 = vmatprep.subr.bf16.mxu0 %v3073
  %4917 = vmatpush1.bf16.msra.mxu0 %v3072
  %4918 = vmatprep.subr.bf16.mxu0 %v3081
  %4919 = vmatpush1.bf16.msra.mxu0 %v3080
  %4920 = vmatprep.subr.bf16.mxu0 %v3089
  %4921 = vmatpush1.bf16.msra.mxu0 %v3088
  %4922 = vmatprep.subr.bf16.mxu0 %v3097
  %4923 = vmatpush1.bf16.msra.mxu0 %v3096
  %4924 = vmatprep.subr.bf16.mxu0 %v3105
  %4925 = vmatpush1.bf16.msra.mxu0 %v3104
  %4926 = vmatprep.subr.bf16.mxu0 %v3113
  %4927 = vmatpush1.bf16.msra.mxu0 %v3112
  %4928 = vmatprep.subr.bf16.mxu0 %v3121
  %4929 = vmatpush1.bf16.msra.mxu0 %v3120
  %4930 = vmatprep.subr.bf16.mxu0 %v3129
  %4931 = vmatpush1.bf16.msra.mxu0 %v3128
  %4932 = vmatprep.subr.bf16.mxu0 %v3137
  %4933 = vmatpush1.bf16.msra.mxu0 %v3136
  %4934 = vmatprep.subr.bf16.mxu0 %v3145
  %4935 = vmatpush1.bf16.msra.mxu0 %v3144
  %4936 = vmatprep.subr.bf16.mxu0 %v3153
  %4937 = vmatpush1.bf16.msra.mxu0 %v3152
  %4938 = vmatprep.subr.bf16.mxu0 %v3161
  %4939 = vmatpush1.bf16.msra.mxu0 %v3160
  %4940 = vmatprep.subr.bf16.mxu0 %v3169
  %4941 = vmatpush1.bf16.msra.mxu0 %v3168
  %4942 = vmatprep.subr.bf16.mxu0 %v3177
  %4943 = vmatpush1.bf16.msra.mxu0 %v3176
  %4944 = vmatprep.subr.bf16.mxu0 %v3185
  %4945 = vmatpush1.bf16.msra.mxu0 %v3184
  %4946 = vmatprep.mubr.bf16.mxu0 %v107
  %4947 = vmatmul.mubr.bf16.gmra.mrb[0].mxu0 %v106
  %v4948 = vpop.f32.mrb[0].mxu0
  %v4949 = vadd.f32 %v4908, %v4948
  %v4950 = vpop.f32.mrb[0].mxu0
  %v4951 = vadd.f32 %v4910, %v4950
  %v4952 = vpop.f32.mrb[0].mxu0
  %v4953 = vpop.f32.mrb[0].mxu0
  %4954 = vdwg.mxu0
  %4955 = vmatprep.subr.bf16.mxu0 %v3193
  %4956 = vmatpush1.bf16.msra.mxu0 %v3192
  %4957 = vmatprep.subr.bf16.mxu0 %v3201
  %4958 = vmatpush1.bf16.msra.mxu0 %v3200
  %4959 = vmatprep.subr.bf16.mxu0 %v3209
  %4960 = vmatpush1.bf16.msra.mxu0 %v3208
  %4961 = vmatprep.subr.bf16.mxu0 %v3217
  %4962 = vmatpush1.bf16.msra.mxu0 %v3216
  %4963 = vmatprep.subr.bf16.mxu0 %v3225
  %4964 = vmatpush1.bf16.msra.mxu0 %v3224
  %4965 = vmatprep.subr.bf16.mxu0 %v3233
  %4966 = vmatpush1.bf16.msra.mxu0 %v3232
  %4967 = vmatprep.subr.bf16.mxu0 %v3241
  %4968 = vmatpush1.bf16.msra.mxu0 %v3240
  %4969 = vmatprep.subr.bf16.mxu0 %v3249
  %4970 = vmatpush1.bf16.msra.mxu0 %v3248
  %4971 = vmatprep.subr.bf16.mxu0 %v3257
  %4972 = vmatpush1.bf16.msra.mxu0 %v3256
  %4973 = vmatprep.subr.bf16.mxu0 %v3265
  %4974 = vmatpush1.bf16.msra.mxu0 %v3264
  %4975 = vmatprep.subr.bf16.mxu0 %v3273
  %4976 = vmatpush1.bf16.msra.mxu0 %v3272
  %4977 = vmatprep.subr.bf16.mxu0 %v3281
  %4978 = vmatpush1.bf16.msra.mxu0 %v3280
  %4979 = vmatprep.subr.bf16.mxu0 %v3289
  %4980 = vmatpush1.bf16.msra.mxu0 %v3288
  %4981 = vmatprep.subr.bf16.mxu0 %v3297
  %4982 = vmatpush1.bf16.msra.mxu0 %v3296
  %4983 = vmatprep.subr.bf16.mxu0 %v3305
  %4984 = vmatpush1.bf16.msra.mxu0 %v3304
  %4985 = vmatprep.subr.bf16.mxu0 %v3313
  %4986 = vmatpush1.bf16.msra.mxu0 %v3312
  %4987 = vmatprep.mubr.bf16.mxu0 %v109
  %4988 = vmatmul.mubr.bf16.gmra.mrb[0].mxu0 %v108
  %v4989 = vpop.f32.mrb[0].mxu0
  %v4990 = vadd.f32 %v4949, %v4989
  %v4991 = vpop.f32.mrb[0].mxu0
  %v4992 = vadd.f32 %v4951, %v4991
  %v4993 = vpop.f32.mrb[0].mxu0
  %v4994 = vpop.f32.mrb[0].mxu0
  %4995 = vdwg.mxu0
  %4996 = vmatprep.subr.bf16.mxu0 %v3321
  %4997 = vmatpush1.bf16.msra.mxu0 %v3320
  %4998 = vmatprep.subr.bf16.mxu0 %v3329
  %4999 = vmatpush1.bf16.msra.mxu0 %v3328
  %5000 = vmatprep.subr.bf16.mxu0 %v3337
  %5001 = vmatpush1.bf16.msra.mxu0 %v3336
  %5002 = vmatprep.subr.bf16.mxu0 %v3345
  %5003 = vmatpush1.bf16.msra.mxu0 %v3344
  %5004 = vmatprep.subr.bf16.mxu0 %v3353
  %5005 = vmatpush1.bf16.msra.mxu0 %v3352
  %5006 = vmatprep.subr.bf16.mxu0 %v3361
  %5007 = vmatpush1.bf16.msra.mxu0 %v3360
  %5008 = vmatprep.subr.bf16.mxu0 %v3369
  %5009 = vmatpush1.bf16.msra.mxu0 %v3368
  %5010 = vmatprep.subr.bf16.mxu0 %v3377
  %5011 = vmatpush1.bf16.msra.mxu0 %v3376
  %5012 = vmatprep.subr.bf16.mxu0 %v3385
  %5013 = vmatpush1.bf16.msra.mxu0 %v3384
  %5014 = vmatprep.subr.bf16.mxu0 %v3393
  %5015 = vmatpush1.bf16.msra.mxu0 %v3392
  %5016 = vmatprep.subr.bf16.mxu0 %v3401
  %5017 = vmatpush1.bf16.msra.mxu0 %v3400
  %5018 = vmatprep.subr.bf16.mxu0 %v3409
  %5019 = vmatpush1.bf16.msra.mxu0 %v3408
  %5020 = vmatprep.subr.bf16.mxu0 %v3417
  %5021 = vmatpush1.bf16.msra.mxu0 %v3416
  %5022 = vmatprep.subr.bf16.mxu0 %v3425
  %5023 = vmatpush1.bf16.msra.mxu0 %v3424
  %5024 = vmatprep.subr.bf16.mxu0 %v3433
  %5025 = vmatpush1.bf16.msra.mxu0 %v3432
  %5026 = vmatprep.subr.bf16.mxu0 %v3441
  %5027 = vmatpush1.bf16.msra.mxu0 %v3440
  %5028 = vmatprep.mubr.bf16.mxu0 %v111
  %5029 = vmatmul.mubr.bf16.gmra.mrb[0].mxu0 %v110
  %v5030 = vpop.f32.mrb[0].mxu0
  %v5031 = vadd.f32 %v4990, %v5030
  %v5032 = vpop.f32.mrb[0].mxu0
  %v5033 = vadd.f32 %v4992, %v5032
  %v5034 = vpop.f32.mrb[0].mxu0
  %v5035 = vpop.f32.mrb[0].mxu0
  %5036 = vdwg.mxu0
  %5037 = vmatprep.subr.bf16.mxu0 %v3449
  %5038 = vmatpush1.bf16.msra.mxu0 %v3448
  %5039 = vmatprep.subr.bf16.mxu0 %v3457
  %5040 = vmatpush1.bf16.msra.mxu0 %v3456
  %5041 = vmatprep.subr.bf16.mxu0 %v3465
  %5042 = vmatpush1.bf16.msra.mxu0 %v3464
  %5043 = vmatprep.subr.bf16.mxu0 %v3473
  %5044 = vmatpush1.bf16.msra.mxu0 %v3472
  %5045 = vmatprep.subr.bf16.mxu0 %v3481
  %5046 = vmatpush1.bf16.msra.mxu0 %v3480
  %5047 = vmatprep.subr.bf16.mxu0 %v3489
  %5048 = vmatpush1.bf16.msra.mxu0 %v3488
  %5049 = vmatprep.subr.bf16.mxu0 %v3497
  %5050 = vmatpush1.bf16.msra.mxu0 %v3496
  %5051 = vmatprep.subr.bf16.mxu0 %v3505
  %5052 = vmatpush1.bf16.msra.mxu0 %v3504
  %5053 = vmatprep.subr.bf16.mxu0 %v3513
  %5054 = vmatpush1.bf16.msra.mxu0 %v3512
  %5055 = vmatprep.subr.bf16.mxu0 %v3521
  %5056 = vmatpush1.bf16.msra.mxu0 %v3520
  %5057 = vmatprep.subr.bf16.mxu0 %v3529
  %5058 = vmatpush1.bf16.msra.mxu0 %v3528
  %5059 = vmatprep.subr.bf16.mxu0 %v3537
  %5060 = vmatpush1.bf16.msra.mxu0 %v3536
  %5061 = vmatprep.subr.bf16.mxu0 %v3545
  %5062 = vmatpush1.bf16.msra.mxu0 %v3544
  %5063 = vmatprep.subr.bf16.mxu0 %v3553
  %5064 = vmatpush1.bf16.msra.mxu0 %v3552
  %5065 = vmatprep.subr.bf16.mxu0 %v3561
  %5066 = vmatpush1.bf16.msra.mxu0 %v3560
  %5067 = vmatprep.subr.bf16.mxu0 %v3569
  %5068 = vmatpush1.bf16.msra.mxu0 %v3568
  %5069 = vmatprep.mubr.bf16.mxu0 %v113
  %5070 = vmatmul.mubr.bf16.gmra.mrb[0].mxu0 %v112
  %v5071 = vpop.f32.mrb[0].mxu0
  %v5072 = vadd.f32 %v5031, %v5071
  %v5073 = vpop.f32.mrb[0].mxu0
  %v5074 = vadd.f32 %v5033, %v5073
  %v5075 = vpop.f32.mrb[0].mxu0
  %v5076 = vpop.f32.mrb[0].mxu0
  %5077 = vdwg.mxu0
  %5078 = vmatprep.subr.bf16.mxu0 %v3577
  %5079 = vmatpush1.bf16.msra.mxu0 %v3576
  %5080 = vmatprep.subr.bf16.mxu0 %v3585
  %5081 = vmatpush1.bf16.msra.mxu0 %v3584
  %5082 = vmatprep.subr.bf16.mxu0 %v3593
  %5083 = vmatpush1.bf16.msra.mxu0 %v3592
  %5084 = vmatprep.subr.bf16.mxu0 %v3601
  %5085 = vmatpush1.bf16.msra.mxu0 %v3600
  %5086 = vmatprep.subr.bf16.mxu0 %v3609
  %5087 = vmatpush1.bf16.msra.mxu0 %v3608
  %5088 = vmatprep.subr.bf16.mxu0 %v3617
  %5089 = vmatpush1.bf16.msra.mxu0 %v3616
  %5090 = vmatprep.subr.bf16.mxu0 %v3625
  %5091 = vmatpush1.bf16.msra.mxu0 %v3624
  %5092 = vmatprep.subr.bf16.mxu0 %v3633
  %5093 = vmatpush1.bf16.msra.mxu0 %v3632
  %5094 = vmatprep.subr.bf16.mxu0 0
  %5095 = vmatpush1.bf16.msra.mxu0 0
  %5096 = vmatprep.subr.bf16.mxu0 0
  %5097 = vmatpush1.bf16.msra.mxu0 0
  %5098 = vmatprep.subr.bf16.mxu0 0
  %5099 = vmatpush1.bf16.msra.mxu0 0
  %5100 = vmatprep.subr.bf16.mxu0 0
  %5101 = vmatpush1.bf16.msra.mxu0 0
  %5102 = vmatprep.subr.bf16.mxu0 0
  %5103 = vmatpush1.bf16.msra.mxu0 0
  %5104 = vmatprep.subr.bf16.mxu0 0
  %5105 = vmatpush1.bf16.msra.mxu0 0
  %5106 = vmatprep.subr.bf16.mxu0 0
  %5107 = vmatpush1.bf16.msra.mxu0 0
  %5108 = vmatprep.subr.bf16.mxu0 0
  %5109 = vmatpush1.bf16.msra.mxu0 0
  %5110 = vmatprep.mubr.bf16.mxu0 0
  %5111 = vmatmul.mubr.bf16.gmra.mrb[0].mxu0 %v114
  %v5112 = vpop.f32.mrb[0].mxu0
  %v5113 = vadd.f32 %v5072, %v5112
  %v5114 = vpop.f32.mrb[0].mxu0
  %v5115 = vadd.f32 %v5074, %v5114
  %v5116 = vpop.f32.mrb[0].mxu0
  %v5117 = vpop.f32.mrb[0].mxu0
  %5118 = vdwg.mxu0
  %5119 = vmatprep.subr.bf16.mxu0 %v2939
  %5120 = vmatpush1.bf16.msra.mxu0 %v2938
  %5121 = vmatprep.subr.bf16.mxu0 %v2947
  %5122 = vmatpush1.bf16.msra.mxu0 %v2946
  %5123 = vmatprep.subr.bf16.mxu0 %v2955
  %5124 = vmatpush1.bf16.msra.mxu0 %v2954
  %5125 = vmatprep.subr.bf16.mxu0 %v2963
  %5126 = vmatpush1.bf16.msra.mxu0 %v2962
  %5127 = vmatprep.subr.bf16.mxu0 %v2971
  %5128 = vmatpush1.bf16.msra.mxu0 %v2970
  %5129 = vmatprep.subr.bf16.mxu0 %v2979
  %5130 = vmatpush1.bf16.msra.mxu0 %v2978
  %5131 = vmatprep.subr.bf16.mxu0 %v2987
  %5132 = vmatpush1.bf16.msra.mxu0 %v2986
  %5133 = vmatprep.subr.bf16.mxu0 %v2995
  %5134 = vmatpush1.bf16.msra.mxu0 %v2994
  %5135 = vmatprep.subr.bf16.mxu0 %v3003
  %5136 = vmatpush1.bf16.msra.mxu0 %v3002
  %5137 = vmatprep.subr.bf16.mxu0 %v3011
  %5138 = vmatpush1.bf16.msra.mxu0 %v3010
  %5139 = vmatprep.subr.bf16.mxu0 %v3019
  %5140 = vmatpush1.bf16.msra.mxu0 %v3018
  %5141 = vmatprep.subr.bf16.mxu0 %v3027
  %5142 = vmatpush1.bf16.msra.mxu0 %v3026
  %5143 = vmatprep.subr.bf16.mxu0 %v3035
  %5144 = vmatpush1.bf16.msra.mxu0 %v3034
  %5145 = vmatprep.subr.bf16.mxu0 %v3043
  %5146 = vmatpush1.bf16.msra.mxu0 %v3042
  %5147 = vmatprep.subr.bf16.mxu0 %v3051
  %5148 = vmatpush1.bf16.msra.mxu0 %v3050
  %5149 = vmatprep.subr.bf16.mxu0 %v3059
  %5150 = vmatpush1.bf16.msra.mxu0 %v3058
  %5151 = vmatprep.mubr.bf16.mxu0 %v105
  %5152 = vmatmul.mubr.bf16.gmra.mrb[0].mxu0 %v104
  %v5153 = vpop.f32.mrb[0].mxu0
  %v5154 = vadd.f32 %v4368, %v5153
  %v5155 = vpop.f32.mrb[0].mxu0
  %v5156 = vadd.f32 %v4372, %v5155
  %v5157 = vpop.f32.mrb[0].mxu0
  %v5158 = vpop.f32.mrb[0].mxu0
  %5159 = vdwg.mxu0
  %5160 = vmatprep.subr.bf16.mxu0 %v3067
  %5161 = vmatpush1.bf16.msra.mxu0 %v3066
  %5162 = vmatprep.subr.bf16.mxu0 %v3075
  %5163 = vmatpush1.bf16.msra.mxu0 %v3074
  %5164 = vmatprep.subr.bf16.mxu0 %v3083
  %5165 = vmatpush1.bf16.msra.mxu0 %v3082
  %5166 = vmatprep.subr.bf16.mxu0 %v3091
  %5167 = vmatpush1.bf16.msra.mxu0 %v3090
  %5168 = vmatprep.subr.bf16.mxu0 %v3099
  %5169 = vmatpush1.bf16.msra.mxu0 %v3098
  %5170 = vmatprep.subr.bf16.mxu0 %v3107
  %5171 = vmatpush1.bf16.msra.mxu0 %v3106
  %5172 = vmatprep.subr.bf16.mxu0 %v3115
  %5173 = vmatpush1.bf16.msra.mxu0 %v3114
  %5174 = vmatprep.subr.bf16.mxu0 %v3123
  %5175 = vmatpush1.bf16.msra.mxu0 %v3122
  %5176 = vmatprep.subr.bf16.mxu0 %v3131
  %5177 = vmatpush1.bf16.msra.mxu0 %v3130
  %5178 = vmatprep.subr.bf16.mxu0 %v3139
  %5179 = vmatpush1.bf16.msra.mxu0 %v3138
  %5180 = vmatprep.subr.bf16.mxu0 %v3147
  %5181 = vmatpush1.bf16.msra.mxu0 %v3146
  %5182 = vmatprep.subr.bf16.mxu0 %v3155
  %5183 = vmatpush1.bf16.msra.mxu0 %v3154
  %5184 = vmatprep.subr.bf16.mxu0 %v3163
  %5185 = vmatpush1.bf16.msra.mxu0 %v3162
  %5186 = vmatprep.subr.bf16.mxu0 %v3171
  %5187 = vmatpush1.bf16.msra.mxu0 %v3170
  %5188 = vmatprep.subr.bf16.mxu0 %v3179
  %5189 = vmatpush1.bf16.msra.mxu0 %v3178
  %5190 = vmatprep.subr.bf16.mxu0 %v3187
  %5191 = vmatpush1.bf16.msra.mxu0 %v3186
  %5192 = vmatprep.mubr.bf16.mxu0 %v107
  %5193 = vmatmul.mubr.bf16.gmra.mrb[0].mxu0 %v106
  %v5194 = vpop.f32.mrb[0].mxu0
  %v5195 = vadd.f32 %v5154, %v5194
  %v5196 = vpop.f32.mrb[0].mxu0
  %v5197 = vadd.f32 %v5156, %v5196
  %v5198 = vpop.f32.mrb[0].mxu0
  %v5199 = vpop.f32.mrb[0].mxu0
  %5200 = vdwg.mxu0
  %5201 = vmatprep.subr.bf16.mxu0 %v3195
  %5202 = vmatpush1.bf16.msra.mxu0 %v3194
  %5203 = vmatprep.subr.bf16.mxu0 %v3203
  %5204 = vmatpush1.bf16.msra.mxu0 %v3202
  %5205 = vmatprep.subr.bf16.mxu0 %v3211
  %5206 = vmatpush1.bf16.msra.mxu0 %v3210
  %5207 = vmatprep.subr.bf16.mxu0 %v3219
  %5208 = vmatpush1.bf16.msra.mxu0 %v3218
  %5209 = vmatprep.subr.bf16.mxu0 %v3227
  %5210 = vmatpush1.bf16.msra.mxu0 %v3226
  %5211 = vmatprep.subr.bf16.mxu0 %v3235
  %5212 = vmatpush1.bf16.msra.mxu0 %v3234
  %5213 = vmatprep.subr.bf16.mxu0 %v3243
  %5214 = vmatpush1.bf16.msra.mxu0 %v3242
  %5215 = vmatprep.subr.bf16.mxu0 %v3251
  %5216 = vmatpush1.bf16.msra.mxu0 %v3250
  %5217 = vmatprep.subr.bf16.mxu0 %v3259
  %5218 = vmatpush1.bf16.msra.mxu0 %v3258
  %5219 = vmatprep.subr.bf16.mxu0 %v3267
  %5220 = vmatpush1.bf16.msra.mxu0 %v3266
  %5221 = vmatprep.subr.bf16.mxu0 %v3275
  %5222 = vmatpush1.bf16.msra.mxu0 %v3274
  %5223 = vmatprep.subr.bf16.mxu0 %v3283
  %5224 = vmatpush1.bf16.msra.mxu0 %v3282
  %5225 = vmatprep.subr.bf16.mxu0 %v3291
  %5226 = vmatpush1.bf16.msra.mxu0 %v3290
  %5227 = vmatprep.subr.bf16.mxu0 %v3299
  %5228 = vmatpush1.bf16.msra.mxu0 %v3298
  %5229 = vmatprep.subr.bf16.mxu0 %v3307
  %5230 = vmatpush1.bf16.msra.mxu0 %v3306
  %5231 = vmatprep.subr.bf16.mxu0 %v3315
  %5232 = vmatpush1.bf16.msra.mxu0 %v3314
  %5233 = vmatprep.mubr.bf16.mxu0 %v109
  %5234 = vmatmul.mubr.bf16.gmra.mrb[0].mxu0 %v108
  %v5235 = vpop.f32.mrb[0].mxu0
  %v5236 = vadd.f32 %v5195, %v5235
  %v5237 = vpop.f32.mrb[0].mxu0
  %v5238 = vadd.f32 %v5197, %v5237
  %v5239 = vpop.f32.mrb[0].mxu0
  %v5240 = vpop.f32.mrb[0].mxu0
  %5241 = vdwg.mxu0
  %5242 = vmatprep.subr.bf16.mxu0 %v3323
  %5243 = vmatpush1.bf16.msra.mxu0 %v3322
  %5244 = vmatprep.subr.bf16.mxu0 %v3331
  %5245 = vmatpush1.bf16.msra.mxu0 %v3330
  %5246 = vmatprep.subr.bf16.mxu0 %v3339
  %5247 = vmatpush1.bf16.msra.mxu0 %v3338
  %5248 = vmatprep.subr.bf16.mxu0 %v3347
  %5249 = vmatpush1.bf16.msra.mxu0 %v3346
  %5250 = vmatprep.subr.bf16.mxu0 %v3355
  %5251 = vmatpush1.bf16.msra.mxu0 %v3354
  %5252 = vmatprep.subr.bf16.mxu0 %v3363
  %5253 = vmatpush1.bf16.msra.mxu0 %v3362
  %5254 = vmatprep.subr.bf16.mxu0 %v3371
  %5255 = vmatpush1.bf16.msra.mxu0 %v3370
  %5256 = vmatprep.subr.bf16.mxu0 %v3379
  %5257 = vmatpush1.bf16.msra.mxu0 %v3378
  %5258 = vmatprep.subr.bf16.mxu0 %v3387
  %5259 = vmatpush1.bf16.msra.mxu0 %v3386
  %5260 = vmatprep.subr.bf16.mxu0 %v3395
  %5261 = vmatpush1.bf16.msra.mxu0 %v3394
  %5262 = vmatprep.subr.bf16.mxu0 %v3403
  %5263 = vmatpush1.bf16.msra.mxu0 %v3402
  %5264 = vmatprep.subr.bf16.mxu0 %v3411
  %5265 = vmatpush1.bf16.msra.mxu0 %v3410
  %5266 = vmatprep.subr.bf16.mxu0 %v3419
  %5267 = vmatpush1.bf16.msra.mxu0 %v3418
  %5268 = vmatprep.subr.bf16.mxu0 %v3427
  %5269 = vmatpush1.bf16.msra.mxu0 %v3426
  %5270 = vmatprep.subr.bf16.mxu0 %v3435
  %5271 = vmatpush1.bf16.msra.mxu0 %v3434
  %5272 = vmatprep.subr.bf16.mxu0 %v3443
  %5273 = vmatpush1.bf16.msra.mxu0 %v3442
  %5274 = vmatprep.mubr.bf16.mxu0 %v111
  %5275 = vmatmul.mubr.bf16.gmra.mrb[0].mxu0 %v110
  %v5276 = vpop.f32.mrb[0].mxu0
  %v5277 = vadd.f32 %v5236, %v5276
  %v5278 = vpop.f32.mrb[0].mxu0
  %v5279 = vadd.f32 %v5238, %v5278
  %v5280 = vpop.f32.mrb[0].mxu0
  %v5281 = vpop.f32.mrb[0].mxu0
  %5282 = vdwg.mxu0
  %5283 = vmatprep.subr.bf16.mxu0 %v3451
  %5284 = vmatpush1.bf16.msra.mxu0 %v3450
  %5285 = vmatprep.subr.bf16.mxu0 %v3459
  %5286 = vmatpush1.bf16.msra.mxu0 %v3458
  %5287 = vmatprep.subr.bf16.mxu0 %v3467
  %5288 = vmatpush1.bf16.msra.mxu0 %v3466
  %5289 = vmatprep.subr.bf16.mxu0 %v3475
  %5290 = vmatpush1.bf16.msra.mxu0 %v3474
  %5291 = vmatprep.subr.bf16.mxu0 %v3483
  %5292 = vmatpush1.bf16.msra.mxu0 %v3482
  %5293 = vmatprep.subr.bf16.mxu0 %v3491
  %5294 = vmatpush1.bf16.msra.mxu0 %v3490
  %5295 = vmatprep.subr.bf16.mxu0 %v3499
  %5296 = vmatpush1.bf16.msra.mxu0 %v3498
  %5297 = vmatprep.subr.bf16.mxu0 %v3507
  %5298 = vmatpush1.bf16.msra.mxu0 %v3506
  %5299 = vmatprep.subr.bf16.mxu0 %v3515
  %5300 = vmatpush1.bf16.msra.mxu0 %v3514
  %5301 = vmatprep.subr.bf16.mxu0 %v3523
  %5302 = vmatpush1.bf16.msra.mxu0 %v3522
  %5303 = vmatprep.subr.bf16.mxu0 %v3531
  %5304 = vmatpush1.bf16.msra.mxu0 %v3530
  %5305 = vmatprep.subr.bf16.mxu0 %v3539
  %5306 = vmatpush1.bf16.msra.mxu0 %v3538
  %5307 = vmatprep.subr.bf16.mxu0 %v3547
  %5308 = vmatpush1.bf16.msra.mxu0 %v3546
  %5309 = vmatprep.subr.bf16.mxu0 %v3555
  %5310 = vmatpush1.bf16.msra.mxu0 %v3554
  %5311 = vmatprep.subr.bf16.mxu0 %v3563
  %5312 = vmatpush1.bf16.msra.mxu0 %v3562
  %5313 = vmatprep.subr.bf16.mxu0 %v3571
  %5314 = vmatpush1.bf16.msra.mxu0 %v3570
  %5315 = vmatprep.mubr.bf16.mxu0 %v113
  %5316 = vmatmul.mubr.bf16.gmra.mrb[0].mxu0 %v112
  %v5317 = vpop.f32.mrb[0].mxu0
  %v5318 = vadd.f32 %v5277, %v5317
  %v5319 = vpop.f32.mrb[0].mxu0
  %v5320 = vadd.f32 %v5279, %v5319
  %v5321 = vpop.f32.mrb[0].mxu0
  %v5322 = vpop.f32.mrb[0].mxu0
  %5323 = vdwg.mxu0
  %5324 = vmatprep.subr.bf16.mxu0 %v3579
  %5325 = vmatpush1.bf16.msra.mxu0 %v3578
  %5326 = vmatprep.subr.bf16.mxu0 %v3587
  %5327 = vmatpush1.bf16.msra.mxu0 %v3586
  %5328 = vmatprep.subr.bf16.mxu0 %v3595
  %5329 = vmatpush1.bf16.msra.mxu0 %v3594
  %5330 = vmatprep.subr.bf16.mxu0 %v3603
  %5331 = vmatpush1.bf16.msra.mxu0 %v3602
  %5332 = vmatprep.subr.bf16.mxu0 %v3611
  %5333 = vmatpush1.bf16.msra.mxu0 %v3610
  %5334 = vmatprep.subr.bf16.mxu0 %v3619
  %5335 = vmatpush1.bf16.msra.mxu0 %v3618
  %5336 = vmatprep.subr.bf16.mxu0 %v3627
  %5337 = vmatpush1.bf16.msra.mxu0 %v3626
  %5338 = vmatprep.subr.bf16.mxu0 %v3635
  %5339 = vmatpush1.bf16.msra.mxu0 %v3634
  %5340 = vmatprep.subr.bf16.mxu0 0
  %5341 = vmatpush1.bf16.msra.mxu0 0
  %5342 = vmatprep.subr.bf16.mxu0 0
  %5343 = vmatpush1.bf16.msra.mxu0 0
  %5344 = vmatprep.subr.bf16.mxu0 0
  %5345 = vmatpush1.bf16.msra.mxu0 0
  %5346 = vmatprep.subr.bf16.mxu0 0
  %5347 = vmatpush1.bf16.msra.mxu0 0
  %5348 = vmatprep.subr.bf16.mxu0 0
  %5349 = vmatpush1.bf16.msra.mxu0 0
  %5350 = vmatprep.subr.bf16.mxu0 0
  %5351 = vmatpush1.bf16.msra.mxu0 0
  %5352 = vmatprep.subr.bf16.mxu0 0
  %5353 = vmatpush1.bf16.msra.mxu0 0
  %5354 = vmatprep.subr.bf16.mxu0 0
  %5355 = vmatpush1.bf16.msra.mxu0 0
  %5356 = vmatprep.mubr.bf16.mxu0 0
  %5357 = vmatmul.mubr.bf16.gmra.mrb[0].mxu0 %v114
  %v5358 = vpop.f32.mrb[0].mxu0
  %v5359 = vadd.f32 %v5318, %v5358
  %v5360 = vpop.f32.mrb[0].mxu0
  %v5361 = vadd.f32 %v5320, %v5360
  %v5362 = vpop.f32.mrb[0].mxu0
  %v5363 = vpop.f32.mrb[0].mxu0
  %5364 = vdwg.mxu0
  %vm5365 = vcmp.ge.f32.partialorder %v4621, 0.0
  %vm5366 = vcmp.ge.f32.partialorder %v4623, 0.0
  %vm5367 = vcmp.ge.f32.partialorder %v4867, 0.0
  %vm5368 = vcmp.ge.f32.partialorder %v4869, 0.0
  %vm5369 = vcmp.ge.f32.partialorder %v5113, 0.0
  %vm5370 = vcmp.ge.f32.partialorder %v5115, 0.0
  %vm5371 = vcmp.ge.f32.partialorder %v5359, 0.0
  %vm5372 = vcmp.ge.f32.partialorder %v5361, 0.0
  %v5373 = vmul.f32 %v4621, 0.01
  %v5374 = vmul.f32 %v4623, 0.01
  %v5375 = vmul.f32 %v4867, 0.01
  %v5376 = vmul.f32 %v4869, 0.01
  %v5377 = vmul.f32 %v5113, 0.01
  %v5378 = vmul.f32 %v5115, 0.01
  %v5379 = vmul.f32 %v5359, 0.01
  %v5380 = vmul.f32 %v5361, 0.01
  %v5381 = vsel %vm5365, %v4621, %v5373
  %v5382 = vsel %vm5366, %v4623, %v5374
  %v5383 = vsel %vm5367, %v4867, %v5375
  %v5384 = vsel %vm5368, %v4869, %v5376
  %v5385 = vsel %vm5369, %v5113, %v5377
  %v5386 = vsel %vm5370, %v5115, %v5378
  %v5387 = vsel %vm5371, %v5359, %v5379
  %v5388 = vsel %vm5372, %v5361, %v5380
  %v5389 = vpack.c.bf16 %v5381, %v5381
  %v5390 = vpack.c.bf16 %v5382, %v5382
  %v5391 = vpack.c.bf16 %v5383, %v5383
  %v5392 = vpack.c.bf16 %v5384, %v5384
  %v5393 = vpack.c.bf16 %v5385, %v5385
  %v5394 = vpack.c.bf16 %v5386, %v5386
  %v5395 = vpack.c.bf16 %v5387, %v5387
  %v5396 = vpack.c.bf16 %v5388, %v5388
  %v5397 = vld [vmem:[%s2] sm:$0xff]
  %v5398 = vld [vmem:[%s2 + $0x8] sm:$0xff]
  %v5399 = vld [vmem:[%s2 + $0x10] sm:$0xff]
  %v5400 = vld [vmem:[%s2 + $0x18] sm:$0xff]
  %v5401 = vld [vmem:[%s2 + $0x20] sm:$0xff]
  %v5402 = vld [vmem:[%s2 + $0x28] sm:$0xff]
  %v5403 = vld [vmem:[%s2 + $0x30] sm:$0xff]
  %v5404 = vld [vmem:[%s2 + $0x38] sm:$0xff]
  %v5405 = vld [vmem:[%s2 + $0x40] sm:$0xff]
  %v5406 = vld [vmem:[%s2 + $0x48] sm:$0xff]
  %v5407 = vld [vmem:[%s2 + $0x50] sm:$0xff]
  %v5408 = vld [vmem:[%s2 + $0x58] sm:$0xff]
  %v5409 = vld [vmem:[%s2 + $0x60] sm:$0xff]
  %v5410 = vld [vmem:[%s2 + $0x68] sm:$0xff]
  %v5411 = vld [vmem:[%s2 + $0x70] sm:$0xff]
  %v5412 = vld [vmem:[%s2 + $0x78] sm:$0xff]
  %v5413 = vld [vmem:[%s2 + $0x80] sm:$0xff]
  %v5414 = vld [vmem:[%s2 + $0x88] sm:$0xff]
  %v5415 = vld [vmem:[%s2 + $0x90] sm:$0xff]
  %v5416 = vld [vmem:[%s2 + $0x98] sm:$0xff]
  %v5417 = vld [vmem:[%s2 + $0xa0] sm:$0xff]
  %v5418 = vld [vmem:[%s2 + $0xa8] sm:$0xff]
  %v5419 = vld [vmem:[%s2 + $0xb0] sm:$0xff]
  %v5420 = vld [vmem:[%s2 + $0xb8] sm:$0xff]
  %v5421 = vld [vmem:[%s2 + $0xc0] sm:$0xff]
  %v5422 = vld [vmem:[%s2 + $0xc8] sm:$0xff]
  %v5423 = vld [vmem:[%s2 + $0xd0] sm:$0xff]
  %v5424 = vld [vmem:[%s2 + $0xd8] sm:$0xff]
  %v5425 = vld [vmem:[%s2 + $0xe0] sm:$0xff]
  %v5426 = vld [vmem:[%s2 + $0xe8] sm:$0xff]
  %v5427 = vld [vmem:[%s2 + $0xf0] sm:$0xff]
  %v5428 = vld [vmem:[%s2 + $0xf8] sm:$0xff]
  %v5429 = vld [vmem:[%s2 + $0x100] sm:$0xff]
  %v5430 = vld [vmem:[%s2 + $0x108] sm:$0xff]
  %v5431 = vld [vmem:[%s2 + $0x110] sm:$0xff]
  %v5432 = vld [vmem:[%s2 + $0x118] sm:$0xff]
  %v5433 = vld [vmem:[%s2 + $0x120] sm:$0xff]
  %v5434 = vld [vmem:[%s2 + $0x128] sm:$0xff]
  %v5435 = vld [vmem:[%s2 + $0x130] sm:$0xff]
  %v5436 = vld [vmem:[%s2 + $0x138] sm:$0xff]
  %v5437 = vld [vmem:[%s2 + $0x140] sm:$0xff]
  %v5438 = vld [vmem:[%s2 + $0x148] sm:$0xff]
  %v5439 = vld [vmem:[%s2 + $0x150] sm:$0xff]
  %v5440 = vld [vmem:[%s2 + $0x158] sm:$0xff]
  %v5441 = vld [vmem:[%s2 + $0x160] sm:$0xff]
  %v5442 = vld [vmem:[%s2 + $0x168] sm:$0xff]
  %v5443 = vld [vmem:[%s2 + $0x170] sm:$0xff]
  %v5444 = vld [vmem:[%s2 + $0x178] sm:$0xff]
  %v5445 = vld [vmem:[%s2 + $0x180] sm:$0xff]
  %v5446 = vld [vmem:[%s2 + $0x188] sm:$0xff]
  %v5447 = vld [vmem:[%s2 + $0x190] sm:$0xff]
  %v5448 = vld [vmem:[%s2 + $0x198] sm:$0xff]
  %v5449 = vld [vmem:[%s2 + $0x1a0] sm:$0xff]
  %v5450 = vld [vmem:[%s2 + $0x1a8] sm:$0xff]
  %v5451 = vld [vmem:[%s2 + $0x1b0] sm:$0xff]
  %v5452 = vld [vmem:[%s2 + $0x1b8] sm:$0xff]
  %v5453 = vld [vmem:[%s2 + $0x1c0] sm:$0xff]
  %v5454 = vld [vmem:[%s2 + $0x1c8] sm:$0xff]
  %v5455 = vld [vmem:[%s2 + $0x1d0] sm:$0xff]
  %v5456 = vld [vmem:[%s2 + $0x1d8] sm:$0xff]
  %v5457 = vld [vmem:[%s2 + $0x1e0] sm:$0xff]
  %v5458 = vld [vmem:[%s2 + $0x1e8] sm:$0xff]
  %v5459 = vld [vmem:[%s2 + $0x1f0] sm:$0xff]
  %v5460 = vld [vmem:[%s2 + $0x1f8] sm:$0xff]
  %v5461 = vld [vmem:[%s2 + $0x200] sm:$0xff]
  %v5462 = vld [vmem:[%s2 + $0x208] sm:$0xff]
  %v5463 = vld [vmem:[%s2 + $0x210] sm:$0xff]
  %v5464 = vld [vmem:[%s2 + $0x218] sm:$0xff]
  %v5465 = vld [vmem:[%s2 + $0x220] sm:$0xff]
  %v5466 = vld [vmem:[%s2 + $0x228] sm:$0xff]
  %v5467 = vld [vmem:[%s2 + $0x230] sm:$0xff]
  %v5468 = vld [vmem:[%s2 + $0x238] sm:$0xff]
  %v5469 = vld [vmem:[%s2 + $0x240] sm:$0xff]
  %v5470 = vld [vmem:[%s2 + $0x248] sm:$0xff]
  %v5471 = vld [vmem:[%s2 + $0x250] sm:$0xff]
  %v5472 = vld [vmem:[%s2 + $0x258] sm:$0xff]
  %v5473 = vld [vmem:[%s2 + $0x260] sm:$0xff]
  %v5474 = vld [vmem:[%s2 + $0x268] sm:$0xff]
  %v5475 = vld [vmem:[%s2 + $0x270] sm:$0xff]
  %v5476 = vld [vmem:[%s2 + $0x278] sm:$0xff]
  %v5477 = vld [vmem:[%s2 + $0x280] sm:$0xff]
  %v5478 = vld [vmem:[%s2 + $0x288] sm:$0xff]
  %v5479 = vld [vmem:[%s2 + $0x290] sm:$0xff]
  %v5480 = vld [vmem:[%s2 + $0x298] sm:$0xff]
  %v5481 = vld [vmem:[%s2 + $0x2a0] sm:$0xff]
  %v5482 = vld [vmem:[%s2 + $0x2a8] sm:$0xff]
  %v5483 = vld [vmem:[%s2 + $0x2b0] sm:$0xff]
  %v5484 = vld [vmem:[%s2 + $0x2b8] sm:$0xff]
  %v5485 = vld [vmem:[%s2 + $0x2c0] sm:$0xff]
  %v5486 = vld [vmem:[%s2 + $0x2c8] sm:$0xff]
  %v5487 = vld [vmem:[%s2 + $0x2d0] sm:$0xff]
  %v5488 = vld [vmem:[%s2 + $0x2d8] sm:$0xff]
  %v5489 = vld [vmem:[%s2 + $0x2e0] sm:$0xff]
  %v5490 = vld [vmem:[%s2 + $0x2e8] sm:$0xff]
  %v5491 = vld [vmem:[%s2 + $0x2f0] sm:$0xff]
  %v5492 = vld [vmem:[%s2 + $0x2f8] sm:$0xff]
  %v5493 = vld [vmem:[%s2 + $0x300] sm:$0xff]
  %v5494 = vld [vmem:[%s2 + $0x308] sm:$0xff]
  %v5495 = vld [vmem:[%s2 + $0x310] sm:$0xff]
  %v5496 = vld [vmem:[%s2 + $0x318] sm:$0xff]
  %v5497 = vld [vmem:[%s2 + $0x320] sm:$0xff]
  %v5498 = vld [vmem:[%s2 + $0x328] sm:$0xff]
  %v5499 = vld [vmem:[%s2 + $0x330] sm:$0xff]
  %v5500 = vld [vmem:[%s2 + $0x338] sm:$0xff]
  %v5501 = vld [vmem:[%s2 + $0x340] sm:$0xff]
  %v5502 = vld [vmem:[%s2 + $0x348] sm:$0xff]
  %v5503 = vld [vmem:[%s2 + $0x350] sm:$0xff]
  %v5504 = vld [vmem:[%s2 + $0x358] sm:$0xff]
  %v5505 = vld [vmem:[%s2 + $0x360] sm:$0xff]
  %v5506 = vld [vmem:[%s2 + $0x368] sm:$0xff]
  %v5507 = vld [vmem:[%s2 + $0x370] sm:$0xff]
  %v5508 = vld [vmem:[%s2 + $0x378] sm:$0xff]
  %v5509 = vld [vmem:[%s2 + $0x380] sm:$0xff]
  %v5510 = vld [vmem:[%s2 + $0x388] sm:$0xff]
  %v5511 = vld [vmem:[%s2 + $0x390] sm:$0xff]
  %v5512 = vld [vmem:[%s2 + $0x398] sm:$0xff]
  %v5513 = vld [vmem:[%s2 + $0x3a0] sm:$0xff]
  %v5514 = vld [vmem:[%s2 + $0x3a8] sm:$0xff]
  %v5515 = vld [vmem:[%s2 + $0x3b0] sm:$0xff]
  %v5516 = vld [vmem:[%s2 + $0x3b8] sm:$0xff]
  %v5517 = vld [vmem:[%s2 + $0x3c0] sm:$0xff]
  %v5518 = vld [vmem:[%s2 + $0x3c8] sm:$0xff]
  %v5519 = vld [vmem:[%s2 + $0x3d0] sm:$0xff]
  %v5520 = vld [vmem:[%s2 + $0x3d8] sm:$0xff]
  %v5521 = vld [vmem:[%s2 + $0x3e0] sm:$0xff]
  %v5522 = vld [vmem:[%s2 + $0x3e8] sm:$0xff]
  %v5523 = vld [vmem:[%s2 + $0x3f0] sm:$0xff]
  %v5524 = vld [vmem:[%s2 + $0x3f8] sm:$0xff]
  %v5525 = vld [vmem:[%s8] sm:$0x3]
  %v5654 = vunpack.c.l.b16 %v5397
  %v5655 = vunpack.c.h.b16 %v5397
  %v5656 = vunpack.c.l.b16 %v5398
  %v5657 = vunpack.c.h.b16 %v5398
  %v5658 = vunpack.c.l.b16 %v5399
  %v5659 = vunpack.c.h.b16 %v5399
  %v5660 = vunpack.c.l.b16 %v5400
  %v5661 = vunpack.c.h.b16 %v5400
  %v5662 = vunpack.c.l.b16 %v5401
  %v5663 = vunpack.c.h.b16 %v5401
  %v5664 = vunpack.c.l.b16 %v5402
  %v5665 = vunpack.c.h.b16 %v5402
  %v5666 = vunpack.c.l.b16 %v5403
  %v5667 = vunpack.c.h.b16 %v5403
  %v5668 = vunpack.c.l.b16 %v5404
  %v5669 = vunpack.c.h.b16 %v5404
  %v5670 = vunpack.c.l.b16 %v5405
  %v5671 = vunpack.c.h.b16 %v5405
  %v5672 = vunpack.c.l.b16 %v5406
  %v5673 = vunpack.c.h.b16 %v5406
  %v5674 = vunpack.c.l.b16 %v5407
  %v5675 = vunpack.c.h.b16 %v5407
  %v5676 = vunpack.c.l.b16 %v5408
  %v5677 = vunpack.c.h.b16 %v5408
  %v5678 = vunpack.c.l.b16 %v5409
  %v5679 = vunpack.c.h.b16 %v5409
  %v5680 = vunpack.c.l.b16 %v5410
  %v5681 = vunpack.c.h.b16 %v5410
  %v5682 = vunpack.c.l.b16 %v5411
  %v5683 = vunpack.c.h.b16 %v5411
  %v5684 = vunpack.c.l.b16 %v5412
  %v5685 = vunpack.c.h.b16 %v5412
  %v5686 = vunpack.c.l.b16 %v5413
  %v5687 = vunpack.c.h.b16 %v5413
  %v5688 = vunpack.c.l.b16 %v5414
  %v5689 = vunpack.c.h.b16 %v5414
  %v5690 = vunpack.c.l.b16 %v5415
  %v5691 = vunpack.c.h.b16 %v5415
  %v5692 = vunpack.c.l.b16 %v5416
  %v5693 = vunpack.c.h.b16 %v5416
  %v5694 = vunpack.c.l.b16 %v5417
  %v5695 = vunpack.c.h.b16 %v5417
  %v5696 = vunpack.c.l.b16 %v5418
  %v5697 = vunpack.c.h.b16 %v5418
  %v5698 = vunpack.c.l.b16 %v5419
  %v5699 = vunpack.c.h.b16 %v5419
  %v5700 = vunpack.c.l.b16 %v5420
  %v5701 = vunpack.c.h.b16 %v5420
  %v5702 = vunpack.c.l.b16 %v5421
  %v5703 = vunpack.c.h.b16 %v5421
  %v5704 = vunpack.c.l.b16 %v5422
  %v5705 = vunpack.c.h.b16 %v5422
  %v5706 = vunpack.c.l.b16 %v5423
  %v5707 = vunpack.c.h.b16 %v5423
  %v5708 = vunpack.c.l.b16 %v5424
  %v5709 = vunpack.c.h.b16 %v5424
  %v5710 = vunpack.c.l.b16 %v5425
  %v5711 = vunpack.c.h.b16 %v5425
  %v5712 = vunpack.c.l.b16 %v5426
  %v5713 = vunpack.c.h.b16 %v5426
  %v5714 = vunpack.c.l.b16 %v5427
  %v5715 = vunpack.c.h.b16 %v5427
  %v5716 = vunpack.c.l.b16 %v5428
  %v5717 = vunpack.c.h.b16 %v5428
  %v5718 = vunpack.c.l.b16 %v5429
  %v5719 = vunpack.c.h.b16 %v5429
  %v5720 = vunpack.c.l.b16 %v5430
  %v5721 = vunpack.c.h.b16 %v5430
  %v5722 = vunpack.c.l.b16 %v5431
  %v5723 = vunpack.c.h.b16 %v5431
  %v5724 = vunpack.c.l.b16 %v5432
  %v5725 = vunpack.c.h.b16 %v5432
  %v5726 = vunpack.c.l.b16 %v5433
  %v5727 = vunpack.c.h.b16 %v5433
  %v5728 = vunpack.c.l.b16 %v5434
  %v5729 = vunpack.c.h.b16 %v5434
  %v5730 = vunpack.c.l.b16 %v5435
  %v5731 = vunpack.c.h.b16 %v5435
  %v5732 = vunpack.c.l.b16 %v5436
  %v5733 = vunpack.c.h.b16 %v5436
  %v5734 = vunpack.c.l.b16 %v5437
  %v5735 = vunpack.c.h.b16 %v5437
  %v5736 = vunpack.c.l.b16 %v5438
  %v5737 = vunpack.c.h.b16 %v5438
  %v5738 = vunpack.c.l.b16 %v5439
  %v5739 = vunpack.c.h.b16 %v5439
  %v5740 = vunpack.c.l.b16 %v5440
  %v5741 = vunpack.c.h.b16 %v5440
  %v5742 = vunpack.c.l.b16 %v5441
  %v5743 = vunpack.c.h.b16 %v5441
  %v5744 = vunpack.c.l.b16 %v5442
  %v5745 = vunpack.c.h.b16 %v5442
  %v5746 = vunpack.c.l.b16 %v5443
  %v5747 = vunpack.c.h.b16 %v5443
  %v5748 = vunpack.c.l.b16 %v5444
  %v5749 = vunpack.c.h.b16 %v5444
  %v5750 = vunpack.c.l.b16 %v5445
  %v5751 = vunpack.c.h.b16 %v5445
  %v5752 = vunpack.c.l.b16 %v5446
  %v5753 = vunpack.c.h.b16 %v5446
  %v5754 = vunpack.c.l.b16 %v5447
  %v5755 = vunpack.c.h.b16 %v5447
  %v5756 = vunpack.c.l.b16 %v5448
  %v5757 = vunpack.c.h.b16 %v5448
  %v5758 = vunpack.c.l.b16 %v5449
  %v5759 = vunpack.c.h.b16 %v5449
  %v5760 = vunpack.c.l.b16 %v5450
  %v5761 = vunpack.c.h.b16 %v5450
  %v5762 = vunpack.c.l.b16 %v5451
  %v5763 = vunpack.c.h.b16 %v5451
  %v5764 = vunpack.c.l.b16 %v5452
  %v5765 = vunpack.c.h.b16 %v5452
  %v5766 = vunpack.c.l.b16 %v5453
  %v5767 = vunpack.c.h.b16 %v5453
  %v5768 = vunpack.c.l.b16 %v5454
  %v5769 = vunpack.c.h.b16 %v5454
  %v5770 = vunpack.c.l.b16 %v5455
  %v5771 = vunpack.c.h.b16 %v5455
  %v5772 = vunpack.c.l.b16 %v5456
  %v5773 = vunpack.c.h.b16 %v5456
  %v5774 = vunpack.c.l.b16 %v5457
  %v5775 = vunpack.c.h.b16 %v5457
  %v5776 = vunpack.c.l.b16 %v5458
  %v5777 = vunpack.c.h.b16 %v5458
  %v5778 = vunpack.c.l.b16 %v5459
  %v5779 = vunpack.c.h.b16 %v5459
  %v5780 = vunpack.c.l.b16 %v5460
  %v5781 = vunpack.c.h.b16 %v5460
  %v5782 = vunpack.c.l.b16 %v5461
  %v5783 = vunpack.c.h.b16 %v5461
  %v5784 = vunpack.c.l.b16 %v5462
  %v5785 = vunpack.c.h.b16 %v5462
  %v5786 = vunpack.c.l.b16 %v5463
  %v5787 = vunpack.c.h.b16 %v5463
  %v5788 = vunpack.c.l.b16 %v5464
  %v5789 = vunpack.c.h.b16 %v5464
  %v5790 = vunpack.c.l.b16 %v5465
  %v5791 = vunpack.c.h.b16 %v5465
  %v5792 = vunpack.c.l.b16 %v5466
  %v5793 = vunpack.c.h.b16 %v5466
  %v5794 = vunpack.c.l.b16 %v5467
  %v5795 = vunpack.c.h.b16 %v5467
  %v5796 = vunpack.c.l.b16 %v5468
  %v5797 = vunpack.c.h.b16 %v5468
  %v5798 = vunpack.c.l.b16 %v5469
  %v5799 = vunpack.c.h.b16 %v5469
  %v5800 = vunpack.c.l.b16 %v5470
  %v5801 = vunpack.c.h.b16 %v5470
  %v5802 = vunpack.c.l.b16 %v5471
  %v5803 = vunpack.c.h.b16 %v5471
  %v5804 = vunpack.c.l.b16 %v5472
  %v5805 = vunpack.c.h.b16 %v5472
  %v5806 = vunpack.c.l.b16 %v5473
  %v5807 = vunpack.c.h.b16 %v5473
  %v5808 = vunpack.c.l.b16 %v5474
  %v5809 = vunpack.c.h.b16 %v5474
  %v5810 = vunpack.c.l.b16 %v5475
  %v5811 = vunpack.c.h.b16 %v5475
  %v5812 = vunpack.c.l.b16 %v5476
  %v5813 = vunpack.c.h.b16 %v5476
  %v5814 = vunpack.c.l.b16 %v5477
  %v5815 = vunpack.c.h.b16 %v5477
  %v5816 = vunpack.c.l.b16 %v5478
  %v5817 = vunpack.c.h.b16 %v5478
  %v5818 = vunpack.c.l.b16 %v5479
  %v5819 = vunpack.c.h.b16 %v5479
  %v5820 = vunpack.c.l.b16 %v5480
  %v5821 = vunpack.c.h.b16 %v5480
  %v5822 = vunpack.c.l.b16 %v5481
  %v5823 = vunpack.c.h.b16 %v5481
  %v5824 = vunpack.c.l.b16 %v5482
  %v5825 = vunpack.c.h.b16 %v5482
  %v5826 = vunpack.c.l.b16 %v5483
  %v5827 = vunpack.c.h.b16 %v5483
  %v5828 = vunpack.c.l.b16 %v5484
  %v5829 = vunpack.c.h.b16 %v5484
  %v5830 = vunpack.c.l.b16 %v5485
  %v5831 = vunpack.c.h.b16 %v5485
  %v5832 = vunpack.c.l.b16 %v5486
  %v5833 = vunpack.c.h.b16 %v5486
  %v5834 = vunpack.c.l.b16 %v5487
  %v5835 = vunpack.c.h.b16 %v5487
  %v5836 = vunpack.c.l.b16 %v5488
  %v5837 = vunpack.c.h.b16 %v5488
  %v5838 = vunpack.c.l.b16 %v5489
  %v5839 = vunpack.c.h.b16 %v5489
  %v5840 = vunpack.c.l.b16 %v5490
  %v5841 = vunpack.c.h.b16 %v5490
  %v5842 = vunpack.c.l.b16 %v5491
  %v5843 = vunpack.c.h.b16 %v5491
  %v5844 = vunpack.c.l.b16 %v5492
  %v5845 = vunpack.c.h.b16 %v5492
  %v5846 = vunpack.c.l.b16 %v5493
  %v5847 = vunpack.c.h.b16 %v5493
  %v5848 = vunpack.c.l.b16 %v5494
  %v5849 = vunpack.c.h.b16 %v5494
  %v5850 = vunpack.c.l.b16 %v5495
  %v5851 = vunpack.c.h.b16 %v5495
  %v5852 = vunpack.c.l.b16 %v5496
  %v5853 = vunpack.c.h.b16 %v5496
  %v5854 = vunpack.c.l.b16 %v5497
  %v5855 = vunpack.c.h.b16 %v5497
  %v5856 = vunpack.c.l.b16 %v5498
  %v5857 = vunpack.c.h.b16 %v5498
  %v5858 = vunpack.c.l.b16 %v5499
  %v5859 = vunpack.c.h.b16 %v5499
  %v5860 = vunpack.c.l.b16 %v5500
  %v5861 = vunpack.c.h.b16 %v5500
  %v5862 = vunpack.c.l.b16 %v5501
  %v5863 = vunpack.c.h.b16 %v5501
  %v5864 = vunpack.c.l.b16 %v5502
  %v5865 = vunpack.c.h.b16 %v5502
  %v5866 = vunpack.c.l.b16 %v5503
  %v5867 = vunpack.c.h.b16 %v5503
  %v5868 = vunpack.c.l.b16 %v5504
  %v5869 = vunpack.c.h.b16 %v5504
  %v5870 = vunpack.c.l.b16 %v5505
  %v5871 = vunpack.c.h.b16 %v5505
  %v5872 = vunpack.c.l.b16 %v5506
  %v5873 = vunpack.c.h.b16 %v5506
  %v5874 = vunpack.c.l.b16 %v5507
  %v5875 = vunpack.c.h.b16 %v5507
  %v5876 = vunpack.c.l.b16 %v5508
  %v5877 = vunpack.c.h.b16 %v5508
  %v5878 = vunpack.c.l.b16 %v5509
  %v5879 = vunpack.c.h.b16 %v5509
  %v5880 = vunpack.c.l.b16 %v5510
  %v5881 = vunpack.c.h.b16 %v5510
  %v5882 = vunpack.c.l.b16 %v5511
  %v5883 = vunpack.c.h.b16 %v5511
  %v5884 = vunpack.c.l.b16 %v5512
  %v5885 = vunpack.c.h.b16 %v5512
  %v5886 = vunpack.c.l.b16 %v5513
  %v5887 = vunpack.c.h.b16 %v5513
  %v5888 = vunpack.c.l.b16 %v5514
  %v5889 = vunpack.c.h.b16 %v5514
  %v5890 = vunpack.c.l.b16 %v5515
  %v5891 = vunpack.c.h.b16 %v5515
  %v5892 = vunpack.c.l.b16 %v5516
  %v5893 = vunpack.c.h.b16 %v5516
  %v5894 = vunpack.c.l.b16 %v5517
  %v5895 = vunpack.c.h.b16 %v5517
  %v5896 = vunpack.c.l.b16 %v5518
  %v5897 = vunpack.c.h.b16 %v5518
  %v5898 = vunpack.c.l.b16 %v5519
  %v5899 = vunpack.c.h.b16 %v5519
  %v5900 = vunpack.c.l.b16 %v5520
  %v5901 = vunpack.c.h.b16 %v5520
  %v5902 = vunpack.c.l.b16 %v5521
  %v5903 = vunpack.c.h.b16 %v5521
  %v5904 = vunpack.c.l.b16 %v5522
  %v5905 = vunpack.c.h.b16 %v5522
  %v5906 = vunpack.c.l.b16 %v5523
  %v5907 = vunpack.c.h.b16 %v5523
  %v5908 = vunpack.c.l.b16 %v5524
  %v5909 = vunpack.c.h.b16 %v5524
  %v5910 = vpack.c.b16 %v5656, %v5654
  %v5911 = vpack.c.b16 %v5657, %v5655
  %v5912 = vpack.c.b16 %v5660, %v5658
  %v5913 = vpack.c.b16 %v5661, %v5659
  %v5914 = vpack.c.b16 %v5664, %v5662
  %v5915 = vpack.c.b16 %v5665, %v5663
  %v5916 = vpack.c.b16 %v5668, %v5666
  %v5917 = vpack.c.b16 %v5669, %v5667
  %v5918 = vpack.c.b16 %v5672, %v5670
  %v5919 = vpack.c.b16 %v5673, %v5671
  %v5920 = vpack.c.b16 %v5676, %v5674
  %v5921 = vpack.c.b16 %v5677, %v5675
  %v5922 = vpack.c.b16 %v5680, %v5678
  %v5923 = vpack.c.b16 %v5681, %v5679
  %v5924 = vpack.c.b16 %v5684, %v5682
  %v5925 = vpack.c.b16 %v5685, %v5683
  %v5926 = vpack.c.b16 %v5688, %v5686
  %v5927 = vpack.c.b16 %v5689, %v5687
  %v5928 = vpack.c.b16 %v5692, %v5690
  %v5929 = vpack.c.b16 %v5693, %v5691
  %v5930 = vpack.c.b16 %v5696, %v5694
  %v5931 = vpack.c.b16 %v5697, %v5695
  %v5932 = vpack.c.b16 %v5700, %v5698
  %v5933 = vpack.c.b16 %v5701, %v5699
  %v5934 = vpack.c.b16 %v5704, %v5702
  %v5935 = vpack.c.b16 %v5705, %v5703
  %v5936 = vpack.c.b16 %v5708, %v5706
  %v5937 = vpack.c.b16 %v5709, %v5707
  %v5938 = vpack.c.b16 %v5712, %v5710
  %v5939 = vpack.c.b16 %v5713, %v5711
  %v5940 = vpack.c.b16 %v5716, %v5714
  %v5941 = vpack.c.b16 %v5717, %v5715
  %v5942 = vpack.c.b16 %v5720, %v5718
  %v5943 = vpack.c.b16 %v5721, %v5719
  %v5944 = vpack.c.b16 %v5724, %v5722
  %v5945 = vpack.c.b16 %v5725, %v5723
  %v5946 = vpack.c.b16 %v5728, %v5726
  %v5947 = vpack.c.b16 %v5729, %v5727
  %v5948 = vpack.c.b16 %v5732, %v5730
  %v5949 = vpack.c.b16 %v5733, %v5731
  %v5950 = vpack.c.b16 %v5736, %v5734
  %v5951 = vpack.c.b16 %v5737, %v5735
  %v5952 = vpack.c.b16 %v5740, %v5738
  %v5953 = vpack.c.b16 %v5741, %v5739
  %v5954 = vpack.c.b16 %v5744, %v5742
  %v5955 = vpack.c.b16 %v5745, %v5743
  %v5956 = vpack.c.b16 %v5748, %v5746
  %v5957 = vpack.c.b16 %v5749, %v5747
  %v5958 = vpack.c.b16 %v5752, %v5750
  %v5959 = vpack.c.b16 %v5753, %v5751
  %v5960 = vpack.c.b16 %v5756, %v5754
  %v5961 = vpack.c.b16 %v5757, %v5755
  %v5962 = vpack.c.b16 %v5760, %v5758
  %v5963 = vpack.c.b16 %v5761, %v5759
  %v5964 = vpack.c.b16 %v5764, %v5762
  %v5965 = vpack.c.b16 %v5765, %v5763
  %v5966 = vpack.c.b16 %v5768, %v5766
  %v5967 = vpack.c.b16 %v5769, %v5767
  %v5968 = vpack.c.b16 %v5772, %v5770
  %v5969 = vpack.c.b16 %v5773, %v5771
  %v5970 = vpack.c.b16 %v5776, %v5774
  %v5971 = vpack.c.b16 %v5777, %v5775
  %v5972 = vpack.c.b16 %v5780, %v5778
  %v5973 = vpack.c.b16 %v5781, %v5779
  %v5974 = vpack.c.b16 %v5784, %v5782
  %v5975 = vpack.c.b16 %v5785, %v5783
  %v5976 = vpack.c.b16 %v5788, %v5786
  %v5977 = vpack.c.b16 %v5789, %v5787
  %v5978 = vpack.c.b16 %v5792, %v5790
  %v5979 = vpack.c.b16 %v5793, %v5791
  %v5980 = vpack.c.b16 %v5796, %v5794
  %v5981 = vpack.c.b16 %v5797, %v5795
  %v5982 = vpack.c.b16 %v5800, %v5798
  %v5983 = vpack.c.b16 %v5801, %v5799
  %v5984 = vpack.c.b16 %v5804, %v5802
  %v5985 = vpack.c.b16 %v5805, %v5803
  %v5986 = vpack.c.b16 %v5808, %v5806
  %v5987 = vpack.c.b16 %v5809, %v5807
  %v5988 = vpack.c.b16 %v5812, %v5810
  %v5989 = vpack.c.b16 %v5813, %v5811
  %v5990 = vpack.c.b16 %v5816, %v5814
  %v5991 = vpack.c.b16 %v5817, %v5815
  %v5992 = vpack.c.b16 %v5820, %v5818
  %v5993 = vpack.c.b16 %v5821, %v5819
  %v5994 = vpack.c.b16 %v5824, %v5822
  %v5995 = vpack.c.b16 %v5825, %v5823
  %v5996 = vpack.c.b16 %v5828, %v5826
  %v5997 = vpack.c.b16 %v5829, %v5827
  %v5998 = vpack.c.b16 %v5832, %v5830
  %v5999 = vpack.c.b16 %v5833, %v5831
  %v6000 = vpack.c.b16 %v5836, %v5834
  %v6001 = vpack.c.b16 %v5837, %v5835
  %v6002 = vpack.c.b16 %v5840, %v5838
  %v6003 = vpack.c.b16 %v5841, %v5839
  %v6004 = vpack.c.b16 %v5844, %v5842
  %v6005 = vpack.c.b16 %v5845, %v5843
  %v6006 = vpack.c.b16 %v5848, %v5846
  %v6007 = vpack.c.b16 %v5849, %v5847
  %v6008 = vpack.c.b16 %v5852, %v5850
  %v6009 = vpack.c.b16 %v5853, %v5851
  %v6010 = vpack.c.b16 %v5856, %v5854
  %v6011 = vpack.c.b16 %v5857, %v5855
  %v6012 = vpack.c.b16 %v5860, %v5858
  %v6013 = vpack.c.b16 %v5861, %v5859
  %v6014 = vpack.c.b16 %v5864, %v5862
  %v6015 = vpack.c.b16 %v5865, %v5863
  %v6016 = vpack.c.b16 %v5868, %v5866
  %v6017 = vpack.c.b16 %v5869, %v5867
  %v6018 = vpack.c.b16 %v5872, %v5870
  %v6019 = vpack.c.b16 %v5873, %v5871
  %v6020 = vpack.c.b16 %v5876, %v5874
  %v6021 = vpack.c.b16 %v5877, %v5875
  %v6022 = vpack.c.b16 %v5880, %v5878
  %v6023 = vpack.c.b16 %v5881, %v5879
  %v6024 = vpack.c.b16 %v5884, %v5882
  %v6025 = vpack.c.b16 %v5885, %v5883
  %v6026 = vpack.c.b16 %v5888, %v5886
  %v6027 = vpack.c.b16 %v5889, %v5887
  %v6028 = vpack.c.b16 %v5892, %v5890
  %v6029 = vpack.c.b16 %v5893, %v5891
  %v6030 = vpack.c.b16 %v5896, %v5894
  %v6031 = vpack.c.b16 %v5897, %v5895
  %v6032 = vpack.c.b16 %v5900, %v5898
  %v6033 = vpack.c.b16 %v5901, %v5899
  %v6034 = vpack.c.b16 %v5904, %v5902
  %v6035 = vpack.c.b16 %v5905, %v5903
  %v6036 = vpack.c.b16 %v5908, %v5906
  %v6037 = vpack.c.b16 %v5909, %v5907
  %v6167 = vlaneseq
  %v6168 = vshrl.u32 %v6167, 7
  %v6169 = vsub.s32 0, %v6168
  %v6170 = vrot.slane %v5525, %v6169
  %v6171 = vlaneseq
  %v6172 = vshrl.u32 %v6171, 7
  %v6173 = vsub.s32 1, %v6172
  %v6174 = vrot.slane %v5525, %v6173
  %6177 = vmatprep.subr.bf16.mxu0 %v5911
  %6178 = vmatpush1.bf16.msra.mxu0 %v5910
  %6179 = vmatprep.subr.bf16.mxu0 %v5913
  %6180 = vmatpush1.bf16.msra.mxu0 %v5912
  %6181 = vmatprep.subr.bf16.mxu0 %v5915
  %6182 = vmatpush1.bf16.msra.mxu0 %v5914
  %6183 = vmatprep.subr.bf16.mxu0 %v5917
  %6184 = vmatpush1.bf16.msra.mxu0 %v5916
  %6185 = vmatprep.subr.bf16.mxu0 %v5919
  %6186 = vmatpush1.bf16.msra.mxu0 %v5918
  %6187 = vmatprep.subr.bf16.mxu0 %v5921
  %6188 = vmatpush1.bf16.msra.mxu0 %v5920
  %6189 = vmatprep.subr.bf16.mxu0 %v5923
  %6190 = vmatpush1.bf16.msra.mxu0 %v5922
  %6191 = vmatprep.subr.bf16.mxu0 %v5925
  %6192 = vmatpush1.bf16.msra.mxu0 %v5924
  %6193 = vmatprep.subr.bf16.mxu0 %v5927
  %6194 = vmatpush1.bf16.msra.mxu0 %v5926
  %6195 = vmatprep.subr.bf16.mxu0 %v5929
  %6196 = vmatpush1.bf16.msra.mxu0 %v5928
  %6197 = vmatprep.subr.bf16.mxu0 %v5931
  %6198 = vmatpush1.bf16.msra.mxu0 %v5930
  %6199 = vmatprep.subr.bf16.mxu0 %v5933
  %6200 = vmatpush1.bf16.msra.mxu0 %v5932
  %6201 = vmatprep.subr.bf16.mxu0 %v5935
  %6202 = vmatpush1.bf16.msra.mxu0 %v5934
  %6203 = vmatprep.subr.bf16.mxu0 %v5937
  %6204 = vmatpush1.bf16.msra.mxu0 %v5936
  %6205 = vmatprep.subr.bf16.mxu0 %v5939
  %6206 = vmatpush1.bf16.msra.mxu0 %v5938
  %6207 = vmatprep.subr.bf16.mxu0 %v5941
  %6208 = vmatpush1.bf16.msra.mxu0 %v5940
  %6209 = vmatprep.mubr.bf16.mxu0 %v5390
  %6210 = vmatmul.mubr.bf16.gmra.mrb[0].mxu0 %v5389
  %v6211 = vpop.f32.mrb[0].mxu0
  %v6212 = vadd.f32 %v6170, %v6211
  %v6213 = vpop.f32.mrb[0].mxu0
  %v6214 = vadd.f32 %v6174, %v6213
  %v6215 = vpop.f32.mrb[0].mxu0
  %v6216 = vpop.f32.mrb[0].mxu0
  %6217 = vdwg.mxu0
  %6218 = vmatprep.subr.bf16.mxu0 %v5943
  %6219 = vmatpush1.bf16.msra.mxu0 %v5942
  %6220 = vmatprep.subr.bf16.mxu0 %v5945
  %6221 = vmatpush1.bf16.msra.mxu0 %v5944
  %6222 = vmatprep.subr.bf16.mxu0 %v5947
  %6223 = vmatpush1.bf16.msra.mxu0 %v5946
  %6224 = vmatprep.subr.bf16.mxu0 %v5949
  %6225 = vmatpush1.bf16.msra.mxu0 %v5948
  %6226 = vmatprep.subr.bf16.mxu0 %v5951
  %6227 = vmatpush1.bf16.msra.mxu0 %v5950
  %6228 = vmatprep.subr.bf16.mxu0 %v5953
  %6229 = vmatpush1.bf16.msra.mxu0 %v5952
  %6230 = vmatprep.subr.bf16.mxu0 %v5955
  %6231 = vmatpush1.bf16.msra.mxu0 %v5954
  %6232 = vmatprep.subr.bf16.mxu0 %v5957
  %6233 = vmatpush1.bf16.msra.mxu0 %v5956
  %6234 = vmatprep.subr.bf16.mxu0 %v5959
  %6235 = vmatpush1.bf16.msra.mxu0 %v5958
  %6236 = vmatprep.subr.bf16.mxu0 %v5961
  %6237 = vmatpush1.bf16.msra.mxu0 %v5960
  %6238 = vmatprep.subr.bf16.mxu0 %v5963
  %6239 = vmatpush1.bf16.msra.mxu0 %v5962
  %6240 = vmatprep.subr.bf16.mxu0 %v5965
  %6241 = vmatpush1.bf16.msra.mxu0 %v5964
  %6242 = vmatprep.subr.bf16.mxu0 %v5967
  %6243 = vmatpush1.bf16.msra.mxu0 %v5966
  %6244 = vmatprep.subr.bf16.mxu0 %v5969
  %6245 = vmatpush1.bf16.msra.mxu0 %v5968
  %6246 = vmatprep.subr.bf16.mxu0 %v5971
  %6247 = vmatpush1.bf16.msra.mxu0 %v5970
  %6248 = vmatprep.subr.bf16.mxu0 %v5973
  %6249 = vmatpush1.bf16.msra.mxu0 %v5972
  %6250 = vmatprep.mubr.bf16.mxu0 %v5392
  %6251 = vmatmul.mubr.bf16.gmra.mrb[0].mxu0 %v5391
  %v6252 = vpop.f32.mrb[0].mxu0
  %v6253 = vadd.f32 %v6212, %v6252
  %v6254 = vpop.f32.mrb[0].mxu0
  %v6255 = vadd.f32 %v6214, %v6254
  %v6256 = vpop.f32.mrb[0].mxu0
  %v6257 = vpop.f32.mrb[0].mxu0
  %6258 = vdwg.mxu0
  %6259 = vmatprep.subr.bf16.mxu0 %v5975
  %6260 = vmatpush1.bf16.msra.mxu0 %v5974
  %6261 = vmatprep.subr.bf16.mxu0 %v5977
  %6262 = vmatpush1.bf16.msra.mxu0 %v5976
  %6263 = vmatprep.subr.bf16.mxu0 %v5979
  %6264 = vmatpush1.bf16.msra.mxu0 %v5978
  %6265 = vmatprep.subr.bf16.mxu0 %v5981
  %6266 = vmatpush1.bf16.msra.mxu0 %v5980
  %6267 = vmatprep.subr.bf16.mxu0 %v5983
  %6268 = vmatpush1.bf16.msra.mxu0 %v5982
  %6269 = vmatprep.subr.bf16.mxu0 %v5985
  %6270 = vmatpush1.bf16.msra.mxu0 %v5984
  %6271 = vmatprep.subr.bf16.mxu0 %v5987
  %6272 = vmatpush1.bf16.msra.mxu0 %v5986
  %6273 = vmatprep.subr.bf16.mxu0 %v5989
  %6274 = vmatpush1.bf16.msra.mxu0 %v5988
  %6275 = vmatprep.subr.bf16.mxu0 %v5991
  %6276 = vmatpush1.bf16.msra.mxu0 %v5990
  %6277 = vmatprep.subr.bf16.mxu0 %v5993
  %6278 = vmatpush1.bf16.msra.mxu0 %v5992
  %6279 = vmatprep.subr.bf16.mxu0 %v5995
  %6280 = vmatpush1.bf16.msra.mxu0 %v5994
  %6281 = vmatprep.subr.bf16.mxu0 %v5997
  %6282 = vmatpush1.bf16.msra.mxu0 %v5996
  %6283 = vmatprep.subr.bf16.mxu0 %v5999
  %6284 = vmatpush1.bf16.msra.mxu0 %v5998
  %6285 = vmatprep.subr.bf16.mxu0 %v6001
  %6286 = vmatpush1.bf16.msra.mxu0 %v6000
  %6287 = vmatprep.subr.bf16.mxu0 %v6003
  %6288 = vmatpush1.bf16.msra.mxu0 %v6002
  %6289 = vmatprep.subr.bf16.mxu0 %v6005
  %6290 = vmatpush1.bf16.msra.mxu0 %v6004
  %6291 = vmatprep.mubr.bf16.mxu0 %v5394
  %6292 = vmatmul.mubr.bf16.gmra.mrb[0].mxu0 %v5393
  %v6293 = vpop.f32.mrb[0].mxu0
  %v6294 = vadd.f32 %v6253, %v6293
  %v6295 = vpop.f32.mrb[0].mxu0
  %v6296 = vadd.f32 %v6255, %v6295
  %v6297 = vpop.f32.mrb[0].mxu0
  %v6298 = vpop.f32.mrb[0].mxu0
  %6299 = vdwg.mxu0
  %6300 = vmatprep.subr.bf16.mxu0 %v6007
  %6301 = vmatpush1.bf16.msra.mxu0 %v6006
  %6302 = vmatprep.subr.bf16.mxu0 %v6009
  %6303 = vmatpush1.bf16.msra.mxu0 %v6008
  %6304 = vmatprep.subr.bf16.mxu0 %v6011
  %6305 = vmatpush1.bf16.msra.mxu0 %v6010
  %6306 = vmatprep.subr.bf16.mxu0 %v6013
  %6307 = vmatpush1.bf16.msra.mxu0 %v6012
  %6308 = vmatprep.subr.bf16.mxu0 %v6015
  %6309 = vmatpush1.bf16.msra.mxu0 %v6014
  %6310 = vmatprep.subr.bf16.mxu0 %v6017
  %6311 = vmatpush1.bf16.msra.mxu0 %v6016
  %6312 = vmatprep.subr.bf16.mxu0 %v6019
  %6313 = vmatpush1.bf16.msra.mxu0 %v6018
  %6314 = vmatprep.subr.bf16.mxu0 %v6021
  %6315 = vmatpush1.bf16.msra.mxu0 %v6020
  %6316 = vmatprep.subr.bf16.mxu0 %v6023
  %6317 = vmatpush1.bf16.msra.mxu0 %v6022
  %6318 = vmatprep.subr.bf16.mxu0 %v6025
  %6319 = vmatpush1.bf16.msra.mxu0 %v6024
  %6320 = vmatprep.subr.bf16.mxu0 %v6027
  %6321 = vmatpush1.bf16.msra.mxu0 %v6026
  %6322 = vmatprep.subr.bf16.mxu0 %v6029
  %6323 = vmatpush1.bf16.msra.mxu0 %v6028
  %6324 = vmatprep.subr.bf16.mxu0 %v6031
  %6325 = vmatpush1.bf16.msra.mxu0 %v6030
  %6326 = vmatprep.subr.bf16.mxu0 %v6033
  %6327 = vmatpush1.bf16.msra.mxu0 %v6032
  %6328 = vmatprep.subr.bf16.mxu0 %v6035
  %6329 = vmatpush1.bf16.msra.mxu0 %v6034
  %6330 = vmatprep.subr.bf16.mxu0 %v6037
  %6331 = vmatpush1.bf16.msra.mxu0 %v6036
  %6332 = vmatprep.mubr.bf16.mxu0 %v5396
  %6333 = vmatmul.mubr.bf16.gmra.mrb[0].mxu0 %v5395
  %v6334 = vpop.f32.mrb[0].mxu0
  %v6335 = vadd.f32 %v6294, %v6334
  %v6336 = vpop.f32.mrb[0].mxu0
  %v6337 = vadd.f32 %v6296, %v6336
  %v6338 = vpop.f32.mrb[0].mxu0
  %v6339 = vpop.f32.mrb[0].mxu0
  %6340 = vdwg.mxu0
  %vm6341 = vcmp.ge.f32.partialorder %v6335, 0.0
  %vm6342 = vcmp.ge.f32.partialorder %v6337, 0.0
  %v6343 = vmul.f32 %v6335, 0.01
  %v6344 = vmul.f32 %v6337, 0.01
  %v6345 = vsel %vm6341, %v6335, %v6343
  %v6346 = vsel %vm6342, %v6337, %v6344
  %v6347 = vpack.c.bf16 %v6345, %v6345
  %v6348 = vpack.c.bf16 %v6346, %v6346
  %v6349 = vld [vmem:[%s3] sm:$0xf]
  %v6350 = vld [vmem:[%s3 + $0x4] sm:$0xf]
  %v6351 = vld [vmem:[%s3 + $0x8] sm:$0xf]
  %v6352 = vld [vmem:[%s3 + $0xc] sm:$0xf]
  %v6353 = vld [vmem:[%s3 + $0x10] sm:$0xf]
  %v6354 = vld [vmem:[%s3 + $0x14] sm:$0xf]
  %v6355 = vld [vmem:[%s3 + $0x18] sm:$0xf]
  %v6356 = vld [vmem:[%s3 + $0x1c] sm:$0xf]
  %v6357 = vld [vmem:[%s3 + $0x20] sm:$0xf]
  %v6358 = vld [vmem:[%s3 + $0x24] sm:$0xf]
  %v6359 = vld [vmem:[%s3 + $0x28] sm:$0xf]
  %v6360 = vld [vmem:[%s3 + $0x2c] sm:$0xf]
  %v6361 = vld [vmem:[%s3 + $0x30] sm:$0xf]
  %v6362 = vld [vmem:[%s3 + $0x34] sm:$0xf]
  %v6363 = vld [vmem:[%s3 + $0x38] sm:$0xf]
  %v6364 = vld [vmem:[%s3 + $0x3c] sm:$0xf]
  %v6365 = vld [vmem:[%s3 + $0x40] sm:$0xf]
  %v6366 = vld [vmem:[%s3 + $0x44] sm:$0xf]
  %v6367 = vld [vmem:[%s3 + $0x48] sm:$0xf]
  %v6368 = vld [vmem:[%s3 + $0x4c] sm:$0xf]
  %v6369 = vld [vmem:[%s3 + $0x50] sm:$0xf]
  %v6370 = vld [vmem:[%s3 + $0x54] sm:$0xf]
  %v6371 = vld [vmem:[%s3 + $0x58] sm:$0xf]
  %v6372 = vld [vmem:[%s3 + $0x5c] sm:$0xf]
  %v6373 = vld [vmem:[%s3 + $0x60] sm:$0xf]
  %v6374 = vld [vmem:[%s3 + $0x64] sm:$0xf]
  %v6375 = vld [vmem:[%s3 + $0x68] sm:$0xf]
  %v6376 = vld [vmem:[%s3 + $0x6c] sm:$0xf]
  %v6377 = vld [vmem:[%s3 + $0x70] sm:$0xf]
  %v6378 = vld [vmem:[%s3 + $0x74] sm:$0xf]
  %v6379 = vld [vmem:[%s3 + $0x78] sm:$0xf]
  %v6380 = vld [vmem:[%s3 + $0x7c] sm:$0xf]
  %v6381 = vld [vmem:[%s9] sm:$0x1]
  %v6414 = vunpack.c.l.b16 %v6349
  %v6415 = vunpack.c.l.b16 %v6350
  %v6416 = vunpack.c.l.b16 %v6351
  %v6417 = vunpack.c.l.b16 %v6352
  %v6418 = vunpack.c.l.b16 %v6353
  %v6419 = vunpack.c.l.b16 %v6354
  %v6420 = vunpack.c.l.b16 %v6355
  %v6421 = vunpack.c.l.b16 %v6356
  %v6422 = vunpack.c.l.b16 %v6357
  %v6423 = vunpack.c.l.b16 %v6358
  %v6424 = vunpack.c.l.b16 %v6359
  %v6425 = vunpack.c.l.b16 %v6360
  %v6426 = vunpack.c.l.b16 %v6361
  %v6427 = vunpack.c.l.b16 %v6362
  %v6428 = vunpack.c.l.b16 %v6363
  %v6429 = vunpack.c.l.b16 %v6364
  %v6430 = vunpack.c.l.b16 %v6365
  %v6431 = vunpack.c.l.b16 %v6366
  %v6432 = vunpack.c.l.b16 %v6367
  %v6433 = vunpack.c.l.b16 %v6368
  %v6434 = vunpack.c.l.b16 %v6369
  %v6435 = vunpack.c.l.b16 %v6370
  %v6436 = vunpack.c.l.b16 %v6371
  %v6437 = vunpack.c.l.b16 %v6372
  %v6438 = vunpack.c.l.b16 %v6373
  %v6439 = vunpack.c.l.b16 %v6374
  %v6440 = vunpack.c.l.b16 %v6375
  %v6441 = vunpack.c.l.b16 %v6376
  %v6442 = vunpack.c.l.b16 %v6377
  %v6443 = vunpack.c.l.b16 %v6378
  %v6444 = vunpack.c.l.b16 %v6379
  %v6445 = vunpack.c.l.b16 %v6380
  %v6446 = vpack.c.b16 %v6415, %v6414
  %v6447 = vpack.c.b16 %v6417, %v6416
  %v6448 = vpack.c.b16 %v6419, %v6418
  %v6449 = vpack.c.b16 %v6421, %v6420
  %v6450 = vpack.c.b16 %v6423, %v6422
  %v6451 = vpack.c.b16 %v6425, %v6424
  %v6452 = vpack.c.b16 %v6427, %v6426
  %v6453 = vpack.c.b16 %v6429, %v6428
  %v6454 = vpack.c.b16 %v6431, %v6430
  %v6455 = vpack.c.b16 %v6433, %v6432
  %v6456 = vpack.c.b16 %v6435, %v6434
  %v6457 = vpack.c.b16 %v6437, %v6436
  %v6458 = vpack.c.b16 %v6439, %v6438
  %v6459 = vpack.c.b16 %v6441, %v6440
  %v6460 = vpack.c.b16 %v6443, %v6442
  %v6461 = vpack.c.b16 %v6445, %v6444
  %6478 = vmatprep.subr.bf16.mxu0 0
  %6479 = vmatpush1.bf16.msra.mxu0 %v6446
  %6480 = vmatprep.subr.bf16.mxu0 0
  %6481 = vmatpush1.bf16.msra.mxu0 %v6447
  %6482 = vmatprep.subr.bf16.mxu0 0
  %6483 = vmatpush1.bf16.msra.mxu0 %v6448
  %6484 = vmatprep.subr.bf16.mxu0 0
  %6485 = vmatpush1.bf16.msra.mxu0 %v6449
  %6486 = vmatprep.subr.bf16.mxu0 0
  %6487 = vmatpush1.bf16.msra.mxu0 %v6450
  %6488 = vmatprep.subr.bf16.mxu0 0
  %6489 = vmatpush1.bf16.msra.mxu0 %v6451
  %6490 = vmatprep.subr.bf16.mxu0 0
  %6491 = vmatpush1.bf16.msra.mxu0 %v6452
  %6492 = vmatprep.subr.bf16.mxu0 0
  %6493 = vmatpush1.bf16.msra.mxu0 %v6453
  %6494 = vmatprep.subr.bf16.mxu0 0
  %6495 = vmatpush1.bf16.msra.mxu0 %v6454
  %6496 = vmatprep.subr.bf16.mxu0 0
  %6497 = vmatpush1.bf16.msra.mxu0 %v6455
  %6498 = vmatprep.subr.bf16.mxu0 0
  %6499 = vmatpush1.bf16.msra.mxu0 %v6456
  %6500 = vmatprep.subr.bf16.mxu0 0
  %6501 = vmatpush1.bf16.msra.mxu0 %v6457
  %6502 = vmatprep.subr.bf16.mxu0 0
  %6503 = vmatpush1.bf16.msra.mxu0 %v6458
  %6504 = vmatprep.subr.bf16.mxu0 0
  %6505 = vmatpush1.bf16.msra.mxu0 %v6459
  %6506 = vmatprep.subr.bf16.mxu0 0
  %6507 = vmatpush1.bf16.msra.mxu0 %v6460
  %6508 = vmatprep.subr.bf16.mxu0 0
  %6509 = vmatpush1.bf16.msra.mxu0 %v6461
  %6510 = vmatprep.mubr.bf16.mxu0 %v6348
  %6511 = vmatmul.mubr.bf16.gmra.mrb[0].mxu0 %v6347
  %v6512 = vpop.f32.mrb[0].mxu0
  %v6513 = vadd.f32 %v6381, %v6512
  %v6514 = vpop.f32.mrb[0].mxu0
  %v6515 = vpop.f32.mrb[0].mxu0
  %v6516 = vpop.f32.mrb[0].mxu0
  %6517 = vdwg.mxu0
  %vm6518 = vcmp.ge.f32.partialorder %v6513, 0.0
  %v6519 = vmul.f32 %v6513, 0.01
  %v6520 = vsel %vm6518, %v6513, %v6519
  %v6521 = vpack.c.bf16 %v6520, %v6520
  %v6522 = vld [vmem:[%s4] sm:$0xf]
  %v6523 = vld [vmem:[%s4 + $0x4] sm:$0xf]
  %v6524 = vld [vmem:[%s4 + $0x8] sm:$0xf]
  %v6525 = vld [vmem:[%s4 + $0xc] sm:$0xf]
  %v6526 = vld [vmem:[%s4 + $0x10] sm:$0xf]
  %v6527 = vld [vmem:[%s4 + $0x14] sm:$0xf]
  %v6528 = vld [vmem:[%s4 + $0x18] sm:$0xf]
  %v6529 = vld [vmem:[%s4 + $0x1c] sm:$0xf]
  %v6530 = vld [vmem:[%s4 + $0x20] sm:$0xf]
  %v6531 = vld [vmem:[%s4 + $0x24] sm:$0xf]
  %v6532 = vld [vmem:[%s4 + $0x28] sm:$0xf]
  %v6533 = vld [vmem:[%s4 + $0x2c] sm:$0xf]
  %v6534 = vld [vmem:[%s4 + $0x30] sm:$0xf]
  %v6535 = vld [vmem:[%s4 + $0x34] sm:$0xf]
  %v6536 = vld [vmem:[%s4 + $0x38] sm:$0xf]
  %v6537 = vld [vmem:[%s4 + $0x3c] sm:$0xf]
  %v6538 = vld [vmem:[%s10] sm:$0x1]
  %v6555 = vunpack.c.l.b16 %v6522
  %v6556 = vunpack.c.l.b16 %v6523
  %v6557 = vunpack.c.l.b16 %v6524
  %v6558 = vunpack.c.l.b16 %v6525
  %v6559 = vunpack.c.l.b16 %v6526
  %v6560 = vunpack.c.l.b16 %v6527
  %v6561 = vunpack.c.l.b16 %v6528
  %v6562 = vunpack.c.l.b16 %v6529
  %v6563 = vunpack.c.l.b16 %v6530
  %v6564 = vunpack.c.l.b16 %v6531
  %v6565 = vunpack.c.l.b16 %v6532
  %v6566 = vunpack.c.l.b16 %v6533
  %v6567 = vunpack.c.l.b16 %v6534
  %v6568 = vunpack.c.l.b16 %v6535
  %v6569 = vunpack.c.l.b16 %v6536
  %v6570 = vunpack.c.l.b16 %v6537
  %v6571 = vpack.c.b16 %v6556, %v6555
  %v6572 = vpack.c.b16 %v6558, %v6557
  %v6573 = vpack.c.b16 %v6560, %v6559
  %v6574 = vpack.c.b16 %v6562, %v6561
  %v6575 = vpack.c.b16 %v6564, %v6563
  %v6576 = vpack.c.b16 %v6566, %v6565
  %v6577 = vpack.c.b16 %v6568, %v6567
  %v6578 = vpack.c.b16 %v6570, %v6569
  %6587 = vmatprep.subr.bf16.mxu0 0
  %6588 = vmatpush1.bf16.msra.mxu0 %v6571
  %6589 = vmatprep.subr.bf16.mxu0 0
  %6590 = vmatpush1.bf16.msra.mxu0 %v6572
  %6591 = vmatprep.subr.bf16.mxu0 0
  %6592 = vmatpush1.bf16.msra.mxu0 %v6573
  %6593 = vmatprep.subr.bf16.mxu0 0
  %6594 = vmatpush1.bf16.msra.mxu0 %v6574
  %6595 = vmatprep.subr.bf16.mxu0 0
  %6596 = vmatpush1.bf16.msra.mxu0 %v6575
  %6597 = vmatprep.subr.bf16.mxu0 0
  %6598 = vmatpush1.bf16.msra.mxu0 %v6576
  %6599 = vmatprep.subr.bf16.mxu0 0
  %6600 = vmatpush1.bf16.msra.mxu0 %v6577
  %6601 = vmatprep.subr.bf16.mxu0 0
  %6602 = vmatpush1.bf16.msra.mxu0 %v6578
  %6603 = vmatprep.subr.bf16.mxu0 0
  %6604 = vmatpush1.bf16.msra.mxu0 0
  %6605 = vmatprep.subr.bf16.mxu0 0
  %6606 = vmatpush1.bf16.msra.mxu0 0
  %6607 = vmatprep.subr.bf16.mxu0 0
  %6608 = vmatpush1.bf16.msra.mxu0 0
  %6609 = vmatprep.subr.bf16.mxu0 0
  %6610 = vmatpush1.bf16.msra.mxu0 0
  %6611 = vmatprep.subr.bf16.mxu0 0
  %6612 = vmatpush1.bf16.msra.mxu0 0
  %6613 = vmatprep.subr.bf16.mxu0 0
  %6614 = vmatpush1.bf16.msra.mxu0 0
  %6615 = vmatprep.subr.bf16.mxu0 0
  %6616 = vmatpush1.bf16.msra.mxu0 0
  %6617 = vmatprep.subr.bf16.mxu0 0
  %6618 = vmatpush1.bf16.msra.mxu0 0
  %6619 = vmatprep.mubr.bf16.mxu0 0
  %6620 = vmatmul.mubr.bf16.gmra.mrb[0].mxu0 %v6521
  %v6621 = vpop.f32.mrb[0].mxu0
  %v6622 = vadd.f32 %v6538, %v6621
  %v6623 = vpop.f32.mrb[0].mxu0
  %v6624 = vpop.f32.mrb[0].mxu0
  %v6625 = vpop.f32.mrb[0].mxu0
  %6626 = vdwg.mxu0
  %vm6627 = vcmp.ge.f32.partialorder %v6622, 0.0
  %v6628 = vmul.f32 %v6622, 0.01
  %v6629 = vsel %vm6627, %v6622, %v6628
  %v6630 = vpack.c.bf16 %v6629, %v6629
  %v6631 = vld [vmem:[%s5] sm:$0xf]
  %v6632 = vld [vmem:[%s5 + $0x4] sm:$0xf]
  %v6633 = vld [vmem:[%s5 + $0x8] sm:$0xf]
  %v6634 = vld [vmem:[%s5 + $0xc] sm:$0xf]
  %v6635 = vld [vmem:[%s5 + $0x10] sm:$0xf]
  %v6636 = vld [vmem:[%s5 + $0x14] sm:$0xf]
  %v6637 = vld [vmem:[%s5 + $0x18] sm:$0xf]
  %v6638 = vld [vmem:[%s5 + $0x1c] sm:$0xf]
  %v6639 = vld [vmem:[%s5 + $0x20] sm:$0xf]
  %v6640 = vld [vmem:[%s5 + $0x24] sm:$0xf]
  %v6641 = vld [vmem:[%s5 + $0x28] sm:$0xf]
  %v6642 = vld [vmem:[%s5 + $0x2c] sm:$0xf]
  %v6643 = vld [vmem:[%s5 + $0x30] sm:$0xf]
  %v6644 = vld [vmem:[%s5 + $0x34] sm:$0xf]
  %v6645 = vld [vmem:[%s5 + $0x38] sm:$0xf]
  %v6646 = vld [vmem:[%s5 + $0x3c] sm:$0xf]
  %v6647 = vld [vmem:[%s11] sm:$0x1]
  %v6664 = vunpack.c.l.b16 %v6631
  %v6665 = vunpack.c.l.b16 %v6632
  %v6666 = vunpack.c.l.b16 %v6633
  %v6667 = vunpack.c.l.b16 %v6634
  %v6668 = vunpack.c.l.b16 %v6635
  %v6669 = vunpack.c.l.b16 %v6636
  %v6670 = vunpack.c.l.b16 %v6637
  %v6671 = vunpack.c.l.b16 %v6638
  %v6672 = vunpack.c.l.b16 %v6639
  %v6673 = vunpack.c.l.b16 %v6640
  %v6674 = vunpack.c.l.b16 %v6641
  %v6675 = vunpack.c.l.b16 %v6642
  %v6676 = vunpack.c.l.b16 %v6643
  %v6677 = vunpack.c.l.b16 %v6644
  %v6678 = vunpack.c.l.b16 %v6645
  %v6679 = vunpack.c.l.b16 %v6646
  %v6680 = vpack.c.b16 %v6665, %v6664
  %v6681 = vpack.c.b16 %v6667, %v6666
  %v6682 = vpack.c.b16 %v6669, %v6668
  %v6683 = vpack.c.b16 %v6671, %v6670
  %v6684 = vpack.c.b16 %v6673, %v6672
  %v6685 = vpack.c.b16 %v6675, %v6674
  %v6686 = vpack.c.b16 %v6677, %v6676
  %v6687 = vpack.c.b16 %v6679, %v6678
  %6696 = vmatprep.subr.bf16.mxu0 0
  %6697 = vmatpush1.bf16.msra.mxu0 %v6680
  %6698 = vmatprep.subr.bf16.mxu0 0
  %6699 = vmatpush1.bf16.msra.mxu0 %v6681
  %6700 = vmatprep.subr.bf16.mxu0 0
  %6701 = vmatpush1.bf16.msra.mxu0 %v6682
  %6702 = vmatprep.subr.bf16.mxu0 0
  %6703 = vmatpush1.bf16.msra.mxu0 %v6683
  %6704 = vmatprep.subr.bf16.mxu0 0
  %6705 = vmatpush1.bf16.msra.mxu0 %v6684
  %6706 = vmatprep.subr.bf16.mxu0 0
  %6707 = vmatpush1.bf16.msra.mxu0 %v6685
  %6708 = vmatprep.subr.bf16.mxu0 0
  %6709 = vmatpush1.bf16.msra.mxu0 %v6686
  %6710 = vmatprep.subr.bf16.mxu0 0
  %6711 = vmatpush1.bf16.msra.mxu0 %v6687
  %6712 = vmatprep.subr.bf16.mxu0 0
  %6713 = vmatpush1.bf16.msra.mxu0 0
  %6714 = vmatprep.subr.bf16.mxu0 0
  %6715 = vmatpush1.bf16.msra.mxu0 0
  %6716 = vmatprep.subr.bf16.mxu0 0
  %6717 = vmatpush1.bf16.msra.mxu0 0
  %6718 = vmatprep.subr.bf16.mxu0 0
  %6719 = vmatpush1.bf16.msra.mxu0 0
  %6720 = vmatprep.subr.bf16.mxu0 0
  %6721 = vmatpush1.bf16.msra.mxu0 0
  %6722 = vmatprep.subr.bf16.mxu0 0
  %6723 = vmatpush1.bf16.msra.mxu0 0
  %6724 = vmatprep.subr.bf16.mxu0 0
  %6725 = vmatpush1.bf16.msra.mxu0 0
  %6726 = vmatprep.subr.bf16.mxu0 0
  %6727 = vmatpush1.bf16.msra.mxu0 0
  %6728 = vmatprep.mubr.bf16.mxu0 0
  %6729 = vmatmul.mubr.bf16.gmra.mrb[0].mxu0 %v6630
  %v6730 = vpop.f32.mrb[0].mxu0
  %v6731 = vadd.f32 %v6647, %v6730
  %v6732 = vpop.f32.mrb[0].mxu0
  %v6733 = vpop.f32.mrb[0].mxu0
  %v6734 = vpop.f32.mrb[0].mxu0
  %6735 = vdwg.mxu0
  %vm6736 = vcmp.ge.f32.partialorder %v6731, 0.0
  %v6737 = vmul.f32 %v6731, 0.01
  %v6738 = vsel %vm6736, %v6731, %v6737
  %v6739 = vpack.c.bf16 %v6738, %v6738
  %v6740 = vld [vmem:[%s6] sm:$0xf]
  %v6741 = vld [vmem:[%s6 + $0x4] sm:$0xf]
  %v6742 = vld [vmem:[%s6 + $0x8] sm:$0xf]
  %v6743 = vld [vmem:[%s6 + $0xc] sm:$0xf]
  %v6744 = vld [vmem:[%s6 + $0x10] sm:$0xf]
  %v6745 = vld [vmem:[%s6 + $0x14] sm:$0xf]
  %v6746 = vld [vmem:[%s6 + $0x18] sm:$0xf]
  %v6747 = vld [vmem:[%s6 + $0x1c] sm:$0xf]
  %v6748 = vld [vmem:[%s6 + $0x20] sm:$0xf]
  %v6749 = vld [vmem:[%s6 + $0x24] sm:$0xf]
  %v6750 = vld [vmem:[%s6 + $0x28] sm:$0xf]
  %v6751 = vld [vmem:[%s6 + $0x2c] sm:$0xf]
  %v6752 = vld [vmem:[%s6 + $0x30] sm:$0xf]
  %v6753 = vld [vmem:[%s6 + $0x34] sm:$0xf]
  %v6754 = vld [vmem:[%s6 + $0x38] sm:$0xf]
  %v6755 = vld [vmem:[%s6 + $0x3c] sm:$0xf]
  %v6756 = vld [vmem:[%s12] sm:$0x1]
  %v6773 = vunpack.c.l.b16 %v6740
  %v6774 = vunpack.c.l.b16 %v6741
  %v6775 = vunpack.c.l.b16 %v6742
  %v6776 = vunpack.c.l.b16 %v6743
  %v6777 = vunpack.c.l.b16 %v6744
  %v6778 = vunpack.c.l.b16 %v6745
  %v6779 = vunpack.c.l.b16 %v6746
  %v6780 = vunpack.c.l.b16 %v6747
  %v6781 = vunpack.c.l.b16 %v6748
  %v6782 = vunpack.c.l.b16 %v6749
  %v6783 = vunpack.c.l.b16 %v6750
  %v6784 = vunpack.c.l.b16 %v6751
  %v6785 = vunpack.c.l.b16 %v6752
  %v6786 = vunpack.c.l.b16 %v6753
  %v6787 = vunpack.c.l.b16 %v6754
  %v6788 = vunpack.c.l.b16 %v6755
  %v6789 = vpack.c.b16 %v6774, %v6773
  %v6790 = vpack.c.b16 %v6776, %v6775
  %v6791 = vpack.c.b16 %v6778, %v6777
  %v6792 = vpack.c.b16 %v6780, %v6779
  %v6793 = vpack.c.b16 %v6782, %v6781
  %v6794 = vpack.c.b16 %v6784, %v6783
  %v6795 = vpack.c.b16 %v6786, %v6785
  %v6796 = vpack.c.b16 %v6788, %v6787
  %6805 = vmatprep.subr.bf16.mxu0 0
  %6806 = vmatpush1.bf16.msra.mxu0 %v6789
  %6807 = vmatprep.subr.bf16.mxu0 0
  %6808 = vmatpush1.bf16.msra.mxu0 %v6790
  %6809 = vmatprep.subr.bf16.mxu0 0
  %6810 = vmatpush1.bf16.msra.mxu0 %v6791
  %6811 = vmatprep.subr.bf16.mxu0 0
  %6812 = vmatpush1.bf16.msra.mxu0 %v6792
  %6813 = vmatprep.subr.bf16.mxu0 0
  %6814 = vmatpush1.bf16.msra.mxu0 %v6793
  %6815 = vmatprep.subr.bf16.mxu0 0
  %6816 = vmatpush1.bf16.msra.mxu0 %v6794
  %6817 = vmatprep.subr.bf16.mxu0 0
  %6818 = vmatpush1.bf16.msra.mxu0 %v6795
  %6819 = vmatprep.subr.bf16.mxu0 0
  %6820 = vmatpush1.bf16.msra.mxu0 %v6796
  %6821 = vmatprep.subr.bf16.mxu0 0
  %6822 = vmatpush1.bf16.msra.mxu0 0
  %6823 = vmatprep.subr.bf16.mxu0 0
  %6824 = vmatpush1.bf16.msra.mxu0 0
  %6825 = vmatprep.subr.bf16.mxu0 0
  %6826 = vmatpush1.bf16.msra.mxu0 0
  %6827 = vmatprep.subr.bf16.mxu0 0
  %6828 = vmatpush1.bf16.msra.mxu0 0
  %6829 = vmatprep.subr.bf16.mxu0 0
  %6830 = vmatpush1.bf16.msra.mxu0 0
  %6831 = vmatprep.subr.bf16.mxu0 0
  %6832 = vmatpush1.bf16.msra.mxu0 0
  %6833 = vmatprep.subr.bf16.mxu0 0
  %6834 = vmatpush1.bf16.msra.mxu0 0
  %6835 = vmatprep.subr.bf16.mxu0 0
  %6836 = vmatpush1.bf16.msra.mxu0 0
  %6837 = vmatprep.mubr.bf16.mxu0 0
  %6838 = vmatmul.mubr.bf16.gmra.mrb[0].mxu0 %v6739
  %v6839 = vpop.f32.mrb[0].mxu0
  %v6840 = vadd.f32 %v6756, %v6839
  %v6841 = vpop.f32.mrb[0].mxu0
  %v6842 = vpop.f32.mrb[0].mxu0
  %v6843 = vpop.f32.mrb[0].mxu0
  %6844 = vdwg.mxu0
  %6845 = vst [vmem:[%s13] sm:$0x1] %v6840
  // Predicated region
  $region54: #{simple_net_forward.7} parent=0 // pred_check
    _
  $region55: #{simple_net_forward.7} parent=0 // pred_check_branch
    %6847 = sbr.rel (0) target = $region57
  $region56: #{simple_net_forward.7} parent=0 // pred_region
    _
  $region57: #{simple_net_forward.7} parent=0 // pred_fallthru
    _
  // Predicated region
  $region58: #{simple_net_forward.7} parent=0 // pred_check
    _
  $region59: #{simple_net_forward.7} parent=0 // pred_check_branch
    %6849 = sbr.rel (0) target = $region61
  $region60: #{simple_net_forward.7} parent=0 // pred_region
    _
  $region61: #{simple_net_forward.7} parent=0 // pred_fallthru
    _

</llo_original>
